<compile_context>
chip_gen: v7x
topology: tpu7x:2x2x1
jax: 0.10.0
libtpu: 0.0.40
codegen_flags: <defaults>
</compile_context>

<pallas_src>
import jax
import jax.numpy as jnp
import numpy as np
from jax.experimental import pallas as pl
from jax.experimental.pallas import tpu as pltpu

# MXU-native operand dtype; accumulation stays f32 via preferred_element_type.
MXU_DTYPE = jnp.bfloat16


def _leaky_relu(x, slope=0.2):
    return jnp.where(x > 0, x, slope * x)


def _instance_norm(x, eps=1e-5):
    # x: (B, L, C); InstanceNorm1d (affine=False): normalize over L per (sample, channel).
    # One-pass: mean and E[x^2] in a single sweep; clamp var at 0 (cancellation).
    mean = jnp.mean(x, axis=1, keepdims=True)
    msq = jnp.mean(jnp.square(x), axis=1, keepdims=True)
    var = jnp.maximum(msq - jnp.square(mean), 0.0)
    return (x - mean) * jax.lax.rsqrt(var + eps)


def _conv_s2_k5(x, w_ref, b_ref):
    """Conv1d(k=5, s=2, p=2): (Bt, L, C_in) -> (Bt, L//2, C_out), f32 output.

    Pad + even/odd split is done once; each tap is a static slice of the
    even/odd slabs.  If C_in is 128-lane aligned the 5 taps are concatenated
    into one (Bt*L/2, 5*C_in) slab -> single fused-K matmul; otherwise the
    lane-axis concat would be cross-lane shuffle work, so we issue 5
    accumulated K=C_in dots against row slices of the fused weight.
    """
    bt, L, c = x.shape
    l_out = L // 2
    c_out = w_ref.shape[-1]
    xd = x.astype(MXU_DTYPE)
    z2 = jnp.zeros((bt, 2, c), xd.dtype)
    xp = jnp.concatenate([z2, xd, z2], axis=1)            # (Bt, L+4, C), padded
    xr = xp.reshape(bt, l_out + 2, 2, c)
    ev = xr[:, :, 0, :]                                    # padded positions 0,2,4,...
    od = xr[:, :, 1, :]                                    # padded positions 1,3,5,...
    # output position i reads padded positions 2i+k for taps k = 0..4
    taps = (ev[:, 0:l_out], od[:, 0:l_out],
            ev[:, 1:l_out + 1], od[:, 1:l_out + 1],
            ev[:, 2:l_out + 2])
    if c % 128 == 0:
        slab = jnp.concatenate(taps, axis=-1).reshape(bt * l_out, 5 * c)
        y = jnp.dot(slab, w_ref[...], preferred_element_type=jnp.float32)
    else:
        y = None
        for k, tap in enumerate(taps):
            m = tap.reshape(bt * l_out, c)
            d = jnp.dot(m, w_ref[k * c:(k + 1) * c, :],
                        preferred_element_type=jnp.float32)
            y = d if y is None else y + d
    return (y + b_ref[...]).reshape(bt, l_out, c_out)


def discriminator_kernel(x_ref, w1_ref, b1_ref, w2_ref, b2_ref, w3_ref, b3_ref,
                         fw1_ref, fb1_ref, fw2_ref, fb2_ref, o_ref):
    x = x_ref[...]                                                   # (Bt, L, C) bf16
    h = _leaky_relu(_conv_s2_k5(x, w1_ref, b1_ref))                  # (Bt, L/2, h)
    h = _leaky_relu(_instance_norm(_conv_s2_k5(h, w2_ref, b2_ref)))  # (Bt, L/4, 2h)
    h = _leaky_relu(_instance_norm(_conv_s2_k5(h, w3_ref, b3_ref)))  # (Bt, L/8, 4h)
    pooled = jnp.mean(h, axis=1)                                     # (Bt, 4h) f32
    z = jnp.dot(pooled.astype(MXU_DTYPE), fw1_ref[...],
                preferred_element_type=jnp.float32) + fb1_ref[...]
    z = jnp.maximum(z, 0.0)                                          # ReLU
    z = jnp.dot(z.astype(MXU_DTYPE), fw2_ref[...],
                preferred_element_type=jnp.float32) + fb2_ref[...]   # (Bt, 1)
    # Sigmoid: exp and reciprocal both route to the (otherwise idle) EUP slot.
    o_ref[...] = pl.reciprocal(1.0 + jnp.exp(-z), approx=True)


def _device_kind():
    try:
        return jax.devices()[0].device_kind.lower()
    except Exception:
        return ""


def _vmem_estimate_bytes(b_tile, L, C, hdim):
    """Rough VMEM footprint: double-buffered input block + single-buffered
    weights + the largest per-layer tap/output slabs (x2 slack)."""
    bf = jnp.dtype(MXU_DTYPE).itemsize
    f4 = 4
    l1, l2, l3 = L // 2, L // 4, L // 8
    w_bytes = (5 * C * hdim + 10 * hdim * hdim + 40 * hdim * hdim
               + 4 * hdim * hdim + hdim) * bf
    b_bytes = (8 * hdim + 1) * f4
    in_blk = b_tile * L * C * bf
    acts = b_tile * (l1 * (5 * C * bf + hdim * f4)
                     + l2 * (5 * hdim * bf + 2 * hdim * f4)
                     + l3 * (10 * hdim * bf + 4 * hdim * f4))
    return 2 * in_blk + w_bytes + b_bytes + 2 * acts


def discriminator_forward(x_ncl, params, *, b_tile=None):
    """x_ncl: (B, seq_dim, seq_len) float32 (PyTorch NCL).  Returns (B, 1) float32."""
    B, C, L = x_ncl.shape
    # Three stride-2 layers with reshape-based even/odd splits require L % 8 == 0.
    assert L % 8 == 0, "seq_len must be a multiple of 8"
    hdim = params["w1"].shape[0]
    l1 = L // 2

    dk = _device_kind()
    is_v7 = "v7" in dk
    # v7x (and v4 megacore) shard "parallel" grid axes across 2 TensorCores.
    n_tc = 2 if (is_v7 or "v4" in dk) else 1
    # v7x has 64 MiB physical VMEM; v5e/v6e have 128 MiB.  Leave headroom.
    vmem_cap = (44 << 20) if is_v7 else (96 << 20)

    if b_tile is None:
        # Single-TC chips: fewest / fattest steps (grid is a serial loop,
        # ~0.35us per-step overhead).  Target ~512 rows in the layer-1 matmul.
        b_tile = max(1, min(B, 512 // max(1, l1)))
        while b_tile > 1 and _vmem_estimate_bytes(b_tile, L, C, hdim) > vmem_cap - (8 << 20):
            b_tile = max(1, b_tile // 2)
        if n_tc > 1:
            # Keep the step count a multiple of the TC count (balanced split).
            g = max(pl.cdiv(B, b_tile), n_tc)
            g = n_tc * pl.cdiv(g, n_tc)
            b_tile = pl.cdiv(B, g)
    g = pl.cdiv(B, b_tile)
    b_pad = g * b_tile

    # NCL -> NLC (channels on the lane axis) + bf16 cast.  No HBM im2col: the
    # 2.5x tap expansion happens in-kernel from the raw (b_tile, L, C) block.
    x = jnp.transpose(x_ncl, (0, 2, 1)).astype(MXU_DTYPE)
    if b_pad != B:
        x = jnp.concatenate([x, jnp.zeros((b_pad - B, L, C), x.dtype)], axis=0)

    # Repack weights (glue, plain JAX): conv (O, I, K) -> fused im2col (K*I, O).
    def conv_w(w):
        o, i, k = w.shape
        return jnp.transpose(w, (2, 1, 0)).reshape(k * i, o).astype(MXU_DTYPE)

    w1 = conv_w(params["w1"]); b1 = params["b1"][None, :].astype(jnp.float32)
    w2 = conv_w(params["w2"]); b2 = params["b2"][None, :].astype(jnp.float32)
    w3 = conv_w(params["w3"]); b3 = params["b3"][None, :].astype(jnp.float32)
    fw1 = params["fc1_w"].T.astype(MXU_DTYPE)
    fb1 = params["fc1_b"][None, :].astype(jnp.float32)
    fw2 = params["fc2_w"].T.astype(MXU_DTYPE)
    fb2 = params["fc2_b"][None, :].astype(jnp.float32)
    consts = (w1, b1, w2, b2, w3, b3, fw1, fb1, fw2, fb2)

    vmem_limit = int(min(max(_vmem_estimate_bytes(b_tile, L, C, hdim) + (8 << 20),
                             16 << 20), vmem_cap))

    def build(single_buffer_weights):
        def const_spec(a):
            n = a.ndim
            if single_buffer_weights and hasattr(pl, "Buffered"):
                # Constant across the grid: no need for a second pipeline buffer.
                return pl.BlockSpec(a.shape, lambda b, n=n: (0,) * n,
                                    pipeline_mode=pl.Buffered(1))
            return pl.BlockSpec(a.shape, lambda b, n=n: (0,) * n)

        return pl.pallas_call(
            discriminator_kernel,
            out_shape=jax.ShapeDtypeStruct((b_pad, 1), jnp.float32),
            grid=(g,),
            in_specs=[pl.BlockSpec((b_tile, L, C), lambda b: (b, 0, 0))]
                     + [const_spec(a) for a in consts],
            out_specs=pl.BlockSpec((b_tile, 1), lambda b: (b, 0)),
            compiler_params=pltpu.CompilerParams(
                dimension_semantics=("parallel",),
                vmem_limit_bytes=vmem_limit),
        )

    try:
        out = build(True)(x, *consts)
    except Exception:
        # Fallback for jax versions that reject pipeline_mode on pallas_call specs.
        out = build(False)(x, *consts)
    return out[:B]


def make_params(seq_dim, hidden_dim, key):
    ks = jax.random.split(key, 10)
    s = 0.1
    return {
        "w1": s * jax.random.normal(ks[0], (hidden_dim, seq_dim, 5), jnp.float32),
        "b1": s * jax.random.normal(ks[1], (hidden_dim,), jnp.float32),
        "w2": s * jax.random.normal(ks[2], (2 * hidden_dim, hidden_dim, 5), jnp.float32),
        "b2": s * jax.random.normal(ks[3], (2 * hidden_dim,), jnp.float32),
        "w3": s * jax.random.normal(ks[4], (4 * hidden_dim, 2 * hidden_dim, 5), jnp.float32),
        "b3": s * jax.random.normal(ks[5], (4 * hidden_dim,), jnp.float32),
        "fc1_w": s * jax.random.normal(ks[6], (hidden_dim, 4 * hidden_dim), jnp.float32),
        "fc1_b": s * jax.random.normal(ks[7], (hidden_dim,), jnp.float32),
        "fc2_w": s * jax.random.normal(ks[8], (1, hidden_dim), jnp.float32),
        "fc2_b": s * jax.random.normal(ks[9], (1,), jnp.float32),
    }


def ref_forward(x, p):
    """Pure-JAX (XLA, f32) reference of the PyTorch forward, NCL layout."""
    def conv(x, w, b):
        y = jax.lax.conv_general_dilated(
            x, w, window_strides=(2,), padding=[(2, 2)],
            dimension_numbers=("NCH", "OIH", "NCH"))
        return y + b[None, :, None]

    def inorm(x, eps=1e-5):
        m = x.mean(axis=2, keepdims=True)
        v = ((x - m) ** 2).mean(axis=2, keepdims=True)
        return (x - m) / jnp.sqrt(v + eps)

    lrelu = lambda t: jnp.where(t > 0, t, 0.2 * t)
    h = lrelu(conv(x, p["w1"], p["b1"]))
    h = lrelu(inorm(conv(h, p["w2"], p["b2"])))
    h = lrelu(inorm(conv(h, p["w3"], p["b3"])))
    h = h.mean(axis=2)                                   # AdaptiveAvgPool1d(1) + flatten
    z = jnp.maximum(h @ p["fc1_w"].T + p["fc1_b"], 0.0)
    z = z @ p["fc2_w"].T + p["fc2_b"]
    return jax.nn.sigmoid(z)


if __name__ == "__main__":
    # Small shapes consistent with the module: batch=8, seq_dim=4, seq_len=16, hidden=32.
    B, seq_dim, seq_len, hidden = 8, 4, 16, 32
    key = jax.random.PRNGKey(0)
    k_x, k_p = jax.random.split(key)
    x = jax.random.normal(k_x, (B, seq_dim, seq_len), jnp.float32)   # NCL, like PyTorch
    params = make_params(seq_dim, hidden, k_p)

    ref = jax.block_until_ready(ref_forward(x, params))

    # Default per-generation tiling.
    out = jax.block_until_ready(discriminator_forward(x, params))
    assert out.shape == (B, 1), out.shape
    # bf16 MXU operands + approx-reciprocal sigmoid -> looser tolerance vs f32 ref.
    assert np.allclose(np.asarray(out), np.asarray(ref), rtol=5e-2, atol=2e-2), (
        np.asarray(out), np.asarray(ref))

    # Also exercise the multi-step grid with batch padding (b_pad > B).
    out2 = jax.block_until_ready(discriminator_forward(x, params, b_tile=3))
    assert np.allclose(np.asarray(out2), np.asarray(ref), rtol=5e-2, atol=2e-2), (
        np.asarray(out2), np.asarray(ref))

    print("KERNEL_OK")
</pallas_src>

<mosaic_0001>
module attributes {stable_mosaic.version = 11 : i64} {
  func.func @discriminator_kernel(%arg0: i32, %arg1: memref<8x16x4xbf16, #tpu.memory_space<vmem>>, %arg2: memref<20x32xbf16, #tpu.memory_space<vmem>>, %arg3: memref<1x32xf32, #tpu.memory_space<vmem>>, %arg4: memref<160x64xbf16, #tpu.memory_space<vmem>>, %arg5: memref<1x64xf32, #tpu.memory_space<vmem>>, %arg6: memref<320x128xbf16, #tpu.memory_space<vmem>>, %arg7: memref<1x128xf32, #tpu.memory_space<vmem>>, %arg8: memref<128x32xbf16, #tpu.memory_space<vmem>>, %arg9: memref<1x32xf32, #tpu.memory_space<vmem>>, %arg10: memref<32x1xbf16, #tpu.memory_space<vmem>>, %arg11: memref<1x1xf32, #tpu.memory_space<vmem>>, %arg12: memref<8x1xf32, #tpu.memory_space<vmem>>) attributes {dimension_semantics = [#tpu.dimension_semantics<parallel>], iteration_bounds = array<i64: 1>, scalar_prefetch = 0 : i64, scratch_operands = 0 : i64, tpu.core_type = #tpu.core_type<tc>, window_params = [{transform_indices = @transform_0, window_bounds = array<i64: 8, 16, 4>}, {pipeline_mode = #tpu.pipeline_mode<synchronous>, transform_indices = @transform_1, window_bounds = array<i64: 20, 32>}, {pipeline_mode = #tpu.pipeline_mode<synchronous>, transform_indices = @transform_2, window_bounds = array<i64: 1, 32>}, {pipeline_mode = #tpu.pipeline_mode<synchronous>, transform_indices = @transform_3, window_bounds = array<i64: 160, 64>}, {pipeline_mode = #tpu.pipeline_mode<synchronous>, transform_indices = @transform_4, window_bounds = array<i64: 1, 64>}, {pipeline_mode = #tpu.pipeline_mode<synchronous>, transform_indices = @transform_5, window_bounds = array<i64: 320, 128>}, {pipeline_mode = #tpu.pipeline_mode<synchronous>, transform_indices = @transform_6, window_bounds = array<i64: 1, 128>}, {pipeline_mode = #tpu.pipeline_mode<synchronous>, transform_indices = @transform_7, window_bounds = array<i64: 128, 32>}, {pipeline_mode = #tpu.pipeline_mode<synchronous>, transform_indices = @transform_8, window_bounds = array<i64: 1, 32>}, {pipeline_mode = #tpu.pipeline_mode<synchronous>, transform_indices = @transform_9, window_bounds = array<i64: 32, 1>}, {pipeline_mode = #tpu.pipeline_mode<synchronous>, transform_indices = @transform_10, window_bounds = array<i64: 1, 1>}, {transform_indices = @transform_11, window_bounds = array<i64: 8, 1>}]} {
    %c0 = arith.constant 0 : index
    %c0_0 = arith.constant 0 : index
    %c0_1 = arith.constant 0 : index
    %0 = vector.load %arg1[%c0, %c0_0, %c0_1] : memref<8x16x4xbf16, #tpu.memory_space<vmem>>, vector<8x16x4xbf16>
    %cst = arith.constant 0.000000e+00 : bf16
    %1 = vector.broadcast %cst : bf16 to vector<8x2x4xbf16>
    %2 = tpu.concatenate %1, %0, %1 in 1 : vector<8x2x4xbf16>, vector<8x16x4xbf16>, vector<8x2x4xbf16> -> vector<8x20x4xbf16>
    %3 = vector.shape_cast %2 : vector<8x20x4xbf16> to vector<8x10x2x4xbf16>
    %4 = vector.extract_strided_slice %3 {offsets = [0, 0, 0, 0], sizes = [8, 10, 1, 4], strides = [1, 1, 1, 1]} : vector<8x10x2x4xbf16> to vector<8x10x1x4xbf16>
    %5 = vector.shape_cast %4 : vector<8x10x1x4xbf16> to vector<8x10x4xbf16>
    %6 = vector.extract_strided_slice %3 {offsets = [0, 0, 1, 0], sizes = [8, 10, 1, 4], strides = [1, 1, 1, 1]} : vector<8x10x2x4xbf16> to vector<8x10x1x4xbf16>
    %7 = vector.shape_cast %6 : vector<8x10x1x4xbf16> to vector<8x10x4xbf16>
    %8 = vector.extract_strided_slice %5 {offsets = [0, 0, 0], sizes = [8, 8, 4], strides = [1, 1, 1]} : vector<8x10x4xbf16> to vector<8x8x4xbf16>
    %9 = vector.extract_strided_slice %7 {offsets = [0, 0, 0], sizes = [8, 8, 4], strides = [1, 1, 1]} : vector<8x10x4xbf16> to vector<8x8x4xbf16>
    %10 = vector.extract_strided_slice %5 {offsets = [0, 1, 0], sizes = [8, 8, 4], strides = [1, 1, 1]} : vector<8x10x4xbf16> to vector<8x8x4xbf16>
    %11 = vector.extract_strided_slice %7 {offsets = [0, 1, 0], sizes = [8, 8, 4], strides = [1, 1, 1]} : vector<8x10x4xbf16> to vector<8x8x4xbf16>
    %12 = vector.extract_strided_slice %5 {offsets = [0, 2, 0], sizes = [8, 8, 4], strides = [1, 1, 1]} : vector<8x10x4xbf16> to vector<8x8x4xbf16>
    %13 = vector.shape_cast %8 : vector<8x8x4xbf16> to vector<64x4xbf16>
    %c0_2 = arith.constant 0 : index
    %c0_3 = arith.constant 0 : index
    %14 = vector.load %arg2[%c0_2, %c0_3] : memref<20x32xbf16, #tpu.memory_space<vmem>>, vector<4x32xbf16>
    %cst_4 = arith.constant dense<0.000000e+00> : vector<64x32xf32>
    %15 = tpu.matmul %13, %14, %cst_4 {dimension_numbers = #tpu.dot_dimension_numbers<[1], [0], [0], [1], [0, 0, 1, 1], [], []>} : vector<64x4xbf16>, vector<4x32xbf16>, vector<64x32xf32> -> vector<64x32xf32>
    %16 = vector.shape_cast %9 : vector<8x8x4xbf16> to vector<64x4xbf16>
    %c4 = arith.constant 4 : index
    %c0_5 = arith.constant 0 : index
    %17 = vector.load %arg2[%c4, %c0_5] : memref<20x32xbf16, #tpu.memory_space<vmem>>, vector<4x32xbf16>
    %cst_6 = arith.constant dense<0.000000e+00> : vector<64x32xf32>
    %18 = tpu.matmul %16, %17, %cst_6 {dimension_numbers = #tpu.dot_dimension_numbers<[1], [0], [0], [1], [0, 0, 1, 1], [], []>} : vector<64x4xbf16>, vector<4x32xbf16>, vector<64x32xf32> -> vector<64x32xf32>
    %19 = arith.addf %15, %18 : vector<64x32xf32>
    %20 = vector.shape_cast %10 : vector<8x8x4xbf16> to vector<64x4xbf16>
    %c8 = arith.constant 8 : index
    %c0_7 = arith.constant 0 : index
    %21 = vector.load %arg2[%c8, %c0_7] : memref<20x32xbf16, #tpu.memory_space<vmem>>, vector<4x32xbf16>
    %cst_8 = arith.constant dense<0.000000e+00> : vector<64x32xf32>
    %22 = tpu.matmul %20, %21, %cst_8 {dimension_numbers = #tpu.dot_dimension_numbers<[1], [0], [0], [1], [0, 0, 1, 1], [], []>} : vector<64x4xbf16>, vector<4x32xbf16>, vector<64x32xf32> -> vector<64x32xf32>
    %23 = arith.addf %19, %22 : vector<64x32xf32>
    %24 = vector.shape_cast %11 : vector<8x8x4xbf16> to vector<64x4xbf16>
    %c12 = arith.constant 12 : index
    %c0_9 = arith.constant 0 : index
    %25 = vector.load %arg2[%c12, %c0_9] : memref<20x32xbf16, #tpu.memory_space<vmem>>, vector<4x32xbf16>
    %cst_10 = arith.constant dense<0.000000e+00> : vector<64x32xf32>
    %26 = tpu.matmul %24, %25, %cst_10 {dimension_numbers = #tpu.dot_dimension_numbers<[1], [0], [0], [1], [0, 0, 1, 1], [], []>} : vector<64x4xbf16>, vector<4x32xbf16>, vector<64x32xf32> -> vector<64x32xf32>
    %27 = arith.addf %23, %26 : vector<64x32xf32>
    %28 = vector.shape_cast %12 : vector<8x8x4xbf16> to vector<64x4xbf16>
    %c16 = arith.constant 16 : index
    %c0_11 = arith.constant 0 : index
    %29 = vector.load %arg2[%c16, %c0_11] : memref<20x32xbf16, #tpu.memory_space<vmem>>, vector<4x32xbf16>
    %cst_12 = arith.constant dense<0.000000e+00> : vector<64x32xf32>
    %30 = tpu.matmul %28, %29, %cst_12 {dimension_numbers = #tpu.dot_dimension_numbers<[1], [0], [0], [1], [0, 0, 1, 1], [], []>} : vector<64x4xbf16>, vector<4x32xbf16>, vector<64x32xf32> -> vector<64x32xf32>
    %31 = arith.addf %27, %30 : vector<64x32xf32>
    %c0_13 = arith.constant 0 : index
    %c0_14 = arith.constant 0 : index
    %32 = vector.load %arg3[%c0_13, %c0_14] : memref<1x32xf32, #tpu.memory_space<vmem>>, vector<1x32xf32>
    %33 = vector.broadcast %32 : vector<1x32xf32> to vector<64x32xf32>
    %34 = arith.addf %31, %33 : vector<64x32xf32>
    %35 = vector.shape_cast %34 : vector<64x32xf32> to vector<8x8x32xf32>
    %cst_15 = arith.constant 0.000000e+00 : f32
    %36 = vector.broadcast %cst_15 : f32 to vector<8x8x32xf32>
    %37 = arith.cmpf ogt, %35, %36 : vector<8x8x32xf32>
    %cst_16 = arith.constant 2.000000e-01 : f32
    %38 = vector.broadcast %cst_16 : f32 to vector<8x8x32xf32>
    %39 = arith.mulf %38, %35 : vector<8x8x32xf32>
    %40 = arith.select %37, %35, %39 : vector<8x8x32xi1>, vector<8x8x32xf32>
    %41 = arith.truncf %40 : vector<8x8x32xf32> to vector<8x8x32xbf16>
    %cst_17 = arith.constant 0.000000e+00 : bf16
    %42 = vector.broadcast %cst_17 : bf16 to vector<8x2x32xbf16>
    %43 = tpu.concatenate %42, %41, %42 in 1 : vector<8x2x32xbf16>, vector<8x8x32xbf16>, vector<8x2x32xbf16> -> vector<8x12x32xbf16>
    %44 = vector.shape_cast %43 : vector<8x12x32xbf16> to vector<8x6x2x32xbf16>
    %45 = vector.extract_strided_slice %44 {offsets = [0, 0, 0, 0], sizes = [8, 6, 1, 32], strides = [1, 1, 1, 1]} : vector<8x6x2x32xbf16> to vector<8x6x1x32xbf16>
    %46 = vector.shape_cast %45 : vector<8x6x1x32xbf16> to vector<8x6x32xbf16>
    %47 = vector.extract_strided_slice %44 {offsets = [0, 0, 1, 0], sizes = [8, 6, 1, 32], strides = [1, 1, 1, 1]} : vector<8x6x2x32xbf16> to vector<8x6x1x32xbf16>
    %48 = vector.shape_cast %47 : vector<8x6x1x32xbf16> to vector<8x6x32xbf16>
    %49 = vector.extract_strided_slice %46 {offsets = [0, 0, 0], sizes = [8, 4, 32], strides = [1, 1, 1]} : vector<8x6x32xbf16> to vector<8x4x32xbf16>
    %50 = vector.extract_strided_slice %48 {offsets = [0, 0, 0], sizes = [8, 4, 32], strides = [1, 1, 1]} : vector<8x6x32xbf16> to vector<8x4x32xbf16>
    %51 = vector.extract_strided_slice %46 {offsets = [0, 1, 0], sizes = [8, 4, 32], strides = [1, 1, 1]} : vector<8x6x32xbf16> to vector<8x4x32xbf16>
    %52 = vector.extract_strided_slice %48 {offsets = [0, 1, 0], sizes = [8, 4, 32], strides = [1, 1, 1]} : vector<8x6x32xbf16> to vector<8x4x32xbf16>
    %53 = vector.extract_strided_slice %46 {offsets = [0, 2, 0], sizes = [8, 4, 32], strides = [1, 1, 1]} : vector<8x6x32xbf16> to vector<8x4x32xbf16>
    %54 = vector.shape_cast %49 : vector<8x4x32xbf16> to vector<32x32xbf16>
    %c0_18 = arith.constant 0 : index
    %c0_19 = arith.constant 0 : index
    %55 = vector.load %arg4[%c0_18, %c0_19] : memref<160x64xbf16, #tpu.memory_space<vmem>>, vector<32x64xbf16>
    %cst_20 = arith.constant dense<0.000000e+00> : vector<32x64xf32>
    %56 = tpu.matmul %54, %55, %cst_20 {dimension_numbers = #tpu.dot_dimension_numbers<[1], [0], [0], [1], [0, 0, 1, 1], [], []>} : vector<32x32xbf16>, vector<32x64xbf16>, vector<32x64xf32> -> vector<32x64xf32>
    %57 = vector.shape_cast %50 : vector<8x4x32xbf16> to vector<32x32xbf16>
    %c32 = arith.constant 32 : index
    %c0_21 = arith.constant 0 : index
    %58 = vector.load %arg4[%c32, %c0_21] : memref<160x64xbf16, #tpu.memory_space<vmem>>, vector<32x64xbf16>
    %cst_22 = arith.constant dense<0.000000e+00> : vector<32x64xf32>
    %59 = tpu.matmul %57, %58, %cst_22 {dimension_numbers = #tpu.dot_dimension_numbers<[1], [0], [0], [1], [0, 0, 1, 1], [], []>} : vector<32x32xbf16>, vector<32x64xbf16>, vector<32x64xf32> -> vector<32x64xf32>
    %60 = arith.addf %56, %59 : vector<32x64xf32>
    %61 = vector.shape_cast %51 : vector<8x4x32xbf16> to vector<32x32xbf16>
    %c64 = arith.constant 64 : index
    %c0_23 = arith.constant 0 : index
    %62 = vector.load %arg4[%c64, %c0_23] : memref<160x64xbf16, #tpu.memory_space<vmem>>, vector<32x64xbf16>
    %cst_24 = arith.constant dense<0.000000e+00> : vector<32x64xf32>
    %63 = tpu.matmul %61, %62, %cst_24 {dimension_numbers = #tpu.dot_dimension_numbers<[1], [0], [0], [1], [0, 0, 1, 1], [], []>} : vector<32x32xbf16>, vector<32x64xbf16>, vector<32x64xf32> -> vector<32x64xf32>
    %64 = arith.addf %60, %63 : vector<32x64xf32>
    %65 = vector.shape_cast %52 : vector<8x4x32xbf16> to vector<32x32xbf16>
    %c96 = arith.constant 96 : index
    %c0_25 = arith.constant 0 : index
    %66 = vector.load %arg4[%c96, %c0_25] : memref<160x64xbf16, #tpu.memory_space<vmem>>, vector<32x64xbf16>
    %cst_26 = arith.constant dense<0.000000e+00> : vector<32x64xf32>
    %67 = tpu.matmul %65, %66, %cst_26 {dimension_numbers = #tpu.dot_dimension_numbers<[1], [0], [0], [1], [0, 0, 1, 1], [], []>} : vector<32x32xbf16>, vector<32x64xbf16>, vector<32x64xf32> -> vector<32x64xf32>
    %68 = arith.addf %64, %67 : vector<32x64xf32>
    %69 = vector.shape_cast %53 : vector<8x4x32xbf16> to vector<32x32xbf16>
    %c128 = arith.constant 128 : index
    %c0_27 = arith.constant 0 : index
    %70 = vector.load %arg4[%c128, %c0_27] : memref<160x64xbf16, #tpu.memory_space<vmem>>, vector<32x64xbf16>
    %cst_28 = arith.constant dense<0.000000e+00> : vector<32x64xf32>
    %71 = tpu.matmul %69, %70, %cst_28 {dimension_numbers = #tpu.dot_dimension_numbers<[1], [0], [0], [1], [0, 0, 1, 1], [], []>} : vector<32x32xbf16>, vector<32x64xbf16>, vector<32x64xf32> -> vector<32x64xf32>
    %72 = arith.addf %68, %71 : vector<32x64xf32>
    %c0_29 = arith.constant 0 : index
    %c0_30 = arith.constant 0 : index
    %73 = vector.load %arg5[%c0_29, %c0_30] : memref<1x64xf32, #tpu.memory_space<vmem>>, vector<1x64xf32>
    %74 = vector.broadcast %73 : vector<1x64xf32> to vector<32x64xf32>
    %75 = arith.addf %72, %74 : vector<32x64xf32>
    %76 = vector.shape_cast %75 : vector<32x64xf32> to vector<8x4x64xf32>
    %cst_31 = arith.constant dense<0.000000e+00> : vector<8x64xf32>
    %77 = vector.multi_reduction <add>, %76, %cst_31 [1] : vector<8x4x64xf32> to vector<8x64xf32>
    %78 = vector.shape_cast %77 : vector<8x64xf32> to vector<8x1x64xf32>
    %cst_32 = arith.constant 4.000000e+00 : f32
    %79 = vector.broadcast %cst_32 : f32 to vector<8x1x64xf32>
    %80 = arith.divf %78, %79 : vector<8x1x64xf32>
    %81 = arith.mulf %76, %76 : vector<8x4x64xf32>
    %cst_33 = arith.constant dense<0.000000e+00> : vector<8x64xf32>
    %82 = vector.multi_reduction <add>, %81, %cst_33 [1] : vector<8x4x64xf32> to vector<8x64xf32>
    %83 = vector.shape_cast %82 : vector<8x64xf32> to vector<8x1x64xf32>
    %cst_34 = arith.constant 4.000000e+00 : f32
    %84 = vector.broadcast %cst_34 : f32 to vector<8x1x64xf32>
    %85 = arith.divf %83, %84 : vector<8x1x64xf32>
    %86 = arith.mulf %80, %80 : vector<8x1x64xf32>
    %87 = arith.subf %85, %86 : vector<8x1x64xf32>
    %cst_35 = arith.constant 0.000000e+00 : f32
    %88 = vector.broadcast %cst_35 : f32 to vector<8x1x64xf32>
    %89 = arith.maximumf %87, %88 : vector<8x1x64xf32>
    %90 = vector.broadcast %80 : vector<8x1x64xf32> to vector<8x4x64xf32>
    %91 = arith.subf %76, %90 : vector<8x4x64xf32>
    %cst_36 = arith.constant 9.99999974E-6 : f32
    %92 = vector.broadcast %cst_36 : f32 to vector<8x1x64xf32>
    %93 = arith.addf %89, %92 : vector<8x1x64xf32>
    %94 = math.rsqrt %93 : vector<8x1x64xf32>
    %95 = vector.broadcast %94 : vector<8x1x64xf32> to vector<8x4x64xf32>
    %96 = arith.mulf %91, %95 : vector<8x4x64xf32>
    %cst_37 = arith.constant 0.000000e+00 : f32
    %97 = vector.broadcast %cst_37 : f32 to vector<8x4x64xf32>
    %98 = arith.cmpf ogt, %96, %97 : vector<8x4x64xf32>
    %cst_38 = arith.constant 2.000000e-01 : f32
    %99 = vector.broadcast %cst_38 : f32 to vector<8x4x64xf32>
    %100 = arith.mulf %99, %96 : vector<8x4x64xf32>
    %101 = arith.select %98, %96, %100 : vector<8x4x64xi1>, vector<8x4x64xf32>
    %102 = arith.truncf %101 : vector<8x4x64xf32> to vector<8x4x64xbf16>
    %cst_39 = arith.constant 0.000000e+00 : bf16
    %103 = vector.broadcast %cst_39 : bf16 to vector<8x2x64xbf16>
    %104 = tpu.concatenate %103, %102, %103 in 1 : vector<8x2x64xbf16>, vector<8x4x64xbf16>, vector<8x2x64xbf16> -> vector<8x8x64xbf16>
    %105 = vector.shape_cast %104 : vector<8x8x64xbf16> to vector<8x4x2x64xbf16>
    %106 = vector.extract_strided_slice %105 {offsets = [0, 0, 0, 0], sizes = [8, 4, 1, 64], strides = [1, 1, 1, 1]} : vector<8x4x2x64xbf16> to vector<8x4x1x64xbf16>
    %107 = vector.shape_cast %106 : vector<8x4x1x64xbf16> to vector<8x4x64xbf16>
    %108 = vector.extract_strided_slice %105 {offsets = [0, 0, 1, 0], sizes = [8, 4, 1, 64], strides = [1, 1, 1, 1]} : vector<8x4x2x64xbf16> to vector<8x4x1x64xbf16>
    %109 = vector.shape_cast %108 : vector<8x4x1x64xbf16> to vector<8x4x64xbf16>
    %110 = vector.extract_strided_slice %107 {offsets = [0, 0, 0], sizes = [8, 2, 64], strides = [1, 1, 1]} : vector<8x4x64xbf16> to vector<8x2x64xbf16>
    %111 = vector.extract_strided_slice %109 {offsets = [0, 0, 0], sizes = [8, 2, 64], strides = [1, 1, 1]} : vector<8x4x64xbf16> to vector<8x2x64xbf16>
    %112 = vector.extract_strided_slice %107 {offsets = [0, 1, 0], sizes = [8, 2, 64], strides = [1, 1, 1]} : vector<8x4x64xbf16> to vector<8x2x64xbf16>
    %113 = vector.extract_strided_slice %109 {offsets = [0, 1, 0], sizes = [8, 2, 64], strides = [1, 1, 1]} : vector<8x4x64xbf16> to vector<8x2x64xbf16>
    %114 = vector.extract_strided_slice %107 {offsets = [0, 2, 0], sizes = [8, 2, 64], strides = [1, 1, 1]} : vector<8x4x64xbf16> to vector<8x2x64xbf16>
    %115 = vector.shape_cast %110 : vector<8x2x64xbf16> to vector<16x64xbf16>
    %c0_40 = arith.constant 0 : index
    %c0_41 = arith.constant 0 : index
    %116 = vector.load %arg6[%c0_40, %c0_41] : memref<320x128xbf16, #tpu.memory_space<vmem>>, vector<64x128xbf16>
    %cst_42 = arith.constant dense<0.000000e+00> : vector<16x128xf32>
    %117 = tpu.matmul %115, %116, %cst_42 {dimension_numbers = #tpu.dot_dimension_numbers<[1], [0], [0], [1], [0, 0, 1, 1], [], []>} : vector<16x64xbf16>, vector<64x128xbf16>, vector<16x128xf32> -> vector<16x128xf32>
    %118 = vector.shape_cast %111 : vector<8x2x64xbf16> to vector<16x64xbf16>
    %c64_43 = arith.constant 64 : index
    %c0_44 = arith.constant 0 : index
    %119 = vector.load %arg6[%c64_43, %c0_44] : memref<320x128xbf16, #tpu.memory_space<vmem>>, vector<64x128xbf16>
    %cst_45 = arith.constant dense<0.000000e+00> : vector<16x128xf32>
    %120 = tpu.matmul %118, %119, %cst_45 {dimension_numbers = #tpu.dot_dimension_numbers<[1], [0], [0], [1], [0, 0, 1, 1], [], []>} : vector<16x64xbf16>, vector<64x128xbf16>, vector<16x128xf32> -> vector<16x128xf32>
    %121 = arith.addf %117, %120 : vector<16x128xf32>
    %122 = vector.shape_cast %112 : vector<8x2x64xbf16> to vector<16x64xbf16>
    %c128_46 = arith.constant 128 : index
    %c0_47 = arith.constant 0 : index
    %123 = vector.load %arg6[%c128_46, %c0_47] : memref<320x128xbf16, #tpu.memory_space<vmem>>, vector<64x128xbf16>
    %cst_48 = arith.constant dense<0.000000e+00> : vector<16x128xf32>
    %124 = tpu.matmul %122, %123, %cst_48 {dimension_numbers = #tpu.dot_dimension_numbers<[1], [0], [0], [1], [0, 0, 1, 1], [], []>} : vector<16x64xbf16>, vector<64x128xbf16>, vector<16x128xf32> -> vector<16x128xf32>
    %125 = arith.addf %121, %124 : vector<16x128xf32>
    %126 = vector.shape_cast %113 : vector<8x2x64xbf16> to vector<16x64xbf16>
    %c192 = arith.constant 192 : index
    %c0_49 = arith.constant 0 : index
    %127 = vector.load %arg6[%c192, %c0_49] : memref<320x128xbf16, #tpu.memory_space<vmem>>, vector<64x128xbf16>
    %cst_50 = arith.constant dense<0.000000e+00> : vector<16x128xf32>
    %128 = tpu.matmul %126, %127, %cst_50 {dimension_numbers = #tpu.dot_dimension_numbers<[1], [0], [0], [1], [0, 0, 1, 1], [], []>} : vector<16x64xbf16>, vector<64x128xbf16>, vector<16x128xf32> -> vector<16x128xf32>
    %129 = arith.addf %125, %128 : vector<16x128xf32>
    %130 = vector.shape_cast %114 : vector<8x2x64xbf16> to vector<16x64xbf16>
    %c256 = arith.constant 256 : index
    %c0_51 = arith.constant 0 : index
    %131 = vector.load %arg6[%c256, %c0_51] : memref<320x128xbf16, #tpu.memory_space<vmem>>, vector<64x128xbf16>
    %cst_52 = arith.constant dense<0.000000e+00> : vector<16x128xf32>
    %132 = tpu.matmul %130, %131, %cst_52 {dimension_numbers = #tpu.dot_dimension_numbers<[1], [0], [0], [1], [0, 0, 1, 1], [], []>} : vector<16x64xbf16>, vector<64x128xbf16>, vector<16x128xf32> -> vector<16x128xf32>
    %133 = arith.addf %129, %132 : vector<16x128xf32>
    %c0_53 = arith.constant 0 : index
    %c0_54 = arith.constant 0 : index
    %134 = vector.load %arg7[%c0_53, %c0_54] : memref<1x128xf32, #tpu.memory_space<vmem>>, vector<1x128xf32>
    %135 = vector.broadcast %134 : vector<1x128xf32> to vector<16x128xf32>
    %136 = arith.addf %133, %135 : vector<16x128xf32>
    %137 = vector.shape_cast %136 : vector<16x128xf32> to vector<8x2x128xf32>
    %cst_55 = arith.constant dense<0.000000e+00> : vector<8x128xf32>
    %138 = vector.multi_reduction <add>, %137, %cst_55 [1] : vector<8x2x128xf32> to vector<8x128xf32>
    %139 = vector.shape_cast %138 : vector<8x128xf32> to vector<8x1x128xf32>
    %cst_56 = arith.constant 2.000000e+00 : f32
    %140 = vector.broadcast %cst_56 : f32 to vector<8x1x128xf32>
    %141 = arith.divf %139, %140 : vector<8x1x128xf32>
    %142 = arith.mulf %137, %137 : vector<8x2x128xf32>
    %cst_57 = arith.constant dense<0.000000e+00> : vector<8x128xf32>
    %143 = vector.multi_reduction <add>, %142, %cst_57 [1] : vector<8x2x128xf32> to vector<8x128xf32>
    %144 = vector.shape_cast %143 : vector<8x128xf32> to vector<8x1x128xf32>
    %cst_58 = arith.constant 2.000000e+00 : f32
    %145 = vector.broadcast %cst_58 : f32 to vector<8x1x128xf32>
    %146 = arith.divf %144, %145 : vector<8x1x128xf32>
    %147 = arith.mulf %141, %141 : vector<8x1x128xf32>
    %148 = arith.subf %146, %147 : vector<8x1x128xf32>
    %cst_59 = arith.constant 0.000000e+00 : f32
    %149 = vector.broadcast %cst_59 : f32 to vector<8x1x128xf32>
    %150 = arith.maximumf %148, %149 : vector<8x1x128xf32>
    %151 = vector.broadcast %141 : vector<8x1x128xf32> to vector<8x2x128xf32>
    %152 = arith.subf %137, %151 : vector<8x2x128xf32>
    %cst_60 = arith.constant 9.99999974E-6 : f32
    %153 = vector.broadcast %cst_60 : f32 to vector<8x1x128xf32>
    %154 = arith.addf %150, %153 : vector<8x1x128xf32>
    %155 = math.rsqrt %154 : vector<8x1x128xf32>
    %156 = vector.broadcast %155 : vector<8x1x128xf32> to vector<8x2x128xf32>
    %157 = arith.mulf %152, %156 : vector<8x2x128xf32>
    %cst_61 = arith.constant 0.000000e+00 : f32
    %158 = vector.broadcast %cst_61 : f32 to vector<8x2x128xf32>
    %159 = arith.cmpf ogt, %157, %158 : vector<8x2x128xf32>
    %cst_62 = arith.constant 2.000000e-01 : f32
    %160 = vector.broadcast %cst_62 : f32 to vector<8x2x128xf32>
    %161 = arith.mulf %160, %157 : vector<8x2x128xf32>
    %162 = arith.select %159, %157, %161 : vector<8x2x128xi1>, vector<8x2x128xf32>
    %cst_63 = arith.constant dense<0.000000e+00> : vector<8x128xf32>
    %163 = vector.multi_reduction <add>, %162, %cst_63 [1] : vector<8x2x128xf32> to vector<8x128xf32>
    %cst_64 = arith.constant 2.000000e+00 : f32
    %164 = vector.broadcast %cst_64 : f32 to vector<8x128xf32>
    %165 = arith.divf %163, %164 : vector<8x128xf32>
    %166 = arith.truncf %165 : vector<8x128xf32> to vector<8x128xbf16>
    %c0_65 = arith.constant 0 : index
    %c0_66 = arith.constant 0 : index
    %167 = vector.load %arg8[%c0_65, %c0_66] : memref<128x32xbf16, #tpu.memory_space<vmem>>, vector<128x32xbf16>
    %cst_67 = arith.constant dense<0.000000e+00> : vector<8x32xf32>
    %168 = tpu.matmul %166, %167, %cst_67 {dimension_numbers = #tpu.dot_dimension_numbers<[1], [0], [0], [1], [0, 0, 1, 1], [], []>} : vector<8x128xbf16>, vector<128x32xbf16>, vector<8x32xf32> -> vector<8x32xf32>
    %c0_68 = arith.constant 0 : index
    %c0_69 = arith.constant 0 : index
    %169 = vector.load %arg9[%c0_68, %c0_69] : memref<1x32xf32, #tpu.memory_space<vmem>>, vector<1x32xf32>
    %170 = vector.broadcast %169 : vector<1x32xf32> to vector<8x32xf32>
    %171 = arith.addf %168, %170 : vector<8x32xf32>
    %cst_70 = arith.constant 0.000000e+00 : f32
    %172 = vector.broadcast %cst_70 : f32 to vector<8x32xf32>
    %173 = arith.maximumf %171, %172 : vector<8x32xf32>
    %174 = arith.truncf %173 : vector<8x32xf32> to vector<8x32xbf16>
    %c0_71 = arith.constant 0 : index
    %c0_72 = arith.constant 0 : index
    %175 = vector.load %arg10[%c0_71, %c0_72] : memref<32x1xbf16, #tpu.memory_space<vmem>>, vector<32x1xbf16>
    %cst_73 = arith.constant dense<0.000000e+00> : vector<8x1xf32>
    %176 = tpu.matmul %174, %175, %cst_73 {dimension_numbers = #tpu.dot_dimension_numbers<[1], [0], [0], [1], [0, 0, 1, 1], [], []>} : vector<8x32xbf16>, vector<32x1xbf16>, vector<8x1xf32> -> vector<8x1xf32>
    %c0_74 = arith.constant 0 : index
    %c0_75 = arith.constant 0 : index
    %177 = vector.load %arg11[%c0_74, %c0_75] : memref<1x1xf32, #tpu.memory_space<vmem>>, vector<1x1xf32>
    %178 = vector.broadcast %177 : vector<1x1xf32> to vector<8x1xf32>
    %179 = arith.addf %176, %178 : vector<8x1xf32>
    %cst_76 = arith.constant 0.000000e+00 : f32
    %180 = vector.broadcast %cst_76 : f32 to vector<8x1xf32>
    %181 = arith.subf %180, %179 : vector<8x1xf32>
    %182 = math.exp %181 : vector<8x1xf32>
    %cst_77 = arith.constant 1.000000e+00 : f32
    %183 = vector.broadcast %cst_77 : f32 to vector<8x1xf32>
    %184 = arith.addf %183, %182 : vector<8x1xf32>
    %185 = tpu.reciprocal %184 {approx = true} : vector<8x1xf32> -> vector<8x1xf32>
    %c0_78 = arith.constant 0 : index
    %c0_79 = arith.constant 0 : index
    %186 = vector.load %arg12[%c0_78, %c0_79] : memref<8x1xf32, #tpu.memory_space<vmem>>, vector<8x1xf32>
    tpu.vector_store %arg12[%c0_78, %c0_79], %185 {strides = array<i32>} : memref<8x1xf32, #tpu.memory_space<vmem>>, vector<8x1xf32>,
    return
  }
  func.func @transform_0(%arg0: i32) -> (i32, i32, i32) {
    %c0_i32 = arith.constant 0 : i32
    %c0_i32_0 = arith.constant 0 : i32
    %c0_i32_1 = arith.constant 0 : i32
    return %arg0, %c0_i32, %c0_i32_0 : i32, i32, i32
  }
  func.func @transform_1(%arg0: i32) -> (i32, i32) {
    %c0_i32 = arith.constant 0 : i32
    %c0_i32_0 = arith.constant 0 : i32
    %c0_i32_1 = arith.constant 0 : i32
    return %c0_i32, %c0_i32_0 : i32, i32
  }
  func.func @transform_2(%arg0: i32) -> (i32, i32) {
    %c0_i32 = arith.constant 0 : i32
    %c0_i32_0 = arith.constant 0 : i32
    %c0_i32_1 = arith.constant 0 : i32
    return %c0_i32, %c0_i32_0 : i32, i32
  }
  func.func @transform_3(%arg0: i32) -> (i32, i32) {
    %c0_i32 = arith.constant 0 : i32
    %c0_i32_0 = arith.constant 0 : i32
    %c0_i32_1 = arith.constant 0 : i32
    return %c0_i32, %c0_i32_0 : i32, i32
  }
  func.func @transform_4(%arg0: i32) -> (i32, i32) {
    %c0_i32 = arith.constant 0 : i32
    %c0_i32_0 = arith.constant 0 : i32
    %c0_i32_1 = arith.constant 0 : i32
    return %c0_i32, %c0_i32_0 : i32, i32
  }
  func.func @transform_5(%arg0: i32) -> (i32, i32) {
    %c0_i32 = arith.constant 0 : i32
    %c0_i32_0 = arith.constant 0 : i32
    %c0_i32_1 = arith.constant 0 : i32
    return %c0_i32, %c0_i32_0 : i32, i32
  }
  func.func @transform_6(%arg0: i32) -> (i32, i32) {
    %c0_i32 = arith.constant 0 : i32
    %c0_i32_0 = arith.constant 0 : i32
    %c0_i32_1 = arith.constant 0 : i32
    return %c0_i32, %c0_i32_0 : i32, i32
  }
  func.func @transform_7(%arg0: i32) -> (i32, i32) {
    %c0_i32 = arith.constant 0 : i32
    %c0_i32_0 = arith.constant 0 : i32
    %c0_i32_1 = arith.constant 0 : i32
    return %c0_i32, %c0_i32_0 : i32, i32
  }
  func.func @transform_8(%arg0: i32) -> (i32, i32) {
    %c0_i32 = arith.constant 0 : i32
    %c0_i32_0 = arith.constant 0 : i32
    %c0_i32_1 = arith.constant 0 : i32
    return %c0_i32, %c0_i32_0 : i32, i32
  }
  func.func @transform_9(%arg0: i32) -> (i32, i32) {
    %c0_i32 = arith.constant 0 : i32
    %c0_i32_0 = arith.constant 0 : i32
    %c0_i32_1 = arith.constant 0 : i32
    return %c0_i32, %c0_i32_0 : i32, i32
  }
  func.func @transform_10(%arg0: i32) -> (i32, i32) {
    %c0_i32 = arith.constant 0 : i32
    %c0_i32_0 = arith.constant 0 : i32
    %c0_i32_1 = arith.constant 0 : i32
    return %c0_i32, %c0_i32_0 : i32, i32
  }
  func.func @transform_11(%arg0: i32) -> (i32, i32) {
    %c0_i32 = arith.constant 0 : i32
    %c0_i32_0 = arith.constant 0 : i32
    return %arg0, %c0_i32 : i32, i32
  }
}

module attributes {stable_mosaic.version = 11 : i64} {
  func.func @discriminator_kernel(%arg0: i32, %arg1: memref<8x16x4xbf16, #tpu.memory_space<vmem>>, %arg2: memref<20x32xbf16, #tpu.memory_space<vmem>>, %arg3: memref<1x32xf32, #tpu.memory_space<vmem>>, %arg4: memref<160x64xbf16, #tpu.memory_space<vmem>>, %arg5: memref<1x64xf32, #tpu.memory_space<vmem>>, %arg6: memref<320x128xbf16, #tpu.memory_space<vmem>>, %arg7: memref<1x128xf32, #tpu.memory_space<vmem>>, %arg8: memref<128x32xbf16, #tpu.memory_space<vmem>>, %arg9: memref<1x32xf32, #tpu.memory_space<vmem>>, %arg10: memref<32x1xbf16, #tpu.memory_space<vmem>>, %arg11: memref<1x1xf32, #tpu.memory_space<vmem>>, %arg12: memref<8x1xf32, #tpu.memory_space<vmem>>) attributes {dimension_semantics = [#tpu.dimension_semantics<parallel>], iteration_bounds = array<i64: 1>, scalar_prefetch = 0 : i64, scratch_operands = 0 : i64, tpu.core_type = #tpu.core_type<tc>, window_params = [{transform_indices = @transform_0, window_bounds = array<i64: 8, 16, 4>}, {pipeline_mode = #tpu.pipeline_mode<synchronous>, transform_indices = @transform_1, window_bounds = array<i64: 20, 32>}, {pipeline_mode = #tpu.pipeline_mode<synchronous>, transform_indices = @transform_2, window_bounds = array<i64: 1, 32>}, {pipeline_mode = #tpu.pipeline_mode<synchronous>, transform_indices = @transform_3, window_bounds = array<i64: 160, 64>}, {pipeline_mode = #tpu.pipeline_mode<synchronous>, transform_indices = @transform_4, window_bounds = array<i64: 1, 64>}, {pipeline_mode = #tpu.pipeline_mode<synchronous>, transform_indices = @transform_5, window_bounds = array<i64: 320, 128>}, {pipeline_mode = #tpu.pipeline_mode<synchronous>, transform_indices = @transform_6, window_bounds = array<i64: 1, 128>}, {pipeline_mode = #tpu.pipeline_mode<synchronous>, transform_indices = @transform_7, window_bounds = array<i64: 128, 32>}, {pipeline_mode = #tpu.pipeline_mode<synchronous>, transform_indices = @transform_8, window_bounds = array<i64: 1, 32>}, {pipeline_mode = #tpu.pipeline_mode<synchronous>, transform_indices = @transform_9, window_bounds = array<i64: 32, 1>}, {pipeline_mode = #tpu.pipeline_mode<synchronous>, transform_indices = @transform_10, window_bounds = array<i64: 1, 1>}, {transform_indices = @transform_11, window_bounds = array<i64: 8, 1>}]} {
    %c0 = arith.constant 0 : index
    %c0_0 = arith.constant 0 : index
    %c0_1 = arith.constant 0 : index
    %0 = vector.load %arg1[%c0, %c0_0, %c0_1] : memref<8x16x4xbf16, #tpu.memory_space<vmem>>, vector<8x16x4xbf16>
    %cst = arith.constant 0.000000e+00 : bf16
    %1 = vector.broadcast %cst : bf16 to vector<8x2x4xbf16>
    %2 = tpu.concatenate %1, %0, %1 in 1 : vector<8x2x4xbf16>, vector<8x16x4xbf16>, vector<8x2x4xbf16> -> vector<8x20x4xbf16>
    %3 = vector.shape_cast %2 : vector<8x20x4xbf16> to vector<8x10x2x4xbf16>
    %4 = vector.extract_strided_slice %3 {offsets = [0, 0, 0, 0], sizes = [8, 10, 1, 4], strides = [1, 1, 1, 1]} : vector<8x10x2x4xbf16> to vector<8x10x1x4xbf16>
    %5 = vector.shape_cast %4 : vector<8x10x1x4xbf16> to vector<8x10x4xbf16>
    %6 = vector.extract_strided_slice %3 {offsets = [0, 0, 1, 0], sizes = [8, 10, 1, 4], strides = [1, 1, 1, 1]} : vector<8x10x2x4xbf16> to vector<8x10x1x4xbf16>
    %7 = vector.shape_cast %6 : vector<8x10x1x4xbf16> to vector<8x10x4xbf16>
    %8 = vector.extract_strided_slice %5 {offsets = [0, 0, 0], sizes = [8, 8, 4], strides = [1, 1, 1]} : vector<8x10x4xbf16> to vector<8x8x4xbf16>
    %9 = vector.extract_strided_slice %7 {offsets = [0, 0, 0], sizes = [8, 8, 4], strides = [1, 1, 1]} : vector<8x10x4xbf16> to vector<8x8x4xbf16>
    %10 = vector.extract_strided_slice %5 {offsets = [0, 1, 0], sizes = [8, 8, 4], strides = [1, 1, 1]} : vector<8x10x4xbf16> to vector<8x8x4xbf16>
    %11 = vector.extract_strided_slice %7 {offsets = [0, 1, 0], sizes = [8, 8, 4], strides = [1, 1, 1]} : vector<8x10x4xbf16> to vector<8x8x4xbf16>
    %12 = vector.extract_strided_slice %5 {offsets = [0, 2, 0], sizes = [8, 8, 4], strides = [1, 1, 1]} : vector<8x10x4xbf16> to vector<8x8x4xbf16>
    %13 = vector.shape_cast %8 : vector<8x8x4xbf16> to vector<64x4xbf16>
    %c0_2 = arith.constant 0 : index
    %c0_3 = arith.constant 0 : index
    %14 = vector.load %arg2[%c0_2, %c0_3] : memref<20x32xbf16, #tpu.memory_space<vmem>>, vector<4x32xbf16>
    %cst_4 = arith.constant dense<0.000000e+00> : vector<64x32xf32>
    %15 = tpu.matmul %13, %14, %cst_4 {dimension_numbers = #tpu.dot_dimension_numbers<[1], [0], [0], [1], [0, 0, 1, 1], [], []>} : vector<64x4xbf16>, vector<4x32xbf16>, vector<64x32xf32> -> vector<64x32xf32>
    %16 = vector.shape_cast %9 : vector<8x8x4xbf16> to vector<64x4xbf16>
    %c4 = arith.constant 4 : index
    %c0_5 = arith.constant 0 : index
    %17 = vector.load %arg2[%c4, %c0_5] : memref<20x32xbf16, #tpu.memory_space<vmem>>, vector<4x32xbf16>
    %cst_6 = arith.constant dense<0.000000e+00> : vector<64x32xf32>
    %18 = tpu.matmul %16, %17, %cst_6 {dimension_numbers = #tpu.dot_dimension_numbers<[1], [0], [0], [1], [0, 0, 1, 1], [], []>} : vector<64x4xbf16>, vector<4x32xbf16>, vector<64x32xf32> -> vector<64x32xf32>
    %19 = arith.addf %15, %18 : vector<64x32xf32>
    %20 = vector.shape_cast %10 : vector<8x8x4xbf16> to vector<64x4xbf16>
    %c8 = arith.constant 8 : index
    %c0_7 = arith.constant 0 : index
    %21 = vector.load %arg2[%c8, %c0_7] : memref<20x32xbf16, #tpu.memory_space<vmem>>, vector<4x32xbf16>
    %cst_8 = arith.constant dense<0.000000e+00> : vector<64x32xf32>
    %22 = tpu.matmul %20, %21, %cst_8 {dimension_numbers = #tpu.dot_dimension_numbers<[1], [0], [0], [1], [0, 0, 1, 1], [], []>} : vector<64x4xbf16>, vector<4x32xbf16>, vector<64x32xf32> -> vector<64x32xf32>
    %23 = arith.addf %19, %22 : vector<64x32xf32>
    %24 = vector.shape_cast %11 : vector<8x8x4xbf16> to vector<64x4xbf16>
    %c12 = arith.constant 12 : index
    %c0_9 = arith.constant 0 : index
    %25 = vector.load %arg2[%c12, %c0_9] : memref<20x32xbf16, #tpu.memory_space<vmem>>, vector<4x32xbf16>
    %cst_10 = arith.constant dense<0.000000e+00> : vector<64x32xf32>
    %26 = tpu.matmul %24, %25, %cst_10 {dimension_numbers = #tpu.dot_dimension_numbers<[1], [0], [0], [1], [0, 0, 1, 1], [], []>} : vector<64x4xbf16>, vector<4x32xbf16>, vector<64x32xf32> -> vector<64x32xf32>
    %27 = arith.addf %23, %26 : vector<64x32xf32>
    %28 = vector.shape_cast %12 : vector<8x8x4xbf16> to vector<64x4xbf16>
    %c16 = arith.constant 16 : index
    %c0_11 = arith.constant 0 : index
    %29 = vector.load %arg2[%c16, %c0_11] : memref<20x32xbf16, #tpu.memory_space<vmem>>, vector<4x32xbf16>
    %cst_12 = arith.constant dense<0.000000e+00> : vector<64x32xf32>
    %30 = tpu.matmul %28, %29, %cst_12 {dimension_numbers = #tpu.dot_dimension_numbers<[1], [0], [0], [1], [0, 0, 1, 1], [], []>} : vector<64x4xbf16>, vector<4x32xbf16>, vector<64x32xf32> -> vector<64x32xf32>
    %31 = arith.addf %27, %30 : vector<64x32xf32>
    %c0_13 = arith.constant 0 : index
    %c0_14 = arith.constant 0 : index
    %32 = vector.load %arg3[%c0_13, %c0_14] : memref<1x32xf32, #tpu.memory_space<vmem>>, vector<1x32xf32>
    %33 = vector.broadcast %32 : vector<1x32xf32> to vector<64x32xf32>
    %34 = arith.addf %31, %33 : vector<64x32xf32>
    %35 = vector.shape_cast %34 : vector<64x32xf32> to vector<8x8x32xf32>
    %cst_15 = arith.constant 0.000000e+00 : f32
    %36 = vector.broadcast %cst_15 : f32 to vector<8x8x32xf32>
    %37 = arith.cmpf ogt, %35, %36 : vector<8x8x32xf32>
    %cst_16 = arith.constant 2.000000e-01 : f32
    %38 = vector.broadcast %cst_16 : f32 to vector<8x8x32xf32>
    %39 = arith.mulf %38, %35 : vector<8x8x32xf32>
    %40 = arith.select %37, %35, %39 : vector<8x8x32xi1>, vector<8x8x32xf32>
    %41 = arith.truncf %40 : vector<8x8x32xf32> to vector<8x8x32xbf16>
    %cst_17 = arith.constant 0.000000e+00 : bf16
    %42 = vector.broadcast %cst_17 : bf16 to vector<8x2x32xbf16>
    %43 = tpu.concatenate %42, %41, %42 in 1 : vector<8x2x32xbf16>, vector<8x8x32xbf16>, vector<8x2x32xbf16> -> vector<8x12x32xbf16>
    %44 = vector.shape_cast %43 : vector<8x12x32xbf16> to vector<8x6x2x32xbf16>
    %45 = vector.extract_strided_slice %44 {offsets = [0, 0, 0, 0], sizes = [8, 6, 1, 32], strides = [1, 1, 1, 1]} : vector<8x6x2x32xbf16> to vector<8x6x1x32xbf16>
    %46 = vector.shape_cast %45 : vector<8x6x1x32xbf16> to vector<8x6x32xbf16>
    %47 = vector.extract_strided_slice %44 {offsets = [0, 0, 1, 0], sizes = [8, 6, 1, 32], strides = [1, 1, 1, 1]} : vector<8x6x2x32xbf16> to vector<8x6x1x32xbf16>
    %48 = vector.shape_cast %47 : vector<8x6x1x32xbf16> to vector<8x6x32xbf16>
    %49 = vector.extract_strided_slice %46 {offsets = [0, 0, 0], sizes = [8, 4, 32], strides = [1, 1, 1]} : vector<8x6x32xbf16> to vector<8x4x32xbf16>
    %50 = vector.extract_strided_slice %48 {offsets = [0, 0, 0], sizes = [8, 4, 32], strides = [1, 1, 1]} : vector<8x6x32xbf16> to vector<8x4x32xbf16>
    %51 = vector.extract_strided_slice %46 {offsets = [0, 1, 0], sizes = [8, 4, 32], strides = [1, 1, 1]} : vector<8x6x32xbf16> to vector<8x4x32xbf16>
    %52 = vector.extract_strided_slice %48 {offsets = [0, 1, 0], sizes = [8, 4, 32], strides = [1, 1, 1]} : vector<8x6x32xbf16> to vector<8x4x32xbf16>
    %53 = vector.extract_strided_slice %46 {offsets = [0, 2, 0], sizes = [8, 4, 32], strides = [1, 1, 1]} : vector<8x6x32xbf16> to vector<8x4x32xbf16>
    %54 = vector.shape_cast %49 : vector<8x4x32xbf16> to vector<32x32xbf16>
    %c0_18 = arith.constant 0 : index
    %c0_19 = arith.constant 0 : index
    %55 = vector.load %arg4[%c0_18, %c0_19] : memref<160x64xbf16, #tpu.memory_space<vmem>>, vector<32x64xbf16>
    %cst_20 = arith.constant dense<0.000000e+00> : vector<32x64xf32>
    %56 = tpu.matmul %54, %55, %cst_20 {dimension_numbers = #tpu.dot_dimension_numbers<[1], [0], [0], [1], [0, 0, 1, 1], [], []>} : vector<32x32xbf16>, vector<32x64xbf16>, vector<32x64xf32> -> vector<32x64xf32>
    %57 = vector.shape_cast %50 : vector<8x4x32xbf16> to vector<32x32xbf16>
    %c32 = arith.constant 32 : index
    %c0_21 = arith.constant 0 : index
    %58 = vector.load %arg4[%c32, %c0_21] : memref<160x64xbf16, #tpu.memory_space<vmem>>, vector<32x64xbf16>
    %cst_22 = arith.constant dense<0.000000e+00> : vector<32x64xf32>
    %59 = tpu.matmul %57, %58, %cst_22 {dimension_numbers = #tpu.dot_dimension_numbers<[1], [0], [0], [1], [0, 0, 1, 1], [], []>} : vector<32x32xbf16>, vector<32x64xbf16>, vector<32x64xf32> -> vector<32x64xf32>
    %60 = arith.addf %56, %59 : vector<32x64xf32>
    %61 = vector.shape_cast %51 : vector<8x4x32xbf16> to vector<32x32xbf16>
    %c64 = arith.constant 64 : index
    %c0_23 = arith.constant 0 : index
    %62 = vector.load %arg4[%c64, %c0_23] : memref<160x64xbf16, #tpu.memory_space<vmem>>, vector<32x64xbf16>
    %cst_24 = arith.constant dense<0.000000e+00> : vector<32x64xf32>
    %63 = tpu.matmul %61, %62, %cst_24 {dimension_numbers = #tpu.dot_dimension_numbers<[1], [0], [0], [1], [0, 0, 1, 1], [], []>} : vector<32x32xbf16>, vector<32x64xbf16>, vector<32x64xf32> -> vector<32x64xf32>
    %64 = arith.addf %60, %63 : vector<32x64xf32>
    %65 = vector.shape_cast %52 : vector<8x4x32xbf16> to vector<32x32xbf16>
    %c96 = arith.constant 96 : index
    %c0_25 = arith.constant 0 : index
    %66 = vector.load %arg4[%c96, %c0_25] : memref<160x64xbf16, #tpu.memory_space<vmem>>, vector<32x64xbf16>
    %cst_26 = arith.constant dense<0.000000e+00> : vector<32x64xf32>
    %67 = tpu.matmul %65, %66, %cst_26 {dimension_numbers = #tpu.dot_dimension_numbers<[1], [0], [0], [1], [0, 0, 1, 1], [], []>} : vector<32x32xbf16>, vector<32x64xbf16>, vector<32x64xf32> -> vector<32x64xf32>
    %68 = arith.addf %64, %67 : vector<32x64xf32>
    %69 = vector.shape_cast %53 : vector<8x4x32xbf16> to vector<32x32xbf16>
    %c128 = arith.constant 128 : index
    %c0_27 = arith.constant 0 : index
    %70 = vector.load %arg4[%c128, %c0_27] : memref<160x64xbf16, #tpu.memory_space<vmem>>, vector<32x64xbf16>
    %cst_28 = arith.constant dense<0.000000e+00> : vector<32x64xf32>
    %71 = tpu.matmul %69, %70, %cst_28 {dimension_numbers = #tpu.dot_dimension_numbers<[1], [0], [0], [1], [0, 0, 1, 1], [], []>} : vector<32x32xbf16>, vector<32x64xbf16>, vector<32x64xf32> -> vector<32x64xf32>
    %72 = arith.addf %68, %71 : vector<32x64xf32>
    %c0_29 = arith.constant 0 : index
    %c0_30 = arith.constant 0 : index
    %73 = vector.load %arg5[%c0_29, %c0_30] : memref<1x64xf32, #tpu.memory_space<vmem>>, vector<1x64xf32>
    %74 = vector.broadcast %73 : vector<1x64xf32> to vector<32x64xf32>
    %75 = arith.addf %72, %74 : vector<32x64xf32>
    %76 = vector.shape_cast %75 : vector<32x64xf32> to vector<8x4x64xf32>
    %cst_31 = arith.constant dense<0.000000e+00> : vector<8x64xf32>
    %77 = vector.multi_reduction <add>, %76, %cst_31 [1] : vector<8x4x64xf32> to vector<8x64xf32>
    %78 = vector.shape_cast %77 : vector<8x64xf32> to vector<8x1x64xf32>
    %cst_32 = arith.constant 4.000000e+00 : f32
    %79 = vector.broadcast %cst_32 : f32 to vector<8x1x64xf32>
    %80 = arith.divf %78, %79 : vector<8x1x64xf32>
    %81 = arith.mulf %76, %76 : vector<8x4x64xf32>
    %cst_33 = arith.constant dense<0.000000e+00> : vector<8x64xf32>
    %82 = vector.multi_reduction <add>, %81, %cst_33 [1] : vector<8x4x64xf32> to vector<8x64xf32>
    %83 = vector.shape_cast %82 : vector<8x64xf32> to vector<8x1x64xf32>
    %cst_34 = arith.constant 4.000000e+00 : f32
    %84 = vector.broadcast %cst_34 : f32 to vector<8x1x64xf32>
    %85 = arith.divf %83, %84 : vector<8x1x64xf32>
    %86 = arith.mulf %80, %80 : vector<8x1x64xf32>
    %87 = arith.subf %85, %86 : vector<8x1x64xf32>
    %cst_35 = arith.constant 0.000000e+00 : f32
    %88 = vector.broadcast %cst_35 : f32 to vector<8x1x64xf32>
    %89 = arith.maximumf %87, %88 : vector<8x1x64xf32>
    %90 = vector.broadcast %80 : vector<8x1x64xf32> to vector<8x4x64xf32>
    %91 = arith.subf %76, %90 : vector<8x4x64xf32>
    %cst_36 = arith.constant 9.99999974E-6 : f32
    %92 = vector.broadcast %cst_36 : f32 to vector<8x1x64xf32>
    %93 = arith.addf %89, %92 : vector<8x1x64xf32>
    %94 = math.rsqrt %93 : vector<8x1x64xf32>
    %95 = vector.broadcast %94 : vector<8x1x64xf32> to vector<8x4x64xf32>
    %96 = arith.mulf %91, %95 : vector<8x4x64xf32>
    %cst_37 = arith.constant 0.000000e+00 : f32
    %97 = vector.broadcast %cst_37 : f32 to vector<8x4x64xf32>
    %98 = arith.cmpf ogt, %96, %97 : vector<8x4x64xf32>
    %cst_38 = arith.constant 2.000000e-01 : f32
    %99 = vector.broadcast %cst_38 : f32 to vector<8x4x64xf32>
    %100 = arith.mulf %99, %96 : vector<8x4x64xf32>
    %101 = arith.select %98, %96, %100 : vector<8x4x64xi1>, vector<8x4x64xf32>
    %102 = arith.truncf %101 : vector<8x4x64xf32> to vector<8x4x64xbf16>
    %cst_39 = arith.constant 0.000000e+00 : bf16
    %103 = vector.broadcast %cst_39 : bf16 to vector<8x2x64xbf16>
    %104 = tpu.concatenate %103, %102, %103 in 1 : vector<8x2x64xbf16>, vector<8x4x64xbf16>, vector<8x2x64xbf16> -> vector<8x8x64xbf16>
    %105 = vector.shape_cast %104 : vector<8x8x64xbf16> to vector<8x4x2x64xbf16>
    %106 = vector.extract_strided_slice %105 {offsets = [0, 0, 0, 0], sizes = [8, 4, 1, 64], strides = [1, 1, 1, 1]} : vector<8x4x2x64xbf16> to vector<8x4x1x64xbf16>
    %107 = vector.shape_cast %106 : vector<8x4x1x64xbf16> to vector<8x4x64xbf16>
    %108 = vector.extract_strided_slice %105 {offsets = [0, 0, 1, 0], sizes = [8, 4, 1, 64], strides = [1, 1, 1, 1]} : vector<8x4x2x64xbf16> to vector<8x4x1x64xbf16>
    %109 = vector.shape_cast %108 : vector<8x4x1x64xbf16> to vector<8x4x64xbf16>
    %110 = vector.extract_strided_slice %107 {offsets = [0, 0, 0], sizes = [8, 2, 64], strides = [1, 1, 1]} : vector<8x4x64xbf16> to vector<8x2x64xbf16>
    %111 = vector.extract_strided_slice %109 {offsets = [0, 0, 0], sizes = [8, 2, 64], strides = [1, 1, 1]} : vector<8x4x64xbf16> to vector<8x2x64xbf16>
    %112 = vector.extract_strided_slice %107 {offsets = [0, 1, 0], sizes = [8, 2, 64], strides = [1, 1, 1]} : vector<8x4x64xbf16> to vector<8x2x64xbf16>
    %113 = vector.extract_strided_slice %109 {offsets = [0, 1, 0], sizes = [8, 2, 64], strides = [1, 1, 1]} : vector<8x4x64xbf16> to vector<8x2x64xbf16>
    %114 = vector.extract_strided_slice %107 {offsets = [0, 2, 0], sizes = [8, 2, 64], strides = [1, 1, 1]} : vector<8x4x64xbf16> to vector<8x2x64xbf16>
    %115 = vector.shape_cast %110 : vector<8x2x64xbf16> to vector<16x64xbf16>
    %c0_40 = arith.constant 0 : index
    %c0_41 = arith.constant 0 : index
    %116 = vector.load %arg6[%c0_40, %c0_41] : memref<320x128xbf16, #tpu.memory_space<vmem>>, vector<64x128xbf16>
    %cst_42 = arith.constant dense<0.000000e+00> : vector<16x128xf32>
    %117 = tpu.matmul %115, %116, %cst_42 {dimension_numbers = #tpu.dot_dimension_numbers<[1], [0], [0], [1], [0, 0, 1, 1], [], []>} : vector<16x64xbf16>, vector<64x128xbf16>, vector<16x128xf32> -> vector<16x128xf32>
    %118 = vector.shape_cast %111 : vector<8x2x64xbf16> to vector<16x64xbf16>
    %c64_43 = arith.constant 64 : index
    %c0_44 = arith.constant 0 : index
    %119 = vector.load %arg6[%c64_43, %c0_44] : memref<320x128xbf16, #tpu.memory_space<vmem>>, vector<64x128xbf16>
    %cst_45 = arith.constant dense<0.000000e+00> : vector<16x128xf32>
    %120 = tpu.matmul %118, %119, %cst_45 {dimension_numbers = #tpu.dot_dimension_numbers<[1], [0], [0], [1], [0, 0, 1, 1], [], []>} : vector<16x64xbf16>, vector<64x128xbf16>, vector<16x128xf32> -> vector<16x128xf32>
    %121 = arith.addf %117, %120 : vector<16x128xf32>
    %122 = vector.shape_cast %112 : vector<8x2x64xbf16> to vector<16x64xbf16>
    %c128_46 = arith.constant 128 : index
    %c0_47 = arith.constant 0 : index
    %123 = vector.load %arg6[%c128_46, %c0_47] : memref<320x128xbf16, #tpu.memory_space<vmem>>, vector<64x128xbf16>
    %cst_48 = arith.constant dense<0.000000e+00> : vector<16x128xf32>
    %124 = tpu.matmul %122, %123, %cst_48 {dimension_numbers = #tpu.dot_dimension_numbers<[1], [0], [0], [1], [0, 0, 1, 1], [], []>} : vector<16x64xbf16>, vector<64x128xbf16>, vector<16x128xf32> -> vector<16x128xf32>
    %125 = arith.addf %121, %124 : vector<16x128xf32>
    %126 = vector.shape_cast %113 : vector<8x2x64xbf16> to vector<16x64xbf16>
    %c192 = arith.constant 192 : index
    %c0_49 = arith.constant 0 : index
    %127 = vector.load %arg6[%c192, %c0_49] : memref<320x128xbf16, #tpu.memory_space<vmem>>, vector<64x128xbf16>
    %cst_50 = arith.constant dense<0.000000e+00> : vector<16x128xf32>
    %128 = tpu.matmul %126, %127, %cst_50 {dimension_numbers = #tpu.dot_dimension_numbers<[1], [0], [0], [1], [0, 0, 1, 1], [], []>} : vector<16x64xbf16>, vector<64x128xbf16>, vector<16x128xf32> -> vector<16x128xf32>
    %129 = arith.addf %125, %128 : vector<16x128xf32>
    %130 = vector.shape_cast %114 : vector<8x2x64xbf16> to vector<16x64xbf16>
    %c256 = arith.constant 256 : index
    %c0_51 = arith.constant 0 : index
    %131 = vector.load %arg6[%c256, %c0_51] : memref<320x128xbf16, #tpu.memory_space<vmem>>, vector<64x128xbf16>
    %cst_52 = arith.constant dense<0.000000e+00> : vector<16x128xf32>
    %132 = tpu.matmul %130, %131, %cst_52 {dimension_numbers = #tpu.dot_dimension_numbers<[1], [0], [0], [1], [0, 0, 1, 1], [], []>} : vector<16x64xbf16>, vector<64x128xbf16>, vector<16x128xf32> -> vector<16x128xf32>
    %133 = arith.addf %129, %132 : vector<16x128xf32>
    %c0_53 = arith.constant 0 : index
    %c0_54 = arith.constant 0 : index
    %134 = vector.load %arg7[%c0_53, %c0_54] : memref<1x128xf32, #tpu.memory_space<vmem>>, vector<1x128xf32>
    %135 = vector.broadcast %134 : vector<1x128xf32> to vector<16x128xf32>
    %136 = arith.addf %133, %135 : vector<16x128xf32>
    %137 = vector.shape_cast %136 : vector<16x128xf32> to vector<8x2x128xf32>
    %cst_55 = arith.constant dense<0.000000e+00> : vector<8x128xf32>
    %138 = vector.multi_reduction <add>, %137, %cst_55 [1] : vector<8x2x128xf32> to vector<8x128xf32>
    %139 = vector.shape_cast %138 : vector<8x128xf32> to vector<8x1x128xf32>
    %cst_56 = arith.constant 2.000000e+00 : f32
    %140 = vector.broadcast %cst_56 : f32 to vector<8x1x128xf32>
    %141 = arith.divf %139, %140 : vector<8x1x128xf32>
    %142 = arith.mulf %137, %137 : vector<8x2x128xf32>
    %cst_57 = arith.constant dense<0.000000e+00> : vector<8x128xf32>
    %143 = vector.multi_reduction <add>, %142, %cst_57 [1] : vector<8x2x128xf32> to vector<8x128xf32>
    %144 = vector.shape_cast %143 : vector<8x128xf32> to vector<8x1x128xf32>
    %cst_58 = arith.constant 2.000000e+00 : f32
    %145 = vector.broadcast %cst_58 : f32 to vector<8x1x128xf32>
    %146 = arith.divf %144, %145 : vector<8x1x128xf32>
    %147 = arith.mulf %141, %141 : vector<8x1x128xf32>
    %148 = arith.subf %146, %147 : vector<8x1x128xf32>
    %cst_59 = arith.constant 0.000000e+00 : f32
    %149 = vector.broadcast %cst_59 : f32 to vector<8x1x128xf32>
    %150 = arith.maximumf %148, %149 : vector<8x1x128xf32>
    %151 = vector.broadcast %141 : vector<8x1x128xf32> to vector<8x2x128xf32>
    %152 = arith.subf %137, %151 : vector<8x2x128xf32>
    %cst_60 = arith.constant 9.99999974E-6 : f32
    %153 = vector.broadcast %cst_60 : f32 to vector<8x1x128xf32>
    %154 = arith.addf %150, %153 : vector<8x1x128xf32>
    %155 = math.rsqrt %154 : vector<8x1x128xf32>
    %156 = vector.broadcast %155 : vector<8x1x128xf32> to vector<8x2x128xf32>
    %157 = arith.mulf %152, %156 : vector<8x2x128xf32>
    %cst_61 = arith.constant 0.000000e+00 : f32
    %158 = vector.broadcast %cst_61 : f32 to vector<8x2x128xf32>
    %159 = arith.cmpf ogt, %157, %158 : vector<8x2x128xf32>
    %cst_62 = arith.constant 2.000000e-01 : f32
    %160 = vector.broadcast %cst_62 : f32 to vector<8x2x128xf32>
    %161 = arith.mulf %160, %157 : vector<8x2x128xf32>
    %162 = arith.select %159, %157, %161 : vector<8x2x128xi1>, vector<8x2x128xf32>
    %cst_63 = arith.constant dense<0.000000e+00> : vector<8x128xf32>
    %163 = vector.multi_reduction <add>, %162, %cst_63 [1] : vector<8x2x128xf32> to vector<8x128xf32>
    %cst_64 = arith.constant 2.000000e+00 : f32
    %164 = vector.broadcast %cst_64 : f32 to vector<8x128xf32>
    %165 = arith.divf %163, %164 : vector<8x128xf32>
    %166 = arith.truncf %165 : vector<8x128xf32> to vector<8x128xbf16>
    %c0_65 = arith.constant 0 : index
    %c0_66 = arith.constant 0 : index
    %167 = vector.load %arg8[%c0_65, %c0_66] : memref<128x32xbf16, #tpu.memory_space<vmem>>, vector<128x32xbf16>
    %cst_67 = arith.constant dense<0.000000e+00> : vector<8x32xf32>
    %168 = tpu.matmul %166, %167, %cst_67 {dimension_numbers = #tpu.dot_dimension_numbers<[1], [0], [0], [1], [0, 0, 1, 1], [], []>} : vector<8x128xbf16>, vector<128x32xbf16>, vector<8x32xf32> -> vector<8x32xf32>
    %c0_68 = arith.constant 0 : index
    %c0_69 = arith.constant 0 : index
    %169 = vector.load %arg9[%c0_68, %c0_69] : memref<1x32xf32, #tpu.memory_space<vmem>>, vector<1x32xf32>
    %170 = vector.broadcast %169 : vector<1x32xf32> to vector<8x32xf32>
    %171 = arith.addf %168, %170 : vector<8x32xf32>
    %cst_70 = arith.constant 0.000000e+00 : f32
    %172 = vector.broadcast %cst_70 : f32 to vector<8x32xf32>
    %173 = arith.maximumf %171, %172 : vector<8x32xf32>
    %174 = arith.truncf %173 : vector<8x32xf32> to vector<8x32xbf16>
    %c0_71 = arith.constant 0 : index
    %c0_72 = arith.constant 0 : index
    %175 = vector.load %arg10[%c0_71, %c0_72] : memref<32x1xbf16, #tpu.memory_space<vmem>>, vector<32x1xbf16>
    %cst_73 = arith.constant dense<0.000000e+00> : vector<8x1xf32>
    %176 = tpu.matmul %174, %175, %cst_73 {dimension_numbers = #tpu.dot_dimension_numbers<[1], [0], [0], [1], [0, 0, 1, 1], [], []>} : vector<8x32xbf16>, vector<32x1xbf16>, vector<8x1xf32> -> vector<8x1xf32>
    %c0_74 = arith.constant 0 : index
    %c0_75 = arith.constant 0 : index
    %177 = vector.load %arg11[%c0_74, %c0_75] : memref<1x1xf32, #tpu.memory_space<vmem>>, vector<1x1xf32>
    %178 = vector.broadcast %177 : vector<1x1xf32> to vector<8x1xf32>
    %179 = arith.addf %176, %178 : vector<8x1xf32>
    %cst_76 = arith.constant 0.000000e+00 : f32
    %180 = vector.broadcast %cst_76 : f32 to vector<8x1xf32>
    %181 = arith.subf %180, %179 : vector<8x1xf32>
    %182 = math.exp %181 : vector<8x1xf32>
    %cst_77 = arith.constant 1.000000e+00 : f32
    %183 = vector.broadcast %cst_77 : f32 to vector<8x1xf32>
    %184 = arith.addf %183, %182 : vector<8x1xf32>
    %185 = tpu.reciprocal %184 {approx = true} : vector<8x1xf32> -> vector<8x1xf32>
    %c0_78 = arith.constant 0 : index
    %c0_79 = arith.constant 0 : index
    %186 = vector.load %arg12[%c0_78, %c0_79] : memref<8x1xf32, #tpu.memory_space<vmem>>, vector<8x1xf32>
    tpu.vector_store %arg12[%c0_78, %c0_79], %185 {strides = array<i32>} : memref<8x1xf32, #tpu.memory_space<vmem>>, vector<8x1xf32>,
    return
  }
  func.func @transform_0(%arg0: i32) -> (i32, i32, i32) {
    %c0_i32 = arith.constant 0 : i32
    %c0_i32_0 = arith.constant 0 : i32
    %c0_i32_1 = arith.constant 0 : i32
    return %arg0, %c0_i32, %c0_i32_0 : i32, i32, i32
  }
  func.func @transform_1(%arg0: i32) -> (i32, i32) {
    %c0_i32 = arith.constant 0 : i32
    %c0_i32_0 = arith.constant 0 : i32
    %c0_i32_1 = arith.constant 0 : i32
    return %c0_i32, %c0_i32_0 : i32, i32
  }
  func.func @transform_2(%arg0: i32) -> (i32, i32) {
    %c0_i32 = arith.constant 0 : i32
    %c0_i32_0 = arith.constant 0 : i32
    %c0_i32_1 = arith.constant 0 : i32
    return %c0_i32, %c0_i32_0 : i32, i32
  }
  func.func @transform_3(%arg0: i32) -> (i32, i32) {
    %c0_i32 = arith.constant 0 : i32
    %c0_i32_0 = arith.constant 0 : i32
    %c0_i32_1 = arith.constant 0 : i32
    return %c0_i32, %c0_i32_0 : i32, i32
  }
  func.func @transform_4(%arg0: i32) -> (i32, i32) {
    %c0_i32 = arith.constant 0 : i32
    %c0_i32_0 = arith.constant 0 : i32
    %c0_i32_1 = arith.constant 0 : i32
    return %c0_i32, %c0_i32_0 : i32, i32
  }
  func.func @transform_5(%arg0: i32) -> (i32, i32) {
    %c0_i32 = arith.constant 0 : i32
    %c0_i32_0 = arith.constant 0 : i32
    %c0_i32_1 = arith.constant 0 : i32
    return %c0_i32, %c0_i32_0 : i32, i32
  }
  func.func @transform_6(%arg0: i32) -> (i32, i32) {
    %c0_i32 = arith.constant 0 : i32
    %c0_i32_0 = arith.constant 0 : i32
    %c0_i32_1 = arith.constant 0 : i32
    return %c0_i32, %c0_i32_0 : i32, i32
  }
  func.func @transform_7(%arg0: i32) -> (i32, i32) {
    %c0_i32 = arith.constant 0 : i32
    %c0_i32_0 = arith.constant 0 : i32
    %c0_i32_1 = arith.constant 0 : i32
    return %c0_i32, %c0_i32_0 : i32, i32
  }
  func.func @transform_8(%arg0: i32) -> (i32, i32) {
    %c0_i32 = arith.constant 0 : i32
    %c0_i32_0 = arith.constant 0 : i32
    %c0_i32_1 = arith.constant 0 : i32
    return %c0_i32, %c0_i32_0 : i32, i32
  }
  func.func @transform_9(%arg0: i32) -> (i32, i32) {
    %c0_i32 = arith.constant 0 : i32
    %c0_i32_0 = arith.constant 0 : i32
    %c0_i32_1 = arith.constant 0 : i32
    return %c0_i32, %c0_i32_0 : i32, i32
  }
  func.func @transform_10(%arg0: i32) -> (i32, i32) {
    %c0_i32 = arith.constant 0 : i32
    %c0_i32_0 = arith.constant 0 : i32
    %c0_i32_1 = arith.constant 0 : i32
    return %c0_i32, %c0_i32_0 : i32, i32
  }
  func.func @transform_11(%arg0: i32) -> (i32, i32) {
    %c0_i32 = arith.constant 0 : i32
    %c0_i32_0 = arith.constant 0 : i32
    return %arg0, %c0_i32 : i32, i32
  }
}

</mosaic_0001>

<llo_original>
// kernel: tpu_custom_call.1
$region0: #{tpu_custom_call.1}
  #allocation0 [shape = 'u32[]', space=smem, size = 0x4, offset = 0x4, fixed_abs, tag = 'smem constant byte address 0x4 - core index']
  #allocation1 [shape = 'u32[144,128]{1,0:T(1,128)}', space=vmem, size = 0x12000, scoped, tag = 'internal scratch']
  #allocation2 [shape = 'f32[1,1]{1,0:T(1,128)S(1)}', space=vmem, size = 0x200, scoped, tag = 'scoped memory for tpu_custom_call.1']
  %s0 = inlined_call_operand.vmem [shape: bf16[8,16,4], index: 0, kind: input, shape index: {}]
  %s1 = inlined_call_operand.vmem [shape: bf16[20,32], index: 1, kind: input, shape index: {}]
  %s2 = inlined_call_operand.vmem [shape: f32[1,32], index: 2, kind: input, shape index: {}]
  %s3 = inlined_call_operand.vmem [shape: bf16[160,64], index: 3, kind: input, shape index: {}]
  %s4 = inlined_call_operand.vmem [shape: f32[1,64], index: 4, kind: input, shape index: {}]
  %s5 = inlined_call_operand.vmem [shape: bf16[320,128], index: 5, kind: input, shape index: {}]
  %s6 = inlined_call_operand.vmem [shape: f32[1,128], index: 6, kind: input, shape index: {}]
  %s7 = inlined_call_operand.vmem [shape: bf16[128,32], index: 7, kind: input, shape index: {}]
  %s8 = inlined_call_operand.vmem [shape: f32[1,32], index: 8, kind: input, shape index: {}]
  %s9 = inlined_call_operand.vmem [shape: bf16[32,1], index: 9, kind: input, shape index: {}]
  %s10 = inlined_call_operand.<no memory space> [shape: f32[1,1], index: 10, kind: input, shape index: {}]
  %s11 = inlined_call_operand.vmem [shape: f32[8,1], index: 11, kind: output, shape index: {}]
  %s12 = sld [smem:[#allocation0]]
  $region54: #{tpu_custom_call.1} parent=0
    _
  %s14 = ssub.s32 1, %s12
  %s15 = scalar_select 0, %s14, %s12
  %v16 = vstv %s10
  %17 = vst [vmem:[#allocation2] sm:$0x1] %v16
  // Predicated region
  $region2: #{tpu_custom_call.1} parent=0 // pred_check
    _
  $region3: #{tpu_custom_call.1} parent=0 // pred_check_branch
    %19 = sbr.rel (0) target = $region5
  $region4: #{tpu_custom_call.1} parent=0 // pred_region
    _
  $region5: #{tpu_custom_call.1} parent=0 // pred_fallthru
    _
  // Predicated region
  $region6: #{tpu_custom_call.1} parent=0 // pred_check
    _
  $region7: #{tpu_custom_call.1} parent=0 // pred_check_branch
    %21 = sbr.rel (0) target = $region9
  $region8: #{tpu_custom_call.1} parent=0 // pred_region
    _
  $region9: #{tpu_custom_call.1} parent=0 // pred_fallthru
    _
  // Predicated region
  $region10: #{tpu_custom_call.1} parent=0 // pred_check
    _
  $region11: #{tpu_custom_call.1} parent=0 // pred_check_branch
    %23 = sbr.rel (0) target = $region13
  $region12: #{tpu_custom_call.1} parent=0 // pred_region
    _
  $region13: #{tpu_custom_call.1} parent=0 // pred_fallthru
    _
  // Predicated region
  $region14: #{tpu_custom_call.1} parent=0 // pred_check
    _
  $region15: #{tpu_custom_call.1} parent=0 // pred_check_branch
    %25 = sbr.rel (0) target = $region17
  $region16: #{tpu_custom_call.1} parent=0 // pred_region
    _
  $region17: #{tpu_custom_call.1} parent=0 // pred_fallthru
    _
  // Predicated region
  $region18: #{tpu_custom_call.1} parent=0 // pred_check
    _
  $region19: #{tpu_custom_call.1} parent=0 // pred_check_branch
    %27 = sbr.rel (0) target = $region21
  $region20: #{tpu_custom_call.1} parent=0 // pred_region
    _
  $region21: #{tpu_custom_call.1} parent=0 // pred_fallthru
    _
  // Predicated region
  $region22: #{tpu_custom_call.1} parent=0 // pred_check
    _
  $region23: #{tpu_custom_call.1} parent=0 // pred_check_branch
    %29 = sbr.rel (0) target = $region25
  $region24: #{tpu_custom_call.1} parent=0 // pred_region
    _
  $region25: #{tpu_custom_call.1} parent=0 // pred_fallthru
    _
  // Predicated region
  $region26: #{tpu_custom_call.1} parent=0 // pred_check
    _
  $region27: #{tpu_custom_call.1} parent=0 // pred_check_branch
    %31 = sbr.rel (0) target = $region29
  $region28: #{tpu_custom_call.1} parent=0 // pred_region
    _
  $region29: #{tpu_custom_call.1} parent=0 // pred_fallthru
    _
  // Predicated region
  $region30: #{tpu_custom_call.1} parent=0 // pred_check
    _
  $region31: #{tpu_custom_call.1} parent=0 // pred_check_branch
    %33 = sbr.rel (0) target = $region33
  $region32: #{tpu_custom_call.1} parent=0 // pred_region
    _
  $region33: #{tpu_custom_call.1} parent=0 // pred_fallthru
    _
  // Predicated region
  $region34: #{tpu_custom_call.1} parent=0 // pred_check
    _
  $region35: #{tpu_custom_call.1} parent=0 // pred_check_branch
    %35 = sbr.rel (0) target = $region37
  $region36: #{tpu_custom_call.1} parent=0 // pred_region
    _
  $region37: #{tpu_custom_call.1} parent=0 // pred_fallthru
    _
  // Predicated region
  $region38: #{tpu_custom_call.1} parent=0 // pred_check
    _
  $region39: #{tpu_custom_call.1} parent=0 // pred_check_branch
    %37 = sbr.rel (0) target = $region41
  $region40: #{tpu_custom_call.1} parent=0 // pred_region
    _
  $region41: #{tpu_custom_call.1} parent=0 // pred_fallthru
    _
  // Predicated region
  $region42: #{tpu_custom_call.1} parent=0 // pred_check
    _
  $region43: #{tpu_custom_call.1} parent=0 // pred_check_branch
    %39 = sbr.rel (0) target = $region45
  $region44: #{tpu_custom_call.1} parent=0 // pred_region
    _
  $region45: #{tpu_custom_call.1} parent=0 // pred_fallthru
    _
  %v41 = vld [vmem:[%s0] sm:$0xf]
  %v42 = vld [vmem:[%s0 + $0x4] sm:$0xf]
  %v43 = vld [vmem:[%s0 + $0x8] sm:$0xf]
  %v44 = vld [vmem:[%s0 + $0xc] sm:$0xf]
  %v45 = vld [vmem:[%s0 + $0x10] sm:$0xf]
  %v46 = vld [vmem:[%s0 + $0x14] sm:$0xf]
  %v47 = vld [vmem:[%s0 + $0x18] sm:$0xf]
  %v48 = vld [vmem:[%s0 + $0x1c] sm:$0xf]
  %v49 = vld [vmem:[%s0 + $0x20] sm:$0xf]
  %v50 = vld [vmem:[%s0 + $0x24] sm:$0xf]
  %v51 = vld [vmem:[%s0 + $0x28] sm:$0xf]
  %v52 = vld [vmem:[%s0 + $0x2c] sm:$0xf]
  %v53 = vld [vmem:[%s0 + $0x30] sm:$0xf]
  %v54 = vld [vmem:[%s0 + $0x34] sm:$0xf]
  %v55 = vld [vmem:[%s0 + $0x38] sm:$0xf]
  %v56 = vld [vmem:[%s0 + $0x3c] sm:$0xf]
  %v73 = vunpack.c.l.b16 %v41
  %v74 = vunpack.c.l.b16 %v42
  %v75 = vunpack.c.l.b16 %v43
  %v76 = vunpack.c.l.b16 %v44
  %v77 = vunpack.c.l.b16 %v45
  %v78 = vunpack.c.l.b16 %v46
  %v79 = vunpack.c.l.b16 %v47
  %v80 = vunpack.c.l.b16 %v48
  %v81 = vunpack.c.l.b16 %v49
  %v82 = vunpack.c.l.b16 %v50
  %v83 = vunpack.c.l.b16 %v51
  %v84 = vunpack.c.l.b16 %v52
  %v85 = vunpack.c.l.b16 %v53
  %v86 = vunpack.c.l.b16 %v54
  %v87 = vunpack.c.l.b16 %v55
  %v88 = vunpack.c.l.b16 %v56
  %v89 = vpack.c.b16 %v74, %v73
  %v90 = vpack.c.b16 %v76, %v75
  %v91 = vpack.c.b16 %v78, %v77
  %v92 = vpack.c.b16 %v80, %v79
  %v93 = vpack.c.b16 %v82, %v81
  %v94 = vpack.c.b16 %v84, %v83
  %v95 = vpack.c.b16 %v86, %v85
  %v96 = vpack.c.b16 %v88, %v87
  %v97 = vrot.slane %v89, 7
  %v98 = vrot.slane %v90, 7
  %v99 = vrot.slane %v91, 7
  %v100 = vrot.slane %v92, 7
  %v101 = vrot.slane %v93, 7
  %v102 = vrot.slane %v94, 7
  %v103 = vrot.slane %v95, 7
  %v104 = vrot.slane %v96, 7
  %vm105 = vcmask 1040384
  %v108 = vsel %vm105, 0, %v97
  %v110 = vsel %vm105, 0, %v98
  %v112 = vsel %vm105, 0, %v99
  %v114 = vsel %vm105, 0, %v100
  %v116 = vsel %vm105, 0, %v101
  %v118 = vsel %vm105, 0, %v102
  %v120 = vsel %vm105, 0, %v103
  %v122 = vsel %vm105, 0, %v104
  %v123 = vsel %vm105, %v97, 0
  %v124 = vsel %vm105, %v98, 0
  %v125 = vsel %vm105, %v99, 0
  %v126 = vsel %vm105, %v100, 0
  %v127 = vsel %vm105, %v101, 0
  %v128 = vsel %vm105, %v102, 0
  %v129 = vsel %vm105, %v103, 0
  %v130 = vsel %vm105, %v104, 0
  %v147 = vcombine.high %v108, %v108
  %v149 = vunpack.c.l.s4 1966171168
  %v150 = vunpack.c.0.s8 %v149
  %v151 = vlaneseq
  %v152 = vshrl.u32 %v151, 7
  %v153 = vsub.s32 %v150, %v152
  %v154 = vrot.slane %v108, %v153
  %v156 = vunpack.c.l.s4 1966171168
  %v157 = vunpack.c.0.s8 %v156
  %v158 = vlaneseq
  %v159 = vshrl.u32 %v158, 7
  %v160 = vsub.s32 %v157, %v159
  %v161 = vrot.slane %v147, %v160
  %v162 = vcombine.high %v154, %v154
  %v163 = vcombine.high %v161, %v161
  %v165 = vunpack.c.l.s4 1966171168
  %v166 = vunpack.c.0.s8 %v165
  %v167 = vlaneseq
  %v168 = vshrl.u32 %v167, 7
  %v169 = vsub.s32 %v166, %v168
  %v170 = vrot.slane %v154, %v169
  %v172 = vunpack.c.l.s4 1966171168
  %v173 = vunpack.c.0.s8 %v172
  %v174 = vlaneseq
  %v175 = vshrl.u32 %v174, 7
  %v176 = vsub.s32 %v173, %v175
  %v177 = vrot.slane %v161, %v176
  %v179 = vunpack.c.l.s4 1966171168
  %v180 = vunpack.c.0.s8 %v179
  %v181 = vlaneseq
  %v182 = vshrl.u32 %v181, 7
  %v183 = vsub.s32 %v180, %v182
  %v184 = vrot.slane %v162, %v183
  %v186 = vunpack.c.l.s4 1966171168
  %v187 = vunpack.c.0.s8 %v186
  %v188 = vlaneseq
  %v189 = vshrl.u32 %v188, 7
  %v190 = vsub.s32 %v187, %v189
  %v191 = vrot.slane %v163, %v190
  %v192 = vcombine.high %v170, %v170
  %v193 = vcombine.high %v177, %v177
  %v194 = vcombine.high %v184, %v184
  %v195 = vcombine.high %v191, %v191
  %v197 = vunpack.c.l.s4 1966171168
  %v198 = vunpack.c.0.s8 %v197
  %v199 = vlaneseq
  %v200 = vshrl.u32 %v199, 7
  %v201 = vsub.s32 %v198, %v200
  %v202 = vrot.slane %v123, %v201
  %v203 = vcombine.high %v202, %v202
  %v205 = vunpack.c.l.s4 1966171168
  %v206 = vunpack.c.0.s8 %v205
  %v207 = vlaneseq
  %v208 = vshrl.u32 %v207, 7
  %v209 = vsub.s32 %v206, %v208
  %v210 = vrot.slane %v202, %v209
  %v212 = vunpack.c.l.s4 1966171168
  %v213 = vunpack.c.0.s8 %v212
  %v214 = vlaneseq
  %v215 = vshrl.u32 %v214, 7
  %v216 = vsub.s32 %v213, %v215
  %v217 = vrot.slane %v203, %v216
  %v218 = vcombine.high %v110, %v110
  %v220 = vunpack.c.l.s4 1966171168
  %v221 = vunpack.c.0.s8 %v220
  %v222 = vlaneseq
  %v223 = vshrl.u32 %v222, 7
  %v224 = vsub.s32 %v221, %v223
  %v225 = vrot.slane %v110, %v224
  %v227 = vunpack.c.l.s4 1966171168
  %v228 = vunpack.c.0.s8 %v227
  %v229 = vlaneseq
  %v230 = vshrl.u32 %v229, 7
  %v231 = vsub.s32 %v228, %v230
  %v232 = vrot.slane %v218, %v231
  %v233 = vcombine.high %v225, %v225
  %v234 = vcombine.high %v232, %v232
  %v236 = vunpack.c.l.s4 1966171168
  %v237 = vunpack.c.0.s8 %v236
  %v238 = vlaneseq
  %v239 = vshrl.u32 %v238, 7
  %v240 = vsub.s32 %v237, %v239
  %v241 = vrot.slane %v225, %v240
  %v243 = vunpack.c.l.s4 1966171168
  %v244 = vunpack.c.0.s8 %v243
  %v245 = vlaneseq
  %v246 = vshrl.u32 %v245, 7
  %v247 = vsub.s32 %v244, %v246
  %v248 = vrot.slane %v232, %v247
  %v250 = vunpack.c.l.s4 1966171168
  %v251 = vunpack.c.0.s8 %v250
  %v252 = vlaneseq
  %v253 = vshrl.u32 %v252, 7
  %v254 = vsub.s32 %v251, %v253
  %v255 = vrot.slane %v233, %v254
  %v257 = vunpack.c.l.s4 1966171168
  %v258 = vunpack.c.0.s8 %v257
  %v259 = vlaneseq
  %v260 = vshrl.u32 %v259, 7
  %v261 = vsub.s32 %v258, %v260
  %v262 = vrot.slane %v234, %v261
  %v263 = vcombine.high %v241, %v241
  %v264 = vcombine.high %v248, %v248
  %v265 = vcombine.high %v255, %v255
  %v266 = vcombine.high %v262, %v262
  %v268 = vunpack.c.l.s4 1966171168
  %v269 = vunpack.c.0.s8 %v268
  %v270 = vlaneseq
  %v271 = vshrl.u32 %v270, 7
  %v272 = vsub.s32 %v269, %v271
  %v273 = vrot.slane %v124, %v272
  %v274 = vcombine.high %v273, %v273
  %v276 = vunpack.c.l.s4 1966171168
  %v277 = vunpack.c.0.s8 %v276
  %v278 = vlaneseq
  %v279 = vshrl.u32 %v278, 7
  %v280 = vsub.s32 %v277, %v279
  %v281 = vrot.slane %v273, %v280
  %v283 = vunpack.c.l.s4 1966171168
  %v284 = vunpack.c.0.s8 %v283
  %v285 = vlaneseq
  %v286 = vshrl.u32 %v285, 7
  %v287 = vsub.s32 %v284, %v286
  %v288 = vrot.slane %v274, %v287
  %v289 = vcombine.high %v112, %v112
  %v291 = vunpack.c.l.s4 1966171168
  %v292 = vunpack.c.0.s8 %v291
  %v293 = vlaneseq
  %v294 = vshrl.u32 %v293, 7
  %v295 = vsub.s32 %v292, %v294
  %v296 = vrot.slane %v112, %v295
  %v298 = vunpack.c.l.s4 1966171168
  %v299 = vunpack.c.0.s8 %v298
  %v300 = vlaneseq
  %v301 = vshrl.u32 %v300, 7
  %v302 = vsub.s32 %v299, %v301
  %v303 = vrot.slane %v289, %v302
  %v304 = vcombine.high %v296, %v296
  %v305 = vcombine.high %v303, %v303
  %v307 = vunpack.c.l.s4 1966171168
  %v308 = vunpack.c.0.s8 %v307
  %v309 = vlaneseq
  %v310 = vshrl.u32 %v309, 7
  %v311 = vsub.s32 %v308, %v310
  %v312 = vrot.slane %v296, %v311
  %v314 = vunpack.c.l.s4 1966171168
  %v315 = vunpack.c.0.s8 %v314
  %v316 = vlaneseq
  %v317 = vshrl.u32 %v316, 7
  %v318 = vsub.s32 %v315, %v317
  %v319 = vrot.slane %v303, %v318
  %v321 = vunpack.c.l.s4 1966171168
  %v322 = vunpack.c.0.s8 %v321
  %v323 = vlaneseq
  %v324 = vshrl.u32 %v323, 7
  %v325 = vsub.s32 %v322, %v324
  %v326 = vrot.slane %v304, %v325
  %v328 = vunpack.c.l.s4 1966171168
  %v329 = vunpack.c.0.s8 %v328
  %v330 = vlaneseq
  %v331 = vshrl.u32 %v330, 7
  %v332 = vsub.s32 %v329, %v331
  %v333 = vrot.slane %v305, %v332
  %v334 = vcombine.high %v312, %v312
  %v335 = vcombine.high %v319, %v319
  %v336 = vcombine.high %v326, %v326
  %v337 = vcombine.high %v333, %v333
  %v339 = vunpack.c.l.s4 1966171168
  %v340 = vunpack.c.0.s8 %v339
  %v341 = vlaneseq
  %v342 = vshrl.u32 %v341, 7
  %v343 = vsub.s32 %v340, %v342
  %v344 = vrot.slane %v125, %v343
  %v345 = vcombine.high %v344, %v344
  %v347 = vunpack.c.l.s4 1966171168
  %v348 = vunpack.c.0.s8 %v347
  %v349 = vlaneseq
  %v350 = vshrl.u32 %v349, 7
  %v351 = vsub.s32 %v348, %v350
  %v352 = vrot.slane %v344, %v351
  %v354 = vunpack.c.l.s4 1966171168
  %v355 = vunpack.c.0.s8 %v354
  %v356 = vlaneseq
  %v357 = vshrl.u32 %v356, 7
  %v358 = vsub.s32 %v355, %v357
  %v359 = vrot.slane %v345, %v358
  %v360 = vcombine.high %v114, %v114
  %v362 = vunpack.c.l.s4 1966171168
  %v363 = vunpack.c.0.s8 %v362
  %v364 = vlaneseq
  %v365 = vshrl.u32 %v364, 7
  %v366 = vsub.s32 %v363, %v365
  %v367 = vrot.slane %v114, %v366
  %v369 = vunpack.c.l.s4 1966171168
  %v370 = vunpack.c.0.s8 %v369
  %v371 = vlaneseq
  %v372 = vshrl.u32 %v371, 7
  %v373 = vsub.s32 %v370, %v372
  %v374 = vrot.slane %v360, %v373
  %v375 = vcombine.high %v367, %v367
  %v376 = vcombine.high %v374, %v374
  %v378 = vunpack.c.l.s4 1966171168
  %v379 = vunpack.c.0.s8 %v378
  %v380 = vlaneseq
  %v381 = vshrl.u32 %v380, 7
  %v382 = vsub.s32 %v379, %v381
  %v383 = vrot.slane %v367, %v382
  %v385 = vunpack.c.l.s4 1966171168
  %v386 = vunpack.c.0.s8 %v385
  %v387 = vlaneseq
  %v388 = vshrl.u32 %v387, 7
  %v389 = vsub.s32 %v386, %v388
  %v390 = vrot.slane %v374, %v389
  %v392 = vunpack.c.l.s4 1966171168
  %v393 = vunpack.c.0.s8 %v392
  %v394 = vlaneseq
  %v395 = vshrl.u32 %v394, 7
  %v396 = vsub.s32 %v393, %v395
  %v397 = vrot.slane %v375, %v396
  %v399 = vunpack.c.l.s4 1966171168
  %v400 = vunpack.c.0.s8 %v399
  %v401 = vlaneseq
  %v402 = vshrl.u32 %v401, 7
  %v403 = vsub.s32 %v400, %v402
  %v404 = vrot.slane %v376, %v403
  %v405 = vcombine.high %v383, %v383
  %v406 = vcombine.high %v390, %v390
  %v407 = vcombine.high %v397, %v397
  %v408 = vcombine.high %v404, %v404
  %v410 = vunpack.c.l.s4 1966171168
  %v411 = vunpack.c.0.s8 %v410
  %v412 = vlaneseq
  %v413 = vshrl.u32 %v412, 7
  %v414 = vsub.s32 %v411, %v413
  %v415 = vrot.slane %v126, %v414
  %v416 = vcombine.high %v415, %v415
  %v418 = vunpack.c.l.s4 1966171168
  %v419 = vunpack.c.0.s8 %v418
  %v420 = vlaneseq
  %v421 = vshrl.u32 %v420, 7
  %v422 = vsub.s32 %v419, %v421
  %v423 = vrot.slane %v415, %v422
  %v425 = vunpack.c.l.s4 1966171168
  %v426 = vunpack.c.0.s8 %v425
  %v427 = vlaneseq
  %v428 = vshrl.u32 %v427, 7
  %v429 = vsub.s32 %v426, %v428
  %v430 = vrot.slane %v416, %v429
  %v431 = vcombine.high %v116, %v116
  %v433 = vunpack.c.l.s4 1966171168
  %v434 = vunpack.c.0.s8 %v433
  %v435 = vlaneseq
  %v436 = vshrl.u32 %v435, 7
  %v437 = vsub.s32 %v434, %v436
  %v438 = vrot.slane %v116, %v437
  %v440 = vunpack.c.l.s4 1966171168
  %v441 = vunpack.c.0.s8 %v440
  %v442 = vlaneseq
  %v443 = vshrl.u32 %v442, 7
  %v444 = vsub.s32 %v441, %v443
  %v445 = vrot.slane %v431, %v444
  %v446 = vcombine.high %v438, %v438
  %v447 = vcombine.high %v445, %v445
  %v449 = vunpack.c.l.s4 1966171168
  %v450 = vunpack.c.0.s8 %v449
  %v451 = vlaneseq
  %v452 = vshrl.u32 %v451, 7
  %v453 = vsub.s32 %v450, %v452
  %v454 = vrot.slane %v438, %v453
  %v456 = vunpack.c.l.s4 1966171168
  %v457 = vunpack.c.0.s8 %v456
  %v458 = vlaneseq
  %v459 = vshrl.u32 %v458, 7
  %v460 = vsub.s32 %v457, %v459
  %v461 = vrot.slane %v445, %v460
  %v463 = vunpack.c.l.s4 1966171168
  %v464 = vunpack.c.0.s8 %v463
  %v465 = vlaneseq
  %v466 = vshrl.u32 %v465, 7
  %v467 = vsub.s32 %v464, %v466
  %v468 = vrot.slane %v446, %v467
  %v470 = vunpack.c.l.s4 1966171168
  %v471 = vunpack.c.0.s8 %v470
  %v472 = vlaneseq
  %v473 = vshrl.u32 %v472, 7
  %v474 = vsub.s32 %v471, %v473
  %v475 = vrot.slane %v447, %v474
  %v476 = vcombine.high %v454, %v454
  %v477 = vcombine.high %v461, %v461
  %v478 = vcombine.high %v468, %v468
  %v479 = vcombine.high %v475, %v475
  %v481 = vunpack.c.l.s4 1966171168
  %v482 = vunpack.c.0.s8 %v481
  %v483 = vlaneseq
  %v484 = vshrl.u32 %v483, 7
  %v485 = vsub.s32 %v482, %v484
  %v486 = vrot.slane %v127, %v485
  %v487 = vcombine.high %v486, %v486
  %v489 = vunpack.c.l.s4 1966171168
  %v490 = vunpack.c.0.s8 %v489
  %v491 = vlaneseq
  %v492 = vshrl.u32 %v491, 7
  %v493 = vsub.s32 %v490, %v492
  %v494 = vrot.slane %v486, %v493
  %v496 = vunpack.c.l.s4 1966171168
  %v497 = vunpack.c.0.s8 %v496
  %v498 = vlaneseq
  %v499 = vshrl.u32 %v498, 7
  %v500 = vsub.s32 %v497, %v499
  %v501 = vrot.slane %v487, %v500
  %v502 = vcombine.high %v118, %v118
  %v504 = vunpack.c.l.s4 1966171168
  %v505 = vunpack.c.0.s8 %v504
  %v506 = vlaneseq
  %v507 = vshrl.u32 %v506, 7
  %v508 = vsub.s32 %v505, %v507
  %v509 = vrot.slane %v118, %v508
  %v511 = vunpack.c.l.s4 1966171168
  %v512 = vunpack.c.0.s8 %v511
  %v513 = vlaneseq
  %v514 = vshrl.u32 %v513, 7
  %v515 = vsub.s32 %v512, %v514
  %v516 = vrot.slane %v502, %v515
  %v517 = vcombine.high %v509, %v509
  %v518 = vcombine.high %v516, %v516
  %v520 = vunpack.c.l.s4 1966171168
  %v521 = vunpack.c.0.s8 %v520
  %v522 = vlaneseq
  %v523 = vshrl.u32 %v522, 7
  %v524 = vsub.s32 %v521, %v523
  %v525 = vrot.slane %v509, %v524
  %v527 = vunpack.c.l.s4 1966171168
  %v528 = vunpack.c.0.s8 %v527
  %v529 = vlaneseq
  %v530 = vshrl.u32 %v529, 7
  %v531 = vsub.s32 %v528, %v530
  %v532 = vrot.slane %v516, %v531
  %v534 = vunpack.c.l.s4 1966171168
  %v535 = vunpack.c.0.s8 %v534
  %v536 = vlaneseq
  %v537 = vshrl.u32 %v536, 7
  %v538 = vsub.s32 %v535, %v537
  %v539 = vrot.slane %v517, %v538
  %v541 = vunpack.c.l.s4 1966171168
  %v542 = vunpack.c.0.s8 %v541
  %v543 = vlaneseq
  %v544 = vshrl.u32 %v543, 7
  %v545 = vsub.s32 %v542, %v544
  %v546 = vrot.slane %v518, %v545
  %v547 = vcombine.high %v525, %v525
  %v548 = vcombine.high %v532, %v532
  %v549 = vcombine.high %v539, %v539
  %v550 = vcombine.high %v546, %v546
  %v552 = vunpack.c.l.s4 1966171168
  %v553 = vunpack.c.0.s8 %v552
  %v554 = vlaneseq
  %v555 = vshrl.u32 %v554, 7
  %v556 = vsub.s32 %v553, %v555
  %v557 = vrot.slane %v128, %v556
  %v558 = vcombine.high %v557, %v557
  %v560 = vunpack.c.l.s4 1966171168
  %v561 = vunpack.c.0.s8 %v560
  %v562 = vlaneseq
  %v563 = vshrl.u32 %v562, 7
  %v564 = vsub.s32 %v561, %v563
  %v565 = vrot.slane %v557, %v564
  %v567 = vunpack.c.l.s4 1966171168
  %v568 = vunpack.c.0.s8 %v567
  %v569 = vlaneseq
  %v570 = vshrl.u32 %v569, 7
  %v571 = vsub.s32 %v568, %v570
  %v572 = vrot.slane %v558, %v571
  %v573 = vcombine.high %v120, %v120
  %v575 = vunpack.c.l.s4 1966171168
  %v576 = vunpack.c.0.s8 %v575
  %v577 = vlaneseq
  %v578 = vshrl.u32 %v577, 7
  %v579 = vsub.s32 %v576, %v578
  %v580 = vrot.slane %v120, %v579
  %v582 = vunpack.c.l.s4 1966171168
  %v583 = vunpack.c.0.s8 %v582
  %v584 = vlaneseq
  %v585 = vshrl.u32 %v584, 7
  %v586 = vsub.s32 %v583, %v585
  %v587 = vrot.slane %v573, %v586
  %v588 = vcombine.high %v580, %v580
  %v589 = vcombine.high %v587, %v587
  %v591 = vunpack.c.l.s4 1966171168
  %v592 = vunpack.c.0.s8 %v591
  %v593 = vlaneseq
  %v594 = vshrl.u32 %v593, 7
  %v595 = vsub.s32 %v592, %v594
  %v596 = vrot.slane %v580, %v595
  %v598 = vunpack.c.l.s4 1966171168
  %v599 = vunpack.c.0.s8 %v598
  %v600 = vlaneseq
  %v601 = vshrl.u32 %v600, 7
  %v602 = vsub.s32 %v599, %v601
  %v603 = vrot.slane %v587, %v602
  %v605 = vunpack.c.l.s4 1966171168
  %v606 = vunpack.c.0.s8 %v605
  %v607 = vlaneseq
  %v608 = vshrl.u32 %v607, 7
  %v609 = vsub.s32 %v606, %v608
  %v610 = vrot.slane %v588, %v609
  %v612 = vunpack.c.l.s4 1966171168
  %v613 = vunpack.c.0.s8 %v612
  %v614 = vlaneseq
  %v615 = vshrl.u32 %v614, 7
  %v616 = vsub.s32 %v613, %v615
  %v617 = vrot.slane %v589, %v616
  %v618 = vcombine.high %v596, %v596
  %v619 = vcombine.high %v603, %v603
  %v620 = vcombine.high %v610, %v610
  %v621 = vcombine.high %v617, %v617
  %v623 = vunpack.c.l.s4 1966171168
  %v624 = vunpack.c.0.s8 %v623
  %v625 = vlaneseq
  %v626 = vshrl.u32 %v625, 7
  %v627 = vsub.s32 %v624, %v626
  %v628 = vrot.slane %v129, %v627
  %v629 = vcombine.high %v628, %v628
  %v631 = vunpack.c.l.s4 1966171168
  %v632 = vunpack.c.0.s8 %v631
  %v633 = vlaneseq
  %v634 = vshrl.u32 %v633, 7
  %v635 = vsub.s32 %v632, %v634
  %v636 = vrot.slane %v628, %v635
  %v638 = vunpack.c.l.s4 1966171168
  %v639 = vunpack.c.0.s8 %v638
  %v640 = vlaneseq
  %v641 = vshrl.u32 %v640, 7
  %v642 = vsub.s32 %v639, %v641
  %v643 = vrot.slane %v629, %v642
  %v644 = vcombine.high %v122, %v122
  %v646 = vunpack.c.l.s4 1966171168
  %v647 = vunpack.c.0.s8 %v646
  %v648 = vlaneseq
  %v649 = vshrl.u32 %v648, 7
  %v650 = vsub.s32 %v647, %v649
  %v651 = vrot.slane %v122, %v650
  %v653 = vunpack.c.l.s4 1966171168
  %v654 = vunpack.c.0.s8 %v653
  %v655 = vlaneseq
  %v656 = vshrl.u32 %v655, 7
  %v657 = vsub.s32 %v654, %v656
  %v658 = vrot.slane %v644, %v657
  %v659 = vcombine.high %v651, %v651
  %v660 = vcombine.high %v658, %v658
  %v662 = vunpack.c.l.s4 1966171168
  %v663 = vunpack.c.0.s8 %v662
  %v664 = vlaneseq
  %v665 = vshrl.u32 %v664, 7
  %v666 = vsub.s32 %v663, %v665
  %v667 = vrot.slane %v651, %v666
  %v669 = vunpack.c.l.s4 1966171168
  %v670 = vunpack.c.0.s8 %v669
  %v671 = vlaneseq
  %v672 = vshrl.u32 %v671, 7
  %v673 = vsub.s32 %v670, %v672
  %v674 = vrot.slane %v658, %v673
  %v676 = vunpack.c.l.s4 1966171168
  %v677 = vunpack.c.0.s8 %v676
  %v678 = vlaneseq
  %v679 = vshrl.u32 %v678, 7
  %v680 = vsub.s32 %v677, %v679
  %v681 = vrot.slane %v659, %v680
  %v683 = vunpack.c.l.s4 1966171168
  %v684 = vunpack.c.0.s8 %v683
  %v685 = vlaneseq
  %v686 = vshrl.u32 %v685, 7
  %v687 = vsub.s32 %v684, %v686
  %v688 = vrot.slane %v660, %v687
  %v689 = vcombine.high %v667, %v667
  %v690 = vcombine.high %v674, %v674
  %v691 = vcombine.high %v681, %v681
  %v692 = vcombine.high %v688, %v688
  %v694 = vunpack.c.l.s4 1966171168
  %v695 = vunpack.c.0.s8 %v694
  %v696 = vlaneseq
  %v697 = vshrl.u32 %v696, 7
  %v698 = vsub.s32 %v695, %v697
  %v699 = vrot.slane %v130, %v698
  %v700 = vcombine.high %v699, %v699
  %v702 = vunpack.c.l.s4 1966171168
  %v703 = vunpack.c.0.s8 %v702
  %v704 = vlaneseq
  %v705 = vshrl.u32 %v704, 7
  %v706 = vsub.s32 %v703, %v705
  %v707 = vrot.slane %v699, %v706
  %v709 = vunpack.c.l.s4 1966171168
  %v710 = vunpack.c.0.s8 %v709
  %v711 = vlaneseq
  %v712 = vshrl.u32 %v711, 7
  %v713 = vsub.s32 %v710, %v712
  %v714 = vrot.slane %v700, %v713
  %v715 = vld [vmem:[%s1] sm:$0x3]
  %v716 = vld [vmem:[%s1] sm:$0xc]
  %v718 = vunpack.c.l.s4 1966171168
  %v719 = vunpack.c.0.s8 %v718
  %v720 = vlaneseq
  %v721 = vshrl.u32 %v720, 7
  %v722 = vsub.s32 %v719, %v721
  %v723 = vrot.slane %v170, %v722
  %v725 = vunpack.c.l.s4 1966171168
  %v726 = vunpack.c.0.s8 %v725
  %v727 = vlaneseq
  %v728 = vshrl.u32 %v727, 7
  %v729 = vsub.s32 %v726, %v728
  %v730 = vrot.slane %v723, %v729
  %v732 = vunpack.c.l.s4 1966171168
  %v733 = vunpack.c.0.s8 %v732
  %v734 = vlaneseq
  %v735 = vshrl.u32 %v734, 7
  %v736 = vsub.s32 %v733, %v735
  %v737 = vrot.slane %v184, %v736
  %v739 = vunpack.c.l.s4 1966171168
  %v740 = vunpack.c.0.s8 %v739
  %v741 = vlaneseq
  %v742 = vshrl.u32 %v741, 7
  %v743 = vsub.s32 %v740, %v742
  %v744 = vrot.slane %v737, %v743
  %v746 = vunpack.c.l.s4 1966171168
  %v747 = vunpack.c.0.s8 %v746
  %v748 = vlaneseq
  %v749 = vshrl.u32 %v748, 7
  %v750 = vsub.s32 %v747, %v749
  %v751 = vrot.slane %v192, %v750
  %v753 = vunpack.c.l.s4 1966171168
  %v754 = vunpack.c.0.s8 %v753
  %v755 = vlaneseq
  %v756 = vshrl.u32 %v755, 7
  %v757 = vsub.s32 %v754, %v756
  %v758 = vrot.slane %v751, %v757
  %v760 = vunpack.c.l.s4 1966171168
  %v761 = vunpack.c.0.s8 %v760
  %v762 = vlaneseq
  %v763 = vshrl.u32 %v762, 7
  %v764 = vsub.s32 %v761, %v763
  %v765 = vrot.slane %v194, %v764
  %v767 = vunpack.c.l.s4 1966171168
  %v768 = vunpack.c.0.s8 %v767
  %v769 = vlaneseq
  %v770 = vshrl.u32 %v769, 7
  %v771 = vsub.s32 %v768, %v770
  %v772 = vrot.slane %v765, %v771
  %v774 = vunpack.c.l.s4 1966171168
  %v775 = vunpack.c.0.s8 %v774
  %v776 = vlaneseq
  %v777 = vshrl.u32 %v776, 7
  %v778 = vsub.s32 %v775, %v777
  %v779 = vrot.slane %v177, %v778
  %v781 = vunpack.c.l.s4 1966171168
  %v782 = vunpack.c.0.s8 %v781
  %v783 = vlaneseq
  %v784 = vshrl.u32 %v783, 7
  %v785 = vsub.s32 %v782, %v784
  %v786 = vrot.slane %v779, %v785
  %v788 = vunpack.c.l.s4 1966171168
  %v789 = vunpack.c.0.s8 %v788
  %v790 = vlaneseq
  %v791 = vshrl.u32 %v790, 7
  %v792 = vsub.s32 %v789, %v791
  %v793 = vrot.slane %v191, %v792
  %v795 = vunpack.c.l.s4 1966171168
  %v796 = vunpack.c.0.s8 %v795
  %v797 = vlaneseq
  %v798 = vshrl.u32 %v797, 7
  %v799 = vsub.s32 %v796, %v798
  %v800 = vrot.slane %v793, %v799
  %v802 = vunpack.c.l.s4 1966171168
  %v803 = vunpack.c.0.s8 %v802
  %v804 = vlaneseq
  %v805 = vshrl.u32 %v804, 7
  %v806 = vsub.s32 %v803, %v805
  %v807 = vrot.slane %v193, %v806
  %v809 = vunpack.c.l.s4 1966171168
  %v810 = vunpack.c.0.s8 %v809
  %v811 = vlaneseq
  %v812 = vshrl.u32 %v811, 7
  %v813 = vsub.s32 %v810, %v812
  %v814 = vrot.slane %v807, %v813
  %v816 = vunpack.c.l.s4 1966171168
  %v817 = vunpack.c.0.s8 %v816
  %v818 = vlaneseq
  %v819 = vshrl.u32 %v818, 7
  %v820 = vsub.s32 %v817, %v819
  %v821 = vrot.slane %v195, %v820
  %v823 = vunpack.c.l.s4 1966171168
  %v824 = vunpack.c.0.s8 %v823
  %v825 = vlaneseq
  %v826 = vshrl.u32 %v825, 7
  %v827 = vsub.s32 %v824, %v826
  %v828 = vrot.slane %v821, %v827
  %v830 = vunpack.c.l.s4 1966171168
  %v831 = vunpack.c.0.s8 %v830
  %v832 = vlaneseq
  %v833 = vshrl.u32 %v832, 7
  %v834 = vsub.s32 %v831, %v833
  %v835 = vrot.slane %v241, %v834
  %v837 = vunpack.c.l.s4 1966171168
  %v838 = vunpack.c.0.s8 %v837
  %v839 = vlaneseq
  %v840 = vshrl.u32 %v839, 7
  %v841 = vsub.s32 %v838, %v840
  %v842 = vrot.slane %v835, %v841
  %v844 = vunpack.c.l.s4 1966171168
  %v845 = vunpack.c.0.s8 %v844
  %v846 = vlaneseq
  %v847 = vshrl.u32 %v846, 7
  %v848 = vsub.s32 %v845, %v847
  %v849 = vrot.slane %v255, %v848
  %v851 = vunpack.c.l.s4 1966171168
  %v852 = vunpack.c.0.s8 %v851
  %v853 = vlaneseq
  %v854 = vshrl.u32 %v853, 7
  %v855 = vsub.s32 %v852, %v854
  %v856 = vrot.slane %v849, %v855
  %v858 = vunpack.c.l.s4 1966171168
  %v859 = vunpack.c.0.s8 %v858
  %v860 = vlaneseq
  %v861 = vshrl.u32 %v860, 7
  %v862 = vsub.s32 %v859, %v861
  %v863 = vrot.slane %v263, %v862
  %v865 = vunpack.c.l.s4 1966171168
  %v866 = vunpack.c.0.s8 %v865
  %v867 = vlaneseq
  %v868 = vshrl.u32 %v867, 7
  %v869 = vsub.s32 %v866, %v868
  %v870 = vrot.slane %v863, %v869
  %v872 = vunpack.c.l.s4 1966171168
  %v873 = vunpack.c.0.s8 %v872
  %v874 = vlaneseq
  %v875 = vshrl.u32 %v874, 7
  %v876 = vsub.s32 %v873, %v875
  %v877 = vrot.slane %v265, %v876
  %v879 = vunpack.c.l.s4 1966171168
  %v880 = vunpack.c.0.s8 %v879
  %v881 = vlaneseq
  %v882 = vshrl.u32 %v881, 7
  %v883 = vsub.s32 %v880, %v882
  %v884 = vrot.slane %v877, %v883
  %v886 = vunpack.c.l.s4 1966171168
  %v887 = vunpack.c.0.s8 %v886
  %v888 = vlaneseq
  %v889 = vshrl.u32 %v888, 7
  %v890 = vsub.s32 %v887, %v889
  %v891 = vrot.slane %v248, %v890
  %v893 = vunpack.c.l.s4 1966171168
  %v894 = vunpack.c.0.s8 %v893
  %v895 = vlaneseq
  %v896 = vshrl.u32 %v895, 7
  %v897 = vsub.s32 %v894, %v896
  %v898 = vrot.slane %v891, %v897
  %v900 = vunpack.c.l.s4 1966171168
  %v901 = vunpack.c.0.s8 %v900
  %v902 = vlaneseq
  %v903 = vshrl.u32 %v902, 7
  %v904 = vsub.s32 %v901, %v903
  %v905 = vrot.slane %v262, %v904
  %v907 = vunpack.c.l.s4 1966171168
  %v908 = vunpack.c.0.s8 %v907
  %v909 = vlaneseq
  %v910 = vshrl.u32 %v909, 7
  %v911 = vsub.s32 %v908, %v910
  %v912 = vrot.slane %v905, %v911
  %v914 = vunpack.c.l.s4 1966171168
  %v915 = vunpack.c.0.s8 %v914
  %v916 = vlaneseq
  %v917 = vshrl.u32 %v916, 7
  %v918 = vsub.s32 %v915, %v917
  %v919 = vrot.slane %v264, %v918
  %v921 = vunpack.c.l.s4 1966171168
  %v922 = vunpack.c.0.s8 %v921
  %v923 = vlaneseq
  %v924 = vshrl.u32 %v923, 7
  %v925 = vsub.s32 %v922, %v924
  %v926 = vrot.slane %v919, %v925
  %v928 = vunpack.c.l.s4 1966171168
  %v929 = vunpack.c.0.s8 %v928
  %v930 = vlaneseq
  %v931 = vshrl.u32 %v930, 7
  %v932 = vsub.s32 %v929, %v931
  %v933 = vrot.slane %v266, %v932
  %v935 = vunpack.c.l.s4 1966171168
  %v936 = vunpack.c.0.s8 %v935
  %v937 = vlaneseq
  %v938 = vshrl.u32 %v937, 7
  %v939 = vsub.s32 %v936, %v938
  %v940 = vrot.slane %v933, %v939
  %v942 = vunpack.c.l.s4 1966171168
  %v943 = vunpack.c.0.s8 %v942
  %v944 = vlaneseq
  %v945 = vshrl.u32 %v944, 7
  %v946 = vsub.s32 %v943, %v945
  %v947 = vrot.slane %v312, %v946
  %v949 = vunpack.c.l.s4 1966171168
  %v950 = vunpack.c.0.s8 %v949
  %v951 = vlaneseq
  %v952 = vshrl.u32 %v951, 7
  %v953 = vsub.s32 %v950, %v952
  %v954 = vrot.slane %v947, %v953
  %v956 = vunpack.c.l.s4 1966171168
  %v957 = vunpack.c.0.s8 %v956
  %v958 = vlaneseq
  %v959 = vshrl.u32 %v958, 7
  %v960 = vsub.s32 %v957, %v959
  %v961 = vrot.slane %v326, %v960
  %v963 = vunpack.c.l.s4 1966171168
  %v964 = vunpack.c.0.s8 %v963
  %v965 = vlaneseq
  %v966 = vshrl.u32 %v965, 7
  %v967 = vsub.s32 %v964, %v966
  %v968 = vrot.slane %v961, %v967
  %v970 = vunpack.c.l.s4 1966171168
  %v971 = vunpack.c.0.s8 %v970
  %v972 = vlaneseq
  %v973 = vshrl.u32 %v972, 7
  %v974 = vsub.s32 %v971, %v973
  %v975 = vrot.slane %v334, %v974
  %v977 = vunpack.c.l.s4 1966171168
  %v978 = vunpack.c.0.s8 %v977
  %v979 = vlaneseq
  %v980 = vshrl.u32 %v979, 7
  %v981 = vsub.s32 %v978, %v980
  %v982 = vrot.slane %v975, %v981
  %v984 = vunpack.c.l.s4 1966171168
  %v985 = vunpack.c.0.s8 %v984
  %v986 = vlaneseq
  %v987 = vshrl.u32 %v986, 7
  %v988 = vsub.s32 %v985, %v987
  %v989 = vrot.slane %v336, %v988
  %v991 = vunpack.c.l.s4 1966171168
  %v992 = vunpack.c.0.s8 %v991
  %v993 = vlaneseq
  %v994 = vshrl.u32 %v993, 7
  %v995 = vsub.s32 %v992, %v994
  %v996 = vrot.slane %v989, %v995
  %v998 = vunpack.c.l.s4 1966171168
  %v999 = vunpack.c.0.s8 %v998
  %v1000 = vlaneseq
  %v1001 = vshrl.u32 %v1000, 7
  %v1002 = vsub.s32 %v999, %v1001
  %v1003 = vrot.slane %v319, %v1002
  %v1005 = vunpack.c.l.s4 1966171168
  %v1006 = vunpack.c.0.s8 %v1005
  %v1007 = vlaneseq
  %v1008 = vshrl.u32 %v1007, 7
  %v1009 = vsub.s32 %v1006, %v1008
  %v1010 = vrot.slane %v1003, %v1009
  %v1012 = vunpack.c.l.s4 1966171168
  %v1013 = vunpack.c.0.s8 %v1012
  %v1014 = vlaneseq
  %v1015 = vshrl.u32 %v1014, 7
  %v1016 = vsub.s32 %v1013, %v1015
  %v1017 = vrot.slane %v333, %v1016
  %v1019 = vunpack.c.l.s4 1966171168
  %v1020 = vunpack.c.0.s8 %v1019
  %v1021 = vlaneseq
  %v1022 = vshrl.u32 %v1021, 7
  %v1023 = vsub.s32 %v1020, %v1022
  %v1024 = vrot.slane %v1017, %v1023
  %v1026 = vunpack.c.l.s4 1966171168
  %v1027 = vunpack.c.0.s8 %v1026
  %v1028 = vlaneseq
  %v1029 = vshrl.u32 %v1028, 7
  %v1030 = vsub.s32 %v1027, %v1029
  %v1031 = vrot.slane %v335, %v1030
  %v1033 = vunpack.c.l.s4 1966171168
  %v1034 = vunpack.c.0.s8 %v1033
  %v1035 = vlaneseq
  %v1036 = vshrl.u32 %v1035, 7
  %v1037 = vsub.s32 %v1034, %v1036
  %v1038 = vrot.slane %v1031, %v1037
  %v1040 = vunpack.c.l.s4 1966171168
  %v1041 = vunpack.c.0.s8 %v1040
  %v1042 = vlaneseq
  %v1043 = vshrl.u32 %v1042, 7
  %v1044 = vsub.s32 %v1041, %v1043
  %v1045 = vrot.slane %v337, %v1044
  %v1047 = vunpack.c.l.s4 1966171168
  %v1048 = vunpack.c.0.s8 %v1047
  %v1049 = vlaneseq
  %v1050 = vshrl.u32 %v1049, 7
  %v1051 = vsub.s32 %v1048, %v1050
  %v1052 = vrot.slane %v1045, %v1051
  %v1054 = vunpack.c.l.s4 1966171168
  %v1055 = vunpack.c.0.s8 %v1054
  %v1056 = vlaneseq
  %v1057 = vshrl.u32 %v1056, 7
  %v1058 = vsub.s32 %v1055, %v1057
  %v1059 = vrot.slane %v383, %v1058
  %v1061 = vunpack.c.l.s4 1966171168
  %v1062 = vunpack.c.0.s8 %v1061
  %v1063 = vlaneseq
  %v1064 = vshrl.u32 %v1063, 7
  %v1065 = vsub.s32 %v1062, %v1064
  %v1066 = vrot.slane %v1059, %v1065
  %v1068 = vunpack.c.l.s4 1966171168
  %v1069 = vunpack.c.0.s8 %v1068
  %v1070 = vlaneseq
  %v1071 = vshrl.u32 %v1070, 7
  %v1072 = vsub.s32 %v1069, %v1071
  %v1073 = vrot.slane %v397, %v1072
  %v1075 = vunpack.c.l.s4 1966171168
  %v1076 = vunpack.c.0.s8 %v1075
  %v1077 = vlaneseq
  %v1078 = vshrl.u32 %v1077, 7
  %v1079 = vsub.s32 %v1076, %v1078
  %v1080 = vrot.slane %v1073, %v1079
  %v1082 = vunpack.c.l.s4 1966171168
  %v1083 = vunpack.c.0.s8 %v1082
  %v1084 = vlaneseq
  %v1085 = vshrl.u32 %v1084, 7
  %v1086 = vsub.s32 %v1083, %v1085
  %v1087 = vrot.slane %v405, %v1086
  %v1089 = vunpack.c.l.s4 1966171168
  %v1090 = vunpack.c.0.s8 %v1089
  %v1091 = vlaneseq
  %v1092 = vshrl.u32 %v1091, 7
  %v1093 = vsub.s32 %v1090, %v1092
  %v1094 = vrot.slane %v1087, %v1093
  %v1096 = vunpack.c.l.s4 1966171168
  %v1097 = vunpack.c.0.s8 %v1096
  %v1098 = vlaneseq
  %v1099 = vshrl.u32 %v1098, 7
  %v1100 = vsub.s32 %v1097, %v1099
  %v1101 = vrot.slane %v407, %v1100
  %v1103 = vunpack.c.l.s4 1966171168
  %v1104 = vunpack.c.0.s8 %v1103
  %v1105 = vlaneseq
  %v1106 = vshrl.u32 %v1105, 7
  %v1107 = vsub.s32 %v1104, %v1106
  %v1108 = vrot.slane %v1101, %v1107
  %v1110 = vunpack.c.l.s4 1966171168
  %v1111 = vunpack.c.0.s8 %v1110
  %v1112 = vlaneseq
  %v1113 = vshrl.u32 %v1112, 7
  %v1114 = vsub.s32 %v1111, %v1113
  %v1115 = vrot.slane %v390, %v1114
  %v1117 = vunpack.c.l.s4 1966171168
  %v1118 = vunpack.c.0.s8 %v1117
  %v1119 = vlaneseq
  %v1120 = vshrl.u32 %v1119, 7
  %v1121 = vsub.s32 %v1118, %v1120
  %v1122 = vrot.slane %v1115, %v1121
  %v1124 = vunpack.c.l.s4 1966171168
  %v1125 = vunpack.c.0.s8 %v1124
  %v1126 = vlaneseq
  %v1127 = vshrl.u32 %v1126, 7
  %v1128 = vsub.s32 %v1125, %v1127
  %v1129 = vrot.slane %v404, %v1128
  %v1131 = vunpack.c.l.s4 1966171168
  %v1132 = vunpack.c.0.s8 %v1131
  %v1133 = vlaneseq
  %v1134 = vshrl.u32 %v1133, 7
  %v1135 = vsub.s32 %v1132, %v1134
  %v1136 = vrot.slane %v1129, %v1135
  %v1138 = vunpack.c.l.s4 1966171168
  %v1139 = vunpack.c.0.s8 %v1138
  %v1140 = vlaneseq
  %v1141 = vshrl.u32 %v1140, 7
  %v1142 = vsub.s32 %v1139, %v1141
  %v1143 = vrot.slane %v406, %v1142
  %v1145 = vunpack.c.l.s4 1966171168
  %v1146 = vunpack.c.0.s8 %v1145
  %v1147 = vlaneseq
  %v1148 = vshrl.u32 %v1147, 7
  %v1149 = vsub.s32 %v1146, %v1148
  %v1150 = vrot.slane %v1143, %v1149
  %v1152 = vunpack.c.l.s4 1966171168
  %v1153 = vunpack.c.0.s8 %v1152
  %v1154 = vlaneseq
  %v1155 = vshrl.u32 %v1154, 7
  %v1156 = vsub.s32 %v1153, %v1155
  %v1157 = vrot.slane %v408, %v1156
  %v1159 = vunpack.c.l.s4 1966171168
  %v1160 = vunpack.c.0.s8 %v1159
  %v1161 = vlaneseq
  %v1162 = vshrl.u32 %v1161, 7
  %v1163 = vsub.s32 %v1160, %v1162
  %v1164 = vrot.slane %v1157, %v1163
  %v1166 = vunpack.c.l.s4 1966171168
  %v1167 = vunpack.c.0.s8 %v1166
  %v1168 = vlaneseq
  %v1169 = vshrl.u32 %v1168, 7
  %v1170 = vsub.s32 %v1167, %v1169
  %v1171 = vrot.slane %v454, %v1170
  %v1173 = vunpack.c.l.s4 1966171168
  %v1174 = vunpack.c.0.s8 %v1173
  %v1175 = vlaneseq
  %v1176 = vshrl.u32 %v1175, 7
  %v1177 = vsub.s32 %v1174, %v1176
  %v1178 = vrot.slane %v1171, %v1177
  %v1180 = vunpack.c.l.s4 1966171168
  %v1181 = vunpack.c.0.s8 %v1180
  %v1182 = vlaneseq
  %v1183 = vshrl.u32 %v1182, 7
  %v1184 = vsub.s32 %v1181, %v1183
  %v1185 = vrot.slane %v468, %v1184
  %v1187 = vunpack.c.l.s4 1966171168
  %v1188 = vunpack.c.0.s8 %v1187
  %v1189 = vlaneseq
  %v1190 = vshrl.u32 %v1189, 7
  %v1191 = vsub.s32 %v1188, %v1190
  %v1192 = vrot.slane %v1185, %v1191
  %v1194 = vunpack.c.l.s4 1966171168
  %v1195 = vunpack.c.0.s8 %v1194
  %v1196 = vlaneseq
  %v1197 = vshrl.u32 %v1196, 7
  %v1198 = vsub.s32 %v1195, %v1197
  %v1199 = vrot.slane %v476, %v1198
  %v1201 = vunpack.c.l.s4 1966171168
  %v1202 = vunpack.c.0.s8 %v1201
  %v1203 = vlaneseq
  %v1204 = vshrl.u32 %v1203, 7
  %v1205 = vsub.s32 %v1202, %v1204
  %v1206 = vrot.slane %v1199, %v1205
  %v1208 = vunpack.c.l.s4 1966171168
  %v1209 = vunpack.c.0.s8 %v1208
  %v1210 = vlaneseq
  %v1211 = vshrl.u32 %v1210, 7
  %v1212 = vsub.s32 %v1209, %v1211
  %v1213 = vrot.slane %v478, %v1212
  %v1215 = vunpack.c.l.s4 1966171168
  %v1216 = vunpack.c.0.s8 %v1215
  %v1217 = vlaneseq
  %v1218 = vshrl.u32 %v1217, 7
  %v1219 = vsub.s32 %v1216, %v1218
  %v1220 = vrot.slane %v1213, %v1219
  %v1222 = vunpack.c.l.s4 1966171168
  %v1223 = vunpack.c.0.s8 %v1222
  %v1224 = vlaneseq
  %v1225 = vshrl.u32 %v1224, 7
  %v1226 = vsub.s32 %v1223, %v1225
  %v1227 = vrot.slane %v461, %v1226
  %v1229 = vunpack.c.l.s4 1966171168
  %v1230 = vunpack.c.0.s8 %v1229
  %v1231 = vlaneseq
  %v1232 = vshrl.u32 %v1231, 7
  %v1233 = vsub.s32 %v1230, %v1232
  %v1234 = vrot.slane %v1227, %v1233
  %v1236 = vunpack.c.l.s4 1966171168
  %v1237 = vunpack.c.0.s8 %v1236
  %v1238 = vlaneseq
  %v1239 = vshrl.u32 %v1238, 7
  %v1240 = vsub.s32 %v1237, %v1239
  %v1241 = vrot.slane %v475, %v1240
  %v1243 = vunpack.c.l.s4 1966171168
  %v1244 = vunpack.c.0.s8 %v1243
  %v1245 = vlaneseq
  %v1246 = vshrl.u32 %v1245, 7
  %v1247 = vsub.s32 %v1244, %v1246
  %v1248 = vrot.slane %v1241, %v1247
  %v1250 = vunpack.c.l.s4 1966171168
  %v1251 = vunpack.c.0.s8 %v1250
  %v1252 = vlaneseq
  %v1253 = vshrl.u32 %v1252, 7
  %v1254 = vsub.s32 %v1251, %v1253
  %v1255 = vrot.slane %v477, %v1254
  %v1257 = vunpack.c.l.s4 1966171168
  %v1258 = vunpack.c.0.s8 %v1257
  %v1259 = vlaneseq
  %v1260 = vshrl.u32 %v1259, 7
  %v1261 = vsub.s32 %v1258, %v1260
  %v1262 = vrot.slane %v1255, %v1261
  %v1264 = vunpack.c.l.s4 1966171168
  %v1265 = vunpack.c.0.s8 %v1264
  %v1266 = vlaneseq
  %v1267 = vshrl.u32 %v1266, 7
  %v1268 = vsub.s32 %v1265, %v1267
  %v1269 = vrot.slane %v479, %v1268
  %v1271 = vunpack.c.l.s4 1966171168
  %v1272 = vunpack.c.0.s8 %v1271
  %v1273 = vlaneseq
  %v1274 = vshrl.u32 %v1273, 7
  %v1275 = vsub.s32 %v1272, %v1274
  %v1276 = vrot.slane %v1269, %v1275
  %v1278 = vunpack.c.l.s4 1966171168
  %v1279 = vunpack.c.0.s8 %v1278
  %v1280 = vlaneseq
  %v1281 = vshrl.u32 %v1280, 7
  %v1282 = vsub.s32 %v1279, %v1281
  %v1283 = vrot.slane %v525, %v1282
  %v1285 = vunpack.c.l.s4 1966171168
  %v1286 = vunpack.c.0.s8 %v1285
  %v1287 = vlaneseq
  %v1288 = vshrl.u32 %v1287, 7
  %v1289 = vsub.s32 %v1286, %v1288
  %v1290 = vrot.slane %v1283, %v1289
  %v1292 = vunpack.c.l.s4 1966171168
  %v1293 = vunpack.c.0.s8 %v1292
  %v1294 = vlaneseq
  %v1295 = vshrl.u32 %v1294, 7
  %v1296 = vsub.s32 %v1293, %v1295
  %v1297 = vrot.slane %v539, %v1296
  %v1299 = vunpack.c.l.s4 1966171168
  %v1300 = vunpack.c.0.s8 %v1299
  %v1301 = vlaneseq
  %v1302 = vshrl.u32 %v1301, 7
  %v1303 = vsub.s32 %v1300, %v1302
  %v1304 = vrot.slane %v1297, %v1303
  %v1306 = vunpack.c.l.s4 1966171168
  %v1307 = vunpack.c.0.s8 %v1306
  %v1308 = vlaneseq
  %v1309 = vshrl.u32 %v1308, 7
  %v1310 = vsub.s32 %v1307, %v1309
  %v1311 = vrot.slane %v547, %v1310
  %v1313 = vunpack.c.l.s4 1966171168
  %v1314 = vunpack.c.0.s8 %v1313
  %v1315 = vlaneseq
  %v1316 = vshrl.u32 %v1315, 7
  %v1317 = vsub.s32 %v1314, %v1316
  %v1318 = vrot.slane %v1311, %v1317
  %v1320 = vunpack.c.l.s4 1966171168
  %v1321 = vunpack.c.0.s8 %v1320
  %v1322 = vlaneseq
  %v1323 = vshrl.u32 %v1322, 7
  %v1324 = vsub.s32 %v1321, %v1323
  %v1325 = vrot.slane %v549, %v1324
  %v1327 = vunpack.c.l.s4 1966171168
  %v1328 = vunpack.c.0.s8 %v1327
  %v1329 = vlaneseq
  %v1330 = vshrl.u32 %v1329, 7
  %v1331 = vsub.s32 %v1328, %v1330
  %v1332 = vrot.slane %v1325, %v1331
  %v1334 = vunpack.c.l.s4 1966171168
  %v1335 = vunpack.c.0.s8 %v1334
  %v1336 = vlaneseq
  %v1337 = vshrl.u32 %v1336, 7
  %v1338 = vsub.s32 %v1335, %v1337
  %v1339 = vrot.slane %v532, %v1338
  %v1341 = vunpack.c.l.s4 1966171168
  %v1342 = vunpack.c.0.s8 %v1341
  %v1343 = vlaneseq
  %v1344 = vshrl.u32 %v1343, 7
  %v1345 = vsub.s32 %v1342, %v1344
  %v1346 = vrot.slane %v1339, %v1345
  %v1348 = vunpack.c.l.s4 1966171168
  %v1349 = vunpack.c.0.s8 %v1348
  %v1350 = vlaneseq
  %v1351 = vshrl.u32 %v1350, 7
  %v1352 = vsub.s32 %v1349, %v1351
  %v1353 = vrot.slane %v546, %v1352
  %v1355 = vunpack.c.l.s4 1966171168
  %v1356 = vunpack.c.0.s8 %v1355
  %v1357 = vlaneseq
  %v1358 = vshrl.u32 %v1357, 7
  %v1359 = vsub.s32 %v1356, %v1358
  %v1360 = vrot.slane %v1353, %v1359
  %v1362 = vunpack.c.l.s4 1966171168
  %v1363 = vunpack.c.0.s8 %v1362
  %v1364 = vlaneseq
  %v1365 = vshrl.u32 %v1364, 7
  %v1366 = vsub.s32 %v1363, %v1365
  %v1367 = vrot.slane %v548, %v1366
  %v1369 = vunpack.c.l.s4 1966171168
  %v1370 = vunpack.c.0.s8 %v1369
  %v1371 = vlaneseq
  %v1372 = vshrl.u32 %v1371, 7
  %v1373 = vsub.s32 %v1370, %v1372
  %v1374 = vrot.slane %v1367, %v1373
  %v1376 = vunpack.c.l.s4 1966171168
  %v1377 = vunpack.c.0.s8 %v1376
  %v1378 = vlaneseq
  %v1379 = vshrl.u32 %v1378, 7
  %v1380 = vsub.s32 %v1377, %v1379
  %v1381 = vrot.slane %v550, %v1380
  %v1383 = vunpack.c.l.s4 1966171168
  %v1384 = vunpack.c.0.s8 %v1383
  %v1385 = vlaneseq
  %v1386 = vshrl.u32 %v1385, 7
  %v1387 = vsub.s32 %v1384, %v1386
  %v1388 = vrot.slane %v1381, %v1387
  %v1390 = vunpack.c.l.s4 1966171168
  %v1391 = vunpack.c.0.s8 %v1390
  %v1392 = vlaneseq
  %v1393 = vshrl.u32 %v1392, 7
  %v1394 = vsub.s32 %v1391, %v1393
  %v1395 = vrot.slane %v596, %v1394
  %v1397 = vunpack.c.l.s4 1966171168
  %v1398 = vunpack.c.0.s8 %v1397
  %v1399 = vlaneseq
  %v1400 = vshrl.u32 %v1399, 7
  %v1401 = vsub.s32 %v1398, %v1400
  %v1402 = vrot.slane %v1395, %v1401
  %v1404 = vunpack.c.l.s4 1966171168
  %v1405 = vunpack.c.0.s8 %v1404
  %v1406 = vlaneseq
  %v1407 = vshrl.u32 %v1406, 7
  %v1408 = vsub.s32 %v1405, %v1407
  %v1409 = vrot.slane %v610, %v1408
  %v1411 = vunpack.c.l.s4 1966171168
  %v1412 = vunpack.c.0.s8 %v1411
  %v1413 = vlaneseq
  %v1414 = vshrl.u32 %v1413, 7
  %v1415 = vsub.s32 %v1412, %v1414
  %v1416 = vrot.slane %v1409, %v1415
  %v1418 = vunpack.c.l.s4 1966171168
  %v1419 = vunpack.c.0.s8 %v1418
  %v1420 = vlaneseq
  %v1421 = vshrl.u32 %v1420, 7
  %v1422 = vsub.s32 %v1419, %v1421
  %v1423 = vrot.slane %v618, %v1422
  %v1425 = vunpack.c.l.s4 1966171168
  %v1426 = vunpack.c.0.s8 %v1425
  %v1427 = vlaneseq
  %v1428 = vshrl.u32 %v1427, 7
  %v1429 = vsub.s32 %v1426, %v1428
  %v1430 = vrot.slane %v1423, %v1429
  %v1432 = vunpack.c.l.s4 1966171168
  %v1433 = vunpack.c.0.s8 %v1432
  %v1434 = vlaneseq
  %v1435 = vshrl.u32 %v1434, 7
  %v1436 = vsub.s32 %v1433, %v1435
  %v1437 = vrot.slane %v620, %v1436
  %v1439 = vunpack.c.l.s4 1966171168
  %v1440 = vunpack.c.0.s8 %v1439
  %v1441 = vlaneseq
  %v1442 = vshrl.u32 %v1441, 7
  %v1443 = vsub.s32 %v1440, %v1442
  %v1444 = vrot.slane %v1437, %v1443
  %v1446 = vunpack.c.l.s4 1966171168
  %v1447 = vunpack.c.0.s8 %v1446
  %v1448 = vlaneseq
  %v1449 = vshrl.u32 %v1448, 7
  %v1450 = vsub.s32 %v1447, %v1449
  %v1451 = vrot.slane %v603, %v1450
  %v1453 = vunpack.c.l.s4 1966171168
  %v1454 = vunpack.c.0.s8 %v1453
  %v1455 = vlaneseq
  %v1456 = vshrl.u32 %v1455, 7
  %v1457 = vsub.s32 %v1454, %v1456
  %v1458 = vrot.slane %v1451, %v1457
  %v1460 = vunpack.c.l.s4 1966171168
  %v1461 = vunpack.c.0.s8 %v1460
  %v1462 = vlaneseq
  %v1463 = vshrl.u32 %v1462, 7
  %v1464 = vsub.s32 %v1461, %v1463
  %v1465 = vrot.slane %v617, %v1464
  %v1467 = vunpack.c.l.s4 1966171168
  %v1468 = vunpack.c.0.s8 %v1467
  %v1469 = vlaneseq
  %v1470 = vshrl.u32 %v1469, 7
  %v1471 = vsub.s32 %v1468, %v1470
  %v1472 = vrot.slane %v1465, %v1471
  %v1474 = vunpack.c.l.s4 1966171168
  %v1475 = vunpack.c.0.s8 %v1474
  %v1476 = vlaneseq
  %v1477 = vshrl.u32 %v1476, 7
  %v1478 = vsub.s32 %v1475, %v1477
  %v1479 = vrot.slane %v619, %v1478
  %v1481 = vunpack.c.l.s4 1966171168
  %v1482 = vunpack.c.0.s8 %v1481
  %v1483 = vlaneseq
  %v1484 = vshrl.u32 %v1483, 7
  %v1485 = vsub.s32 %v1482, %v1484
  %v1486 = vrot.slane %v1479, %v1485
  %v1488 = vunpack.c.l.s4 1966171168
  %v1489 = vunpack.c.0.s8 %v1488
  %v1490 = vlaneseq
  %v1491 = vshrl.u32 %v1490, 7
  %v1492 = vsub.s32 %v1489, %v1491
  %v1493 = vrot.slane %v621, %v1492
  %v1495 = vunpack.c.l.s4 1966171168
  %v1496 = vunpack.c.0.s8 %v1495
  %v1497 = vlaneseq
  %v1498 = vshrl.u32 %v1497, 7
  %v1499 = vsub.s32 %v1496, %v1498
  %v1500 = vrot.slane %v1493, %v1499
  %v1502 = vunpack.c.l.s4 1966171168
  %v1503 = vunpack.c.0.s8 %v1502
  %v1504 = vlaneseq
  %v1505 = vshrl.u32 %v1504, 7
  %v1506 = vsub.s32 %v1503, %v1505
  %v1507 = vrot.slane %v667, %v1506
  %v1509 = vunpack.c.l.s4 1966171168
  %v1510 = vunpack.c.0.s8 %v1509
  %v1511 = vlaneseq
  %v1512 = vshrl.u32 %v1511, 7
  %v1513 = vsub.s32 %v1510, %v1512
  %v1514 = vrot.slane %v1507, %v1513
  %v1516 = vunpack.c.l.s4 1966171168
  %v1517 = vunpack.c.0.s8 %v1516
  %v1518 = vlaneseq
  %v1519 = vshrl.u32 %v1518, 7
  %v1520 = vsub.s32 %v1517, %v1519
  %v1521 = vrot.slane %v681, %v1520
  %v1523 = vunpack.c.l.s4 1966171168
  %v1524 = vunpack.c.0.s8 %v1523
  %v1525 = vlaneseq
  %v1526 = vshrl.u32 %v1525, 7
  %v1527 = vsub.s32 %v1524, %v1526
  %v1528 = vrot.slane %v1521, %v1527
  %v1530 = vunpack.c.l.s4 1966171168
  %v1531 = vunpack.c.0.s8 %v1530
  %v1532 = vlaneseq
  %v1533 = vshrl.u32 %v1532, 7
  %v1534 = vsub.s32 %v1531, %v1533
  %v1535 = vrot.slane %v689, %v1534
  %v1537 = vunpack.c.l.s4 1966171168
  %v1538 = vunpack.c.0.s8 %v1537
  %v1539 = vlaneseq
  %v1540 = vshrl.u32 %v1539, 7
  %v1541 = vsub.s32 %v1538, %v1540
  %v1542 = vrot.slane %v1535, %v1541
  %v1544 = vunpack.c.l.s4 1966171168
  %v1545 = vunpack.c.0.s8 %v1544
  %v1546 = vlaneseq
  %v1547 = vshrl.u32 %v1546, 7
  %v1548 = vsub.s32 %v1545, %v1547
  %v1549 = vrot.slane %v691, %v1548
  %v1551 = vunpack.c.l.s4 1966171168
  %v1552 = vunpack.c.0.s8 %v1551
  %v1553 = vlaneseq
  %v1554 = vshrl.u32 %v1553, 7
  %v1555 = vsub.s32 %v1552, %v1554
  %v1556 = vrot.slane %v1549, %v1555
  %v1558 = vunpack.c.l.s4 1966171168
  %v1559 = vunpack.c.0.s8 %v1558
  %v1560 = vlaneseq
  %v1561 = vshrl.u32 %v1560, 7
  %v1562 = vsub.s32 %v1559, %v1561
  %v1563 = vrot.slane %v674, %v1562
  %v1565 = vunpack.c.l.s4 1966171168
  %v1566 = vunpack.c.0.s8 %v1565
  %v1567 = vlaneseq
  %v1568 = vshrl.u32 %v1567, 7
  %v1569 = vsub.s32 %v1566, %v1568
  %v1570 = vrot.slane %v1563, %v1569
  %v1572 = vunpack.c.l.s4 1966171168
  %v1573 = vunpack.c.0.s8 %v1572
  %v1574 = vlaneseq
  %v1575 = vshrl.u32 %v1574, 7
  %v1576 = vsub.s32 %v1573, %v1575
  %v1577 = vrot.slane %v688, %v1576
  %v1579 = vunpack.c.l.s4 1966171168
  %v1580 = vunpack.c.0.s8 %v1579
  %v1581 = vlaneseq
  %v1582 = vshrl.u32 %v1581, 7
  %v1583 = vsub.s32 %v1580, %v1582
  %v1584 = vrot.slane %v1577, %v1583
  %v1586 = vunpack.c.l.s4 1966171168
  %v1587 = vunpack.c.0.s8 %v1586
  %v1588 = vlaneseq
  %v1589 = vshrl.u32 %v1588, 7
  %v1590 = vsub.s32 %v1587, %v1589
  %v1591 = vrot.slane %v690, %v1590
  %v1593 = vunpack.c.l.s4 1966171168
  %v1594 = vunpack.c.0.s8 %v1593
  %v1595 = vlaneseq
  %v1596 = vshrl.u32 %v1595, 7
  %v1597 = vsub.s32 %v1594, %v1596
  %v1598 = vrot.slane %v1591, %v1597
  %v1600 = vunpack.c.l.s4 1966171168
  %v1601 = vunpack.c.0.s8 %v1600
  %v1602 = vlaneseq
  %v1603 = vshrl.u32 %v1602, 7
  %v1604 = vsub.s32 %v1601, %v1603
  %v1605 = vrot.slane %v692, %v1604
  %v1607 = vunpack.c.l.s4 1966171168
  %v1608 = vunpack.c.0.s8 %v1607
  %v1609 = vlaneseq
  %v1610 = vshrl.u32 %v1609, 7
  %v1611 = vsub.s32 %v1608, %v1610
  %v1612 = vrot.slane %v1605, %v1611
  %v1613 = vunpack.c.l.b16 %v730
  %v1614 = vunpack.c.l.b16 %v744
  %v1615 = vunpack.c.l.b16 %v758
  %v1616 = vunpack.c.l.b16 %v772
  %v1617 = vunpack.c.l.b16 %v786
  %v1618 = vunpack.c.l.b16 %v800
  %v1619 = vunpack.c.l.b16 %v814
  %v1620 = vunpack.c.l.b16 %v828
  %v1621 = vunpack.c.l.b16 %v842
  %v1622 = vunpack.c.l.b16 %v856
  %v1623 = vunpack.c.l.b16 %v870
  %v1624 = vunpack.c.l.b16 %v884
  %v1625 = vunpack.c.l.b16 %v898
  %v1626 = vunpack.c.l.b16 %v912
  %v1627 = vunpack.c.l.b16 %v926
  %v1628 = vunpack.c.l.b16 %v940
  %v1629 = vunpack.c.l.b16 %v954
  %v1630 = vunpack.c.l.b16 %v968
  %v1631 = vunpack.c.l.b16 %v982
  %v1632 = vunpack.c.l.b16 %v996
  %v1633 = vunpack.c.l.b16 %v1010
  %v1634 = vunpack.c.l.b16 %v1024
  %v1635 = vunpack.c.l.b16 %v1038
  %v1636 = vunpack.c.l.b16 %v1052
  %v1637 = vunpack.c.l.b16 %v1066
  %v1638 = vunpack.c.l.b16 %v1080
  %v1639 = vunpack.c.l.b16 %v1094
  %v1640 = vunpack.c.l.b16 %v1108
  %v1641 = vunpack.c.l.b16 %v1122
  %v1642 = vunpack.c.l.b16 %v1136
  %v1643 = vunpack.c.l.b16 %v1150
  %v1644 = vunpack.c.l.b16 %v1164
  %v1645 = vunpack.c.l.b16 %v1178
  %v1646 = vunpack.c.l.b16 %v1192
  %v1647 = vunpack.c.l.b16 %v1206
  %v1648 = vunpack.c.l.b16 %v1220
  %v1649 = vunpack.c.l.b16 %v1234
  %v1650 = vunpack.c.l.b16 %v1248
  %v1651 = vunpack.c.l.b16 %v1262
  %v1652 = vunpack.c.l.b16 %v1276
  %v1653 = vunpack.c.l.b16 %v1290
  %v1654 = vunpack.c.l.b16 %v1304
  %v1655 = vunpack.c.l.b16 %v1318
  %v1656 = vunpack.c.l.b16 %v1332
  %v1657 = vunpack.c.l.b16 %v1346
  %v1658 = vunpack.c.l.b16 %v1360
  %v1659 = vunpack.c.l.b16 %v1374
  %v1660 = vunpack.c.l.b16 %v1388
  %v1661 = vunpack.c.l.b16 %v1402
  %v1662 = vunpack.c.l.b16 %v1416
  %v1663 = vunpack.c.l.b16 %v1430
  %v1664 = vunpack.c.l.b16 %v1444
  %v1665 = vunpack.c.l.b16 %v1458
  %v1666 = vunpack.c.l.b16 %v1472
  %v1667 = vunpack.c.l.b16 %v1486
  %v1668 = vunpack.c.l.b16 %v1500
  %v1669 = vunpack.c.l.b16 %v1514
  %v1670 = vunpack.c.l.b16 %v1528
  %v1671 = vunpack.c.l.b16 %v1542
  %v1672 = vunpack.c.l.b16 %v1556
  %v1673 = vunpack.c.l.b16 %v1570
  %v1674 = vunpack.c.l.b16 %v1584
  %v1675 = vunpack.c.l.b16 %v1598
  %v1676 = vunpack.c.l.b16 %v1612
  %v1677 = vrot.slane %v1613, 1
  %vm1678 = vcmask 1041409
  %v1679 = vsel %vm1678, %v1614, %v1677
  %v1680 = vrot.slane %v1615, 7
  %vm1681 = vcmask 1042434
  %v1682 = vsel %vm1681, %v1680, %v1679
  %v1683 = vrot.slane %v1616, 6
  %vm1684 = vcmask 1043459
  %v1685 = vsel %vm1684, %v1683, %v1682
  %v1686 = vrot.slane %v1617, 5
  %vm1687 = vcmask 1044484
  %v1688 = vsel %vm1687, %v1686, %v1685
  %v1689 = vrot.slane %v1618, 4
  %vm1690 = vcmask 1045509
  %v1691 = vsel %vm1690, %v1689, %v1688
  %v1692 = vrot.slane %v1619, 3
  %vm1693 = vcmask 1046534
  %v1694 = vsel %vm1693, %v1692, %v1691
  %v1695 = vrot.slane %v1620, 2
  %vm1696 = vcmask 1047559
  %v1697 = vsel %vm1696, %v1695, %v1694
  %v1698 = vrot.slane %v1621, 1
  %v1699 = vsel %vm1678, %v1622, %v1698
  %v1700 = vrot.slane %v1623, 7
  %v1701 = vsel %vm1681, %v1700, %v1699
  %v1702 = vrot.slane %v1624, 6
  %v1703 = vsel %vm1684, %v1702, %v1701
  %v1704 = vrot.slane %v1625, 5
  %v1705 = vsel %vm1687, %v1704, %v1703
  %v1706 = vrot.slane %v1626, 4
  %v1707 = vsel %vm1690, %v1706, %v1705
  %v1708 = vrot.slane %v1627, 3
  %v1709 = vsel %vm1693, %v1708, %v1707
  %v1710 = vrot.slane %v1628, 2
  %v1711 = vsel %vm1696, %v1710, %v1709
  %v1712 = vrot.slane %v1629, 1
  %v1713 = vsel %vm1678, %v1630, %v1712
  %v1714 = vrot.slane %v1631, 7
  %v1715 = vsel %vm1681, %v1714, %v1713
  %v1716 = vrot.slane %v1632, 6
  %v1717 = vsel %vm1684, %v1716, %v1715
  %v1718 = vrot.slane %v1633, 5
  %v1719 = vsel %vm1687, %v1718, %v1717
  %v1720 = vrot.slane %v1634, 4
  %v1721 = vsel %vm1690, %v1720, %v1719
  %v1722 = vrot.slane %v1635, 3
  %v1723 = vsel %vm1693, %v1722, %v1721
  %v1724 = vrot.slane %v1636, 2
  %v1725 = vsel %vm1696, %v1724, %v1723
  %v1726 = vrot.slane %v1637, 1
  %v1727 = vsel %vm1678, %v1638, %v1726
  %v1728 = vrot.slane %v1639, 7
  %v1729 = vsel %vm1681, %v1728, %v1727
  %v1730 = vrot.slane %v1640, 6
  %v1731 = vsel %vm1684, %v1730, %v1729
  %v1732 = vrot.slane %v1641, 5
  %v1733 = vsel %vm1687, %v1732, %v1731
  %v1734 = vrot.slane %v1642, 4
  %v1735 = vsel %vm1690, %v1734, %v1733
  %v1736 = vrot.slane %v1643, 3
  %v1737 = vsel %vm1693, %v1736, %v1735
  %v1738 = vrot.slane %v1644, 2
  %v1739 = vsel %vm1696, %v1738, %v1737
  %v1740 = vrot.slane %v1645, 1
  %v1741 = vsel %vm1678, %v1646, %v1740
  %v1742 = vrot.slane %v1647, 7
  %v1743 = vsel %vm1681, %v1742, %v1741
  %v1744 = vrot.slane %v1648, 6
  %v1745 = vsel %vm1684, %v1744, %v1743
  %v1746 = vrot.slane %v1649, 5
  %v1747 = vsel %vm1687, %v1746, %v1745
  %v1748 = vrot.slane %v1650, 4
  %v1749 = vsel %vm1690, %v1748, %v1747
  %v1750 = vrot.slane %v1651, 3
  %v1751 = vsel %vm1693, %v1750, %v1749
  %v1752 = vrot.slane %v1652, 2
  %v1753 = vsel %vm1696, %v1752, %v1751
  %v1754 = vrot.slane %v1653, 1
  %v1755 = vsel %vm1678, %v1654, %v1754
  %v1756 = vrot.slane %v1655, 7
  %v1757 = vsel %vm1681, %v1756, %v1755
  %v1758 = vrot.slane %v1656, 6
  %v1759 = vsel %vm1684, %v1758, %v1757
  %v1760 = vrot.slane %v1657, 5
  %v1761 = vsel %vm1687, %v1760, %v1759
  %v1762 = vrot.slane %v1658, 4
  %v1763 = vsel %vm1690, %v1762, %v1761
  %v1764 = vrot.slane %v1659, 3
  %v1765 = vsel %vm1693, %v1764, %v1763
  %v1766 = vrot.slane %v1660, 2
  %v1767 = vsel %vm1696, %v1766, %v1765
  %v1768 = vrot.slane %v1661, 1
  %v1769 = vsel %vm1678, %v1662, %v1768
  %v1770 = vrot.slane %v1663, 7
  %v1771 = vsel %vm1681, %v1770, %v1769
  %v1772 = vrot.slane %v1664, 6
  %v1773 = vsel %vm1684, %v1772, %v1771
  %v1774 = vrot.slane %v1665, 5
  %v1775 = vsel %vm1687, %v1774, %v1773
  %v1776 = vrot.slane %v1666, 4
  %v1777 = vsel %vm1690, %v1776, %v1775
  %v1778 = vrot.slane %v1667, 3
  %v1779 = vsel %vm1693, %v1778, %v1777
  %v1780 = vrot.slane %v1668, 2
  %v1781 = vsel %vm1696, %v1780, %v1779
  %v1782 = vrot.slane %v1669, 1
  %v1783 = vsel %vm1678, %v1670, %v1782
  %v1784 = vrot.slane %v1671, 7
  %v1785 = vsel %vm1681, %v1784, %v1783
  %v1786 = vrot.slane %v1672, 6
  %v1787 = vsel %vm1684, %v1786, %v1785
  %v1788 = vrot.slane %v1673, 5
  %v1789 = vsel %vm1687, %v1788, %v1787
  %v1790 = vrot.slane %v1674, 4
  %v1791 = vsel %vm1690, %v1790, %v1789
  %v1792 = vrot.slane %v1675, 3
  %v1793 = vsel %vm1693, %v1792, %v1791
  %v1794 = vrot.slane %v1676, 2
  %v1795 = vsel %vm1696, %v1794, %v1793
  %v1796 = vpack.c.b16 %v1711, %v1697
  %v1797 = vpack.c.b16 %v1739, %v1725
  %v1798 = vpack.c.b16 %v1767, %v1753
  %v1799 = vpack.c.b16 %v1795, %v1781
  %v1801 = vunpack.c.l.b16 %v716
  %v1802 = vpack.c.b16 %v1801, %v1801
  %v1803 = vrot.slane %v1802, 2
  %vm1804 = vcmask 31744
  %v1806 = vsel %vm1804, %v1796, 0
  %v1809 = vsel %vm1804, %v1797, 0
  %v1812 = vsel %vm1804, %v1798, 0
  %v1815 = vsel %vm1804, %v1799, 0
  %vm1817 = vcmask 1041408
  %v1819 = vsel %vm1817, %v1803, 0
  %1821 = vmatprep.subr.bf16.mxu0 0
  %1822 = vmatpush1.bf16.msra.mxu0 %v1819
  %1823 = vmatprep.subr.bf16.mxu0 0
  %1824 = vmatpush1.bf16.msra.mxu0 0
  %1825 = vmatprep.subr.bf16.mxu0 0
  %1826 = vmatpush1.bf16.msra.mxu0 0
  %1827 = vmatprep.subr.bf16.mxu0 0
  %1828 = vmatpush1.bf16.msra.mxu0 0
  %1829 = vmatprep.subr.bf16.mxu0 0
  %1830 = vmatpush1.bf16.msra.mxu0 0
  %1831 = vmatprep.subr.bf16.mxu0 0
  %1832 = vmatpush1.bf16.msra.mxu0 0
  %1833 = vmatprep.subr.bf16.mxu0 0
  %1834 = vmatpush1.bf16.msra.mxu0 0
  %1835 = vmatprep.subr.bf16.mxu0 0
  %1836 = vmatpush1.bf16.msra.mxu0 0
  %1837 = vmatprep.subr.bf16.mxu0 0
  %1838 = vmatpush1.bf16.msra.mxu0 0
  %1839 = vmatprep.subr.bf16.mxu0 0
  %1840 = vmatpush1.bf16.msra.mxu0 0
  %1841 = vmatprep.subr.bf16.mxu0 0
  %1842 = vmatpush1.bf16.msra.mxu0 0
  %1843 = vmatprep.subr.bf16.mxu0 0
  %1844 = vmatpush1.bf16.msra.mxu0 0
  %1845 = vmatprep.subr.bf16.mxu0 0
  %1846 = vmatpush1.bf16.msra.mxu0 0
  %1847 = vmatprep.subr.bf16.mxu0 0
  %1848 = vmatpush1.bf16.msra.mxu0 0
  %1849 = vmatprep.subr.bf16.mxu0 0
  %1850 = vmatpush1.bf16.msra.mxu0 0
  %1851 = vmatprep.subr.bf16.mxu0 0
  %1852 = vmatpush1.bf16.msra.mxu0 0
  %1853 = vmatprep.mubr.bf16.mxu0 0
  %1854 = vmatmul.mubr.bf16.gmra.mrb[0].mxu0 %v1806
  %v1855 = vpop.f32.mrb[0].mxu0
  %v1856 = vadd.f32 0.0, %v1855
  %v1857 = vpop.f32.mrb[0].mxu0
  %v1858 = vpop.f32.mrb[0].mxu0
  %v1859 = vadd.f32 0.0, %v1858
  %v1860 = vpop.f32.mrb[0].mxu0
  %1861 = vmatprep.mubr.bf16.mxu0 0
  %1862 = vmatmul.mubr.bf16.gmra.mrb[0].mxu0 %v1809
  %v1863 = vpop.f32.mrb[0].mxu0
  %v1864 = vadd.f32 0.0, %v1863
  %v1865 = vpop.f32.mrb[0].mxu0
  %v1866 = vpop.f32.mrb[0].mxu0
  %v1867 = vadd.f32 0.0, %v1866
  %v1868 = vpop.f32.mrb[0].mxu0
  %1869 = vmatprep.mubr.bf16.mxu0 0
  %1870 = vmatmul.mubr.bf16.gmra.mrb[0].mxu0 %v1812
  %v1871 = vpop.f32.mrb[0].mxu0
  %v1872 = vadd.f32 0.0, %v1871
  %v1873 = vpop.f32.mrb[0].mxu0
  %v1874 = vpop.f32.mrb[0].mxu0
  %v1875 = vadd.f32 0.0, %v1874
  %v1876 = vpop.f32.mrb[0].mxu0
  %1877 = vmatprep.mubr.bf16.mxu0 0
  %1878 = vmatmul.mubr.bf16.gmra.mrb[0].mxu0 %v1815
  %v1879 = vpop.f32.mrb[0].mxu0
  %v1880 = vadd.f32 0.0, %v1879
  %v1881 = vpop.f32.mrb[0].mxu0
  %v1882 = vpop.f32.mrb[0].mxu0
  %v1883 = vadd.f32 0.0, %v1882
  %v1884 = vpop.f32.mrb[0].mxu0
  %1885 = vdwg.mxu0
  %v1886 = vrot.slane %v1614, 7
  %v1887 = vsel %vm1678, %v1886, %v1613
  %v1888 = vrot.slane %v1615, 6
  %v1889 = vsel %vm1681, %v1888, %v1887
  %v1890 = vrot.slane %v1616, 5
  %v1891 = vsel %vm1684, %v1890, %v1889
  %v1892 = vrot.slane %v1617, 4
  %v1893 = vsel %vm1687, %v1892, %v1891
  %v1894 = vrot.slane %v1618, 3
  %v1895 = vsel %vm1690, %v1894, %v1893
  %v1896 = vrot.slane %v1619, 2
  %v1897 = vsel %vm1693, %v1896, %v1895
  %v1898 = vrot.slane %v1620, 1
  %v1899 = vsel %vm1696, %v1898, %v1897
  %v1900 = vrot.slane %v1622, 7
  %v1901 = vsel %vm1678, %v1900, %v1621
  %v1902 = vrot.slane %v1623, 6
  %v1903 = vsel %vm1681, %v1902, %v1901
  %v1904 = vrot.slane %v1624, 5
  %v1905 = vsel %vm1684, %v1904, %v1903
  %v1906 = vrot.slane %v1625, 4
  %v1907 = vsel %vm1687, %v1906, %v1905
  %v1908 = vrot.slane %v1626, 3
  %v1909 = vsel %vm1690, %v1908, %v1907
  %v1910 = vrot.slane %v1627, 2
  %v1911 = vsel %vm1693, %v1910, %v1909
  %v1912 = vrot.slane %v1628, 1
  %v1913 = vsel %vm1696, %v1912, %v1911
  %v1914 = vrot.slane %v1630, 7
  %v1915 = vsel %vm1678, %v1914, %v1629
  %v1916 = vrot.slane %v1631, 6
  %v1917 = vsel %vm1681, %v1916, %v1915
  %v1918 = vrot.slane %v1632, 5
  %v1919 = vsel %vm1684, %v1918, %v1917
  %v1920 = vrot.slane %v1633, 4
  %v1921 = vsel %vm1687, %v1920, %v1919
  %v1922 = vrot.slane %v1634, 3
  %v1923 = vsel %vm1690, %v1922, %v1921
  %v1924 = vrot.slane %v1635, 2
  %v1925 = vsel %vm1693, %v1924, %v1923
  %v1926 = vrot.slane %v1636, 1
  %v1927 = vsel %vm1696, %v1926, %v1925
  %v1928 = vrot.slane %v1638, 7
  %v1929 = vsel %vm1678, %v1928, %v1637
  %v1930 = vrot.slane %v1639, 6
  %v1931 = vsel %vm1681, %v1930, %v1929
  %v1932 = vrot.slane %v1640, 5
  %v1933 = vsel %vm1684, %v1932, %v1931
  %v1934 = vrot.slane %v1641, 4
  %v1935 = vsel %vm1687, %v1934, %v1933
  %v1936 = vrot.slane %v1642, 3
  %v1937 = vsel %vm1690, %v1936, %v1935
  %v1938 = vrot.slane %v1643, 2
  %v1939 = vsel %vm1693, %v1938, %v1937
  %v1940 = vrot.slane %v1644, 1
  %v1941 = vsel %vm1696, %v1940, %v1939
  %v1942 = vrot.slane %v1646, 7
  %v1943 = vsel %vm1678, %v1942, %v1645
  %v1944 = vrot.slane %v1647, 6
  %v1945 = vsel %vm1681, %v1944, %v1943
  %v1946 = vrot.slane %v1648, 5
  %v1947 = vsel %vm1684, %v1946, %v1945
  %v1948 = vrot.slane %v1649, 4
  %v1949 = vsel %vm1687, %v1948, %v1947
  %v1950 = vrot.slane %v1650, 3
  %v1951 = vsel %vm1690, %v1950, %v1949
  %v1952 = vrot.slane %v1651, 2
  %v1953 = vsel %vm1693, %v1952, %v1951
  %v1954 = vrot.slane %v1652, 1
  %v1955 = vsel %vm1696, %v1954, %v1953
  %v1956 = vrot.slane %v1654, 7
  %v1957 = vsel %vm1678, %v1956, %v1653
  %v1958 = vrot.slane %v1655, 6
  %v1959 = vsel %vm1681, %v1958, %v1957
  %v1960 = vrot.slane %v1656, 5
  %v1961 = vsel %vm1684, %v1960, %v1959
  %v1962 = vrot.slane %v1657, 4
  %v1963 = vsel %vm1687, %v1962, %v1961
  %v1964 = vrot.slane %v1658, 3
  %v1965 = vsel %vm1690, %v1964, %v1963
  %v1966 = vrot.slane %v1659, 2
  %v1967 = vsel %vm1693, %v1966, %v1965
  %v1968 = vrot.slane %v1660, 1
  %v1969 = vsel %vm1696, %v1968, %v1967
  %v1970 = vrot.slane %v1662, 7
  %v1971 = vsel %vm1678, %v1970, %v1661
  %v1972 = vrot.slane %v1663, 6
  %v1973 = vsel %vm1681, %v1972, %v1971
  %v1974 = vrot.slane %v1664, 5
  %v1975 = vsel %vm1684, %v1974, %v1973
  %v1976 = vrot.slane %v1665, 4
  %v1977 = vsel %vm1687, %v1976, %v1975
  %v1978 = vrot.slane %v1666, 3
  %v1979 = vsel %vm1690, %v1978, %v1977
  %v1980 = vrot.slane %v1667, 2
  %v1981 = vsel %vm1693, %v1980, %v1979
  %v1982 = vrot.slane %v1668, 1
  %v1983 = vsel %vm1696, %v1982, %v1981
  %v1984 = vrot.slane %v1670, 7
  %v1985 = vsel %vm1678, %v1984, %v1669
  %v1986 = vrot.slane %v1671, 6
  %v1987 = vsel %vm1681, %v1986, %v1985
  %v1988 = vrot.slane %v1672, 5
  %v1989 = vsel %vm1684, %v1988, %v1987
  %v1990 = vrot.slane %v1673, 4
  %v1991 = vsel %vm1687, %v1990, %v1989
  %v1992 = vrot.slane %v1674, 3
  %v1993 = vsel %vm1690, %v1992, %v1991
  %v1994 = vrot.slane %v1675, 2
  %v1995 = vsel %vm1693, %v1994, %v1993
  %v1996 = vrot.slane %v1676, 1
  %v1997 = vsel %vm1696, %v1996, %v1995
  %v1998 = vpack.c.b16 %v1913, %v1899
  %v1999 = vpack.c.b16 %v1941, %v1927
  %v2000 = vpack.c.b16 %v1969, %v1955
  %v2001 = vpack.c.b16 %v1997, %v1983
  %v2003 = vsel %vm1804, %v1998, 0
  %v2006 = vsel %vm1804, %v1999, 0
  %v2009 = vsel %vm1804, %v2000, 0
  %v2012 = vsel %vm1804, %v2001, 0
  %v2015 = vsel %vm1817, %v715, 0
  %2017 = vmatprep.subr.bf16.mxu0 0
  %2018 = vmatpush1.bf16.msra.mxu0 %v2015
  %2019 = vmatprep.subr.bf16.mxu0 0
  %2020 = vmatpush1.bf16.msra.mxu0 0
  %2021 = vmatprep.subr.bf16.mxu0 0
  %2022 = vmatpush1.bf16.msra.mxu0 0
  %2023 = vmatprep.subr.bf16.mxu0 0
  %2024 = vmatpush1.bf16.msra.mxu0 0
  %2025 = vmatprep.subr.bf16.mxu0 0
  %2026 = vmatpush1.bf16.msra.mxu0 0
  %2027 = vmatprep.subr.bf16.mxu0 0
  %2028 = vmatpush1.bf16.msra.mxu0 0
  %2029 = vmatprep.subr.bf16.mxu0 0
  %2030 = vmatpush1.bf16.msra.mxu0 0
  %2031 = vmatprep.subr.bf16.mxu0 0
  %2032 = vmatpush1.bf16.msra.mxu0 0
  %2033 = vmatprep.subr.bf16.mxu0 0
  %2034 = vmatpush1.bf16.msra.mxu0 0
  %2035 = vmatprep.subr.bf16.mxu0 0
  %2036 = vmatpush1.bf16.msra.mxu0 0
  %2037 = vmatprep.subr.bf16.mxu0 0
  %2038 = vmatpush1.bf16.msra.mxu0 0
  %2039 = vmatprep.subr.bf16.mxu0 0
  %2040 = vmatpush1.bf16.msra.mxu0 0
  %2041 = vmatprep.subr.bf16.mxu0 0
  %2042 = vmatpush1.bf16.msra.mxu0 0
  %2043 = vmatprep.subr.bf16.mxu0 0
  %2044 = vmatpush1.bf16.msra.mxu0 0
  %2045 = vmatprep.subr.bf16.mxu0 0
  %2046 = vmatpush1.bf16.msra.mxu0 0
  %2047 = vmatprep.subr.bf16.mxu0 0
  %2048 = vmatpush1.bf16.msra.mxu0 0
  %2049 = vmatprep.mubr.bf16.mxu0 0
  %2050 = vmatmul.mubr.bf16.gmra.mrb[0].mxu0 %v2003
  %v2051 = vpop.f32.mrb[0].mxu0
  %v2052 = vadd.f32 %v1856, %v2051
  %v2053 = vpop.f32.mrb[0].mxu0
  %v2054 = vpop.f32.mrb[0].mxu0
  %v2055 = vadd.f32 %v1859, %v2054
  %v2056 = vpop.f32.mrb[0].mxu0
  %2057 = vmatprep.mubr.bf16.mxu0 0
  %2058 = vmatmul.mubr.bf16.gmra.mrb[0].mxu0 %v2006
  %v2059 = vpop.f32.mrb[0].mxu0
  %v2060 = vadd.f32 %v1864, %v2059
  %v2061 = vpop.f32.mrb[0].mxu0
  %v2062 = vpop.f32.mrb[0].mxu0
  %v2063 = vadd.f32 %v1867, %v2062
  %v2064 = vpop.f32.mrb[0].mxu0
  %2065 = vmatprep.mubr.bf16.mxu0 0
  %2066 = vmatmul.mubr.bf16.gmra.mrb[0].mxu0 %v2009
  %v2067 = vpop.f32.mrb[0].mxu0
  %v2068 = vadd.f32 %v1872, %v2067
  %v2069 = vpop.f32.mrb[0].mxu0
  %v2070 = vpop.f32.mrb[0].mxu0
  %v2071 = vadd.f32 %v1875, %v2070
  %v2072 = vpop.f32.mrb[0].mxu0
  %2073 = vmatprep.mubr.bf16.mxu0 0
  %2074 = vmatmul.mubr.bf16.gmra.mrb[0].mxu0 %v2012
  %v2075 = vpop.f32.mrb[0].mxu0
  %v2076 = vadd.f32 %v1880, %v2075
  %v2077 = vpop.f32.mrb[0].mxu0
  %v2078 = vpop.f32.mrb[0].mxu0
  %v2079 = vadd.f32 %v1883, %v2078
  %v2080 = vpop.f32.mrb[0].mxu0
  %2081 = vdwg.mxu0
  %v2082 = vld [vmem:[%s1 + $0x4] sm:$0x3]
  %v2084 = vunpack.c.l.s4 1966171168
  %v2085 = vunpack.c.0.s8 %v2084
  %v2086 = vlaneseq
  %v2087 = vshrl.u32 %v2086, 7
  %v2088 = vsub.s32 %v2085, %v2087
  %v2089 = vrot.slane %v210, %v2088
  %v2091 = vunpack.c.l.s4 1966171168
  %v2092 = vunpack.c.0.s8 %v2091
  %v2093 = vlaneseq
  %v2094 = vshrl.u32 %v2093, 7
  %v2095 = vsub.s32 %v2092, %v2094
  %v2096 = vrot.slane %v2089, %v2095
  %v2098 = vunpack.c.l.s4 1966171168
  %v2099 = vunpack.c.0.s8 %v2098
  %v2100 = vlaneseq
  %v2101 = vshrl.u32 %v2100, 7
  %v2102 = vsub.s32 %v2099, %v2101
  %v2103 = vrot.slane %v281, %v2102
  %v2105 = vunpack.c.l.s4 1966171168
  %v2106 = vunpack.c.0.s8 %v2105
  %v2107 = vlaneseq
  %v2108 = vshrl.u32 %v2107, 7
  %v2109 = vsub.s32 %v2106, %v2108
  %v2110 = vrot.slane %v2103, %v2109
  %v2112 = vunpack.c.l.s4 1966171168
  %v2113 = vunpack.c.0.s8 %v2112
  %v2114 = vlaneseq
  %v2115 = vshrl.u32 %v2114, 7
  %v2116 = vsub.s32 %v2113, %v2115
  %v2117 = vrot.slane %v352, %v2116
  %v2119 = vunpack.c.l.s4 1966171168
  %v2120 = vunpack.c.0.s8 %v2119
  %v2121 = vlaneseq
  %v2122 = vshrl.u32 %v2121, 7
  %v2123 = vsub.s32 %v2120, %v2122
  %v2124 = vrot.slane %v2117, %v2123
  %v2126 = vunpack.c.l.s4 1966171168
  %v2127 = vunpack.c.0.s8 %v2126
  %v2128 = vlaneseq
  %v2129 = vshrl.u32 %v2128, 7
  %v2130 = vsub.s32 %v2127, %v2129
  %v2131 = vrot.slane %v423, %v2130
  %v2133 = vunpack.c.l.s4 1966171168
  %v2134 = vunpack.c.0.s8 %v2133
  %v2135 = vlaneseq
  %v2136 = vshrl.u32 %v2135, 7
  %v2137 = vsub.s32 %v2134, %v2136
  %v2138 = vrot.slane %v2131, %v2137
  %v2140 = vunpack.c.l.s4 1966171168
  %v2141 = vunpack.c.0.s8 %v2140
  %v2142 = vlaneseq
  %v2143 = vshrl.u32 %v2142, 7
  %v2144 = vsub.s32 %v2141, %v2143
  %v2145 = vrot.slane %v494, %v2144
  %v2147 = vunpack.c.l.s4 1966171168
  %v2148 = vunpack.c.0.s8 %v2147
  %v2149 = vlaneseq
  %v2150 = vshrl.u32 %v2149, 7
  %v2151 = vsub.s32 %v2148, %v2150
  %v2152 = vrot.slane %v2145, %v2151
  %v2154 = vunpack.c.l.s4 1966171168
  %v2155 = vunpack.c.0.s8 %v2154
  %v2156 = vlaneseq
  %v2157 = vshrl.u32 %v2156, 7
  %v2158 = vsub.s32 %v2155, %v2157
  %v2159 = vrot.slane %v565, %v2158
  %v2161 = vunpack.c.l.s4 1966171168
  %v2162 = vunpack.c.0.s8 %v2161
  %v2163 = vlaneseq
  %v2164 = vshrl.u32 %v2163, 7
  %v2165 = vsub.s32 %v2162, %v2164
  %v2166 = vrot.slane %v2159, %v2165
  %v2168 = vunpack.c.l.s4 1966171168
  %v2169 = vunpack.c.0.s8 %v2168
  %v2170 = vlaneseq
  %v2171 = vshrl.u32 %v2170, 7
  %v2172 = vsub.s32 %v2169, %v2171
  %v2173 = vrot.slane %v636, %v2172
  %v2175 = vunpack.c.l.s4 1966171168
  %v2176 = vunpack.c.0.s8 %v2175
  %v2177 = vlaneseq
  %v2178 = vshrl.u32 %v2177, 7
  %v2179 = vsub.s32 %v2176, %v2178
  %v2180 = vrot.slane %v2173, %v2179
  %v2182 = vunpack.c.l.s4 1966171168
  %v2183 = vunpack.c.0.s8 %v2182
  %v2184 = vlaneseq
  %v2185 = vshrl.u32 %v2184, 7
  %v2186 = vsub.s32 %v2183, %v2185
  %v2187 = vrot.slane %v707, %v2186
  %v2189 = vunpack.c.l.s4 1966171168
  %v2190 = vunpack.c.0.s8 %v2189
  %v2191 = vlaneseq
  %v2192 = vshrl.u32 %v2191, 7
  %v2193 = vsub.s32 %v2190, %v2192
  %v2194 = vrot.slane %v2187, %v2193
  %v2195 = vunpack.c.l.b16 %v2096
  %v2196 = vunpack.c.l.b16 %v2110
  %v2197 = vunpack.c.l.b16 %v2124
  %v2198 = vunpack.c.l.b16 %v2138
  %v2199 = vunpack.c.l.b16 %v2152
  %v2200 = vunpack.c.l.b16 %v2166
  %v2201 = vunpack.c.l.b16 %v2180
  %v2202 = vunpack.c.l.b16 %v2194
  %v2203 = vsel %vm1678, %v1680, %v1614
  %v2204 = vsel %vm1681, %v1683, %v2203
  %v2205 = vsel %vm1684, %v1686, %v2204
  %v2206 = vsel %vm1687, %v1689, %v2205
  %v2207 = vsel %vm1690, %v1692, %v2206
  %v2208 = vsel %vm1693, %v1695, %v2207
  %v2209 = vrot.slane %v2195, 1
  %v2210 = vsel %vm1696, %v2209, %v2208
  %v2211 = vsel %vm1678, %v1700, %v1622
  %v2212 = vsel %vm1681, %v1702, %v2211
  %v2213 = vsel %vm1684, %v1704, %v2212
  %v2214 = vsel %vm1687, %v1706, %v2213
  %v2215 = vsel %vm1690, %v1708, %v2214
  %v2216 = vsel %vm1693, %v1710, %v2215
  %v2217 = vrot.slane %v2196, 1
  %v2218 = vsel %vm1696, %v2217, %v2216
  %v2219 = vsel %vm1678, %v1714, %v1630
  %v2220 = vsel %vm1681, %v1716, %v2219
  %v2221 = vsel %vm1684, %v1718, %v2220
  %v2222 = vsel %vm1687, %v1720, %v2221
  %v2223 = vsel %vm1690, %v1722, %v2222
  %v2224 = vsel %vm1693, %v1724, %v2223
  %v2225 = vrot.slane %v2197, 1
  %v2226 = vsel %vm1696, %v2225, %v2224
  %v2227 = vsel %vm1678, %v1728, %v1638
  %v2228 = vsel %vm1681, %v1730, %v2227
  %v2229 = vsel %vm1684, %v1732, %v2228
  %v2230 = vsel %vm1687, %v1734, %v2229
  %v2231 = vsel %vm1690, %v1736, %v2230
  %v2232 = vsel %vm1693, %v1738, %v2231
  %v2233 = vrot.slane %v2198, 1
  %v2234 = vsel %vm1696, %v2233, %v2232
  %v2235 = vsel %vm1678, %v1742, %v1646
  %v2236 = vsel %vm1681, %v1744, %v2235
  %v2237 = vsel %vm1684, %v1746, %v2236
  %v2238 = vsel %vm1687, %v1748, %v2237
  %v2239 = vsel %vm1690, %v1750, %v2238
  %v2240 = vsel %vm1693, %v1752, %v2239
  %v2241 = vrot.slane %v2199, 1
  %v2242 = vsel %vm1696, %v2241, %v2240
  %v2243 = vsel %vm1678, %v1756, %v1654
  %v2244 = vsel %vm1681, %v1758, %v2243
  %v2245 = vsel %vm1684, %v1760, %v2244
  %v2246 = vsel %vm1687, %v1762, %v2245
  %v2247 = vsel %vm1690, %v1764, %v2246
  %v2248 = vsel %vm1693, %v1766, %v2247
  %v2249 = vrot.slane %v2200, 1
  %v2250 = vsel %vm1696, %v2249, %v2248
  %v2251 = vsel %vm1678, %v1770, %v1662
  %v2252 = vsel %vm1681, %v1772, %v2251
  %v2253 = vsel %vm1684, %v1774, %v2252
  %v2254 = vsel %vm1687, %v1776, %v2253
  %v2255 = vsel %vm1690, %v1778, %v2254
  %v2256 = vsel %vm1693, %v1780, %v2255
  %v2257 = vrot.slane %v2201, 1
  %v2258 = vsel %vm1696, %v2257, %v2256
  %v2259 = vsel %vm1678, %v1784, %v1670
  %v2260 = vsel %vm1681, %v1786, %v2259
  %v2261 = vsel %vm1684, %v1788, %v2260
  %v2262 = vsel %vm1687, %v1790, %v2261
  %v2263 = vsel %vm1690, %v1792, %v2262
  %v2264 = vsel %vm1693, %v1794, %v2263
  %v2265 = vrot.slane %v2202, 1
  %v2266 = vsel %vm1696, %v2265, %v2264
  %v2267 = vpack.c.b16 %v2218, %v2210
  %v2268 = vpack.c.b16 %v2234, %v2226
  %v2269 = vpack.c.b16 %v2250, %v2242
  %v2270 = vpack.c.b16 %v2266, %v2258
  %v2272 = vsel %vm1804, %v2267, 0
  %v2275 = vsel %vm1804, %v2268, 0
  %v2278 = vsel %vm1804, %v2269, 0
  %v2281 = vsel %vm1804, %v2270, 0
  %v2284 = vsel %vm1817, %v2082, 0
  %2286 = vmatprep.subr.bf16.mxu0 0
  %2287 = vmatpush1.bf16.msra.mxu0 %v2284
  %2288 = vmatprep.subr.bf16.mxu0 0
  %2289 = vmatpush1.bf16.msra.mxu0 0
  %2290 = vmatprep.subr.bf16.mxu0 0
  %2291 = vmatpush1.bf16.msra.mxu0 0
  %2292 = vmatprep.subr.bf16.mxu0 0
  %2293 = vmatpush1.bf16.msra.mxu0 0
  %2294 = vmatprep.subr.bf16.mxu0 0
  %2295 = vmatpush1.bf16.msra.mxu0 0
  %2296 = vmatprep.subr.bf16.mxu0 0
  %2297 = vmatpush1.bf16.msra.mxu0 0
  %2298 = vmatprep.subr.bf16.mxu0 0
  %2299 = vmatpush1.bf16.msra.mxu0 0
  %2300 = vmatprep.subr.bf16.mxu0 0
  %2301 = vmatpush1.bf16.msra.mxu0 0
  %2302 = vmatprep.subr.bf16.mxu0 0
  %2303 = vmatpush1.bf16.msra.mxu0 0
  %2304 = vmatprep.subr.bf16.mxu0 0
  %2305 = vmatpush1.bf16.msra.mxu0 0
  %2306 = vmatprep.subr.bf16.mxu0 0
  %2307 = vmatpush1.bf16.msra.mxu0 0
  %2308 = vmatprep.subr.bf16.mxu0 0
  %2309 = vmatpush1.bf16.msra.mxu0 0
  %2310 = vmatprep.subr.bf16.mxu0 0
  %2311 = vmatpush1.bf16.msra.mxu0 0
  %2312 = vmatprep.subr.bf16.mxu0 0
  %2313 = vmatpush1.bf16.msra.mxu0 0
  %2314 = vmatprep.subr.bf16.mxu0 0
  %2315 = vmatpush1.bf16.msra.mxu0 0
  %2316 = vmatprep.subr.bf16.mxu0 0
  %2317 = vmatpush1.bf16.msra.mxu0 0
  %2318 = vmatprep.mubr.bf16.mxu0 0
  %2319 = vmatmul.mubr.bf16.gmra.mrb[0].mxu0 %v2272
  %v2320 = vpop.f32.mrb[0].mxu0
  %v2321 = vadd.f32 0.0, %v2320
  %v2322 = vpop.f32.mrb[0].mxu0
  %v2323 = vpop.f32.mrb[0].mxu0
  %v2324 = vadd.f32 0.0, %v2323
  %v2325 = vpop.f32.mrb[0].mxu0
  %2326 = vmatprep.mubr.bf16.mxu0 0
  %2327 = vmatmul.mubr.bf16.gmra.mrb[0].mxu0 %v2275
  %v2328 = vpop.f32.mrb[0].mxu0
  %v2329 = vadd.f32 0.0, %v2328
  %v2330 = vpop.f32.mrb[0].mxu0
  %v2331 = vpop.f32.mrb[0].mxu0
  %v2332 = vadd.f32 0.0, %v2331
  %v2333 = vpop.f32.mrb[0].mxu0
  %2334 = vmatprep.mubr.bf16.mxu0 0
  %2335 = vmatmul.mubr.bf16.gmra.mrb[0].mxu0 %v2278
  %v2336 = vpop.f32.mrb[0].mxu0
  %v2337 = vadd.f32 0.0, %v2336
  %v2338 = vpop.f32.mrb[0].mxu0
  %v2339 = vpop.f32.mrb[0].mxu0
  %v2340 = vadd.f32 0.0, %v2339
  %v2341 = vpop.f32.mrb[0].mxu0
  %2342 = vmatprep.mubr.bf16.mxu0 0
  %2343 = vmatmul.mubr.bf16.gmra.mrb[0].mxu0 %v2281
  %v2344 = vpop.f32.mrb[0].mxu0
  %v2345 = vadd.f32 0.0, %v2344
  %v2346 = vpop.f32.mrb[0].mxu0
  %v2347 = vpop.f32.mrb[0].mxu0
  %v2348 = vadd.f32 0.0, %v2347
  %v2349 = vpop.f32.mrb[0].mxu0
  %2350 = vdwg.mxu0
  %v2351 = vadd.f32 %v2052, %v2321
  %v2352 = vadd.f32 %v2055, %v2324
  %v2353 = vadd.f32 %v2060, %v2329
  %v2354 = vadd.f32 %v2063, %v2332
  %v2355 = vadd.f32 %v2068, %v2337
  %v2356 = vadd.f32 %v2071, %v2340
  %v2357 = vadd.f32 %v2076, %v2345
  %v2358 = vadd.f32 %v2079, %v2348
  %v2359 = vld [vmem:[%s1 + $0x4] sm:$0xc]
  %v2360 = vrot.slane %v1614, 1
  %v2361 = vsel %vm1678, %v1615, %v2360
  %v2362 = vrot.slane %v1616, 7
  %v2363 = vsel %vm1681, %v2362, %v2361
  %v2364 = vrot.slane %v1617, 6
  %v2365 = vsel %vm1684, %v2364, %v2363
  %v2366 = vrot.slane %v1618, 5
  %v2367 = vsel %vm1687, %v2366, %v2365
  %v2368 = vrot.slane %v1619, 4
  %v2369 = vsel %vm1690, %v2368, %v2367
  %v2370 = vrot.slane %v1620, 3
  %v2371 = vsel %vm1693, %v2370, %v2369
  %v2372 = vrot.slane %v2195, 2
  %v2373 = vsel %vm1696, %v2372, %v2371
  %v2374 = vrot.slane %v1622, 1
  %v2375 = vsel %vm1678, %v1623, %v2374
  %v2376 = vrot.slane %v1624, 7
  %v2377 = vsel %vm1681, %v2376, %v2375
  %v2378 = vrot.slane %v1625, 6
  %v2379 = vsel %vm1684, %v2378, %v2377
  %v2380 = vrot.slane %v1626, 5
  %v2381 = vsel %vm1687, %v2380, %v2379
  %v2382 = vrot.slane %v1627, 4
  %v2383 = vsel %vm1690, %v2382, %v2381
  %v2384 = vrot.slane %v1628, 3
  %v2385 = vsel %vm1693, %v2384, %v2383
  %v2386 = vrot.slane %v2196, 2
  %v2387 = vsel %vm1696, %v2386, %v2385
  %v2388 = vrot.slane %v1630, 1
  %v2389 = vsel %vm1678, %v1631, %v2388
  %v2390 = vrot.slane %v1632, 7
  %v2391 = vsel %vm1681, %v2390, %v2389
  %v2392 = vrot.slane %v1633, 6
  %v2393 = vsel %vm1684, %v2392, %v2391
  %v2394 = vrot.slane %v1634, 5
  %v2395 = vsel %vm1687, %v2394, %v2393
  %v2396 = vrot.slane %v1635, 4
  %v2397 = vsel %vm1690, %v2396, %v2395
  %v2398 = vrot.slane %v1636, 3
  %v2399 = vsel %vm1693, %v2398, %v2397
  %v2400 = vrot.slane %v2197, 2
  %v2401 = vsel %vm1696, %v2400, %v2399
  %v2402 = vrot.slane %v1638, 1
  %v2403 = vsel %vm1678, %v1639, %v2402
  %v2404 = vrot.slane %v1640, 7
  %v2405 = vsel %vm1681, %v2404, %v2403
  %v2406 = vrot.slane %v1641, 6
  %v2407 = vsel %vm1684, %v2406, %v2405
  %v2408 = vrot.slane %v1642, 5
  %v2409 = vsel %vm1687, %v2408, %v2407
  %v2410 = vrot.slane %v1643, 4
  %v2411 = vsel %vm1690, %v2410, %v2409
  %v2412 = vrot.slane %v1644, 3
  %v2413 = vsel %vm1693, %v2412, %v2411
  %v2414 = vrot.slane %v2198, 2
  %v2415 = vsel %vm1696, %v2414, %v2413
  %v2416 = vrot.slane %v1646, 1
  %v2417 = vsel %vm1678, %v1647, %v2416
  %v2418 = vrot.slane %v1648, 7
  %v2419 = vsel %vm1681, %v2418, %v2417
  %v2420 = vrot.slane %v1649, 6
  %v2421 = vsel %vm1684, %v2420, %v2419
  %v2422 = vrot.slane %v1650, 5
  %v2423 = vsel %vm1687, %v2422, %v2421
  %v2424 = vrot.slane %v1651, 4
  %v2425 = vsel %vm1690, %v2424, %v2423
  %v2426 = vrot.slane %v1652, 3
  %v2427 = vsel %vm1693, %v2426, %v2425
  %v2428 = vrot.slane %v2199, 2
  %v2429 = vsel %vm1696, %v2428, %v2427
  %v2430 = vrot.slane %v1654, 1
  %v2431 = vsel %vm1678, %v1655, %v2430
  %v2432 = vrot.slane %v1656, 7
  %v2433 = vsel %vm1681, %v2432, %v2431
  %v2434 = vrot.slane %v1657, 6
  %v2435 = vsel %vm1684, %v2434, %v2433
  %v2436 = vrot.slane %v1658, 5
  %v2437 = vsel %vm1687, %v2436, %v2435
  %v2438 = vrot.slane %v1659, 4
  %v2439 = vsel %vm1690, %v2438, %v2437
  %v2440 = vrot.slane %v1660, 3
  %v2441 = vsel %vm1693, %v2440, %v2439
  %v2442 = vrot.slane %v2200, 2
  %v2443 = vsel %vm1696, %v2442, %v2441
  %v2444 = vrot.slane %v1662, 1
  %v2445 = vsel %vm1678, %v1663, %v2444
  %v2446 = vrot.slane %v1664, 7
  %v2447 = vsel %vm1681, %v2446, %v2445
  %v2448 = vrot.slane %v1665, 6
  %v2449 = vsel %vm1684, %v2448, %v2447
  %v2450 = vrot.slane %v1666, 5
  %v2451 = vsel %vm1687, %v2450, %v2449
  %v2452 = vrot.slane %v1667, 4
  %v2453 = vsel %vm1690, %v2452, %v2451
  %v2454 = vrot.slane %v1668, 3
  %v2455 = vsel %vm1693, %v2454, %v2453
  %v2456 = vrot.slane %v2201, 2
  %v2457 = vsel %vm1696, %v2456, %v2455
  %v2458 = vrot.slane %v1670, 1
  %v2459 = vsel %vm1678, %v1671, %v2458
  %v2460 = vrot.slane %v1672, 7
  %v2461 = vsel %vm1681, %v2460, %v2459
  %v2462 = vrot.slane %v1673, 6
  %v2463 = vsel %vm1684, %v2462, %v2461
  %v2464 = vrot.slane %v1674, 5
  %v2465 = vsel %vm1687, %v2464, %v2463
  %v2466 = vrot.slane %v1675, 4
  %v2467 = vsel %vm1690, %v2466, %v2465
  %v2468 = vrot.slane %v1676, 3
  %v2469 = vsel %vm1693, %v2468, %v2467
  %v2470 = vrot.slane %v2202, 2
  %v2471 = vsel %vm1696, %v2470, %v2469
  %v2472 = vpack.c.b16 %v2387, %v2373
  %v2473 = vpack.c.b16 %v2415, %v2401
  %v2474 = vpack.c.b16 %v2443, %v2429
  %v2475 = vpack.c.b16 %v2471, %v2457
  %v2477 = vunpack.c.l.b16 %v2359
  %v2478 = vpack.c.b16 %v2477, %v2477
  %v2479 = vrot.slane %v2478, 2
  %v2481 = vsel %vm1804, %v2472, 0
  %v2484 = vsel %vm1804, %v2473, 0
  %v2487 = vsel %vm1804, %v2474, 0
  %v2490 = vsel %vm1804, %v2475, 0
  %v2493 = vsel %vm1817, %v2479, 0
  %2495 = vmatprep.subr.bf16.mxu0 0
  %2496 = vmatpush1.bf16.msra.mxu0 %v2493
  %2497 = vmatprep.subr.bf16.mxu0 0
  %2498 = vmatpush1.bf16.msra.mxu0 0
  %2499 = vmatprep.subr.bf16.mxu0 0
  %2500 = vmatpush1.bf16.msra.mxu0 0
  %2501 = vmatprep.subr.bf16.mxu0 0
  %2502 = vmatpush1.bf16.msra.mxu0 0
  %2503 = vmatprep.subr.bf16.mxu0 0
  %2504 = vmatpush1.bf16.msra.mxu0 0
  %2505 = vmatprep.subr.bf16.mxu0 0
  %2506 = vmatpush1.bf16.msra.mxu0 0
  %2507 = vmatprep.subr.bf16.mxu0 0
  %2508 = vmatpush1.bf16.msra.mxu0 0
  %2509 = vmatprep.subr.bf16.mxu0 0
  %2510 = vmatpush1.bf16.msra.mxu0 0
  %2511 = vmatprep.subr.bf16.mxu0 0
  %2512 = vmatpush1.bf16.msra.mxu0 0
  %2513 = vmatprep.subr.bf16.mxu0 0
  %2514 = vmatpush1.bf16.msra.mxu0 0
  %2515 = vmatprep.subr.bf16.mxu0 0
  %2516 = vmatpush1.bf16.msra.mxu0 0
  %2517 = vmatprep.subr.bf16.mxu0 0
  %2518 = vmatpush1.bf16.msra.mxu0 0
  %2519 = vmatprep.subr.bf16.mxu0 0
  %2520 = vmatpush1.bf16.msra.mxu0 0
  %2521 = vmatprep.subr.bf16.mxu0 0
  %2522 = vmatpush1.bf16.msra.mxu0 0
  %2523 = vmatprep.subr.bf16.mxu0 0
  %2524 = vmatpush1.bf16.msra.mxu0 0
  %2525 = vmatprep.subr.bf16.mxu0 0
  %2526 = vmatpush1.bf16.msra.mxu0 0
  %2527 = vmatprep.mubr.bf16.mxu0 0
  %2528 = vmatmul.mubr.bf16.gmra.mrb[0].mxu0 %v2481
  %v2529 = vpop.f32.mrb[0].mxu0
  %v2530 = vadd.f32 0.0, %v2529
  %v2531 = vpop.f32.mrb[0].mxu0
  %v2532 = vpop.f32.mrb[0].mxu0
  %v2533 = vadd.f32 0.0, %v2532
  %v2534 = vpop.f32.mrb[0].mxu0
  %2535 = vmatprep.mubr.bf16.mxu0 0
  %2536 = vmatmul.mubr.bf16.gmra.mrb[0].mxu0 %v2484
  %v2537 = vpop.f32.mrb[0].mxu0
  %v2538 = vadd.f32 0.0, %v2537
  %v2539 = vpop.f32.mrb[0].mxu0
  %v2540 = vpop.f32.mrb[0].mxu0
  %v2541 = vadd.f32 0.0, %v2540
  %v2542 = vpop.f32.mrb[0].mxu0
  %2543 = vmatprep.mubr.bf16.mxu0 0
  %2544 = vmatmul.mubr.bf16.gmra.mrb[0].mxu0 %v2487
  %v2545 = vpop.f32.mrb[0].mxu0
  %v2546 = vadd.f32 0.0, %v2545
  %v2547 = vpop.f32.mrb[0].mxu0
  %v2548 = vpop.f32.mrb[0].mxu0
  %v2549 = vadd.f32 0.0, %v2548
  %v2550 = vpop.f32.mrb[0].mxu0
  %2551 = vmatprep.mubr.bf16.mxu0 0
  %2552 = vmatmul.mubr.bf16.gmra.mrb[0].mxu0 %v2490
  %v2553 = vpop.f32.mrb[0].mxu0
  %v2554 = vadd.f32 0.0, %v2553
  %v2555 = vpop.f32.mrb[0].mxu0
  %v2556 = vpop.f32.mrb[0].mxu0
  %v2557 = vadd.f32 0.0, %v2556
  %v2558 = vpop.f32.mrb[0].mxu0
  %2559 = vdwg.mxu0
  %v2560 = vadd.f32 %v2351, %v2530
  %v2561 = vadd.f32 %v2352, %v2533
  %v2562 = vadd.f32 %v2353, %v2538
  %v2563 = vadd.f32 %v2354, %v2541
  %v2564 = vadd.f32 %v2355, %v2546
  %v2565 = vadd.f32 %v2356, %v2549
  %v2566 = vadd.f32 %v2357, %v2554
  %v2567 = vadd.f32 %v2358, %v2557
  %v2568 = vld [vmem:[%s1 + $0x8] sm:$0x3]
  %v2570 = vunpack.c.l.s4 1966171168
  %v2571 = vunpack.c.0.s8 %v2570
  %v2572 = vlaneseq
  %v2573 = vshrl.u32 %v2572, 7
  %v2574 = vsub.s32 %v2571, %v2573
  %v2575 = vrot.slane %v217, %v2574
  %v2577 = vunpack.c.l.s4 1966171168
  %v2578 = vunpack.c.0.s8 %v2577
  %v2579 = vlaneseq
  %v2580 = vshrl.u32 %v2579, 7
  %v2581 = vsub.s32 %v2578, %v2580
  %v2582 = vrot.slane %v2575, %v2581
  %v2584 = vunpack.c.l.s4 1966171168
  %v2585 = vunpack.c.0.s8 %v2584
  %v2586 = vlaneseq
  %v2587 = vshrl.u32 %v2586, 7
  %v2588 = vsub.s32 %v2585, %v2587
  %v2589 = vrot.slane %v288, %v2588
  %v2591 = vunpack.c.l.s4 1966171168
  %v2592 = vunpack.c.0.s8 %v2591
  %v2593 = vlaneseq
  %v2594 = vshrl.u32 %v2593, 7
  %v2595 = vsub.s32 %v2592, %v2594
  %v2596 = vrot.slane %v2589, %v2595
  %v2598 = vunpack.c.l.s4 1966171168
  %v2599 = vunpack.c.0.s8 %v2598
  %v2600 = vlaneseq
  %v2601 = vshrl.u32 %v2600, 7
  %v2602 = vsub.s32 %v2599, %v2601
  %v2603 = vrot.slane %v359, %v2602
  %v2605 = vunpack.c.l.s4 1966171168
  %v2606 = vunpack.c.0.s8 %v2605
  %v2607 = vlaneseq
  %v2608 = vshrl.u32 %v2607, 7
  %v2609 = vsub.s32 %v2606, %v2608
  %v2610 = vrot.slane %v2603, %v2609
  %v2612 = vunpack.c.l.s4 1966171168
  %v2613 = vunpack.c.0.s8 %v2612
  %v2614 = vlaneseq
  %v2615 = vshrl.u32 %v2614, 7
  %v2616 = vsub.s32 %v2613, %v2615
  %v2617 = vrot.slane %v430, %v2616
  %v2619 = vunpack.c.l.s4 1966171168
  %v2620 = vunpack.c.0.s8 %v2619
  %v2621 = vlaneseq
  %v2622 = vshrl.u32 %v2621, 7
  %v2623 = vsub.s32 %v2620, %v2622
  %v2624 = vrot.slane %v2617, %v2623
  %v2626 = vunpack.c.l.s4 1966171168
  %v2627 = vunpack.c.0.s8 %v2626
  %v2628 = vlaneseq
  %v2629 = vshrl.u32 %v2628, 7
  %v2630 = vsub.s32 %v2627, %v2629
  %v2631 = vrot.slane %v501, %v2630
  %v2633 = vunpack.c.l.s4 1966171168
  %v2634 = vunpack.c.0.s8 %v2633
  %v2635 = vlaneseq
  %v2636 = vshrl.u32 %v2635, 7
  %v2637 = vsub.s32 %v2634, %v2636
  %v2638 = vrot.slane %v2631, %v2637
  %v2640 = vunpack.c.l.s4 1966171168
  %v2641 = vunpack.c.0.s8 %v2640
  %v2642 = vlaneseq
  %v2643 = vshrl.u32 %v2642, 7
  %v2644 = vsub.s32 %v2641, %v2643
  %v2645 = vrot.slane %v572, %v2644
  %v2647 = vunpack.c.l.s4 1966171168
  %v2648 = vunpack.c.0.s8 %v2647
  %v2649 = vlaneseq
  %v2650 = vshrl.u32 %v2649, 7
  %v2651 = vsub.s32 %v2648, %v2650
  %v2652 = vrot.slane %v2645, %v2651
  %v2654 = vunpack.c.l.s4 1966171168
  %v2655 = vunpack.c.0.s8 %v2654
  %v2656 = vlaneseq
  %v2657 = vshrl.u32 %v2656, 7
  %v2658 = vsub.s32 %v2655, %v2657
  %v2659 = vrot.slane %v643, %v2658
  %v2661 = vunpack.c.l.s4 1966171168
  %v2662 = vunpack.c.0.s8 %v2661
  %v2663 = vlaneseq
  %v2664 = vshrl.u32 %v2663, 7
  %v2665 = vsub.s32 %v2662, %v2664
  %v2666 = vrot.slane %v2659, %v2665
  %v2668 = vunpack.c.l.s4 1966171168
  %v2669 = vunpack.c.0.s8 %v2668
  %v2670 = vlaneseq
  %v2671 = vshrl.u32 %v2670, 7
  %v2672 = vsub.s32 %v2669, %v2671
  %v2673 = vrot.slane %v714, %v2672
  %v2675 = vunpack.c.l.s4 1966171168
  %v2676 = vunpack.c.0.s8 %v2675
  %v2677 = vlaneseq
  %v2678 = vshrl.u32 %v2677, 7
  %v2679 = vsub.s32 %v2676, %v2678
  %v2680 = vrot.slane %v2673, %v2679
  %v2681 = vunpack.c.l.b16 %v2582
  %v2682 = vunpack.c.l.b16 %v2596
  %v2683 = vunpack.c.l.b16 %v2610
  %v2684 = vunpack.c.l.b16 %v2624
  %v2685 = vunpack.c.l.b16 %v2638
  %v2686 = vunpack.c.l.b16 %v2652
  %v2687 = vunpack.c.l.b16 %v2666
  %v2688 = vunpack.c.l.b16 %v2680
  %v2689 = vsel %vm1678, %v2362, %v1615
  %v2690 = vsel %vm1681, %v2364, %v2689
  %v2691 = vsel %vm1684, %v2366, %v2690
  %v2692 = vsel %vm1687, %v2368, %v2691
  %v2693 = vsel %vm1690, %v2370, %v2692
  %v2694 = vsel %vm1693, %v2372, %v2693
  %v2695 = vrot.slane %v2681, 1
  %v2696 = vsel %vm1696, %v2695, %v2694
  %v2697 = vsel %vm1678, %v2376, %v1623
  %v2698 = vsel %vm1681, %v2378, %v2697
  %v2699 = vsel %vm1684, %v2380, %v2698
  %v2700 = vsel %vm1687, %v2382, %v2699
  %v2701 = vsel %vm1690, %v2384, %v2700
  %v2702 = vsel %vm1693, %v2386, %v2701
  %v2703 = vrot.slane %v2682, 1
  %v2704 = vsel %vm1696, %v2703, %v2702
  %v2705 = vsel %vm1678, %v2390, %v1631
  %v2706 = vsel %vm1681, %v2392, %v2705
  %v2707 = vsel %vm1684, %v2394, %v2706
  %v2708 = vsel %vm1687, %v2396, %v2707
  %v2709 = vsel %vm1690, %v2398, %v2708
  %v2710 = vsel %vm1693, %v2400, %v2709
  %v2711 = vrot.slane %v2683, 1
  %v2712 = vsel %vm1696, %v2711, %v2710
  %v2713 = vsel %vm1678, %v2404, %v1639
  %v2714 = vsel %vm1681, %v2406, %v2713
  %v2715 = vsel %vm1684, %v2408, %v2714
  %v2716 = vsel %vm1687, %v2410, %v2715
  %v2717 = vsel %vm1690, %v2412, %v2716
  %v2718 = vsel %vm1693, %v2414, %v2717
  %v2719 = vrot.slane %v2684, 1
  %v2720 = vsel %vm1696, %v2719, %v2718
  %v2721 = vsel %vm1678, %v2418, %v1647
  %v2722 = vsel %vm1681, %v2420, %v2721
  %v2723 = vsel %vm1684, %v2422, %v2722
  %v2724 = vsel %vm1687, %v2424, %v2723
  %v2725 = vsel %vm1690, %v2426, %v2724
  %v2726 = vsel %vm1693, %v2428, %v2725
  %v2727 = vrot.slane %v2685, 1
  %v2728 = vsel %vm1696, %v2727, %v2726
  %v2729 = vsel %vm1678, %v2432, %v1655
  %v2730 = vsel %vm1681, %v2434, %v2729
  %v2731 = vsel %vm1684, %v2436, %v2730
  %v2732 = vsel %vm1687, %v2438, %v2731
  %v2733 = vsel %vm1690, %v2440, %v2732
  %v2734 = vsel %vm1693, %v2442, %v2733
  %v2735 = vrot.slane %v2686, 1
  %v2736 = vsel %vm1696, %v2735, %v2734
  %v2737 = vsel %vm1678, %v2446, %v1663
  %v2738 = vsel %vm1681, %v2448, %v2737
  %v2739 = vsel %vm1684, %v2450, %v2738
  %v2740 = vsel %vm1687, %v2452, %v2739
  %v2741 = vsel %vm1690, %v2454, %v2740
  %v2742 = vsel %vm1693, %v2456, %v2741
  %v2743 = vrot.slane %v2687, 1
  %v2744 = vsel %vm1696, %v2743, %v2742
  %v2745 = vsel %vm1678, %v2460, %v1671
  %v2746 = vsel %vm1681, %v2462, %v2745
  %v2747 = vsel %vm1684, %v2464, %v2746
  %v2748 = vsel %vm1687, %v2466, %v2747
  %v2749 = vsel %vm1690, %v2468, %v2748
  %v2750 = vsel %vm1693, %v2470, %v2749
  %v2751 = vrot.slane %v2688, 1
  %v2752 = vsel %vm1696, %v2751, %v2750
  %v2753 = vpack.c.b16 %v2704, %v2696
  %v2754 = vpack.c.b16 %v2720, %v2712
  %v2755 = vpack.c.b16 %v2736, %v2728
  %v2756 = vpack.c.b16 %v2752, %v2744
  %v2758 = vsel %vm1804, %v2753, 0
  %v2761 = vsel %vm1804, %v2754, 0
  %v2764 = vsel %vm1804, %v2755, 0
  %v2767 = vsel %vm1804, %v2756, 0
  %v2770 = vsel %vm1817, %v2568, 0
  %2772 = vmatprep.subr.bf16.mxu0 0
  %2773 = vmatpush1.bf16.msra.mxu0 %v2770
  %2774 = vmatprep.subr.bf16.mxu0 0
  %2775 = vmatpush1.bf16.msra.mxu0 0
  %2776 = vmatprep.subr.bf16.mxu0 0
  %2777 = vmatpush1.bf16.msra.mxu0 0
  %2778 = vmatprep.subr.bf16.mxu0 0
  %2779 = vmatpush1.bf16.msra.mxu0 0
  %2780 = vmatprep.subr.bf16.mxu0 0
  %2781 = vmatpush1.bf16.msra.mxu0 0
  %2782 = vmatprep.subr.bf16.mxu0 0
  %2783 = vmatpush1.bf16.msra.mxu0 0
  %2784 = vmatprep.subr.bf16.mxu0 0
  %2785 = vmatpush1.bf16.msra.mxu0 0
  %2786 = vmatprep.subr.bf16.mxu0 0
  %2787 = vmatpush1.bf16.msra.mxu0 0
  %2788 = vmatprep.subr.bf16.mxu0 0
  %2789 = vmatpush1.bf16.msra.mxu0 0
  %2790 = vmatprep.subr.bf16.mxu0 0
  %2791 = vmatpush1.bf16.msra.mxu0 0
  %2792 = vmatprep.subr.bf16.mxu0 0
  %2793 = vmatpush1.bf16.msra.mxu0 0
  %2794 = vmatprep.subr.bf16.mxu0 0
  %2795 = vmatpush1.bf16.msra.mxu0 0
  %2796 = vmatprep.subr.bf16.mxu0 0
  %2797 = vmatpush1.bf16.msra.mxu0 0
  %2798 = vmatprep.subr.bf16.mxu0 0
  %2799 = vmatpush1.bf16.msra.mxu0 0
  %2800 = vmatprep.subr.bf16.mxu0 0
  %2801 = vmatpush1.bf16.msra.mxu0 0
  %2802 = vmatprep.subr.bf16.mxu0 0
  %2803 = vmatpush1.bf16.msra.mxu0 0
  %2804 = vmatprep.mubr.bf16.mxu0 0
  %2805 = vmatmul.mubr.bf16.gmra.mrb[0].mxu0 %v2758
  %v2806 = vpop.f32.mrb[0].mxu0
  %v2807 = vadd.f32 0.0, %v2806
  %v2808 = vpop.f32.mrb[0].mxu0
  %v2809 = vpop.f32.mrb[0].mxu0
  %v2810 = vadd.f32 0.0, %v2809
  %v2811 = vpop.f32.mrb[0].mxu0
  %2812 = vmatprep.mubr.bf16.mxu0 0
  %2813 = vmatmul.mubr.bf16.gmra.mrb[0].mxu0 %v2761
  %v2814 = vpop.f32.mrb[0].mxu0
  %v2815 = vadd.f32 0.0, %v2814
  %v2816 = vpop.f32.mrb[0].mxu0
  %v2817 = vpop.f32.mrb[0].mxu0
  %v2818 = vadd.f32 0.0, %v2817
  %v2819 = vpop.f32.mrb[0].mxu0
  %2820 = vmatprep.mubr.bf16.mxu0 0
  %2821 = vmatmul.mubr.bf16.gmra.mrb[0].mxu0 %v2764
  %v2822 = vpop.f32.mrb[0].mxu0
  %v2823 = vadd.f32 0.0, %v2822
  %v2824 = vpop.f32.mrb[0].mxu0
  %v2825 = vpop.f32.mrb[0].mxu0
  %v2826 = vadd.f32 0.0, %v2825
  %v2827 = vpop.f32.mrb[0].mxu0
  %2828 = vmatprep.mubr.bf16.mxu0 0
  %2829 = vmatmul.mubr.bf16.gmra.mrb[0].mxu0 %v2767
  %v2830 = vpop.f32.mrb[0].mxu0
  %v2831 = vadd.f32 0.0, %v2830
  %v2832 = vpop.f32.mrb[0].mxu0
  %v2833 = vpop.f32.mrb[0].mxu0
  %v2834 = vadd.f32 0.0, %v2833
  %v2835 = vpop.f32.mrb[0].mxu0
  %2836 = vdwg.mxu0
  %v2837 = vadd.f32 %v2560, %v2807
  %v2838 = vadd.f32 %v2561, %v2810
  %v2839 = vadd.f32 %v2562, %v2815
  %v2840 = vadd.f32 %v2563, %v2818
  %v2841 = vadd.f32 %v2564, %v2823
  %v2842 = vadd.f32 %v2565, %v2826
  %v2843 = vadd.f32 %v2566, %v2831
  %v2844 = vadd.f32 %v2567, %v2834
  %v2845 = vld [vmem:[%s2] sm:$0x1]
  %v2847 = vlaneseq
  %v2848 = vshrl.u32 %v2847, 7
  %v2849 = vsub.s32 0, %v2848
  %v2850 = vrot.slane %v2845, %v2849
  %v2852 = vadd.f32 %v2837, %v2850
  %v2853 = vadd.f32 %v2838, %v2850
  %v2854 = vadd.f32 %v2839, %v2850
  %v2855 = vadd.f32 %v2840, %v2850
  %v2856 = vadd.f32 %v2841, %v2850
  %v2857 = vadd.f32 %v2842, %v2850
  %v2858 = vadd.f32 %v2843, %v2850
  %v2859 = vadd.f32 %v2844, %v2850
  %vm2860 = vcmp.gt.f32.partialorder %v2852, 0.0
  %vm2861 = vcmp.gt.f32.partialorder %v2853, 0.0
  %vm2862 = vcmp.gt.f32.partialorder %v2854, 0.0
  %vm2863 = vcmp.gt.f32.partialorder %v2855, 0.0
  %vm2864 = vcmp.gt.f32.partialorder %v2856, 0.0
  %vm2865 = vcmp.gt.f32.partialorder %v2857, 0.0
  %vm2866 = vcmp.gt.f32.partialorder %v2858, 0.0
  %vm2867 = vcmp.gt.f32.partialorder %v2859, 0.0
  %v2868 = vmul.f32 %v2852, 0.2
  %v2869 = vmul.f32 %v2853, 0.2
  %v2870 = vmul.f32 %v2854, 0.2
  %v2871 = vmul.f32 %v2855, 0.2
  %v2872 = vmul.f32 %v2856, 0.2
  %v2873 = vmul.f32 %v2857, 0.2
  %v2874 = vmul.f32 %v2858, 0.2
  %v2875 = vmul.f32 %v2859, 0.2
  %v2876 = vsel %vm2860, %v2852, %v2868
  %v2877 = vsel %vm2861, %v2853, %v2869
  %v2878 = vsel %vm2862, %v2854, %v2870
  %v2879 = vsel %vm2863, %v2855, %v2871
  %v2880 = vsel %vm2864, %v2856, %v2872
  %v2881 = vsel %vm2865, %v2857, %v2873
  %v2882 = vsel %vm2866, %v2858, %v2874
  %v2883 = vsel %vm2867, %v2859, %v2875
  %v2884 = vpack.c.bf16 %v2876, %v2876
  %v2885 = vpack.c.bf16 %v2877, %v2877
  %v2886 = vpack.c.bf16 %v2878, %v2878
  %v2887 = vpack.c.bf16 %v2879, %v2879
  %v2888 = vpack.c.bf16 %v2880, %v2880
  %v2889 = vpack.c.bf16 %v2881, %v2881
  %v2890 = vpack.c.bf16 %v2882, %v2882
  %v2891 = vpack.c.bf16 %v2883, %v2883
  %v2900 = vrot.slane %v2884, 7
  %v2901 = vrot.slane %v2885, 7
  %v2902 = vrot.slane %v2886, 7
  %v2903 = vrot.slane %v2887, 7
  %v2904 = vrot.slane %v2888, 7
  %v2905 = vrot.slane %v2889, 7
  %v2906 = vrot.slane %v2890, 7
  %v2907 = vrot.slane %v2891, 7
  %v2909 = vsel %vm105, 0, %v2900
  %v2911 = vsel %vm105, 0, %v2901
  %v2913 = vsel %vm105, 0, %v2902
  %v2915 = vsel %vm105, 0, %v2903
  %v2917 = vsel %vm105, 0, %v2904
  %v2919 = vsel %vm105, 0, %v2905
  %v2921 = vsel %vm105, 0, %v2906
  %v2923 = vsel %vm105, 0, %v2907
  %vm2924 = vcmask 1044480
  %v2925 = vsel %vm2924, %v2909, 0
  %v2926 = vsel %vm2924, %v2911, 0
  %v2927 = vsel %vm2924, %v2913, 0
  %v2928 = vsel %vm2924, %v2915, 0
  %v2929 = vsel %vm2924, %v2917, 0
  %v2930 = vsel %vm2924, %v2919, 0
  %v2931 = vsel %vm2924, %v2921, 0
  %v2932 = vsel %vm2924, %v2923, 0
  %v2941 = vcombine.high %v2925, %v2925
  %v2943 = vunpack.c.l.s4 1966171168
  %v2944 = vunpack.c.0.s8 %v2943
  %v2945 = vlaneseq
  %v2946 = vshrl.u32 %v2945, 7
  %v2947 = vsub.s32 %v2944, %v2946
  %v2948 = vrot.slane %v2925, %v2947
  %v2950 = vunpack.c.l.s4 1966171168
  %v2951 = vunpack.c.0.s8 %v2950
  %v2952 = vlaneseq
  %v2953 = vshrl.u32 %v2952, 7
  %v2954 = vsub.s32 %v2951, %v2953
  %v2955 = vrot.slane %v2941, %v2954
  %v2956 = vcombine.high %v2948, %v2948
  %v2957 = vcombine.high %v2955, %v2955
  %v2959 = vunpack.c.l.s4 1966171168
  %v2960 = vunpack.c.0.s8 %v2959
  %v2961 = vlaneseq
  %v2962 = vshrl.u32 %v2961, 7
  %v2963 = vsub.s32 %v2960, %v2962
  %v2964 = vrot.slane %v2948, %v2963
  %v2966 = vunpack.c.l.s4 1966171168
  %v2967 = vunpack.c.0.s8 %v2966
  %v2968 = vlaneseq
  %v2969 = vshrl.u32 %v2968, 7
  %v2970 = vsub.s32 %v2967, %v2969
  %v2971 = vrot.slane %v2955, %v2970
  %v2973 = vunpack.c.l.s4 1966171168
  %v2974 = vunpack.c.0.s8 %v2973
  %v2975 = vlaneseq
  %v2976 = vshrl.u32 %v2975, 7
  %v2977 = vsub.s32 %v2974, %v2976
  %v2978 = vrot.slane %v2956, %v2977
  %v2980 = vunpack.c.l.s4 1966171168
  %v2981 = vunpack.c.0.s8 %v2980
  %v2982 = vlaneseq
  %v2983 = vshrl.u32 %v2982, 7
  %v2984 = vsub.s32 %v2981, %v2983
  %v2985 = vrot.slane %v2957, %v2984
  %v2986 = vcombine.high %v2964, %v2964
  %v2987 = vcombine.high %v2978, %v2978
  %v2988 = vcombine.high %v2926, %v2926
  %v2990 = vunpack.c.l.s4 1966171168
  %v2991 = vunpack.c.0.s8 %v2990
  %v2992 = vlaneseq
  %v2993 = vshrl.u32 %v2992, 7
  %v2994 = vsub.s32 %v2991, %v2993
  %v2995 = vrot.slane %v2926, %v2994
  %v2997 = vunpack.c.l.s4 1966171168
  %v2998 = vunpack.c.0.s8 %v2997
  %v2999 = vlaneseq
  %v3000 = vshrl.u32 %v2999, 7
  %v3001 = vsub.s32 %v2998, %v3000
  %v3002 = vrot.slane %v2988, %v3001
  %v3003 = vcombine.high %v2995, %v2995
  %v3004 = vcombine.high %v3002, %v3002
  %v3006 = vunpack.c.l.s4 1966171168
  %v3007 = vunpack.c.0.s8 %v3006
  %v3008 = vlaneseq
  %v3009 = vshrl.u32 %v3008, 7
  %v3010 = vsub.s32 %v3007, %v3009
  %v3011 = vrot.slane %v2995, %v3010
  %v3013 = vunpack.c.l.s4 1966171168
  %v3014 = vunpack.c.0.s8 %v3013
  %v3015 = vlaneseq
  %v3016 = vshrl.u32 %v3015, 7
  %v3017 = vsub.s32 %v3014, %v3016
  %v3018 = vrot.slane %v3002, %v3017
  %v3020 = vunpack.c.l.s4 1966171168
  %v3021 = vunpack.c.0.s8 %v3020
  %v3022 = vlaneseq
  %v3023 = vshrl.u32 %v3022, 7
  %v3024 = vsub.s32 %v3021, %v3023
  %v3025 = vrot.slane %v3003, %v3024
  %v3027 = vunpack.c.l.s4 1966171168
  %v3028 = vunpack.c.0.s8 %v3027
  %v3029 = vlaneseq
  %v3030 = vshrl.u32 %v3029, 7
  %v3031 = vsub.s32 %v3028, %v3030
  %v3032 = vrot.slane %v3004, %v3031
  %v3033 = vcombine.high %v3011, %v3011
  %v3034 = vcombine.high %v3025, %v3025
  %v3035 = vcombine.high %v2927, %v2927
  %v3037 = vunpack.c.l.s4 1966171168
  %v3038 = vunpack.c.0.s8 %v3037
  %v3039 = vlaneseq
  %v3040 = vshrl.u32 %v3039, 7
  %v3041 = vsub.s32 %v3038, %v3040
  %v3042 = vrot.slane %v2927, %v3041
  %v3044 = vunpack.c.l.s4 1966171168
  %v3045 = vunpack.c.0.s8 %v3044
  %v3046 = vlaneseq
  %v3047 = vshrl.u32 %v3046, 7
  %v3048 = vsub.s32 %v3045, %v3047
  %v3049 = vrot.slane %v3035, %v3048
  %v3050 = vcombine.high %v3042, %v3042
  %v3051 = vcombine.high %v3049, %v3049
  %v3053 = vunpack.c.l.s4 1966171168
  %v3054 = vunpack.c.0.s8 %v3053
  %v3055 = vlaneseq
  %v3056 = vshrl.u32 %v3055, 7
  %v3057 = vsub.s32 %v3054, %v3056
  %v3058 = vrot.slane %v3042, %v3057
  %v3060 = vunpack.c.l.s4 1966171168
  %v3061 = vunpack.c.0.s8 %v3060
  %v3062 = vlaneseq
  %v3063 = vshrl.u32 %v3062, 7
  %v3064 = vsub.s32 %v3061, %v3063
  %v3065 = vrot.slane %v3049, %v3064
  %v3067 = vunpack.c.l.s4 1966171168
  %v3068 = vunpack.c.0.s8 %v3067
  %v3069 = vlaneseq
  %v3070 = vshrl.u32 %v3069, 7
  %v3071 = vsub.s32 %v3068, %v3070
  %v3072 = vrot.slane %v3050, %v3071
  %v3074 = vunpack.c.l.s4 1966171168
  %v3075 = vunpack.c.0.s8 %v3074
  %v3076 = vlaneseq
  %v3077 = vshrl.u32 %v3076, 7
  %v3078 = vsub.s32 %v3075, %v3077
  %v3079 = vrot.slane %v3051, %v3078
  %v3080 = vcombine.high %v3058, %v3058
  %v3081 = vcombine.high %v3072, %v3072
  %v3082 = vcombine.high %v2928, %v2928
  %v3084 = vunpack.c.l.s4 1966171168
  %v3085 = vunpack.c.0.s8 %v3084
  %v3086 = vlaneseq
  %v3087 = vshrl.u32 %v3086, 7
  %v3088 = vsub.s32 %v3085, %v3087
  %v3089 = vrot.slane %v2928, %v3088
  %v3091 = vunpack.c.l.s4 1966171168
  %v3092 = vunpack.c.0.s8 %v3091
  %v3093 = vlaneseq
  %v3094 = vshrl.u32 %v3093, 7
  %v3095 = vsub.s32 %v3092, %v3094
  %v3096 = vrot.slane %v3082, %v3095
  %v3097 = vcombine.high %v3089, %v3089
  %v3098 = vcombine.high %v3096, %v3096
  %v3100 = vunpack.c.l.s4 1966171168
  %v3101 = vunpack.c.0.s8 %v3100
  %v3102 = vlaneseq
  %v3103 = vshrl.u32 %v3102, 7
  %v3104 = vsub.s32 %v3101, %v3103
  %v3105 = vrot.slane %v3089, %v3104
  %v3107 = vunpack.c.l.s4 1966171168
  %v3108 = vunpack.c.0.s8 %v3107
  %v3109 = vlaneseq
  %v3110 = vshrl.u32 %v3109, 7
  %v3111 = vsub.s32 %v3108, %v3110
  %v3112 = vrot.slane %v3096, %v3111
  %v3114 = vunpack.c.l.s4 1966171168
  %v3115 = vunpack.c.0.s8 %v3114
  %v3116 = vlaneseq
  %v3117 = vshrl.u32 %v3116, 7
  %v3118 = vsub.s32 %v3115, %v3117
  %v3119 = vrot.slane %v3097, %v3118
  %v3121 = vunpack.c.l.s4 1966171168
  %v3122 = vunpack.c.0.s8 %v3121
  %v3123 = vlaneseq
  %v3124 = vshrl.u32 %v3123, 7
  %v3125 = vsub.s32 %v3122, %v3124
  %v3126 = vrot.slane %v3098, %v3125
  %v3127 = vcombine.high %v3105, %v3105
  %v3128 = vcombine.high %v3119, %v3119
  %v3129 = vcombine.high %v2929, %v2929
  %v3131 = vunpack.c.l.s4 1966171168
  %v3132 = vunpack.c.0.s8 %v3131
  %v3133 = vlaneseq
  %v3134 = vshrl.u32 %v3133, 7
  %v3135 = vsub.s32 %v3132, %v3134
  %v3136 = vrot.slane %v2929, %v3135
  %v3138 = vunpack.c.l.s4 1966171168
  %v3139 = vunpack.c.0.s8 %v3138
  %v3140 = vlaneseq
  %v3141 = vshrl.u32 %v3140, 7
  %v3142 = vsub.s32 %v3139, %v3141
  %v3143 = vrot.slane %v3129, %v3142
  %v3144 = vcombine.high %v3136, %v3136
  %v3145 = vcombine.high %v3143, %v3143
  %v3147 = vunpack.c.l.s4 1966171168
  %v3148 = vunpack.c.0.s8 %v3147
  %v3149 = vlaneseq
  %v3150 = vshrl.u32 %v3149, 7
  %v3151 = vsub.s32 %v3148, %v3150
  %v3152 = vrot.slane %v3136, %v3151
  %v3154 = vunpack.c.l.s4 1966171168
  %v3155 = vunpack.c.0.s8 %v3154
  %v3156 = vlaneseq
  %v3157 = vshrl.u32 %v3156, 7
  %v3158 = vsub.s32 %v3155, %v3157
  %v3159 = vrot.slane %v3143, %v3158
  %v3161 = vunpack.c.l.s4 1966171168
  %v3162 = vunpack.c.0.s8 %v3161
  %v3163 = vlaneseq
  %v3164 = vshrl.u32 %v3163, 7
  %v3165 = vsub.s32 %v3162, %v3164
  %v3166 = vrot.slane %v3144, %v3165
  %v3168 = vunpack.c.l.s4 1966171168
  %v3169 = vunpack.c.0.s8 %v3168
  %v3170 = vlaneseq
  %v3171 = vshrl.u32 %v3170, 7
  %v3172 = vsub.s32 %v3169, %v3171
  %v3173 = vrot.slane %v3145, %v3172
  %v3174 = vcombine.high %v3152, %v3152
  %v3175 = vcombine.high %v3166, %v3166
  %v3176 = vcombine.high %v2930, %v2930
  %v3178 = vunpack.c.l.s4 1966171168
  %v3179 = vunpack.c.0.s8 %v3178
  %v3180 = vlaneseq
  %v3181 = vshrl.u32 %v3180, 7
  %v3182 = vsub.s32 %v3179, %v3181
  %v3183 = vrot.slane %v2930, %v3182
  %v3185 = vunpack.c.l.s4 1966171168
  %v3186 = vunpack.c.0.s8 %v3185
  %v3187 = vlaneseq
  %v3188 = vshrl.u32 %v3187, 7
  %v3189 = vsub.s32 %v3186, %v3188
  %v3190 = vrot.slane %v3176, %v3189
  %v3191 = vcombine.high %v3183, %v3183
  %v3192 = vcombine.high %v3190, %v3190
  %v3194 = vunpack.c.l.s4 1966171168
  %v3195 = vunpack.c.0.s8 %v3194
  %v3196 = vlaneseq
  %v3197 = vshrl.u32 %v3196, 7
  %v3198 = vsub.s32 %v3195, %v3197
  %v3199 = vrot.slane %v3183, %v3198
  %v3201 = vunpack.c.l.s4 1966171168
  %v3202 = vunpack.c.0.s8 %v3201
  %v3203 = vlaneseq
  %v3204 = vshrl.u32 %v3203, 7
  %v3205 = vsub.s32 %v3202, %v3204
  %v3206 = vrot.slane %v3190, %v3205
  %v3208 = vunpack.c.l.s4 1966171168
  %v3209 = vunpack.c.0.s8 %v3208
  %v3210 = vlaneseq
  %v3211 = vshrl.u32 %v3210, 7
  %v3212 = vsub.s32 %v3209, %v3211
  %v3213 = vrot.slane %v3191, %v3212
  %v3215 = vunpack.c.l.s4 1966171168
  %v3216 = vunpack.c.0.s8 %v3215
  %v3217 = vlaneseq
  %v3218 = vshrl.u32 %v3217, 7
  %v3219 = vsub.s32 %v3216, %v3218
  %v3220 = vrot.slane %v3192, %v3219
  %v3221 = vcombine.high %v3199, %v3199
  %v3222 = vcombine.high %v3213, %v3213
  %v3223 = vcombine.high %v2931, %v2931
  %v3225 = vunpack.c.l.s4 1966171168
  %v3226 = vunpack.c.0.s8 %v3225
  %v3227 = vlaneseq
  %v3228 = vshrl.u32 %v3227, 7
  %v3229 = vsub.s32 %v3226, %v3228
  %v3230 = vrot.slane %v2931, %v3229
  %v3232 = vunpack.c.l.s4 1966171168
  %v3233 = vunpack.c.0.s8 %v3232
  %v3234 = vlaneseq
  %v3235 = vshrl.u32 %v3234, 7
  %v3236 = vsub.s32 %v3233, %v3235
  %v3237 = vrot.slane %v3223, %v3236
  %v3238 = vcombine.high %v3230, %v3230
  %v3239 = vcombine.high %v3237, %v3237
  %v3241 = vunpack.c.l.s4 1966171168
  %v3242 = vunpack.c.0.s8 %v3241
  %v3243 = vlaneseq
  %v3244 = vshrl.u32 %v3243, 7
  %v3245 = vsub.s32 %v3242, %v3244
  %v3246 = vrot.slane %v3230, %v3245
  %v3248 = vunpack.c.l.s4 1966171168
  %v3249 = vunpack.c.0.s8 %v3248
  %v3250 = vlaneseq
  %v3251 = vshrl.u32 %v3250, 7
  %v3252 = vsub.s32 %v3249, %v3251
  %v3253 = vrot.slane %v3237, %v3252
  %v3255 = vunpack.c.l.s4 1966171168
  %v3256 = vunpack.c.0.s8 %v3255
  %v3257 = vlaneseq
  %v3258 = vshrl.u32 %v3257, 7
  %v3259 = vsub.s32 %v3256, %v3258
  %v3260 = vrot.slane %v3238, %v3259
  %v3262 = vunpack.c.l.s4 1966171168
  %v3263 = vunpack.c.0.s8 %v3262
  %v3264 = vlaneseq
  %v3265 = vshrl.u32 %v3264, 7
  %v3266 = vsub.s32 %v3263, %v3265
  %v3267 = vrot.slane %v3239, %v3266
  %v3268 = vcombine.high %v3246, %v3246
  %v3269 = vcombine.high %v3260, %v3260
  %v3270 = vcombine.high %v2932, %v2932
  %v3272 = vunpack.c.l.s4 1966171168
  %v3273 = vunpack.c.0.s8 %v3272
  %v3274 = vlaneseq
  %v3275 = vshrl.u32 %v3274, 7
  %v3276 = vsub.s32 %v3273, %v3275
  %v3277 = vrot.slane %v2932, %v3276
  %v3279 = vunpack.c.l.s4 1966171168
  %v3280 = vunpack.c.0.s8 %v3279
  %v3281 = vlaneseq
  %v3282 = vshrl.u32 %v3281, 7
  %v3283 = vsub.s32 %v3280, %v3282
  %v3284 = vrot.slane %v3270, %v3283
  %v3285 = vcombine.high %v3277, %v3277
  %v3286 = vcombine.high %v3284, %v3284
  %v3288 = vunpack.c.l.s4 1966171168
  %v3289 = vunpack.c.0.s8 %v3288
  %v3290 = vlaneseq
  %v3291 = vshrl.u32 %v3290, 7
  %v3292 = vsub.s32 %v3289, %v3291
  %v3293 = vrot.slane %v3277, %v3292
  %v3295 = vunpack.c.l.s4 1966171168
  %v3296 = vunpack.c.0.s8 %v3295
  %v3297 = vlaneseq
  %v3298 = vshrl.u32 %v3297, 7
  %v3299 = vsub.s32 %v3296, %v3298
  %v3300 = vrot.slane %v3284, %v3299
  %v3302 = vunpack.c.l.s4 1966171168
  %v3303 = vunpack.c.0.s8 %v3302
  %v3304 = vlaneseq
  %v3305 = vshrl.u32 %v3304, 7
  %v3306 = vsub.s32 %v3303, %v3305
  %v3307 = vrot.slane %v3285, %v3306
  %v3309 = vunpack.c.l.s4 1966171168
  %v3310 = vunpack.c.0.s8 %v3309
  %v3311 = vlaneseq
  %v3312 = vshrl.u32 %v3311, 7
  %v3313 = vsub.s32 %v3310, %v3312
  %v3314 = vrot.slane %v3286, %v3313
  %v3315 = vcombine.high %v3293, %v3293
  %v3316 = vcombine.high %v3307, %v3307
  %v3317 = vld [vmem:[%s3] sm:$0xf]
  %v3318 = vld [vmem:[%s3 + $0x4] sm:$0xf]
  %v3319 = vld [vmem:[%s3 + $0x8] sm:$0xf]
  %v3320 = vld [vmem:[%s3 + $0xc] sm:$0xf]
  %v3321 = vld [vmem:[%s3 + $0x10] sm:$0xf]
  %v3322 = vld [vmem:[%s3 + $0x14] sm:$0xf]
  %v3323 = vld [vmem:[%s3 + $0x18] sm:$0xf]
  %v3324 = vld [vmem:[%s3 + $0x1c] sm:$0xf]
  %v3326 = vunpack.c.l.s4 1966171168
  %v3327 = vunpack.c.0.s8 %v3326
  %v3328 = vlaneseq
  %v3329 = vshrl.u32 %v3328, 7
  %v3330 = vsub.s32 %v3327, %v3329
  %v3331 = vrot.slane %v2964, %v3330
  %v3333 = vunpack.c.l.s4 1966171168
  %v3334 = vunpack.c.0.s8 %v3333
  %v3335 = vlaneseq
  %v3336 = vshrl.u32 %v3335, 7
  %v3337 = vsub.s32 %v3334, %v3336
  %v3338 = vrot.slane %v3331, %v3337
  %v3340 = vunpack.c.l.s4 1966171168
  %v3341 = vunpack.c.0.s8 %v3340
  %v3342 = vlaneseq
  %v3343 = vshrl.u32 %v3342, 7
  %v3344 = vsub.s32 %v3341, %v3343
  %v3345 = vrot.slane %v2978, %v3344
  %v3347 = vunpack.c.l.s4 1966171168
  %v3348 = vunpack.c.0.s8 %v3347
  %v3349 = vlaneseq
  %v3350 = vshrl.u32 %v3349, 7
  %v3351 = vsub.s32 %v3348, %v3350
  %v3352 = vrot.slane %v3345, %v3351
  %v3354 = vunpack.c.l.s4 1966171168
  %v3355 = vunpack.c.0.s8 %v3354
  %v3356 = vlaneseq
  %v3357 = vshrl.u32 %v3356, 7
  %v3358 = vsub.s32 %v3355, %v3357
  %v3359 = vrot.slane %v2986, %v3358
  %v3361 = vunpack.c.l.s4 1966171168
  %v3362 = vunpack.c.0.s8 %v3361
  %v3363 = vlaneseq
  %v3364 = vshrl.u32 %v3363, 7
  %v3365 = vsub.s32 %v3362, %v3364
  %v3366 = vrot.slane %v3359, %v3365
  %v3368 = vunpack.c.l.s4 1966171168
  %v3369 = vunpack.c.0.s8 %v3368
  %v3370 = vlaneseq
  %v3371 = vshrl.u32 %v3370, 7
  %v3372 = vsub.s32 %v3369, %v3371
  %v3373 = vrot.slane %v2987, %v3372
  %v3375 = vunpack.c.l.s4 1966171168
  %v3376 = vunpack.c.0.s8 %v3375
  %v3377 = vlaneseq
  %v3378 = vshrl.u32 %v3377, 7
  %v3379 = vsub.s32 %v3376, %v3378
  %v3380 = vrot.slane %v3373, %v3379
  %v3382 = vunpack.c.l.s4 1966171168
  %v3383 = vunpack.c.0.s8 %v3382
  %v3384 = vlaneseq
  %v3385 = vshrl.u32 %v3384, 7
  %v3386 = vsub.s32 %v3383, %v3385
  %v3387 = vrot.slane %v3011, %v3386
  %v3389 = vunpack.c.l.s4 1966171168
  %v3390 = vunpack.c.0.s8 %v3389
  %v3391 = vlaneseq
  %v3392 = vshrl.u32 %v3391, 7
  %v3393 = vsub.s32 %v3390, %v3392
  %v3394 = vrot.slane %v3387, %v3393
  %v3396 = vunpack.c.l.s4 1966171168
  %v3397 = vunpack.c.0.s8 %v3396
  %v3398 = vlaneseq
  %v3399 = vshrl.u32 %v3398, 7
  %v3400 = vsub.s32 %v3397, %v3399
  %v3401 = vrot.slane %v3025, %v3400
  %v3403 = vunpack.c.l.s4 1966171168
  %v3404 = vunpack.c.0.s8 %v3403
  %v3405 = vlaneseq
  %v3406 = vshrl.u32 %v3405, 7
  %v3407 = vsub.s32 %v3404, %v3406
  %v3408 = vrot.slane %v3401, %v3407
  %v3410 = vunpack.c.l.s4 1966171168
  %v3411 = vunpack.c.0.s8 %v3410
  %v3412 = vlaneseq
  %v3413 = vshrl.u32 %v3412, 7
  %v3414 = vsub.s32 %v3411, %v3413
  %v3415 = vrot.slane %v3033, %v3414
  %v3417 = vunpack.c.l.s4 1966171168
  %v3418 = vunpack.c.0.s8 %v3417
  %v3419 = vlaneseq
  %v3420 = vshrl.u32 %v3419, 7
  %v3421 = vsub.s32 %v3418, %v3420
  %v3422 = vrot.slane %v3415, %v3421
  %v3424 = vunpack.c.l.s4 1966171168
  %v3425 = vunpack.c.0.s8 %v3424
  %v3426 = vlaneseq
  %v3427 = vshrl.u32 %v3426, 7
  %v3428 = vsub.s32 %v3425, %v3427
  %v3429 = vrot.slane %v3034, %v3428
  %v3431 = vunpack.c.l.s4 1966171168
  %v3432 = vunpack.c.0.s8 %v3431
  %v3433 = vlaneseq
  %v3434 = vshrl.u32 %v3433, 7
  %v3435 = vsub.s32 %v3432, %v3434
  %v3436 = vrot.slane %v3429, %v3435
  %v3438 = vunpack.c.l.s4 1966171168
  %v3439 = vunpack.c.0.s8 %v3438
  %v3440 = vlaneseq
  %v3441 = vshrl.u32 %v3440, 7
  %v3442 = vsub.s32 %v3439, %v3441
  %v3443 = vrot.slane %v3058, %v3442
  %v3445 = vunpack.c.l.s4 1966171168
  %v3446 = vunpack.c.0.s8 %v3445
  %v3447 = vlaneseq
  %v3448 = vshrl.u32 %v3447, 7
  %v3449 = vsub.s32 %v3446, %v3448
  %v3450 = vrot.slane %v3443, %v3449
  %v3452 = vunpack.c.l.s4 1966171168
  %v3453 = vunpack.c.0.s8 %v3452
  %v3454 = vlaneseq
  %v3455 = vshrl.u32 %v3454, 7
  %v3456 = vsub.s32 %v3453, %v3455
  %v3457 = vrot.slane %v3072, %v3456
  %v3459 = vunpack.c.l.s4 1966171168
  %v3460 = vunpack.c.0.s8 %v3459
  %v3461 = vlaneseq
  %v3462 = vshrl.u32 %v3461, 7
  %v3463 = vsub.s32 %v3460, %v3462
  %v3464 = vrot.slane %v3457, %v3463
  %v3466 = vunpack.c.l.s4 1966171168
  %v3467 = vunpack.c.0.s8 %v3466
  %v3468 = vlaneseq
  %v3469 = vshrl.u32 %v3468, 7
  %v3470 = vsub.s32 %v3467, %v3469
  %v3471 = vrot.slane %v3080, %v3470
  %v3473 = vunpack.c.l.s4 1966171168
  %v3474 = vunpack.c.0.s8 %v3473
  %v3475 = vlaneseq
  %v3476 = vshrl.u32 %v3475, 7
  %v3477 = vsub.s32 %v3474, %v3476
  %v3478 = vrot.slane %v3471, %v3477
  %v3480 = vunpack.c.l.s4 1966171168
  %v3481 = vunpack.c.0.s8 %v3480
  %v3482 = vlaneseq
  %v3483 = vshrl.u32 %v3482, 7
  %v3484 = vsub.s32 %v3481, %v3483
  %v3485 = vrot.slane %v3081, %v3484
  %v3487 = vunpack.c.l.s4 1966171168
  %v3488 = vunpack.c.0.s8 %v3487
  %v3489 = vlaneseq
  %v3490 = vshrl.u32 %v3489, 7
  %v3491 = vsub.s32 %v3488, %v3490
  %v3492 = vrot.slane %v3485, %v3491
  %v3494 = vunpack.c.l.s4 1966171168
  %v3495 = vunpack.c.0.s8 %v3494
  %v3496 = vlaneseq
  %v3497 = vshrl.u32 %v3496, 7
  %v3498 = vsub.s32 %v3495, %v3497
  %v3499 = vrot.slane %v3105, %v3498
  %v3501 = vunpack.c.l.s4 1966171168
  %v3502 = vunpack.c.0.s8 %v3501
  %v3503 = vlaneseq
  %v3504 = vshrl.u32 %v3503, 7
  %v3505 = vsub.s32 %v3502, %v3504
  %v3506 = vrot.slane %v3499, %v3505
  %v3508 = vunpack.c.l.s4 1966171168
  %v3509 = vunpack.c.0.s8 %v3508
  %v3510 = vlaneseq
  %v3511 = vshrl.u32 %v3510, 7
  %v3512 = vsub.s32 %v3509, %v3511
  %v3513 = vrot.slane %v3119, %v3512
  %v3515 = vunpack.c.l.s4 1966171168
  %v3516 = vunpack.c.0.s8 %v3515
  %v3517 = vlaneseq
  %v3518 = vshrl.u32 %v3517, 7
  %v3519 = vsub.s32 %v3516, %v3518
  %v3520 = vrot.slane %v3513, %v3519
  %v3522 = vunpack.c.l.s4 1966171168
  %v3523 = vunpack.c.0.s8 %v3522
  %v3524 = vlaneseq
  %v3525 = vshrl.u32 %v3524, 7
  %v3526 = vsub.s32 %v3523, %v3525
  %v3527 = vrot.slane %v3127, %v3526
  %v3529 = vunpack.c.l.s4 1966171168
  %v3530 = vunpack.c.0.s8 %v3529
  %v3531 = vlaneseq
  %v3532 = vshrl.u32 %v3531, 7
  %v3533 = vsub.s32 %v3530, %v3532
  %v3534 = vrot.slane %v3527, %v3533
  %v3536 = vunpack.c.l.s4 1966171168
  %v3537 = vunpack.c.0.s8 %v3536
  %v3538 = vlaneseq
  %v3539 = vshrl.u32 %v3538, 7
  %v3540 = vsub.s32 %v3537, %v3539
  %v3541 = vrot.slane %v3128, %v3540
  %v3543 = vunpack.c.l.s4 1966171168
  %v3544 = vunpack.c.0.s8 %v3543
  %v3545 = vlaneseq
  %v3546 = vshrl.u32 %v3545, 7
  %v3547 = vsub.s32 %v3544, %v3546
  %v3548 = vrot.slane %v3541, %v3547
  %v3550 = vunpack.c.l.s4 1966171168
  %v3551 = vunpack.c.0.s8 %v3550
  %v3552 = vlaneseq
  %v3553 = vshrl.u32 %v3552, 7
  %v3554 = vsub.s32 %v3551, %v3553
  %v3555 = vrot.slane %v3152, %v3554
  %v3557 = vunpack.c.l.s4 1966171168
  %v3558 = vunpack.c.0.s8 %v3557
  %v3559 = vlaneseq
  %v3560 = vshrl.u32 %v3559, 7
  %v3561 = vsub.s32 %v3558, %v3560
  %v3562 = vrot.slane %v3555, %v3561
  %v3564 = vunpack.c.l.s4 1966171168
  %v3565 = vunpack.c.0.s8 %v3564
  %v3566 = vlaneseq
  %v3567 = vshrl.u32 %v3566, 7
  %v3568 = vsub.s32 %v3565, %v3567
  %v3569 = vrot.slane %v3166, %v3568
  %v3571 = vunpack.c.l.s4 1966171168
  %v3572 = vunpack.c.0.s8 %v3571
  %v3573 = vlaneseq
  %v3574 = vshrl.u32 %v3573, 7
  %v3575 = vsub.s32 %v3572, %v3574
  %v3576 = vrot.slane %v3569, %v3575
  %v3578 = vunpack.c.l.s4 1966171168
  %v3579 = vunpack.c.0.s8 %v3578
  %v3580 = vlaneseq
  %v3581 = vshrl.u32 %v3580, 7
  %v3582 = vsub.s32 %v3579, %v3581
  %v3583 = vrot.slane %v3174, %v3582
  %v3585 = vunpack.c.l.s4 1966171168
  %v3586 = vunpack.c.0.s8 %v3585
  %v3587 = vlaneseq
  %v3588 = vshrl.u32 %v3587, 7
  %v3589 = vsub.s32 %v3586, %v3588
  %v3590 = vrot.slane %v3583, %v3589
  %v3592 = vunpack.c.l.s4 1966171168
  %v3593 = vunpack.c.0.s8 %v3592
  %v3594 = vlaneseq
  %v3595 = vshrl.u32 %v3594, 7
  %v3596 = vsub.s32 %v3593, %v3595
  %v3597 = vrot.slane %v3175, %v3596
  %v3599 = vunpack.c.l.s4 1966171168
  %v3600 = vunpack.c.0.s8 %v3599
  %v3601 = vlaneseq
  %v3602 = vshrl.u32 %v3601, 7
  %v3603 = vsub.s32 %v3600, %v3602
  %v3604 = vrot.slane %v3597, %v3603
  %v3606 = vunpack.c.l.s4 1966171168
  %v3607 = vunpack.c.0.s8 %v3606
  %v3608 = vlaneseq
  %v3609 = vshrl.u32 %v3608, 7
  %v3610 = vsub.s32 %v3607, %v3609
  %v3611 = vrot.slane %v3199, %v3610
  %v3613 = vunpack.c.l.s4 1966171168
  %v3614 = vunpack.c.0.s8 %v3613
  %v3615 = vlaneseq
  %v3616 = vshrl.u32 %v3615, 7
  %v3617 = vsub.s32 %v3614, %v3616
  %v3618 = vrot.slane %v3611, %v3617
  %v3620 = vunpack.c.l.s4 1966171168
  %v3621 = vunpack.c.0.s8 %v3620
  %v3622 = vlaneseq
  %v3623 = vshrl.u32 %v3622, 7
  %v3624 = vsub.s32 %v3621, %v3623
  %v3625 = vrot.slane %v3213, %v3624
  %v3627 = vunpack.c.l.s4 1966171168
  %v3628 = vunpack.c.0.s8 %v3627
  %v3629 = vlaneseq
  %v3630 = vshrl.u32 %v3629, 7
  %v3631 = vsub.s32 %v3628, %v3630
  %v3632 = vrot.slane %v3625, %v3631
  %v3634 = vunpack.c.l.s4 1966171168
  %v3635 = vunpack.c.0.s8 %v3634
  %v3636 = vlaneseq
  %v3637 = vshrl.u32 %v3636, 7
  %v3638 = vsub.s32 %v3635, %v3637
  %v3639 = vrot.slane %v3221, %v3638
  %v3641 = vunpack.c.l.s4 1966171168
  %v3642 = vunpack.c.0.s8 %v3641
  %v3643 = vlaneseq
  %v3644 = vshrl.u32 %v3643, 7
  %v3645 = vsub.s32 %v3642, %v3644
  %v3646 = vrot.slane %v3639, %v3645
  %v3648 = vunpack.c.l.s4 1966171168
  %v3649 = vunpack.c.0.s8 %v3648
  %v3650 = vlaneseq
  %v3651 = vshrl.u32 %v3650, 7
  %v3652 = vsub.s32 %v3649, %v3651
  %v3653 = vrot.slane %v3222, %v3652
  %v3655 = vunpack.c.l.s4 1966171168
  %v3656 = vunpack.c.0.s8 %v3655
  %v3657 = vlaneseq
  %v3658 = vshrl.u32 %v3657, 7
  %v3659 = vsub.s32 %v3656, %v3658
  %v3660 = vrot.slane %v3653, %v3659
  %v3662 = vunpack.c.l.s4 1966171168
  %v3663 = vunpack.c.0.s8 %v3662
  %v3664 = vlaneseq
  %v3665 = vshrl.u32 %v3664, 7
  %v3666 = vsub.s32 %v3663, %v3665
  %v3667 = vrot.slane %v3246, %v3666
  %v3669 = vunpack.c.l.s4 1966171168
  %v3670 = vunpack.c.0.s8 %v3669
  %v3671 = vlaneseq
  %v3672 = vshrl.u32 %v3671, 7
  %v3673 = vsub.s32 %v3670, %v3672
  %v3674 = vrot.slane %v3667, %v3673
  %v3676 = vunpack.c.l.s4 1966171168
  %v3677 = vunpack.c.0.s8 %v3676
  %v3678 = vlaneseq
  %v3679 = vshrl.u32 %v3678, 7
  %v3680 = vsub.s32 %v3677, %v3679
  %v3681 = vrot.slane %v3260, %v3680
  %v3683 = vunpack.c.l.s4 1966171168
  %v3684 = vunpack.c.0.s8 %v3683
  %v3685 = vlaneseq
  %v3686 = vshrl.u32 %v3685, 7
  %v3687 = vsub.s32 %v3684, %v3686
  %v3688 = vrot.slane %v3681, %v3687
  %v3690 = vunpack.c.l.s4 1966171168
  %v3691 = vunpack.c.0.s8 %v3690
  %v3692 = vlaneseq
  %v3693 = vshrl.u32 %v3692, 7
  %v3694 = vsub.s32 %v3691, %v3693
  %v3695 = vrot.slane %v3268, %v3694
  %v3697 = vunpack.c.l.s4 1966171168
  %v3698 = vunpack.c.0.s8 %v3697
  %v3699 = vlaneseq
  %v3700 = vshrl.u32 %v3699, 7
  %v3701 = vsub.s32 %v3698, %v3700
  %v3702 = vrot.slane %v3695, %v3701
  %v3704 = vunpack.c.l.s4 1966171168
  %v3705 = vunpack.c.0.s8 %v3704
  %v3706 = vlaneseq
  %v3707 = vshrl.u32 %v3706, 7
  %v3708 = vsub.s32 %v3705, %v3707
  %v3709 = vrot.slane %v3269, %v3708
  %v3711 = vunpack.c.l.s4 1966171168
  %v3712 = vunpack.c.0.s8 %v3711
  %v3713 = vlaneseq
  %v3714 = vshrl.u32 %v3713, 7
  %v3715 = vsub.s32 %v3712, %v3714
  %v3716 = vrot.slane %v3709, %v3715
  %v3718 = vunpack.c.l.s4 1966171168
  %v3719 = vunpack.c.0.s8 %v3718
  %v3720 = vlaneseq
  %v3721 = vshrl.u32 %v3720, 7
  %v3722 = vsub.s32 %v3719, %v3721
  %v3723 = vrot.slane %v3293, %v3722
  %v3725 = vunpack.c.l.s4 1966171168
  %v3726 = vunpack.c.0.s8 %v3725
  %v3727 = vlaneseq
  %v3728 = vshrl.u32 %v3727, 7
  %v3729 = vsub.s32 %v3726, %v3728
  %v3730 = vrot.slane %v3723, %v3729
  %v3732 = vunpack.c.l.s4 1966171168
  %v3733 = vunpack.c.0.s8 %v3732
  %v3734 = vlaneseq
  %v3735 = vshrl.u32 %v3734, 7
  %v3736 = vsub.s32 %v3733, %v3735
  %v3737 = vrot.slane %v3307, %v3736
  %v3739 = vunpack.c.l.s4 1966171168
  %v3740 = vunpack.c.0.s8 %v3739
  %v3741 = vlaneseq
  %v3742 = vshrl.u32 %v3741, 7
  %v3743 = vsub.s32 %v3740, %v3742
  %v3744 = vrot.slane %v3737, %v3743
  %v3746 = vunpack.c.l.s4 1966171168
  %v3747 = vunpack.c.0.s8 %v3746
  %v3748 = vlaneseq
  %v3749 = vshrl.u32 %v3748, 7
  %v3750 = vsub.s32 %v3747, %v3749
  %v3751 = vrot.slane %v3315, %v3750
  %v3753 = vunpack.c.l.s4 1966171168
  %v3754 = vunpack.c.0.s8 %v3753
  %v3755 = vlaneseq
  %v3756 = vshrl.u32 %v3755, 7
  %v3757 = vsub.s32 %v3754, %v3756
  %v3758 = vrot.slane %v3751, %v3757
  %v3760 = vunpack.c.l.s4 1966171168
  %v3761 = vunpack.c.0.s8 %v3760
  %v3762 = vlaneseq
  %v3763 = vshrl.u32 %v3762, 7
  %v3764 = vsub.s32 %v3761, %v3763
  %v3765 = vrot.slane %v3316, %v3764
  %v3767 = vunpack.c.l.s4 1966171168
  %v3768 = vunpack.c.0.s8 %v3767
  %v3769 = vlaneseq
  %v3770 = vshrl.u32 %v3769, 7
  %v3771 = vsub.s32 %v3768, %v3770
  %v3772 = vrot.slane %v3765, %v3771
  %v3773 = vunpack.c.l.b16 %v3338
  %v3774 = vunpack.c.l.b16 %v3352
  %v3775 = vunpack.c.l.b16 %v3366
  %v3776 = vunpack.c.l.b16 %v3380
  %v3777 = vunpack.c.l.b16 %v3394
  %v3778 = vunpack.c.l.b16 %v3408
  %v3779 = vunpack.c.l.b16 %v3422
  %v3780 = vunpack.c.l.b16 %v3436
  %v3781 = vunpack.c.l.b16 %v3450
  %v3782 = vunpack.c.l.b16 %v3464
  %v3783 = vunpack.c.l.b16 %v3478
  %v3784 = vunpack.c.l.b16 %v3492
  %v3785 = vunpack.c.l.b16 %v3506
  %v3786 = vunpack.c.l.b16 %v3520
  %v3787 = vunpack.c.l.b16 %v3534
  %v3788 = vunpack.c.l.b16 %v3548
  %v3789 = vunpack.c.l.b16 %v3562
  %v3790 = vunpack.c.l.b16 %v3576
  %v3791 = vunpack.c.l.b16 %v3590
  %v3792 = vunpack.c.l.b16 %v3604
  %v3793 = vunpack.c.l.b16 %v3618
  %v3794 = vunpack.c.l.b16 %v3632
  %v3795 = vunpack.c.l.b16 %v3646
  %v3796 = vunpack.c.l.b16 %v3660
  %v3797 = vunpack.c.l.b16 %v3674
  %v3798 = vunpack.c.l.b16 %v3688
  %v3799 = vunpack.c.l.b16 %v3702
  %v3800 = vunpack.c.l.b16 %v3716
  %v3801 = vunpack.c.l.b16 %v3730
  %v3802 = vunpack.c.l.b16 %v3744
  %v3803 = vunpack.c.l.b16 %v3758
  %v3804 = vunpack.c.l.b16 %v3772
  %v3805 = vrot.slane %v3773, 1
  %v3806 = vsel %vm1678, %v3774, %v3805
  %v3807 = vrot.slane %v3775, 7
  %v3808 = vsel %vm1681, %v3807, %v3806
  %v3809 = vrot.slane %v3776, 6
  %v3810 = vsel %vm1684, %v3809, %v3808
  %v3811 = vrot.slane %v3777, 5
  %v3812 = vsel %vm1687, %v3811, %v3810
  %v3813 = vrot.slane %v3778, 4
  %v3814 = vsel %vm1690, %v3813, %v3812
  %v3815 = vrot.slane %v3779, 3
  %v3816 = vsel %vm1693, %v3815, %v3814
  %v3817 = vrot.slane %v3780, 2
  %v3818 = vsel %vm1696, %v3817, %v3816
  %v3819 = vrot.slane %v3781, 1
  %v3820 = vsel %vm1678, %v3782, %v3819
  %v3821 = vrot.slane %v3783, 7
  %v3822 = vsel %vm1681, %v3821, %v3820
  %v3823 = vrot.slane %v3784, 6
  %v3824 = vsel %vm1684, %v3823, %v3822
  %v3825 = vrot.slane %v3785, 5
  %v3826 = vsel %vm1687, %v3825, %v3824
  %v3827 = vrot.slane %v3786, 4
  %v3828 = vsel %vm1690, %v3827, %v3826
  %v3829 = vrot.slane %v3787, 3
  %v3830 = vsel %vm1693, %v3829, %v3828
  %v3831 = vrot.slane %v3788, 2
  %v3832 = vsel %vm1696, %v3831, %v3830
  %v3833 = vrot.slane %v3789, 1
  %v3834 = vsel %vm1678, %v3790, %v3833
  %v3835 = vrot.slane %v3791, 7
  %v3836 = vsel %vm1681, %v3835, %v3834
  %v3837 = vrot.slane %v3792, 6
  %v3838 = vsel %vm1684, %v3837, %v3836
  %v3839 = vrot.slane %v3793, 5
  %v3840 = vsel %vm1687, %v3839, %v3838
  %v3841 = vrot.slane %v3794, 4
  %v3842 = vsel %vm1690, %v3841, %v3840
  %v3843 = vrot.slane %v3795, 3
  %v3844 = vsel %vm1693, %v3843, %v3842
  %v3845 = vrot.slane %v3796, 2
  %v3846 = vsel %vm1696, %v3845, %v3844
  %v3847 = vrot.slane %v3797, 1
  %v3848 = vsel %vm1678, %v3798, %v3847
  %v3849 = vrot.slane %v3799, 7
  %v3850 = vsel %vm1681, %v3849, %v3848
  %v3851 = vrot.slane %v3800, 6
  %v3852 = vsel %vm1684, %v3851, %v3850
  %v3853 = vrot.slane %v3801, 5
  %v3854 = vsel %vm1687, %v3853, %v3852
  %v3855 = vrot.slane %v3802, 4
  %v3856 = vsel %vm1690, %v3855, %v3854
  %v3857 = vrot.slane %v3803, 3
  %v3858 = vsel %vm1693, %v3857, %v3856
  %v3859 = vrot.slane %v3804, 2
  %v3860 = vsel %vm1696, %v3859, %v3858
  %v3861 = vpack.c.b16 %v3832, %v3818
  %v3862 = vpack.c.b16 %v3860, %v3846
  %v3867 = vunpack.c.l.b16 %v3321
  %v3868 = vunpack.c.l.b16 %v3322
  %v3869 = vunpack.c.l.b16 %v3323
  %v3870 = vunpack.c.l.b16 %v3324
  %v3871 = vpack.c.b16 %v3868, %v3867
  %v3872 = vpack.c.b16 %v3870, %v3869
  %vm3875 = vcmask 261120
  %v3877 = vsel %vm3875, %v3861, 0
  %v3880 = vsel %vm3875, %v3862, 0
  %3882 = vmatprep.subr.bf16.mxu0 0
  %3883 = vmatpush1.bf16.msra.mxu0 %v3871
  %3884 = vmatprep.subr.bf16.mxu0 0
  %3885 = vmatpush1.bf16.msra.mxu0 %v3872
  %3886 = vmatprep.subr.bf16.mxu0 0
  %3887 = vmatpush1.bf16.msra.mxu0 0
  %3888 = vmatprep.subr.bf16.mxu0 0
  %3889 = vmatpush1.bf16.msra.mxu0 0
  %3890 = vmatprep.subr.bf16.mxu0 0
  %3891 = vmatpush1.bf16.msra.mxu0 0
  %3892 = vmatprep.subr.bf16.mxu0 0
  %3893 = vmatpush1.bf16.msra.mxu0 0
  %3894 = vmatprep.subr.bf16.mxu0 0
  %3895 = vmatpush1.bf16.msra.mxu0 0
  %3896 = vmatprep.subr.bf16.mxu0 0
  %3897 = vmatpush1.bf16.msra.mxu0 0
  %3898 = vmatprep.subr.bf16.mxu0 0
  %3899 = vmatpush1.bf16.msra.mxu0 0
  %3900 = vmatprep.subr.bf16.mxu0 0
  %3901 = vmatpush1.bf16.msra.mxu0 0
  %3902 = vmatprep.subr.bf16.mxu0 0
  %3903 = vmatpush1.bf16.msra.mxu0 0
  %3904 = vmatprep.subr.bf16.mxu0 0
  %3905 = vmatpush1.bf16.msra.mxu0 0
  %3906 = vmatprep.subr.bf16.mxu0 0
  %3907 = vmatpush1.bf16.msra.mxu0 0
  %3908 = vmatprep.subr.bf16.mxu0 0
  %3909 = vmatpush1.bf16.msra.mxu0 0
  %3910 = vmatprep.subr.bf16.mxu0 0
  %3911 = vmatpush1.bf16.msra.mxu0 0
  %3912 = vmatprep.subr.bf16.mxu0 0
  %3913 = vmatpush1.bf16.msra.mxu0 0
  %3914 = vmatprep.mubr.bf16.mxu0 0
  %3915 = vmatmul.mubr.bf16.gmra.mrb[0].mxu0 %v3877
  %v3916 = vpop.f32.mrb[0].mxu0
  %v3917 = vadd.f32 0.0, %v3916
  %v3918 = vpop.f32.mrb[0].mxu0
  %v3919 = vpop.f32.mrb[0].mxu0
  %v3920 = vadd.f32 0.0, %v3919
  %v3921 = vpop.f32.mrb[0].mxu0
  %3922 = vmatprep.mubr.bf16.mxu0 0
  %3923 = vmatmul.mubr.bf16.gmra.mrb[0].mxu0 %v3880
  %v3924 = vpop.f32.mrb[0].mxu0
  %v3925 = vadd.f32 0.0, %v3924
  %v3926 = vpop.f32.mrb[0].mxu0
  %v3927 = vpop.f32.mrb[0].mxu0
  %v3928 = vadd.f32 0.0, %v3927
  %v3929 = vpop.f32.mrb[0].mxu0
  %3930 = vdwg.mxu0
  %v3931 = vrot.slane %v3774, 7
  %v3932 = vsel %vm1678, %v3931, %v3773
  %v3933 = vrot.slane %v3775, 6
  %v3934 = vsel %vm1681, %v3933, %v3932
  %v3935 = vrot.slane %v3776, 5
  %v3936 = vsel %vm1684, %v3935, %v3934
  %v3937 = vrot.slane %v3777, 4
  %v3938 = vsel %vm1687, %v3937, %v3936
  %v3939 = vrot.slane %v3778, 3
  %v3940 = vsel %vm1690, %v3939, %v3938
  %v3941 = vrot.slane %v3779, 2
  %v3942 = vsel %vm1693, %v3941, %v3940
  %v3943 = vrot.slane %v3780, 1
  %v3944 = vsel %vm1696, %v3943, %v3942
  %v3945 = vrot.slane %v3782, 7
  %v3946 = vsel %vm1678, %v3945, %v3781
  %v3947 = vrot.slane %v3783, 6
  %v3948 = vsel %vm1681, %v3947, %v3946
  %v3949 = vrot.slane %v3784, 5
  %v3950 = vsel %vm1684, %v3949, %v3948
  %v3951 = vrot.slane %v3785, 4
  %v3952 = vsel %vm1687, %v3951, %v3950
  %v3953 = vrot.slane %v3786, 3
  %v3954 = vsel %vm1690, %v3953, %v3952
  %v3955 = vrot.slane %v3787, 2
  %v3956 = vsel %vm1693, %v3955, %v3954
  %v3957 = vrot.slane %v3788, 1
  %v3958 = vsel %vm1696, %v3957, %v3956
  %v3959 = vrot.slane %v3790, 7
  %v3960 = vsel %vm1678, %v3959, %v3789
  %v3961 = vrot.slane %v3791, 6
  %v3962 = vsel %vm1681, %v3961, %v3960
  %v3963 = vrot.slane %v3792, 5
  %v3964 = vsel %vm1684, %v3963, %v3962
  %v3965 = vrot.slane %v3793, 4
  %v3966 = vsel %vm1687, %v3965, %v3964
  %v3967 = vrot.slane %v3794, 3
  %v3968 = vsel %vm1690, %v3967, %v3966
  %v3969 = vrot.slane %v3795, 2
  %v3970 = vsel %vm1693, %v3969, %v3968
  %v3971 = vrot.slane %v3796, 1
  %v3972 = vsel %vm1696, %v3971, %v3970
  %v3973 = vrot.slane %v3798, 7
  %v3974 = vsel %vm1678, %v3973, %v3797
  %v3975 = vrot.slane %v3799, 6
  %v3976 = vsel %vm1681, %v3975, %v3974
  %v3977 = vrot.slane %v3800, 5
  %v3978 = vsel %vm1684, %v3977, %v3976
  %v3979 = vrot.slane %v3801, 4
  %v3980 = vsel %vm1687, %v3979, %v3978
  %v3981 = vrot.slane %v3802, 3
  %v3982 = vsel %vm1690, %v3981, %v3980
  %v3983 = vrot.slane %v3803, 2
  %v3984 = vsel %vm1693, %v3983, %v3982
  %v3985 = vrot.slane %v3804, 1
  %v3986 = vsel %vm1696, %v3985, %v3984
  %v3987 = vpack.c.b16 %v3958, %v3944
  %v3988 = vpack.c.b16 %v3986, %v3972
  %v3993 = vunpack.c.l.b16 %v3317
  %v3994 = vunpack.c.l.b16 %v3318
  %v3995 = vunpack.c.l.b16 %v3319
  %v3996 = vunpack.c.l.b16 %v3320
  %v3997 = vpack.c.b16 %v3994, %v3993
  %v3998 = vpack.c.b16 %v3996, %v3995
  %v4002 = vsel %vm3875, %v3987, 0
  %v4005 = vsel %vm3875, %v3988, 0
  %4007 = vmatprep.subr.bf16.mxu0 0
  %4008 = vmatpush1.bf16.msra.mxu0 %v3997
  %4009 = vmatprep.subr.bf16.mxu0 0
  %4010 = vmatpush1.bf16.msra.mxu0 %v3998
  %4011 = vmatprep.subr.bf16.mxu0 0
  %4012 = vmatpush1.bf16.msra.mxu0 0
  %4013 = vmatprep.subr.bf16.mxu0 0
  %4014 = vmatpush1.bf16.msra.mxu0 0
  %4015 = vmatprep.subr.bf16.mxu0 0
  %4016 = vmatpush1.bf16.msra.mxu0 0
  %4017 = vmatprep.subr.bf16.mxu0 0
  %4018 = vmatpush1.bf16.msra.mxu0 0
  %4019 = vmatprep.subr.bf16.mxu0 0
  %4020 = vmatpush1.bf16.msra.mxu0 0
  %4021 = vmatprep.subr.bf16.mxu0 0
  %4022 = vmatpush1.bf16.msra.mxu0 0
  %4023 = vmatprep.subr.bf16.mxu0 0
  %4024 = vmatpush1.bf16.msra.mxu0 0
  %4025 = vmatprep.subr.bf16.mxu0 0
  %4026 = vmatpush1.bf16.msra.mxu0 0
  %4027 = vmatprep.subr.bf16.mxu0 0
  %4028 = vmatpush1.bf16.msra.mxu0 0
  %4029 = vmatprep.subr.bf16.mxu0 0
  %4030 = vmatpush1.bf16.msra.mxu0 0
  %4031 = vmatprep.subr.bf16.mxu0 0
  %4032 = vmatpush1.bf16.msra.mxu0 0
  %4033 = vmatprep.subr.bf16.mxu0 0
  %4034 = vmatpush1.bf16.msra.mxu0 0
  %4035 = vmatprep.subr.bf16.mxu0 0
  %4036 = vmatpush1.bf16.msra.mxu0 0
  %4037 = vmatprep.subr.bf16.mxu0 0
  %4038 = vmatpush1.bf16.msra.mxu0 0
  %4039 = vmatprep.mubr.bf16.mxu0 0
  %4040 = vmatmul.mubr.bf16.gmra.mrb[0].mxu0 %v4002
  %v4041 = vpop.f32.mrb[0].mxu0
  %v4042 = vadd.f32 %v3917, %v4041
  %v4043 = vpop.f32.mrb[0].mxu0
  %v4044 = vpop.f32.mrb[0].mxu0
  %v4045 = vadd.f32 %v3920, %v4044
  %v4046 = vpop.f32.mrb[0].mxu0
  %4047 = vmatprep.mubr.bf16.mxu0 0
  %4048 = vmatmul.mubr.bf16.gmra.mrb[0].mxu0 %v4005
  %v4049 = vpop.f32.mrb[0].mxu0
  %v4050 = vadd.f32 %v3925, %v4049
  %v4051 = vpop.f32.mrb[0].mxu0
  %v4052 = vpop.f32.mrb[0].mxu0
  %v4053 = vadd.f32 %v3928, %v4052
  %v4054 = vpop.f32.mrb[0].mxu0
  %4055 = vdwg.mxu0
  %v4056 = vld [vmem:[%s3 + $0x20] sm:$0xf]
  %v4057 = vld [vmem:[%s3 + $0x24] sm:$0xf]
  %v4058 = vld [vmem:[%s3 + $0x28] sm:$0xf]
  %v4059 = vld [vmem:[%s3 + $0x2c] sm:$0xf]
  %v4061 = vunpack.c.l.s4 1966171168
  %v4062 = vunpack.c.0.s8 %v4061
  %v4063 = vlaneseq
  %v4064 = vshrl.u32 %v4063, 7
  %v4065 = vsub.s32 %v4062, %v4064
  %v4066 = vrot.slane %v2971, %v4065
  %v4068 = vunpack.c.l.s4 1966171168
  %v4069 = vunpack.c.0.s8 %v4068
  %v4070 = vlaneseq
  %v4071 = vshrl.u32 %v4070, 7
  %v4072 = vsub.s32 %v4069, %v4071
  %v4073 = vrot.slane %v4066, %v4072
  %v4075 = vunpack.c.l.s4 1966171168
  %v4076 = vunpack.c.0.s8 %v4075
  %v4077 = vlaneseq
  %v4078 = vshrl.u32 %v4077, 7
  %v4079 = vsub.s32 %v4076, %v4078
  %v4080 = vrot.slane %v3018, %v4079
  %v4082 = vunpack.c.l.s4 1966171168
  %v4083 = vunpack.c.0.s8 %v4082
  %v4084 = vlaneseq
  %v4085 = vshrl.u32 %v4084, 7
  %v4086 = vsub.s32 %v4083, %v4085
  %v4087 = vrot.slane %v4080, %v4086
  %v4089 = vunpack.c.l.s4 1966171168
  %v4090 = vunpack.c.0.s8 %v4089
  %v4091 = vlaneseq
  %v4092 = vshrl.u32 %v4091, 7
  %v4093 = vsub.s32 %v4090, %v4092
  %v4094 = vrot.slane %v3065, %v4093
  %v4096 = vunpack.c.l.s4 1966171168
  %v4097 = vunpack.c.0.s8 %v4096
  %v4098 = vlaneseq
  %v4099 = vshrl.u32 %v4098, 7
  %v4100 = vsub.s32 %v4097, %v4099
  %v4101 = vrot.slane %v4094, %v4100
  %v4103 = vunpack.c.l.s4 1966171168
  %v4104 = vunpack.c.0.s8 %v4103
  %v4105 = vlaneseq
  %v4106 = vshrl.u32 %v4105, 7
  %v4107 = vsub.s32 %v4104, %v4106
  %v4108 = vrot.slane %v3112, %v4107
  %v4110 = vunpack.c.l.s4 1966171168
  %v4111 = vunpack.c.0.s8 %v4110
  %v4112 = vlaneseq
  %v4113 = vshrl.u32 %v4112, 7
  %v4114 = vsub.s32 %v4111, %v4113
  %v4115 = vrot.slane %v4108, %v4114
  %v4117 = vunpack.c.l.s4 1966171168
  %v4118 = vunpack.c.0.s8 %v4117
  %v4119 = vlaneseq
  %v4120 = vshrl.u32 %v4119, 7
  %v4121 = vsub.s32 %v4118, %v4120
  %v4122 = vrot.slane %v3159, %v4121
  %v4124 = vunpack.c.l.s4 1966171168
  %v4125 = vunpack.c.0.s8 %v4124
  %v4126 = vlaneseq
  %v4127 = vshrl.u32 %v4126, 7
  %v4128 = vsub.s32 %v4125, %v4127
  %v4129 = vrot.slane %v4122, %v4128
  %v4131 = vunpack.c.l.s4 1966171168
  %v4132 = vunpack.c.0.s8 %v4131
  %v4133 = vlaneseq
  %v4134 = vshrl.u32 %v4133, 7
  %v4135 = vsub.s32 %v4132, %v4134
  %v4136 = vrot.slane %v3206, %v4135
  %v4138 = vunpack.c.l.s4 1966171168
  %v4139 = vunpack.c.0.s8 %v4138
  %v4140 = vlaneseq
  %v4141 = vshrl.u32 %v4140, 7
  %v4142 = vsub.s32 %v4139, %v4141
  %v4143 = vrot.slane %v4136, %v4142
  %v4145 = vunpack.c.l.s4 1966171168
  %v4146 = vunpack.c.0.s8 %v4145
  %v4147 = vlaneseq
  %v4148 = vshrl.u32 %v4147, 7
  %v4149 = vsub.s32 %v4146, %v4148
  %v4150 = vrot.slane %v3253, %v4149
  %v4152 = vunpack.c.l.s4 1966171168
  %v4153 = vunpack.c.0.s8 %v4152
  %v4154 = vlaneseq
  %v4155 = vshrl.u32 %v4154, 7
  %v4156 = vsub.s32 %v4153, %v4155
  %v4157 = vrot.slane %v4150, %v4156
  %v4159 = vunpack.c.l.s4 1966171168
  %v4160 = vunpack.c.0.s8 %v4159
  %v4161 = vlaneseq
  %v4162 = vshrl.u32 %v4161, 7
  %v4163 = vsub.s32 %v4160, %v4162
  %v4164 = vrot.slane %v3300, %v4163
  %v4166 = vunpack.c.l.s4 1966171168
  %v4167 = vunpack.c.0.s8 %v4166
  %v4168 = vlaneseq
  %v4169 = vshrl.u32 %v4168, 7
  %v4170 = vsub.s32 %v4167, %v4169
  %v4171 = vrot.slane %v4164, %v4170
  %v4172 = vunpack.c.l.b16 %v4073
  %v4173 = vunpack.c.l.b16 %v4087
  %v4174 = vunpack.c.l.b16 %v4101
  %v4175 = vunpack.c.l.b16 %v4115
  %v4176 = vunpack.c.l.b16 %v4129
  %v4177 = vunpack.c.l.b16 %v4143
  %v4178 = vunpack.c.l.b16 %v4157
  %v4179 = vunpack.c.l.b16 %v4171
  %v4180 = vsel %vm1678, %v3807, %v3774
  %v4181 = vsel %vm1681, %v3809, %v4180
  %v4182 = vrot.slane %v4172, 5
  %v4183 = vsel %vm1684, %v4182, %v4181
  %v4184 = vsel %vm1687, %v3813, %v4183
  %v4185 = vsel %vm1690, %v3815, %v4184
  %v4186 = vsel %vm1693, %v3817, %v4185
  %v4187 = vrot.slane %v4173, 1
  %v4188 = vsel %vm1696, %v4187, %v4186
  %v4189 = vsel %vm1678, %v3821, %v3782
  %v4190 = vsel %vm1681, %v3823, %v4189
  %v4191 = vrot.slane %v4174, 5
  %v4192 = vsel %vm1684, %v4191, %v4190
  %v4193 = vsel %vm1687, %v3827, %v4192
  %v4194 = vsel %vm1690, %v3829, %v4193
  %v4195 = vsel %vm1693, %v3831, %v4194
  %v4196 = vrot.slane %v4175, 1
  %v4197 = vsel %vm1696, %v4196, %v4195
  %v4198 = vsel %vm1678, %v3835, %v3790
  %v4199 = vsel %vm1681, %v3837, %v4198
  %v4200 = vrot.slane %v4176, 5
  %v4201 = vsel %vm1684, %v4200, %v4199
  %v4202 = vsel %vm1687, %v3841, %v4201
  %v4203 = vsel %vm1690, %v3843, %v4202
  %v4204 = vsel %vm1693, %v3845, %v4203
  %v4205 = vrot.slane %v4177, 1
  %v4206 = vsel %vm1696, %v4205, %v4204
  %v4207 = vsel %vm1678, %v3849, %v3798
  %v4208 = vsel %vm1681, %v3851, %v4207
  %v4209 = vrot.slane %v4178, 5
  %v4210 = vsel %vm1684, %v4209, %v4208
  %v4211 = vsel %vm1687, %v3855, %v4210
  %v4212 = vsel %vm1690, %v3857, %v4211
  %v4213 = vsel %vm1693, %v3859, %v4212
  %v4214 = vrot.slane %v4179, 1
  %v4215 = vsel %vm1696, %v4214, %v4213
  %v4216 = vpack.c.b16 %v4197, %v4188
  %v4217 = vpack.c.b16 %v4215, %v4206
  %v4222 = vunpack.c.l.b16 %v4056
  %v4223 = vunpack.c.l.b16 %v4057
  %v4224 = vunpack.c.l.b16 %v4058
  %v4225 = vunpack.c.l.b16 %v4059
  %v4226 = vpack.c.b16 %v4223, %v4222
  %v4227 = vpack.c.b16 %v4225, %v4224
  %v4231 = vsel %vm3875, %v4216, 0
  %v4234 = vsel %vm3875, %v4217, 0
  %4236 = vmatprep.subr.bf16.mxu0 0
  %4237 = vmatpush1.bf16.msra.mxu0 %v4226
  %4238 = vmatprep.subr.bf16.mxu0 0
  %4239 = vmatpush1.bf16.msra.mxu0 %v4227
  %4240 = vmatprep.subr.bf16.mxu0 0
  %4241 = vmatpush1.bf16.msra.mxu0 0
  %4242 = vmatprep.subr.bf16.mxu0 0
  %4243 = vmatpush1.bf16.msra.mxu0 0
  %4244 = vmatprep.subr.bf16.mxu0 0
  %4245 = vmatpush1.bf16.msra.mxu0 0
  %4246 = vmatprep.subr.bf16.mxu0 0
  %4247 = vmatpush1.bf16.msra.mxu0 0
  %4248 = vmatprep.subr.bf16.mxu0 0
  %4249 = vmatpush1.bf16.msra.mxu0 0
  %4250 = vmatprep.subr.bf16.mxu0 0
  %4251 = vmatpush1.bf16.msra.mxu0 0
  %4252 = vmatprep.subr.bf16.mxu0 0
  %4253 = vmatpush1.bf16.msra.mxu0 0
  %4254 = vmatprep.subr.bf16.mxu0 0
  %4255 = vmatpush1.bf16.msra.mxu0 0
  %4256 = vmatprep.subr.bf16.mxu0 0
  %4257 = vmatpush1.bf16.msra.mxu0 0
  %4258 = vmatprep.subr.bf16.mxu0 0
  %4259 = vmatpush1.bf16.msra.mxu0 0
  %4260 = vmatprep.subr.bf16.mxu0 0
  %4261 = vmatpush1.bf16.msra.mxu0 0
  %4262 = vmatprep.subr.bf16.mxu0 0
  %4263 = vmatpush1.bf16.msra.mxu0 0
  %4264 = vmatprep.subr.bf16.mxu0 0
  %4265 = vmatpush1.bf16.msra.mxu0 0
  %4266 = vmatprep.subr.bf16.mxu0 0
  %4267 = vmatpush1.bf16.msra.mxu0 0
  %4268 = vmatprep.mubr.bf16.mxu0 0
  %4269 = vmatmul.mubr.bf16.gmra.mrb[0].mxu0 %v4231
  %v4270 = vpop.f32.mrb[0].mxu0
  %v4271 = vadd.f32 0.0, %v4270
  %v4272 = vpop.f32.mrb[0].mxu0
  %v4273 = vpop.f32.mrb[0].mxu0
  %v4274 = vadd.f32 0.0, %v4273
  %v4275 = vpop.f32.mrb[0].mxu0
  %4276 = vmatprep.mubr.bf16.mxu0 0
  %4277 = vmatmul.mubr.bf16.gmra.mrb[0].mxu0 %v4234
  %v4278 = vpop.f32.mrb[0].mxu0
  %v4279 = vadd.f32 0.0, %v4278
  %v4280 = vpop.f32.mrb[0].mxu0
  %v4281 = vpop.f32.mrb[0].mxu0
  %v4282 = vadd.f32 0.0, %v4281
  %v4283 = vpop.f32.mrb[0].mxu0
  %4284 = vdwg.mxu0
  %v4285 = vadd.f32 %v4042, %v4271
  %v4286 = vadd.f32 %v4045, %v4274
  %v4287 = vadd.f32 %v4050, %v4279
  %v4288 = vadd.f32 %v4053, %v4282
  %v4289 = vld [vmem:[%s3 + $0x30] sm:$0xf]
  %v4290 = vld [vmem:[%s3 + $0x34] sm:$0xf]
  %v4291 = vld [vmem:[%s3 + $0x38] sm:$0xf]
  %v4292 = vld [vmem:[%s3 + $0x3c] sm:$0xf]
  %v4293 = vrot.slane %v3774, 1
  %v4294 = vsel %vm1678, %v3775, %v4293
  %v4295 = vrot.slane %v3776, 7
  %v4296 = vsel %vm1681, %v4295, %v4294
  %v4297 = vrot.slane %v4172, 6
  %v4298 = vsel %vm1684, %v4297, %v4296
  %v4299 = vrot.slane %v3778, 5
  %v4300 = vsel %vm1687, %v4299, %v4298
  %v4301 = vrot.slane %v3779, 4
  %v4302 = vsel %vm1690, %v4301, %v4300
  %v4303 = vrot.slane %v3780, 3
  %v4304 = vsel %vm1693, %v4303, %v4302
  %v4305 = vrot.slane %v4173, 2
  %v4306 = vsel %vm1696, %v4305, %v4304
  %v4307 = vrot.slane %v3782, 1
  %v4308 = vsel %vm1678, %v3783, %v4307
  %v4309 = vrot.slane %v3784, 7
  %v4310 = vsel %vm1681, %v4309, %v4308
  %v4311 = vrot.slane %v4174, 6
  %v4312 = vsel %vm1684, %v4311, %v4310
  %v4313 = vrot.slane %v3786, 5
  %v4314 = vsel %vm1687, %v4313, %v4312
  %v4315 = vrot.slane %v3787, 4
  %v4316 = vsel %vm1690, %v4315, %v4314
  %v4317 = vrot.slane %v3788, 3
  %v4318 = vsel %vm1693, %v4317, %v4316
  %v4319 = vrot.slane %v4175, 2
  %v4320 = vsel %vm1696, %v4319, %v4318
  %v4321 = vrot.slane %v3790, 1
  %v4322 = vsel %vm1678, %v3791, %v4321
  %v4323 = vrot.slane %v3792, 7
  %v4324 = vsel %vm1681, %v4323, %v4322
  %v4325 = vrot.slane %v4176, 6
  %v4326 = vsel %vm1684, %v4325, %v4324
  %v4327 = vrot.slane %v3794, 5
  %v4328 = vsel %vm1687, %v4327, %v4326
  %v4329 = vrot.slane %v3795, 4
  %v4330 = vsel %vm1690, %v4329, %v4328
  %v4331 = vrot.slane %v3796, 3
  %v4332 = vsel %vm1693, %v4331, %v4330
  %v4333 = vrot.slane %v4177, 2
  %v4334 = vsel %vm1696, %v4333, %v4332
  %v4335 = vrot.slane %v3798, 1
  %v4336 = vsel %vm1678, %v3799, %v4335
  %v4337 = vrot.slane %v3800, 7
  %v4338 = vsel %vm1681, %v4337, %v4336
  %v4339 = vrot.slane %v4178, 6
  %v4340 = vsel %vm1684, %v4339, %v4338
  %v4341 = vrot.slane %v3802, 5
  %v4342 = vsel %vm1687, %v4341, %v4340
  %v4343 = vrot.slane %v3803, 4
  %v4344 = vsel %vm1690, %v4343, %v4342
  %v4345 = vrot.slane %v3804, 3
  %v4346 = vsel %vm1693, %v4345, %v4344
  %v4347 = vrot.slane %v4179, 2
  %v4348 = vsel %vm1696, %v4347, %v4346
  %v4349 = vpack.c.b16 %v4320, %v4306
  %v4350 = vpack.c.b16 %v4348, %v4334
  %v4355 = vunpack.c.l.b16 %v4289
  %v4356 = vunpack.c.l.b16 %v4290
  %v4357 = vunpack.c.l.b16 %v4291
  %v4358 = vunpack.c.l.b16 %v4292
  %v4359 = vpack.c.b16 %v4356, %v4355
  %v4360 = vpack.c.b16 %v4358, %v4357
  %v4364 = vsel %vm3875, %v4349, 0
  %v4367 = vsel %vm3875, %v4350, 0
  %4369 = vmatprep.subr.bf16.mxu0 0
  %4370 = vmatpush1.bf16.msra.mxu0 %v4359
  %4371 = vmatprep.subr.bf16.mxu0 0
  %4372 = vmatpush1.bf16.msra.mxu0 %v4360
  %4373 = vmatprep.subr.bf16.mxu0 0
  %4374 = vmatpush1.bf16.msra.mxu0 0
  %4375 = vmatprep.subr.bf16.mxu0 0
  %4376 = vmatpush1.bf16.msra.mxu0 0
  %4377 = vmatprep.subr.bf16.mxu0 0
  %4378 = vmatpush1.bf16.msra.mxu0 0
  %4379 = vmatprep.subr.bf16.mxu0 0
  %4380 = vmatpush1.bf16.msra.mxu0 0
  %4381 = vmatprep.subr.bf16.mxu0 0
  %4382 = vmatpush1.bf16.msra.mxu0 0
  %4383 = vmatprep.subr.bf16.mxu0 0
  %4384 = vmatpush1.bf16.msra.mxu0 0
  %4385 = vmatprep.subr.bf16.mxu0 0
  %4386 = vmatpush1.bf16.msra.mxu0 0
  %4387 = vmatprep.subr.bf16.mxu0 0
  %4388 = vmatpush1.bf16.msra.mxu0 0
  %4389 = vmatprep.subr.bf16.mxu0 0
  %4390 = vmatpush1.bf16.msra.mxu0 0
  %4391 = vmatprep.subr.bf16.mxu0 0
  %4392 = vmatpush1.bf16.msra.mxu0 0
  %4393 = vmatprep.subr.bf16.mxu0 0
  %4394 = vmatpush1.bf16.msra.mxu0 0
  %4395 = vmatprep.subr.bf16.mxu0 0
  %4396 = vmatpush1.bf16.msra.mxu0 0
  %4397 = vmatprep.subr.bf16.mxu0 0
  %4398 = vmatpush1.bf16.msra.mxu0 0
  %4399 = vmatprep.subr.bf16.mxu0 0
  %4400 = vmatpush1.bf16.msra.mxu0 0
  %4401 = vmatprep.mubr.bf16.mxu0 0
  %4402 = vmatmul.mubr.bf16.gmra.mrb[0].mxu0 %v4364
  %v4403 = vpop.f32.mrb[0].mxu0
  %v4404 = vadd.f32 0.0, %v4403
  %v4405 = vpop.f32.mrb[0].mxu0
  %v4406 = vpop.f32.mrb[0].mxu0
  %v4407 = vadd.f32 0.0, %v4406
  %v4408 = vpop.f32.mrb[0].mxu0
  %4409 = vmatprep.mubr.bf16.mxu0 0
  %4410 = vmatmul.mubr.bf16.gmra.mrb[0].mxu0 %v4367
  %v4411 = vpop.f32.mrb[0].mxu0
  %v4412 = vadd.f32 0.0, %v4411
  %v4413 = vpop.f32.mrb[0].mxu0
  %v4414 = vpop.f32.mrb[0].mxu0
  %v4415 = vadd.f32 0.0, %v4414
  %v4416 = vpop.f32.mrb[0].mxu0
  %4417 = vdwg.mxu0
  %v4418 = vadd.f32 %v4285, %v4404
  %v4419 = vadd.f32 %v4286, %v4407
  %v4420 = vadd.f32 %v4287, %v4412
  %v4421 = vadd.f32 %v4288, %v4415
  %v4422 = vld [vmem:[%s3 + $0x40] sm:$0xf]
  %v4423 = vld [vmem:[%s3 + $0x44] sm:$0xf]
  %v4424 = vld [vmem:[%s3 + $0x48] sm:$0xf]
  %v4425 = vld [vmem:[%s3 + $0x4c] sm:$0xf]
  %v4427 = vunpack.c.l.s4 1966171168
  %v4428 = vunpack.c.0.s8 %v4427
  %v4429 = vlaneseq
  %v4430 = vshrl.u32 %v4429, 7
  %v4431 = vsub.s32 %v4428, %v4430
  %v4432 = vrot.slane %v2985, %v4431
  %v4434 = vunpack.c.l.s4 1966171168
  %v4435 = vunpack.c.0.s8 %v4434
  %v4436 = vlaneseq
  %v4437 = vshrl.u32 %v4436, 7
  %v4438 = vsub.s32 %v4435, %v4437
  %v4439 = vrot.slane %v4432, %v4438
  %v4441 = vunpack.c.l.s4 1966171168
  %v4442 = vunpack.c.0.s8 %v4441
  %v4443 = vlaneseq
  %v4444 = vshrl.u32 %v4443, 7
  %v4445 = vsub.s32 %v4442, %v4444
  %v4446 = vrot.slane %v3032, %v4445
  %v4448 = vunpack.c.l.s4 1966171168
  %v4449 = vunpack.c.0.s8 %v4448
  %v4450 = vlaneseq
  %v4451 = vshrl.u32 %v4450, 7
  %v4452 = vsub.s32 %v4449, %v4451
  %v4453 = vrot.slane %v4446, %v4452
  %v4455 = vunpack.c.l.s4 1966171168
  %v4456 = vunpack.c.0.s8 %v4455
  %v4457 = vlaneseq
  %v4458 = vshrl.u32 %v4457, 7
  %v4459 = vsub.s32 %v4456, %v4458
  %v4460 = vrot.slane %v3079, %v4459
  %v4462 = vunpack.c.l.s4 1966171168
  %v4463 = vunpack.c.0.s8 %v4462
  %v4464 = vlaneseq
  %v4465 = vshrl.u32 %v4464, 7
  %v4466 = vsub.s32 %v4463, %v4465
  %v4467 = vrot.slane %v4460, %v4466
  %v4469 = vunpack.c.l.s4 1966171168
  %v4470 = vunpack.c.0.s8 %v4469
  %v4471 = vlaneseq
  %v4472 = vshrl.u32 %v4471, 7
  %v4473 = vsub.s32 %v4470, %v4472
  %v4474 = vrot.slane %v3126, %v4473
  %v4476 = vunpack.c.l.s4 1966171168
  %v4477 = vunpack.c.0.s8 %v4476
  %v4478 = vlaneseq
  %v4479 = vshrl.u32 %v4478, 7
  %v4480 = vsub.s32 %v4477, %v4479
  %v4481 = vrot.slane %v4474, %v4480
  %v4483 = vunpack.c.l.s4 1966171168
  %v4484 = vunpack.c.0.s8 %v4483
  %v4485 = vlaneseq
  %v4486 = vshrl.u32 %v4485, 7
  %v4487 = vsub.s32 %v4484, %v4486
  %v4488 = vrot.slane %v3173, %v4487
  %v4490 = vunpack.c.l.s4 1966171168
  %v4491 = vunpack.c.0.s8 %v4490
  %v4492 = vlaneseq
  %v4493 = vshrl.u32 %v4492, 7
  %v4494 = vsub.s32 %v4491, %v4493
  %v4495 = vrot.slane %v4488, %v4494
  %v4497 = vunpack.c.l.s4 1966171168
  %v4498 = vunpack.c.0.s8 %v4497
  %v4499 = vlaneseq
  %v4500 = vshrl.u32 %v4499, 7
  %v4501 = vsub.s32 %v4498, %v4500
  %v4502 = vrot.slane %v3220, %v4501
  %v4504 = vunpack.c.l.s4 1966171168
  %v4505 = vunpack.c.0.s8 %v4504
  %v4506 = vlaneseq
  %v4507 = vshrl.u32 %v4506, 7
  %v4508 = vsub.s32 %v4505, %v4507
  %v4509 = vrot.slane %v4502, %v4508
  %v4511 = vunpack.c.l.s4 1966171168
  %v4512 = vunpack.c.0.s8 %v4511
  %v4513 = vlaneseq
  %v4514 = vshrl.u32 %v4513, 7
  %v4515 = vsub.s32 %v4512, %v4514
  %v4516 = vrot.slane %v3267, %v4515
  %v4518 = vunpack.c.l.s4 1966171168
  %v4519 = vunpack.c.0.s8 %v4518
  %v4520 = vlaneseq
  %v4521 = vshrl.u32 %v4520, 7
  %v4522 = vsub.s32 %v4519, %v4521
  %v4523 = vrot.slane %v4516, %v4522
  %v4525 = vunpack.c.l.s4 1966171168
  %v4526 = vunpack.c.0.s8 %v4525
  %v4527 = vlaneseq
  %v4528 = vshrl.u32 %v4527, 7
  %v4529 = vsub.s32 %v4526, %v4528
  %v4530 = vrot.slane %v3314, %v4529
  %v4532 = vunpack.c.l.s4 1966171168
  %v4533 = vunpack.c.0.s8 %v4532
  %v4534 = vlaneseq
  %v4535 = vshrl.u32 %v4534, 7
  %v4536 = vsub.s32 %v4533, %v4535
  %v4537 = vrot.slane %v4530, %v4536
  %v4538 = vunpack.c.l.b16 %v4439
  %v4539 = vunpack.c.l.b16 %v4453
  %v4540 = vunpack.c.l.b16 %v4467
  %v4541 = vunpack.c.l.b16 %v4481
  %v4542 = vunpack.c.l.b16 %v4495
  %v4543 = vunpack.c.l.b16 %v4509
  %v4544 = vunpack.c.l.b16 %v4523
  %v4545 = vunpack.c.l.b16 %v4537
  %v4546 = vsel %vm1678, %v4295, %v3775
  %v4547 = vsel %vm1681, %v4297, %v4546
  %v4548 = vrot.slane %v4538, 5
  %v4549 = vsel %vm1684, %v4548, %v4547
  %v4550 = vsel %vm1687, %v4301, %v4549
  %v4551 = vsel %vm1690, %v4303, %v4550
  %v4552 = vsel %vm1693, %v4305, %v4551
  %v4553 = vrot.slane %v4539, 1
  %v4554 = vsel %vm1696, %v4553, %v4552
  %v4555 = vsel %vm1678, %v4309, %v3783
  %v4556 = vsel %vm1681, %v4311, %v4555
  %v4557 = vrot.slane %v4540, 5
  %v4558 = vsel %vm1684, %v4557, %v4556
  %v4559 = vsel %vm1687, %v4315, %v4558
  %v4560 = vsel %vm1690, %v4317, %v4559
  %v4561 = vsel %vm1693, %v4319, %v4560
  %v4562 = vrot.slane %v4541, 1
  %v4563 = vsel %vm1696, %v4562, %v4561
  %v4564 = vsel %vm1678, %v4323, %v3791
  %v4565 = vsel %vm1681, %v4325, %v4564
  %v4566 = vrot.slane %v4542, 5
  %v4567 = vsel %vm1684, %v4566, %v4565
  %v4568 = vsel %vm1687, %v4329, %v4567
  %v4569 = vsel %vm1690, %v4331, %v4568
  %v4570 = vsel %vm1693, %v4333, %v4569
  %v4571 = vrot.slane %v4543, 1
  %v4572 = vsel %vm1696, %v4571, %v4570
  %v4573 = vsel %vm1678, %v4337, %v3799
  %v4574 = vsel %vm1681, %v4339, %v4573
  %v4575 = vrot.slane %v4544, 5
  %v4576 = vsel %vm1684, %v4575, %v4574
  %v4577 = vsel %vm1687, %v4343, %v4576
  %v4578 = vsel %vm1690, %v4345, %v4577
  %v4579 = vsel %vm1693, %v4347, %v4578
  %v4580 = vrot.slane %v4545, 1
  %v4581 = vsel %vm1696, %v4580, %v4579
  %v4582 = vpack.c.b16 %v4563, %v4554
  %v4583 = vpack.c.b16 %v4581, %v4572
  %v4588 = vunpack.c.l.b16 %v4422
  %v4589 = vunpack.c.l.b16 %v4423
  %v4590 = vunpack.c.l.b16 %v4424
  %v4591 = vunpack.c.l.b16 %v4425
  %v4592 = vpack.c.b16 %v4589, %v4588
  %v4593 = vpack.c.b16 %v4591, %v4590
  %v4597 = vsel %vm3875, %v4582, 0
  %v4600 = vsel %vm3875, %v4583, 0
  %4602 = vmatprep.subr.bf16.mxu0 0
  %4603 = vmatpush1.bf16.msra.mxu0 %v4592
  %4604 = vmatprep.subr.bf16.mxu0 0
  %4605 = vmatpush1.bf16.msra.mxu0 %v4593
  %4606 = vmatprep.subr.bf16.mxu0 0
  %4607 = vmatpush1.bf16.msra.mxu0 0
  %4608 = vmatprep.subr.bf16.mxu0 0
  %4609 = vmatpush1.bf16.msra.mxu0 0
  %4610 = vmatprep.subr.bf16.mxu0 0
  %4611 = vmatpush1.bf16.msra.mxu0 0
  %4612 = vmatprep.subr.bf16.mxu0 0
  %4613 = vmatpush1.bf16.msra.mxu0 0
  %4614 = vmatprep.subr.bf16.mxu0 0
  %4615 = vmatpush1.bf16.msra.mxu0 0
  %4616 = vmatprep.subr.bf16.mxu0 0
  %4617 = vmatpush1.bf16.msra.mxu0 0
  %4618 = vmatprep.subr.bf16.mxu0 0
  %4619 = vmatpush1.bf16.msra.mxu0 0
  %4620 = vmatprep.subr.bf16.mxu0 0
  %4621 = vmatpush1.bf16.msra.mxu0 0
  %4622 = vmatprep.subr.bf16.mxu0 0
  %4623 = vmatpush1.bf16.msra.mxu0 0
  %4624 = vmatprep.subr.bf16.mxu0 0
  %4625 = vmatpush1.bf16.msra.mxu0 0
  %4626 = vmatprep.subr.bf16.mxu0 0
  %4627 = vmatpush1.bf16.msra.mxu0 0
  %4628 = vmatprep.subr.bf16.mxu0 0
  %4629 = vmatpush1.bf16.msra.mxu0 0
  %4630 = vmatprep.subr.bf16.mxu0 0
  %4631 = vmatpush1.bf16.msra.mxu0 0
  %4632 = vmatprep.subr.bf16.mxu0 0
  %4633 = vmatpush1.bf16.msra.mxu0 0
  %4634 = vmatprep.mubr.bf16.mxu0 0
  %4635 = vmatmul.mubr.bf16.gmra.mrb[0].mxu0 %v4597
  %v4636 = vpop.f32.mrb[0].mxu0
  %v4637 = vadd.f32 0.0, %v4636
  %v4638 = vpop.f32.mrb[0].mxu0
  %v4639 = vpop.f32.mrb[0].mxu0
  %v4640 = vadd.f32 0.0, %v4639
  %v4641 = vpop.f32.mrb[0].mxu0
  %4642 = vmatprep.mubr.bf16.mxu0 0
  %4643 = vmatmul.mubr.bf16.gmra.mrb[0].mxu0 %v4600
  %v4644 = vpop.f32.mrb[0].mxu0
  %v4645 = vadd.f32 0.0, %v4644
  %v4646 = vpop.f32.mrb[0].mxu0
  %v4647 = vpop.f32.mrb[0].mxu0
  %v4648 = vadd.f32 0.0, %v4647
  %v4649 = vpop.f32.mrb[0].mxu0
  %4650 = vdwg.mxu0
  %v4651 = vadd.f32 %v4418, %v4637
  %v4652 = vadd.f32 %v4419, %v4640
  %v4653 = vadd.f32 %v4420, %v4645
  %v4654 = vadd.f32 %v4421, %v4648
  %v4655 = vld [vmem:[%s4] sm:$0x1]
  %v4657 = vlaneseq
  %v4658 = vshrl.u32 %v4657, 7
  %v4659 = vsub.s32 0, %v4658
  %v4660 = vrot.slane %v4655, %v4659
  %v4662 = vadd.f32 %v4651, %v4660
  %v4663 = vadd.f32 %v4652, %v4660
  %v4664 = vadd.f32 %v4653, %v4660
  %v4665 = vadd.f32 %v4654, %v4660
  %v4670 = vcombine.high %v4662, %v4662
  %v4671 = vcombine.high %v4663, %v4663
  %v4672 = vcombine.high %v4664, %v4664
  %v4673 = vcombine.high %v4665, %v4665
  %vm4678 = vcmask 519168
  %v4679 = vsel %vm4678, %v4662, 0.0
  %v4680 = vrot.slane %v4679, 4
  %v4681 = vadd.f32 %v4679, %v4680
  %v4682 = vrot.slane %v4681, 2
  %v4683 = vadd.f32 %v4681, %v4682
  %v4684 = vrot.slane %v4683, 1
  %v4685 = vadd.f32 %v4683, %v4684
  %v4686 = vsel %vm4678, %v4670, 0.0
  %v4687 = vrot.slane %v4686, 4
  %v4688 = vadd.f32 %v4686, %v4687
  %v4689 = vrot.slane %v4688, 2
  %v4690 = vadd.f32 %v4688, %v4689
  %v4691 = vrot.slane %v4690, 1
  %v4692 = vadd.f32 %v4690, %v4691
  %v4693 = vsel %vm4678, %v4663, 0.0
  %v4694 = vrot.slane %v4693, 4
  %v4695 = vadd.f32 %v4693, %v4694
  %v4696 = vrot.slane %v4695, 2
  %v4697 = vadd.f32 %v4695, %v4696
  %v4698 = vrot.slane %v4697, 1
  %v4699 = vadd.f32 %v4697, %v4698
  %v4700 = vsel %vm4678, %v4671, 0.0
  %v4701 = vrot.slane %v4700, 4
  %v4702 = vadd.f32 %v4700, %v4701
  %v4703 = vrot.slane %v4702, 2
  %v4704 = vadd.f32 %v4702, %v4703
  %v4705 = vrot.slane %v4704, 1
  %v4706 = vadd.f32 %v4704, %v4705
  %v4707 = vsel %vm4678, %v4664, 0.0
  %v4708 = vrot.slane %v4707, 4
  %v4709 = vadd.f32 %v4707, %v4708
  %v4710 = vrot.slane %v4709, 2
  %v4711 = vadd.f32 %v4709, %v4710
  %v4712 = vrot.slane %v4711, 1
  %v4713 = vadd.f32 %v4711, %v4712
  %v4714 = vsel %vm4678, %v4672, 0.0
  %v4715 = vrot.slane %v4714, 4
  %v4716 = vadd.f32 %v4714, %v4715
  %v4717 = vrot.slane %v4716, 2
  %v4718 = vadd.f32 %v4716, %v4717
  %v4719 = vrot.slane %v4718, 1
  %v4720 = vadd.f32 %v4718, %v4719
  %v4721 = vsel %vm4678, %v4665, 0.0
  %v4722 = vrot.slane %v4721, 4
  %v4723 = vadd.f32 %v4721, %v4722
  %v4724 = vrot.slane %v4723, 2
  %v4725 = vadd.f32 %v4723, %v4724
  %v4726 = vrot.slane %v4725, 1
  %v4727 = vadd.f32 %v4725, %v4726
  %v4728 = vsel %vm4678, %v4673, 0.0
  %v4729 = vrot.slane %v4728, 4
  %v4730 = vadd.f32 %v4728, %v4729
  %v4731 = vrot.slane %v4730, 2
  %v4732 = vadd.f32 %v4730, %v4731
  %v4733 = vrot.slane %v4732, 1
  %v4734 = vadd.f32 %v4732, %v4733
  %v4735 = vrcp.pop 4.0
  %v4736 = vmul.f32 %v4685, %v4735
  %v4737 = vmul.f32 %v4692, %v4735
  %v4738 = vmul.f32 %v4699, %v4735
  %v4739 = vmul.f32 %v4706, %v4735
  %v4740 = vmul.f32 %v4713, %v4735
  %v4741 = vmul.f32 %v4720, %v4735
  %v4742 = vmul.f32 %v4727, %v4735
  %v4743 = vmul.f32 %v4734, %v4735
  %v4744 = vmul.f32 %v4662, %v4662
  %v4745 = vmul.f32 %v4670, %v4670
  %v4746 = vmul.f32 %v4663, %v4663
  %v4747 = vmul.f32 %v4671, %v4671
  %v4748 = vmul.f32 %v4664, %v4664
  %v4749 = vmul.f32 %v4672, %v4672
  %v4750 = vmul.f32 %v4665, %v4665
  %v4751 = vmul.f32 %v4673, %v4673
  %v4752 = vsel %vm4678, %v4744, 0.0
  %v4753 = vrot.slane %v4752, 4
  %v4754 = vadd.f32 %v4752, %v4753
  %v4755 = vrot.slane %v4754, 2
  %v4756 = vadd.f32 %v4754, %v4755
  %v4757 = vrot.slane %v4756, 1
  %v4758 = vadd.f32 %v4756, %v4757
  %v4759 = vsel %vm4678, %v4745, 0.0
  %v4760 = vrot.slane %v4759, 4
  %v4761 = vadd.f32 %v4759, %v4760
  %v4762 = vrot.slane %v4761, 2
  %v4763 = vadd.f32 %v4761, %v4762
  %v4764 = vrot.slane %v4763, 1
  %v4765 = vadd.f32 %v4763, %v4764
  %v4766 = vsel %vm4678, %v4746, 0.0
  %v4767 = vrot.slane %v4766, 4
  %v4768 = vadd.f32 %v4766, %v4767
  %v4769 = vrot.slane %v4768, 2
  %v4770 = vadd.f32 %v4768, %v4769
  %v4771 = vrot.slane %v4770, 1
  %v4772 = vadd.f32 %v4770, %v4771
  %v4773 = vsel %vm4678, %v4747, 0.0
  %v4774 = vrot.slane %v4773, 4
  %v4775 = vadd.f32 %v4773, %v4774
  %v4776 = vrot.slane %v4775, 2
  %v4777 = vadd.f32 %v4775, %v4776
  %v4778 = vrot.slane %v4777, 1
  %v4779 = vadd.f32 %v4777, %v4778
  %v4780 = vsel %vm4678, %v4748, 0.0
  %v4781 = vrot.slane %v4780, 4
  %v4782 = vadd.f32 %v4780, %v4781
  %v4783 = vrot.slane %v4782, 2
  %v4784 = vadd.f32 %v4782, %v4783
  %v4785 = vrot.slane %v4784, 1
  %v4786 = vadd.f32 %v4784, %v4785
  %v4787 = vsel %vm4678, %v4749, 0.0
  %v4788 = vrot.slane %v4787, 4
  %v4789 = vadd.f32 %v4787, %v4788
  %v4790 = vrot.slane %v4789, 2
  %v4791 = vadd.f32 %v4789, %v4790
  %v4792 = vrot.slane %v4791, 1
  %v4793 = vadd.f32 %v4791, %v4792
  %v4794 = vsel %vm4678, %v4750, 0.0
  %v4795 = vrot.slane %v4794, 4
  %v4796 = vadd.f32 %v4794, %v4795
  %v4797 = vrot.slane %v4796, 2
  %v4798 = vadd.f32 %v4796, %v4797
  %v4799 = vrot.slane %v4798, 1
  %v4800 = vadd.f32 %v4798, %v4799
  %v4801 = vsel %vm4678, %v4751, 0.0
  %v4802 = vrot.slane %v4801, 4
  %v4803 = vadd.f32 %v4801, %v4802
  %v4804 = vrot.slane %v4803, 2
  %v4805 = vadd.f32 %v4803, %v4804
  %v4806 = vrot.slane %v4805, 1
  %v4807 = vadd.f32 %v4805, %v4806
  %v4808 = vmul.f32 %v4758, %v4735
  %v4809 = vmul.f32 %v4765, %v4735
  %v4810 = vmul.f32 %v4772, %v4735
  %v4811 = vmul.f32 %v4779, %v4735
  %v4812 = vmul.f32 %v4786, %v4735
  %v4813 = vmul.f32 %v4793, %v4735
  %v4814 = vmul.f32 %v4800, %v4735
  %v4815 = vmul.f32 %v4807, %v4735
  %v4816 = vmul.f32 %v4736, %v4736
  %v4817 = vmul.f32 %v4737, %v4737
  %v4818 = vmul.f32 %v4738, %v4738
  %v4819 = vmul.f32 %v4739, %v4739
  %v4820 = vmul.f32 %v4740, %v4740
  %v4821 = vmul.f32 %v4741, %v4741
  %v4822 = vmul.f32 %v4742, %v4742
  %v4823 = vmul.f32 %v4743, %v4743
  %v4824 = vsub.f32 %v4808, %v4816
  %v4825 = vsub.f32 %v4809, %v4817
  %v4826 = vsub.f32 %v4810, %v4818
  %v4827 = vsub.f32 %v4811, %v4819
  %v4828 = vsub.f32 %v4812, %v4820
  %v4829 = vsub.f32 %v4813, %v4821
  %v4830 = vsub.f32 %v4814, %v4822
  %v4831 = vsub.f32 %v4815, %v4823
  %v4832 = vmax.f32 %v4824, 0.0
  %v4833 = vmax.f32 %v4825, 0.0
  %v4834 = vmax.f32 %v4826, 0.0
  %v4835 = vmax.f32 %v4827, 0.0
  %v4836 = vmax.f32 %v4828, 0.0
  %v4837 = vmax.f32 %v4829, 0.0
  %v4838 = vmax.f32 %v4830, 0.0
  %v4839 = vmax.f32 %v4831, 0.0
  %v4840 = vsub.f32 %v4662, %v4736
  %v4841 = vsub.f32 %v4670, %v4737
  %v4842 = vsub.f32 %v4663, %v4738
  %v4843 = vsub.f32 %v4671, %v4739
  %v4844 = vsub.f32 %v4664, %v4740
  %v4845 = vsub.f32 %v4672, %v4741
  %v4846 = vsub.f32 %v4665, %v4742
  %v4847 = vsub.f32 %v4673, %v4743
  %v4848 = vadd.f32 %v4832, 1e-05
  %v4849 = vadd.f32 %v4833, 1e-05
  %v4850 = vadd.f32 %v4834, 1e-05
  %v4851 = vadd.f32 %v4835, 1e-05
  %v4852 = vadd.f32 %v4836, 1e-05
  %v4853 = vadd.f32 %v4837, 1e-05
  %v4854 = vadd.f32 %v4838, 1e-05
  %v4855 = vadd.f32 %v4839, 1e-05
  %v4856 = vrsqrt.pop %v4848
  %v4857 = vrsqrt.pop %v4849
  %v4858 = vrsqrt.pop %v4850
  %v4859 = vrsqrt.pop %v4851
  %v4860 = vrsqrt.pop %v4852
  %v4861 = vrsqrt.pop %v4853
  %v4862 = vrsqrt.pop %v4854
  %v4863 = vrsqrt.pop %v4855
  %v4864 = vmul.f32 %v4840, %v4856
  %v4865 = vmul.f32 %v4841, %v4857
  %v4866 = vmul.f32 %v4842, %v4858
  %v4867 = vmul.f32 %v4843, %v4859
  %v4868 = vmul.f32 %v4844, %v4860
  %v4869 = vmul.f32 %v4845, %v4861
  %v4870 = vmul.f32 %v4846, %v4862
  %v4871 = vmul.f32 %v4847, %v4863
  %vm4872 = vcmp.gt.f32.partialorder %v4864, 0.0
  %vm4873 = vcmp.gt.f32.partialorder %v4865, 0.0
  %vm4874 = vcmp.gt.f32.partialorder %v4866, 0.0
  %vm4875 = vcmp.gt.f32.partialorder %v4867, 0.0
  %vm4876 = vcmp.gt.f32.partialorder %v4868, 0.0
  %vm4877 = vcmp.gt.f32.partialorder %v4869, 0.0
  %vm4878 = vcmp.gt.f32.partialorder %v4870, 0.0
  %vm4879 = vcmp.gt.f32.partialorder %v4871, 0.0
  %v4880 = vmul.f32 %v4864, 0.2
  %v4881 = vmul.f32 %v4865, 0.2
  %v4882 = vmul.f32 %v4866, 0.2
  %v4883 = vmul.f32 %v4867, 0.2
  %v4884 = vmul.f32 %v4868, 0.2
  %v4885 = vmul.f32 %v4869, 0.2
  %v4886 = vmul.f32 %v4870, 0.2
  %v4887 = vmul.f32 %v4871, 0.2
  %v4888 = vsel %vm4872, %v4864, %v4880
  %v4889 = vsel %vm4873, %v4865, %v4881
  %v4890 = vsel %vm4874, %v4866, %v4882
  %v4891 = vsel %vm4875, %v4867, %v4883
  %v4892 = vsel %vm4876, %v4868, %v4884
  %v4893 = vsel %vm4877, %v4869, %v4885
  %v4894 = vsel %vm4878, %v4870, %v4886
  %v4895 = vsel %vm4879, %v4871, %v4887
  %v4896 = vpack.c.bf16 %v4888, %v4888
  %v4897 = vpack.c.bf16 %v4889, %v4889
  %v4898 = vpack.c.bf16 %v4890, %v4890
  %v4899 = vpack.c.bf16 %v4891, %v4891
  %v4900 = vpack.c.bf16 %v4892, %v4892
  %v4901 = vpack.c.bf16 %v4893, %v4893
  %v4902 = vpack.c.bf16 %v4894, %v4894
  %v4903 = vpack.c.bf16 %v4895, %v4895
  %v4912 = vrot.slane %v4896, 7
  %v4913 = vrot.slane %v4897, 7
  %v4914 = vrot.slane %v4898, 7
  %v4915 = vrot.slane %v4899, 7
  %v4916 = vrot.slane %v4900, 7
  %v4917 = vrot.slane %v4901, 7
  %v4918 = vrot.slane %v4902, 7
  %v4919 = vrot.slane %v4903, 7
  %v4921 = vsel %vm105, 0, %v4912
  %v4923 = vsel %vm105, 0, %v4913
  %v4925 = vsel %vm105, 0, %v4914
  %v4927 = vsel %vm105, 0, %v4915
  %v4929 = vsel %vm105, 0, %v4916
  %v4931 = vsel %vm105, 0, %v4917
  %v4933 = vsel %vm105, 0, %v4918
  %v4935 = vsel %vm105, 0, %v4919
  %vm4936 = vcmask 1042432
  %v4937 = vsel %vm4936, %v4921, 0
  %v4938 = vsel %vm4936, %v4923, 0
  %v4939 = vsel %vm4936, %v4925, 0
  %v4940 = vsel %vm4936, %v4927, 0
  %v4941 = vsel %vm4936, %v4929, 0
  %v4942 = vsel %vm4936, %v4931, 0
  %v4943 = vsel %vm4936, %v4933, 0
  %v4944 = vsel %vm4936, %v4935, 0
  %v4954 = vunpack.c.l.s4 1966171168
  %v4955 = vunpack.c.0.s8 %v4954
  %v4956 = vlaneseq
  %v4957 = vshrl.u32 %v4956, 7
  %v4958 = vsub.s32 %v4955, %v4957
  %v4959 = vrot.slane %v4937, %v4958
  %v4960 = vcombine.high %v4959, %v4959
  %v4962 = vunpack.c.l.s4 1966171168
  %v4963 = vunpack.c.0.s8 %v4962
  %v4964 = vlaneseq
  %v4965 = vshrl.u32 %v4964, 7
  %v4966 = vsub.s32 %v4963, %v4965
  %v4967 = vrot.slane %v4959, %v4966
  %v4969 = vunpack.c.l.s4 1966171168
  %v4970 = vunpack.c.0.s8 %v4969
  %v4971 = vlaneseq
  %v4972 = vshrl.u32 %v4971, 7
  %v4973 = vsub.s32 %v4970, %v4972
  %v4974 = vrot.slane %v4960, %v4973
  %v4975 = vcombine.high %v4967, %v4967
  %v4976 = vcombine.high %v4974, %v4974
  %v4978 = vunpack.c.l.s4 1966171168
  %v4979 = vunpack.c.0.s8 %v4978
  %v4980 = vlaneseq
  %v4981 = vshrl.u32 %v4980, 7
  %v4982 = vsub.s32 %v4979, %v4981
  %v4983 = vrot.slane %v4938, %v4982
  %v4984 = vcombine.high %v4983, %v4983
  %v4986 = vunpack.c.l.s4 1966171168
  %v4987 = vunpack.c.0.s8 %v4986
  %v4988 = vlaneseq
  %v4989 = vshrl.u32 %v4988, 7
  %v4990 = vsub.s32 %v4987, %v4989
  %v4991 = vrot.slane %v4983, %v4990
  %v4993 = vunpack.c.l.s4 1966171168
  %v4994 = vunpack.c.0.s8 %v4993
  %v4995 = vlaneseq
  %v4996 = vshrl.u32 %v4995, 7
  %v4997 = vsub.s32 %v4994, %v4996
  %v4998 = vrot.slane %v4984, %v4997
  %v4999 = vcombine.high %v4991, %v4991
  %v5000 = vcombine.high %v4998, %v4998
  %v5002 = vunpack.c.l.s4 1966171168
  %v5003 = vunpack.c.0.s8 %v5002
  %v5004 = vlaneseq
  %v5005 = vshrl.u32 %v5004, 7
  %v5006 = vsub.s32 %v5003, %v5005
  %v5007 = vrot.slane %v4939, %v5006
  %v5008 = vcombine.high %v5007, %v5007
  %v5010 = vunpack.c.l.s4 1966171168
  %v5011 = vunpack.c.0.s8 %v5010
  %v5012 = vlaneseq
  %v5013 = vshrl.u32 %v5012, 7
  %v5014 = vsub.s32 %v5011, %v5013
  %v5015 = vrot.slane %v5007, %v5014
  %v5017 = vunpack.c.l.s4 1966171168
  %v5018 = vunpack.c.0.s8 %v5017
  %v5019 = vlaneseq
  %v5020 = vshrl.u32 %v5019, 7
  %v5021 = vsub.s32 %v5018, %v5020
  %v5022 = vrot.slane %v5008, %v5021
  %v5023 = vcombine.high %v5015, %v5015
  %v5024 = vcombine.high %v5022, %v5022
  %v5026 = vunpack.c.l.s4 1966171168
  %v5027 = vunpack.c.0.s8 %v5026
  %v5028 = vlaneseq
  %v5029 = vshrl.u32 %v5028, 7
  %v5030 = vsub.s32 %v5027, %v5029
  %v5031 = vrot.slane %v4940, %v5030
  %v5032 = vcombine.high %v5031, %v5031
  %v5034 = vunpack.c.l.s4 1966171168
  %v5035 = vunpack.c.0.s8 %v5034
  %v5036 = vlaneseq
  %v5037 = vshrl.u32 %v5036, 7
  %v5038 = vsub.s32 %v5035, %v5037
  %v5039 = vrot.slane %v5031, %v5038
  %v5041 = vunpack.c.l.s4 1966171168
  %v5042 = vunpack.c.0.s8 %v5041
  %v5043 = vlaneseq
  %v5044 = vshrl.u32 %v5043, 7
  %v5045 = vsub.s32 %v5042, %v5044
  %v5046 = vrot.slane %v5032, %v5045
  %v5047 = vcombine.high %v5039, %v5039
  %v5048 = vcombine.high %v5046, %v5046
  %v5050 = vunpack.c.l.s4 1966171168
  %v5051 = vunpack.c.0.s8 %v5050
  %v5052 = vlaneseq
  %v5053 = vshrl.u32 %v5052, 7
  %v5054 = vsub.s32 %v5051, %v5053
  %v5055 = vrot.slane %v4941, %v5054
  %v5056 = vcombine.high %v5055, %v5055
  %v5058 = vunpack.c.l.s4 1966171168
  %v5059 = vunpack.c.0.s8 %v5058
  %v5060 = vlaneseq
  %v5061 = vshrl.u32 %v5060, 7
  %v5062 = vsub.s32 %v5059, %v5061
  %v5063 = vrot.slane %v5055, %v5062
  %v5065 = vunpack.c.l.s4 1966171168
  %v5066 = vunpack.c.0.s8 %v5065
  %v5067 = vlaneseq
  %v5068 = vshrl.u32 %v5067, 7
  %v5069 = vsub.s32 %v5066, %v5068
  %v5070 = vrot.slane %v5056, %v5069
  %v5071 = vcombine.high %v5063, %v5063
  %v5072 = vcombine.high %v5070, %v5070
  %v5074 = vunpack.c.l.s4 1966171168
  %v5075 = vunpack.c.0.s8 %v5074
  %v5076 = vlaneseq
  %v5077 = vshrl.u32 %v5076, 7
  %v5078 = vsub.s32 %v5075, %v5077
  %v5079 = vrot.slane %v4942, %v5078
  %v5080 = vcombine.high %v5079, %v5079
  %v5082 = vunpack.c.l.s4 1966171168
  %v5083 = vunpack.c.0.s8 %v5082
  %v5084 = vlaneseq
  %v5085 = vshrl.u32 %v5084, 7
  %v5086 = vsub.s32 %v5083, %v5085
  %v5087 = vrot.slane %v5079, %v5086
  %v5089 = vunpack.c.l.s4 1966171168
  %v5090 = vunpack.c.0.s8 %v5089
  %v5091 = vlaneseq
  %v5092 = vshrl.u32 %v5091, 7
  %v5093 = vsub.s32 %v5090, %v5092
  %v5094 = vrot.slane %v5080, %v5093
  %v5095 = vcombine.high %v5087, %v5087
  %v5096 = vcombine.high %v5094, %v5094
  %v5098 = vunpack.c.l.s4 1966171168
  %v5099 = vunpack.c.0.s8 %v5098
  %v5100 = vlaneseq
  %v5101 = vshrl.u32 %v5100, 7
  %v5102 = vsub.s32 %v5099, %v5101
  %v5103 = vrot.slane %v4943, %v5102
  %v5104 = vcombine.high %v5103, %v5103
  %v5106 = vunpack.c.l.s4 1966171168
  %v5107 = vunpack.c.0.s8 %v5106
  %v5108 = vlaneseq
  %v5109 = vshrl.u32 %v5108, 7
  %v5110 = vsub.s32 %v5107, %v5109
  %v5111 = vrot.slane %v5103, %v5110
  %v5113 = vunpack.c.l.s4 1966171168
  %v5114 = vunpack.c.0.s8 %v5113
  %v5115 = vlaneseq
  %v5116 = vshrl.u32 %v5115, 7
  %v5117 = vsub.s32 %v5114, %v5116
  %v5118 = vrot.slane %v5104, %v5117
  %v5119 = vcombine.high %v5111, %v5111
  %v5120 = vcombine.high %v5118, %v5118
  %v5122 = vunpack.c.l.s4 1966171168
  %v5123 = vunpack.c.0.s8 %v5122
  %v5124 = vlaneseq
  %v5125 = vshrl.u32 %v5124, 7
  %v5126 = vsub.s32 %v5123, %v5125
  %v5127 = vrot.slane %v4944, %v5126
  %v5128 = vcombine.high %v5127, %v5127
  %v5130 = vunpack.c.l.s4 1966171168
  %v5131 = vunpack.c.0.s8 %v5130
  %v5132 = vlaneseq
  %v5133 = vshrl.u32 %v5132, 7
  %v5134 = vsub.s32 %v5131, %v5133
  %v5135 = vrot.slane %v5127, %v5134
  %v5137 = vunpack.c.l.s4 1966171168
  %v5138 = vunpack.c.0.s8 %v5137
  %v5139 = vlaneseq
  %v5140 = vshrl.u32 %v5139, 7
  %v5141 = vsub.s32 %v5138, %v5140
  %v5142 = vrot.slane %v5128, %v5141
  %v5143 = vcombine.high %v5135, %v5135
  %v5144 = vcombine.high %v5142, %v5142
  %v5145 = vld [vmem:[%s5] sm:$0xf]
  %v5146 = vld [vmem:[%s5 + $0x4] sm:$0xf]
  %v5147 = vld [vmem:[%s5 + $0x8] sm:$0xf]
  %v5148 = vld [vmem:[%s5 + $0xc] sm:$0xf]
  %v5149 = vld [vmem:[%s5 + $0x10] sm:$0xf]
  %v5150 = vld [vmem:[%s5 + $0x14] sm:$0xf]
  %v5151 = vld [vmem:[%s5 + $0x18] sm:$0xf]
  %v5152 = vld [vmem:[%s5 + $0x1c] sm:$0xf]
  %v5153 = vld [vmem:[%s5 + $0x20] sm:$0xf]
  %v5154 = vld [vmem:[%s5 + $0x24] sm:$0xf]
  %v5155 = vld [vmem:[%s5 + $0x28] sm:$0xf]
  %v5156 = vld [vmem:[%s5 + $0x2c] sm:$0xf]
  %v5157 = vld [vmem:[%s5 + $0x30] sm:$0xf]
  %v5158 = vld [vmem:[%s5 + $0x34] sm:$0xf]
  %v5159 = vld [vmem:[%s5 + $0x38] sm:$0xf]
  %v5160 = vld [vmem:[%s5 + $0x3c] sm:$0xf]
  %v5162 = vunpack.c.l.s4 1966171168
  %v5163 = vunpack.c.0.s8 %v5162
  %v5164 = vlaneseq
  %v5165 = vshrl.u32 %v5164, 7
  %v5166 = vsub.s32 %v5163, %v5165
  %v5167 = vrot.slane %v4967, %v5166
  %v5169 = vunpack.c.l.s4 1966171168
  %v5170 = vunpack.c.0.s8 %v5169
  %v5171 = vlaneseq
  %v5172 = vshrl.u32 %v5171, 7
  %v5173 = vsub.s32 %v5170, %v5172
  %v5174 = vrot.slane %v5167, %v5173
  %v5176 = vunpack.c.l.s4 1966171168
  %v5177 = vunpack.c.0.s8 %v5176
  %v5178 = vlaneseq
  %v5179 = vshrl.u32 %v5178, 7
  %v5180 = vsub.s32 %v5177, %v5179
  %v5181 = vrot.slane %v4974, %v5180
  %v5183 = vunpack.c.l.s4 1966171168
  %v5184 = vunpack.c.0.s8 %v5183
  %v5185 = vlaneseq
  %v5186 = vshrl.u32 %v5185, 7
  %v5187 = vsub.s32 %v5184, %v5186
  %v5188 = vrot.slane %v5181, %v5187
  %v5190 = vunpack.c.l.s4 1966171168
  %v5191 = vunpack.c.0.s8 %v5190
  %v5192 = vlaneseq
  %v5193 = vshrl.u32 %v5192, 7
  %v5194 = vsub.s32 %v5191, %v5193
  %v5195 = vrot.slane %v4991, %v5194
  %v5197 = vunpack.c.l.s4 1966171168
  %v5198 = vunpack.c.0.s8 %v5197
  %v5199 = vlaneseq
  %v5200 = vshrl.u32 %v5199, 7
  %v5201 = vsub.s32 %v5198, %v5200
  %v5202 = vrot.slane %v5195, %v5201
  %v5204 = vunpack.c.l.s4 1966171168
  %v5205 = vunpack.c.0.s8 %v5204
  %v5206 = vlaneseq
  %v5207 = vshrl.u32 %v5206, 7
  %v5208 = vsub.s32 %v5205, %v5207
  %v5209 = vrot.slane %v4998, %v5208
  %v5211 = vunpack.c.l.s4 1966171168
  %v5212 = vunpack.c.0.s8 %v5211
  %v5213 = vlaneseq
  %v5214 = vshrl.u32 %v5213, 7
  %v5215 = vsub.s32 %v5212, %v5214
  %v5216 = vrot.slane %v5209, %v5215
  %v5218 = vunpack.c.l.s4 1966171168
  %v5219 = vunpack.c.0.s8 %v5218
  %v5220 = vlaneseq
  %v5221 = vshrl.u32 %v5220, 7
  %v5222 = vsub.s32 %v5219, %v5221
  %v5223 = vrot.slane %v5015, %v5222
  %v5225 = vunpack.c.l.s4 1966171168
  %v5226 = vunpack.c.0.s8 %v5225
  %v5227 = vlaneseq
  %v5228 = vshrl.u32 %v5227, 7
  %v5229 = vsub.s32 %v5226, %v5228
  %v5230 = vrot.slane %v5223, %v5229
  %v5232 = vunpack.c.l.s4 1966171168
  %v5233 = vunpack.c.0.s8 %v5232
  %v5234 = vlaneseq
  %v5235 = vshrl.u32 %v5234, 7
  %v5236 = vsub.s32 %v5233, %v5235
  %v5237 = vrot.slane %v5022, %v5236
  %v5239 = vunpack.c.l.s4 1966171168
  %v5240 = vunpack.c.0.s8 %v5239
  %v5241 = vlaneseq
  %v5242 = vshrl.u32 %v5241, 7
  %v5243 = vsub.s32 %v5240, %v5242
  %v5244 = vrot.slane %v5237, %v5243
  %v5246 = vunpack.c.l.s4 1966171168
  %v5247 = vunpack.c.0.s8 %v5246
  %v5248 = vlaneseq
  %v5249 = vshrl.u32 %v5248, 7
  %v5250 = vsub.s32 %v5247, %v5249
  %v5251 = vrot.slane %v5039, %v5250
  %v5253 = vunpack.c.l.s4 1966171168
  %v5254 = vunpack.c.0.s8 %v5253
  %v5255 = vlaneseq
  %v5256 = vshrl.u32 %v5255, 7
  %v5257 = vsub.s32 %v5254, %v5256
  %v5258 = vrot.slane %v5251, %v5257
  %v5260 = vunpack.c.l.s4 1966171168
  %v5261 = vunpack.c.0.s8 %v5260
  %v5262 = vlaneseq
  %v5263 = vshrl.u32 %v5262, 7
  %v5264 = vsub.s32 %v5261, %v5263
  %v5265 = vrot.slane %v5046, %v5264
  %v5267 = vunpack.c.l.s4 1966171168
  %v5268 = vunpack.c.0.s8 %v5267
  %v5269 = vlaneseq
  %v5270 = vshrl.u32 %v5269, 7
  %v5271 = vsub.s32 %v5268, %v5270
  %v5272 = vrot.slane %v5265, %v5271
  %v5274 = vunpack.c.l.s4 1966171168
  %v5275 = vunpack.c.0.s8 %v5274
  %v5276 = vlaneseq
  %v5277 = vshrl.u32 %v5276, 7
  %v5278 = vsub.s32 %v5275, %v5277
  %v5279 = vrot.slane %v5063, %v5278
  %v5281 = vunpack.c.l.s4 1966171168
  %v5282 = vunpack.c.0.s8 %v5281
  %v5283 = vlaneseq
  %v5284 = vshrl.u32 %v5283, 7
  %v5285 = vsub.s32 %v5282, %v5284
  %v5286 = vrot.slane %v5279, %v5285
  %v5288 = vunpack.c.l.s4 1966171168
  %v5289 = vunpack.c.0.s8 %v5288
  %v5290 = vlaneseq
  %v5291 = vshrl.u32 %v5290, 7
  %v5292 = vsub.s32 %v5289, %v5291
  %v5293 = vrot.slane %v5070, %v5292
  %v5295 = vunpack.c.l.s4 1966171168
  %v5296 = vunpack.c.0.s8 %v5295
  %v5297 = vlaneseq
  %v5298 = vshrl.u32 %v5297, 7
  %v5299 = vsub.s32 %v5296, %v5298
  %v5300 = vrot.slane %v5293, %v5299
  %v5302 = vunpack.c.l.s4 1966171168
  %v5303 = vunpack.c.0.s8 %v5302
  %v5304 = vlaneseq
  %v5305 = vshrl.u32 %v5304, 7
  %v5306 = vsub.s32 %v5303, %v5305
  %v5307 = vrot.slane %v5087, %v5306
  %v5309 = vunpack.c.l.s4 1966171168
  %v5310 = vunpack.c.0.s8 %v5309
  %v5311 = vlaneseq
  %v5312 = vshrl.u32 %v5311, 7
  %v5313 = vsub.s32 %v5310, %v5312
  %v5314 = vrot.slane %v5307, %v5313
  %v5316 = vunpack.c.l.s4 1966171168
  %v5317 = vunpack.c.0.s8 %v5316
  %v5318 = vlaneseq
  %v5319 = vshrl.u32 %v5318, 7
  %v5320 = vsub.s32 %v5317, %v5319
  %v5321 = vrot.slane %v5094, %v5320
  %v5323 = vunpack.c.l.s4 1966171168
  %v5324 = vunpack.c.0.s8 %v5323
  %v5325 = vlaneseq
  %v5326 = vshrl.u32 %v5325, 7
  %v5327 = vsub.s32 %v5324, %v5326
  %v5328 = vrot.slane %v5321, %v5327
  %v5330 = vunpack.c.l.s4 1966171168
  %v5331 = vunpack.c.0.s8 %v5330
  %v5332 = vlaneseq
  %v5333 = vshrl.u32 %v5332, 7
  %v5334 = vsub.s32 %v5331, %v5333
  %v5335 = vrot.slane %v5111, %v5334
  %v5337 = vunpack.c.l.s4 1966171168
  %v5338 = vunpack.c.0.s8 %v5337
  %v5339 = vlaneseq
  %v5340 = vshrl.u32 %v5339, 7
  %v5341 = vsub.s32 %v5338, %v5340
  %v5342 = vrot.slane %v5335, %v5341
  %v5344 = vunpack.c.l.s4 1966171168
  %v5345 = vunpack.c.0.s8 %v5344
  %v5346 = vlaneseq
  %v5347 = vshrl.u32 %v5346, 7
  %v5348 = vsub.s32 %v5345, %v5347
  %v5349 = vrot.slane %v5118, %v5348
  %v5351 = vunpack.c.l.s4 1966171168
  %v5352 = vunpack.c.0.s8 %v5351
  %v5353 = vlaneseq
  %v5354 = vshrl.u32 %v5353, 7
  %v5355 = vsub.s32 %v5352, %v5354
  %v5356 = vrot.slane %v5349, %v5355
  %v5358 = vunpack.c.l.s4 1966171168
  %v5359 = vunpack.c.0.s8 %v5358
  %v5360 = vlaneseq
  %v5361 = vshrl.u32 %v5360, 7
  %v5362 = vsub.s32 %v5359, %v5361
  %v5363 = vrot.slane %v5135, %v5362
  %v5365 = vunpack.c.l.s4 1966171168
  %v5366 = vunpack.c.0.s8 %v5365
  %v5367 = vlaneseq
  %v5368 = vshrl.u32 %v5367, 7
  %v5369 = vsub.s32 %v5366, %v5368
  %v5370 = vrot.slane %v5363, %v5369
  %v5372 = vunpack.c.l.s4 1966171168
  %v5373 = vunpack.c.0.s8 %v5372
  %v5374 = vlaneseq
  %v5375 = vshrl.u32 %v5374, 7
  %v5376 = vsub.s32 %v5373, %v5375
  %v5377 = vrot.slane %v5142, %v5376
  %v5379 = vunpack.c.l.s4 1966171168
  %v5380 = vunpack.c.0.s8 %v5379
  %v5381 = vlaneseq
  %v5382 = vshrl.u32 %v5381, 7
  %v5383 = vsub.s32 %v5380, %v5382
  %v5384 = vrot.slane %v5377, %v5383
  %v5385 = vunpack.c.l.b16 %v5174
  %v5386 = vunpack.c.l.b16 %v5188
  %v5387 = vunpack.c.l.b16 %v5202
  %v5388 = vunpack.c.l.b16 %v5216
  %v5389 = vunpack.c.l.b16 %v5230
  %v5390 = vunpack.c.l.b16 %v5244
  %v5391 = vunpack.c.l.b16 %v5258
  %v5392 = vunpack.c.l.b16 %v5272
  %v5393 = vunpack.c.l.b16 %v5286
  %v5394 = vunpack.c.l.b16 %v5300
  %v5395 = vunpack.c.l.b16 %v5314
  %v5396 = vunpack.c.l.b16 %v5328
  %v5397 = vunpack.c.l.b16 %v5342
  %v5398 = vunpack.c.l.b16 %v5356
  %v5399 = vunpack.c.l.b16 %v5370
  %v5400 = vunpack.c.l.b16 %v5384
  %v5401 = vrot.slane %v5385, 1
  %v5402 = vsel %vm1678, %v5386, %v5401
  %v5403 = vrot.slane %v5387, 7
  %v5404 = vsel %vm1681, %v5403, %v5402
  %v5405 = vrot.slane %v5388, 6
  %v5406 = vsel %vm1684, %v5405, %v5404
  %v5407 = vrot.slane %v5389, 5
  %v5408 = vsel %vm1687, %v5407, %v5406
  %v5409 = vrot.slane %v5390, 4
  %v5410 = vsel %vm1690, %v5409, %v5408
  %v5411 = vrot.slane %v5391, 3
  %v5412 = vsel %vm1693, %v5411, %v5410
  %v5413 = vrot.slane %v5392, 2
  %v5414 = vsel %vm1696, %v5413, %v5412
  %v5415 = vrot.slane %v5393, 1
  %v5416 = vsel %vm1678, %v5394, %v5415
  %v5417 = vrot.slane %v5395, 7
  %v5418 = vsel %vm1681, %v5417, %v5416
  %v5419 = vrot.slane %v5396, 6
  %v5420 = vsel %vm1684, %v5419, %v5418
  %v5421 = vrot.slane %v5397, 5
  %v5422 = vsel %vm1687, %v5421, %v5420
  %v5423 = vrot.slane %v5398, 4
  %v5424 = vsel %vm1690, %v5423, %v5422
  %v5425 = vrot.slane %v5399, 3
  %v5426 = vsel %vm1693, %v5425, %v5424
  %v5427 = vrot.slane %v5400, 2
  %v5428 = vsel %vm1696, %v5427, %v5426
  %v5429 = vpack.c.b16 %v5428, %v5414
  %v5438 = vunpack.c.l.b16 %v5153
  %v5439 = vunpack.c.l.b16 %v5154
  %v5440 = vunpack.c.l.b16 %v5155
  %v5441 = vunpack.c.l.b16 %v5156
  %v5442 = vunpack.c.l.b16 %v5157
  %v5443 = vunpack.c.l.b16 %v5158
  %v5444 = vunpack.c.l.b16 %v5159
  %v5445 = vunpack.c.l.b16 %v5160
  %v5446 = vpack.c.b16 %v5439, %v5438
  %v5447 = vpack.c.b16 %v5441, %v5440
  %v5448 = vpack.c.b16 %v5443, %v5442
  %v5449 = vpack.c.b16 %v5445, %v5444
  %vm5454 = vcmask 523264
  %v5456 = vsel %vm5454, %v5429, 0
  %5458 = vmatprep.subr.bf16.mxu0 0
  %5459 = vmatpush1.bf16.msra.mxu0 %v5446
  %5460 = vmatprep.subr.bf16.mxu0 0
  %5461 = vmatpush1.bf16.msra.mxu0 %v5447
  %5462 = vmatprep.subr.bf16.mxu0 0
  %5463 = vmatpush1.bf16.msra.mxu0 %v5448
  %5464 = vmatprep.subr.bf16.mxu0 0
  %5465 = vmatpush1.bf16.msra.mxu0 %v5449
  %5466 = vmatprep.subr.bf16.mxu0 0
  %5467 = vmatpush1.bf16.msra.mxu0 0
  %5468 = vmatprep.subr.bf16.mxu0 0
  %5469 = vmatpush1.bf16.msra.mxu0 0
  %5470 = vmatprep.subr.bf16.mxu0 0
  %5471 = vmatpush1.bf16.msra.mxu0 0
  %5472 = vmatprep.subr.bf16.mxu0 0
  %5473 = vmatpush1.bf16.msra.mxu0 0
  %5474 = vmatprep.subr.bf16.mxu0 0
  %5475 = vmatpush1.bf16.msra.mxu0 0
  %5476 = vmatprep.subr.bf16.mxu0 0
  %5477 = vmatpush1.bf16.msra.mxu0 0
  %5478 = vmatprep.subr.bf16.mxu0 0
  %5479 = vmatpush1.bf16.msra.mxu0 0
  %5480 = vmatprep.subr.bf16.mxu0 0
  %5481 = vmatpush1.bf16.msra.mxu0 0
  %5482 = vmatprep.subr.bf16.mxu0 0
  %5483 = vmatpush1.bf16.msra.mxu0 0
  %5484 = vmatprep.subr.bf16.mxu0 0
  %5485 = vmatpush1.bf16.msra.mxu0 0
  %5486 = vmatprep.subr.bf16.mxu0 0
  %5487 = vmatpush1.bf16.msra.mxu0 0
  %5488 = vmatprep.subr.bf16.mxu0 0
  %5489 = vmatpush1.bf16.msra.mxu0 0
  %5490 = vmatprep.mubr.bf16.mxu0 0
  %5491 = vmatmul.mubr.bf16.gmra.mrb[0].mxu0 %v5456
  %v5492 = vpop.f32.mrb[0].mxu0
  %v5493 = vadd.f32 0.0, %v5492
  %v5494 = vpop.f32.mrb[0].mxu0
  %v5495 = vpop.f32.mrb[0].mxu0
  %v5496 = vadd.f32 0.0, %v5495
  %v5497 = vpop.f32.mrb[0].mxu0
  %5498 = vdwg.mxu0
  %v5499 = vrot.slane %v5386, 7
  %v5500 = vsel %vm1678, %v5499, %v5385
  %v5501 = vrot.slane %v5387, 6
  %v5502 = vsel %vm1681, %v5501, %v5500
  %v5503 = vrot.slane %v5388, 5
  %v5504 = vsel %vm1684, %v5503, %v5502
  %v5505 = vrot.slane %v5389, 4
  %v5506 = vsel %vm1687, %v5505, %v5504
  %v5507 = vrot.slane %v5390, 3
  %v5508 = vsel %vm1690, %v5507, %v5506
  %v5509 = vrot.slane %v5391, 2
  %v5510 = vsel %vm1693, %v5509, %v5508
  %v5511 = vrot.slane %v5392, 1
  %v5512 = vsel %vm1696, %v5511, %v5510
  %v5513 = vrot.slane %v5394, 7
  %v5514 = vsel %vm1678, %v5513, %v5393
  %v5515 = vrot.slane %v5395, 6
  %v5516 = vsel %vm1681, %v5515, %v5514
  %v5517 = vrot.slane %v5396, 5
  %v5518 = vsel %vm1684, %v5517, %v5516
  %v5519 = vrot.slane %v5397, 4
  %v5520 = vsel %vm1687, %v5519, %v5518
  %v5521 = vrot.slane %v5398, 3
  %v5522 = vsel %vm1690, %v5521, %v5520
  %v5523 = vrot.slane %v5399, 2
  %v5524 = vsel %vm1693, %v5523, %v5522
  %v5525 = vrot.slane %v5400, 1
  %v5526 = vsel %vm1696, %v5525, %v5524
  %v5527 = vpack.c.b16 %v5526, %v5512
  %v5536 = vunpack.c.l.b16 %v5145
  %v5537 = vunpack.c.l.b16 %v5146
  %v5538 = vunpack.c.l.b16 %v5147
  %v5539 = vunpack.c.l.b16 %v5148
  %v5540 = vunpack.c.l.b16 %v5149
  %v5541 = vunpack.c.l.b16 %v5150
  %v5542 = vunpack.c.l.b16 %v5151
  %v5543 = vunpack.c.l.b16 %v5152
  %v5544 = vpack.c.b16 %v5537, %v5536
  %v5545 = vpack.c.b16 %v5539, %v5538
  %v5546 = vpack.c.b16 %v5541, %v5540
  %v5547 = vpack.c.b16 %v5543, %v5542
  %v5553 = vsel %vm5454, %v5527, 0
  %5555 = vmatprep.subr.bf16.mxu0 0
  %5556 = vmatpush1.bf16.msra.mxu0 %v5544
  %5557 = vmatprep.subr.bf16.mxu0 0
  %5558 = vmatpush1.bf16.msra.mxu0 %v5545
  %5559 = vmatprep.subr.bf16.mxu0 0
  %5560 = vmatpush1.bf16.msra.mxu0 %v5546
  %5561 = vmatprep.subr.bf16.mxu0 0
  %5562 = vmatpush1.bf16.msra.mxu0 %v5547
  %5563 = vmatprep.subr.bf16.mxu0 0
  %5564 = vmatpush1.bf16.msra.mxu0 0
  %5565 = vmatprep.subr.bf16.mxu0 0
  %5566 = vmatpush1.bf16.msra.mxu0 0
  %5567 = vmatprep.subr.bf16.mxu0 0
  %5568 = vmatpush1.bf16.msra.mxu0 0
  %5569 = vmatprep.subr.bf16.mxu0 0
  %5570 = vmatpush1.bf16.msra.mxu0 0
  %5571 = vmatprep.subr.bf16.mxu0 0
  %5572 = vmatpush1.bf16.msra.mxu0 0
  %5573 = vmatprep.subr.bf16.mxu0 0
  %5574 = vmatpush1.bf16.msra.mxu0 0
  %5575 = vmatprep.subr.bf16.mxu0 0
  %5576 = vmatpush1.bf16.msra.mxu0 0
  %5577 = vmatprep.subr.bf16.mxu0 0
  %5578 = vmatpush1.bf16.msra.mxu0 0
  %5579 = vmatprep.subr.bf16.mxu0 0
  %5580 = vmatpush1.bf16.msra.mxu0 0
  %5581 = vmatprep.subr.bf16.mxu0 0
  %5582 = vmatpush1.bf16.msra.mxu0 0
  %5583 = vmatprep.subr.bf16.mxu0 0
  %5584 = vmatpush1.bf16.msra.mxu0 0
  %5585 = vmatprep.subr.bf16.mxu0 0
  %5586 = vmatpush1.bf16.msra.mxu0 0
  %5587 = vmatprep.mubr.bf16.mxu0 0
  %5588 = vmatmul.mubr.bf16.gmra.mrb[0].mxu0 %v5553
  %v5589 = vpop.f32.mrb[0].mxu0
  %v5590 = vadd.f32 %v5493, %v5589
  %v5591 = vpop.f32.mrb[0].mxu0
  %v5592 = vpop.f32.mrb[0].mxu0
  %v5593 = vadd.f32 %v5496, %v5592
  %v5594 = vpop.f32.mrb[0].mxu0
  %5595 = vdwg.mxu0
  %v5596 = vld [vmem:[%s5 + $0x40] sm:$0xf]
  %v5597 = vld [vmem:[%s5 + $0x44] sm:$0xf]
  %v5598 = vld [vmem:[%s5 + $0x48] sm:$0xf]
  %v5599 = vld [vmem:[%s5 + $0x4c] sm:$0xf]
  %v5600 = vld [vmem:[%s5 + $0x50] sm:$0xf]
  %v5601 = vld [vmem:[%s5 + $0x54] sm:$0xf]
  %v5602 = vld [vmem:[%s5 + $0x58] sm:$0xf]
  %v5603 = vld [vmem:[%s5 + $0x5c] sm:$0xf]
  %v5605 = vunpack.c.l.s4 1966171168
  %v5606 = vunpack.c.0.s8 %v5605
  %v5607 = vlaneseq
  %v5608 = vshrl.u32 %v5607, 7
  %v5609 = vsub.s32 %v5606, %v5608
  %v5610 = vrot.slane %v4975, %v5609
  %v5612 = vunpack.c.l.s4 1966171168
  %v5613 = vunpack.c.0.s8 %v5612
  %v5614 = vlaneseq
  %v5615 = vshrl.u32 %v5614, 7
  %v5616 = vsub.s32 %v5613, %v5615
  %v5617 = vrot.slane %v5610, %v5616
  %v5619 = vunpack.c.l.s4 1966171168
  %v5620 = vunpack.c.0.s8 %v5619
  %v5621 = vlaneseq
  %v5622 = vshrl.u32 %v5621, 7
  %v5623 = vsub.s32 %v5620, %v5622
  %v5624 = vrot.slane %v4999, %v5623
  %v5626 = vunpack.c.l.s4 1966171168
  %v5627 = vunpack.c.0.s8 %v5626
  %v5628 = vlaneseq
  %v5629 = vshrl.u32 %v5628, 7
  %v5630 = vsub.s32 %v5627, %v5629
  %v5631 = vrot.slane %v5624, %v5630
  %v5633 = vunpack.c.l.s4 1966171168
  %v5634 = vunpack.c.0.s8 %v5633
  %v5635 = vlaneseq
  %v5636 = vshrl.u32 %v5635, 7
  %v5637 = vsub.s32 %v5634, %v5636
  %v5638 = vrot.slane %v5023, %v5637
  %v5640 = vunpack.c.l.s4 1966171168
  %v5641 = vunpack.c.0.s8 %v5640
  %v5642 = vlaneseq
  %v5643 = vshrl.u32 %v5642, 7
  %v5644 = vsub.s32 %v5641, %v5643
  %v5645 = vrot.slane %v5638, %v5644
  %v5647 = vunpack.c.l.s4 1966171168
  %v5648 = vunpack.c.0.s8 %v5647
  %v5649 = vlaneseq
  %v5650 = vshrl.u32 %v5649, 7
  %v5651 = vsub.s32 %v5648, %v5650
  %v5652 = vrot.slane %v5047, %v5651
  %v5654 = vunpack.c.l.s4 1966171168
  %v5655 = vunpack.c.0.s8 %v5654
  %v5656 = vlaneseq
  %v5657 = vshrl.u32 %v5656, 7
  %v5658 = vsub.s32 %v5655, %v5657
  %v5659 = vrot.slane %v5652, %v5658
  %v5661 = vunpack.c.l.s4 1966171168
  %v5662 = vunpack.c.0.s8 %v5661
  %v5663 = vlaneseq
  %v5664 = vshrl.u32 %v5663, 7
  %v5665 = vsub.s32 %v5662, %v5664
  %v5666 = vrot.slane %v5071, %v5665
  %v5668 = vunpack.c.l.s4 1966171168
  %v5669 = vunpack.c.0.s8 %v5668
  %v5670 = vlaneseq
  %v5671 = vshrl.u32 %v5670, 7
  %v5672 = vsub.s32 %v5669, %v5671
  %v5673 = vrot.slane %v5666, %v5672
  %v5675 = vunpack.c.l.s4 1966171168
  %v5676 = vunpack.c.0.s8 %v5675
  %v5677 = vlaneseq
  %v5678 = vshrl.u32 %v5677, 7
  %v5679 = vsub.s32 %v5676, %v5678
  %v5680 = vrot.slane %v5095, %v5679
  %v5682 = vunpack.c.l.s4 1966171168
  %v5683 = vunpack.c.0.s8 %v5682
  %v5684 = vlaneseq
  %v5685 = vshrl.u32 %v5684, 7
  %v5686 = vsub.s32 %v5683, %v5685
  %v5687 = vrot.slane %v5680, %v5686
  %v5689 = vunpack.c.l.s4 1966171168
  %v5690 = vunpack.c.0.s8 %v5689
  %v5691 = vlaneseq
  %v5692 = vshrl.u32 %v5691, 7
  %v5693 = vsub.s32 %v5690, %v5692
  %v5694 = vrot.slane %v5119, %v5693
  %v5696 = vunpack.c.l.s4 1966171168
  %v5697 = vunpack.c.0.s8 %v5696
  %v5698 = vlaneseq
  %v5699 = vshrl.u32 %v5698, 7
  %v5700 = vsub.s32 %v5697, %v5699
  %v5701 = vrot.slane %v5694, %v5700
  %v5703 = vunpack.c.l.s4 1966171168
  %v5704 = vunpack.c.0.s8 %v5703
  %v5705 = vlaneseq
  %v5706 = vshrl.u32 %v5705, 7
  %v5707 = vsub.s32 %v5704, %v5706
  %v5708 = vrot.slane %v5143, %v5707
  %v5710 = vunpack.c.l.s4 1966171168
  %v5711 = vunpack.c.0.s8 %v5710
  %v5712 = vlaneseq
  %v5713 = vshrl.u32 %v5712, 7
  %v5714 = vsub.s32 %v5711, %v5713
  %v5715 = vrot.slane %v5708, %v5714
  %v5716 = vunpack.c.l.b16 %v5617
  %v5717 = vunpack.c.l.b16 %v5631
  %v5718 = vunpack.c.l.b16 %v5645
  %v5719 = vunpack.c.l.b16 %v5659
  %v5720 = vunpack.c.l.b16 %v5673
  %v5721 = vunpack.c.l.b16 %v5687
  %v5722 = vunpack.c.l.b16 %v5701
  %v5723 = vunpack.c.l.b16 %v5715
  %v5724 = vrot.slane %v5716, 7
  %v5725 = vsel %vm1678, %v5724, %v5386
  %v5726 = vsel %vm1681, %v5405, %v5725
  %v5727 = vrot.slane %v5717, 5
  %v5728 = vsel %vm1684, %v5727, %v5726
  %v5729 = vsel %vm1687, %v5409, %v5728
  %v5730 = vrot.slane %v5718, 3
  %v5731 = vsel %vm1690, %v5730, %v5729
  %v5732 = vsel %vm1693, %v5413, %v5731
  %v5733 = vrot.slane %v5719, 1
  %v5734 = vsel %vm1696, %v5733, %v5732
  %v5735 = vrot.slane %v5720, 7
  %v5736 = vsel %vm1678, %v5735, %v5394
  %v5737 = vsel %vm1681, %v5419, %v5736
  %v5738 = vrot.slane %v5721, 5
  %v5739 = vsel %vm1684, %v5738, %v5737
  %v5740 = vsel %vm1687, %v5423, %v5739
  %v5741 = vrot.slane %v5722, 3
  %v5742 = vsel %vm1690, %v5741, %v5740
  %v5743 = vsel %vm1693, %v5427, %v5742
  %v5744 = vrot.slane %v5723, 1
  %v5745 = vsel %vm1696, %v5744, %v5743
  %v5746 = vpack.c.b16 %v5745, %v5734
  %v5755 = vunpack.c.l.b16 %v5596
  %v5756 = vunpack.c.l.b16 %v5597
  %v5757 = vunpack.c.l.b16 %v5598
  %v5758 = vunpack.c.l.b16 %v5599
  %v5759 = vunpack.c.l.b16 %v5600
  %v5760 = vunpack.c.l.b16 %v5601
  %v5761 = vunpack.c.l.b16 %v5602
  %v5762 = vunpack.c.l.b16 %v5603
  %v5763 = vpack.c.b16 %v5756, %v5755
  %v5764 = vpack.c.b16 %v5758, %v5757
  %v5765 = vpack.c.b16 %v5760, %v5759
  %v5766 = vpack.c.b16 %v5762, %v5761
  %v5772 = vsel %vm5454, %v5746, 0
  %5774 = vmatprep.subr.bf16.mxu0 0
  %5775 = vmatpush1.bf16.msra.mxu0 %v5763
  %5776 = vmatprep.subr.bf16.mxu0 0
  %5777 = vmatpush1.bf16.msra.mxu0 %v5764
  %5778 = vmatprep.subr.bf16.mxu0 0
  %5779 = vmatpush1.bf16.msra.mxu0 %v5765
  %5780 = vmatprep.subr.bf16.mxu0 0
  %5781 = vmatpush1.bf16.msra.mxu0 %v5766
  %5782 = vmatprep.subr.bf16.mxu0 0
  %5783 = vmatpush1.bf16.msra.mxu0 0
  %5784 = vmatprep.subr.bf16.mxu0 0
  %5785 = vmatpush1.bf16.msra.mxu0 0
  %5786 = vmatprep.subr.bf16.mxu0 0
  %5787 = vmatpush1.bf16.msra.mxu0 0
  %5788 = vmatprep.subr.bf16.mxu0 0
  %5789 = vmatpush1.bf16.msra.mxu0 0
  %5790 = vmatprep.subr.bf16.mxu0 0
  %5791 = vmatpush1.bf16.msra.mxu0 0
  %5792 = vmatprep.subr.bf16.mxu0 0
  %5793 = vmatpush1.bf16.msra.mxu0 0
  %5794 = vmatprep.subr.bf16.mxu0 0
  %5795 = vmatpush1.bf16.msra.mxu0 0
  %5796 = vmatprep.subr.bf16.mxu0 0
  %5797 = vmatpush1.bf16.msra.mxu0 0
  %5798 = vmatprep.subr.bf16.mxu0 0
  %5799 = vmatpush1.bf16.msra.mxu0 0
  %5800 = vmatprep.subr.bf16.mxu0 0
  %5801 = vmatpush1.bf16.msra.mxu0 0
  %5802 = vmatprep.subr.bf16.mxu0 0
  %5803 = vmatpush1.bf16.msra.mxu0 0
  %5804 = vmatprep.subr.bf16.mxu0 0
  %5805 = vmatpush1.bf16.msra.mxu0 0
  %5806 = vmatprep.mubr.bf16.mxu0 0
  %5807 = vmatmul.mubr.bf16.gmra.mrb[0].mxu0 %v5772
  %v5808 = vpop.f32.mrb[0].mxu0
  %v5809 = vadd.f32 0.0, %v5808
  %v5810 = vpop.f32.mrb[0].mxu0
  %v5811 = vpop.f32.mrb[0].mxu0
  %v5812 = vadd.f32 0.0, %v5811
  %v5813 = vpop.f32.mrb[0].mxu0
  %5814 = vdwg.mxu0
  %v5815 = vadd.f32 %v5590, %v5809
  %v5816 = vadd.f32 %v5593, %v5812
  %v5817 = vld [vmem:[%s5 + $0x60] sm:$0xf]
  %v5818 = vld [vmem:[%s5 + $0x64] sm:$0xf]
  %v5819 = vld [vmem:[%s5 + $0x68] sm:$0xf]
  %v5820 = vld [vmem:[%s5 + $0x6c] sm:$0xf]
  %v5821 = vld [vmem:[%s5 + $0x70] sm:$0xf]
  %v5822 = vld [vmem:[%s5 + $0x74] sm:$0xf]
  %v5823 = vld [vmem:[%s5 + $0x78] sm:$0xf]
  %v5824 = vld [vmem:[%s5 + $0x7c] sm:$0xf]
  %v5825 = vrot.slane %v5386, 1
  %v5826 = vsel %vm1678, %v5716, %v5825
  %v5827 = vrot.slane %v5388, 7
  %v5828 = vsel %vm1681, %v5827, %v5826
  %v5829 = vrot.slane %v5717, 6
  %v5830 = vsel %vm1684, %v5829, %v5828
  %v5831 = vrot.slane %v5390, 5
  %v5832 = vsel %vm1687, %v5831, %v5830
  %v5833 = vrot.slane %v5718, 4
  %v5834 = vsel %vm1690, %v5833, %v5832
  %v5835 = vrot.slane %v5392, 3
  %v5836 = vsel %vm1693, %v5835, %v5834
  %v5837 = vrot.slane %v5719, 2
  %v5838 = vsel %vm1696, %v5837, %v5836
  %v5839 = vrot.slane %v5394, 1
  %v5840 = vsel %vm1678, %v5720, %v5839
  %v5841 = vrot.slane %v5396, 7
  %v5842 = vsel %vm1681, %v5841, %v5840
  %v5843 = vrot.slane %v5721, 6
  %v5844 = vsel %vm1684, %v5843, %v5842
  %v5845 = vrot.slane %v5398, 5
  %v5846 = vsel %vm1687, %v5845, %v5844
  %v5847 = vrot.slane %v5722, 4
  %v5848 = vsel %vm1690, %v5847, %v5846
  %v5849 = vrot.slane %v5400, 3
  %v5850 = vsel %vm1693, %v5849, %v5848
  %v5851 = vrot.slane %v5723, 2
  %v5852 = vsel %vm1696, %v5851, %v5850
  %v5853 = vpack.c.b16 %v5852, %v5838
  %v5862 = vunpack.c.l.b16 %v5817
  %v5863 = vunpack.c.l.b16 %v5818
  %v5864 = vunpack.c.l.b16 %v5819
  %v5865 = vunpack.c.l.b16 %v5820
  %v5866 = vunpack.c.l.b16 %v5821
  %v5867 = vunpack.c.l.b16 %v5822
  %v5868 = vunpack.c.l.b16 %v5823
  %v5869 = vunpack.c.l.b16 %v5824
  %v5870 = vpack.c.b16 %v5863, %v5862
  %v5871 = vpack.c.b16 %v5865, %v5864
  %v5872 = vpack.c.b16 %v5867, %v5866
  %v5873 = vpack.c.b16 %v5869, %v5868
  %v5879 = vsel %vm5454, %v5853, 0
  %5881 = vmatprep.subr.bf16.mxu0 0
  %5882 = vmatpush1.bf16.msra.mxu0 %v5870
  %5883 = vmatprep.subr.bf16.mxu0 0
  %5884 = vmatpush1.bf16.msra.mxu0 %v5871
  %5885 = vmatprep.subr.bf16.mxu0 0
  %5886 = vmatpush1.bf16.msra.mxu0 %v5872
  %5887 = vmatprep.subr.bf16.mxu0 0
  %5888 = vmatpush1.bf16.msra.mxu0 %v5873
  %5889 = vmatprep.subr.bf16.mxu0 0
  %5890 = vmatpush1.bf16.msra.mxu0 0
  %5891 = vmatprep.subr.bf16.mxu0 0
  %5892 = vmatpush1.bf16.msra.mxu0 0
  %5893 = vmatprep.subr.bf16.mxu0 0
  %5894 = vmatpush1.bf16.msra.mxu0 0
  %5895 = vmatprep.subr.bf16.mxu0 0
  %5896 = vmatpush1.bf16.msra.mxu0 0
  %5897 = vmatprep.subr.bf16.mxu0 0
  %5898 = vmatpush1.bf16.msra.mxu0 0
  %5899 = vmatprep.subr.bf16.mxu0 0
  %5900 = vmatpush1.bf16.msra.mxu0 0
  %5901 = vmatprep.subr.bf16.mxu0 0
  %5902 = vmatpush1.bf16.msra.mxu0 0
  %5903 = vmatprep.subr.bf16.mxu0 0
  %5904 = vmatpush1.bf16.msra.mxu0 0
  %5905 = vmatprep.subr.bf16.mxu0 0
  %5906 = vmatpush1.bf16.msra.mxu0 0
  %5907 = vmatprep.subr.bf16.mxu0 0
  %5908 = vmatpush1.bf16.msra.mxu0 0
  %5909 = vmatprep.subr.bf16.mxu0 0
  %5910 = vmatpush1.bf16.msra.mxu0 0
  %5911 = vmatprep.subr.bf16.mxu0 0
  %5912 = vmatpush1.bf16.msra.mxu0 0
  %5913 = vmatprep.mubr.bf16.mxu0 0
  %5914 = vmatmul.mubr.bf16.gmra.mrb[0].mxu0 %v5879
  %v5915 = vpop.f32.mrb[0].mxu0
  %v5916 = vadd.f32 0.0, %v5915
  %v5917 = vpop.f32.mrb[0].mxu0
  %v5918 = vpop.f32.mrb[0].mxu0
  %v5919 = vadd.f32 0.0, %v5918
  %v5920 = vpop.f32.mrb[0].mxu0
  %5921 = vdwg.mxu0
  %v5922 = vadd.f32 %v5815, %v5916
  %v5923 = vadd.f32 %v5816, %v5919
  %v5924 = vld [vmem:[%s5 + $0x80] sm:$0xf]
  %v5925 = vld [vmem:[%s5 + $0x84] sm:$0xf]
  %v5926 = vld [vmem:[%s5 + $0x88] sm:$0xf]
  %v5927 = vld [vmem:[%s5 + $0x8c] sm:$0xf]
  %v5928 = vld [vmem:[%s5 + $0x90] sm:$0xf]
  %v5929 = vld [vmem:[%s5 + $0x94] sm:$0xf]
  %v5930 = vld [vmem:[%s5 + $0x98] sm:$0xf]
  %v5931 = vld [vmem:[%s5 + $0x9c] sm:$0xf]
  %v5933 = vunpack.c.l.s4 1966171168
  %v5934 = vunpack.c.0.s8 %v5933
  %v5935 = vlaneseq
  %v5936 = vshrl.u32 %v5935, 7
  %v5937 = vsub.s32 %v5934, %v5936
  %v5938 = vrot.slane %v4976, %v5937
  %v5940 = vunpack.c.l.s4 1966171168
  %v5941 = vunpack.c.0.s8 %v5940
  %v5942 = vlaneseq
  %v5943 = vshrl.u32 %v5942, 7
  %v5944 = vsub.s32 %v5941, %v5943
  %v5945 = vrot.slane %v5938, %v5944
  %v5947 = vunpack.c.l.s4 1966171168
  %v5948 = vunpack.c.0.s8 %v5947
  %v5949 = vlaneseq
  %v5950 = vshrl.u32 %v5949, 7
  %v5951 = vsub.s32 %v5948, %v5950
  %v5952 = vrot.slane %v5000, %v5951
  %v5954 = vunpack.c.l.s4 1966171168
  %v5955 = vunpack.c.0.s8 %v5954
  %v5956 = vlaneseq
  %v5957 = vshrl.u32 %v5956, 7
  %v5958 = vsub.s32 %v5955, %v5957
  %v5959 = vrot.slane %v5952, %v5958
  %v5961 = vunpack.c.l.s4 1966171168
  %v5962 = vunpack.c.0.s8 %v5961
  %v5963 = vlaneseq
  %v5964 = vshrl.u32 %v5963, 7
  %v5965 = vsub.s32 %v5962, %v5964
  %v5966 = vrot.slane %v5024, %v5965
  %v5968 = vunpack.c.l.s4 1966171168
  %v5969 = vunpack.c.0.s8 %v5968
  %v5970 = vlaneseq
  %v5971 = vshrl.u32 %v5970, 7
  %v5972 = vsub.s32 %v5969, %v5971
  %v5973 = vrot.slane %v5966, %v5972
  %v5975 = vunpack.c.l.s4 1966171168
  %v5976 = vunpack.c.0.s8 %v5975
  %v5977 = vlaneseq
  %v5978 = vshrl.u32 %v5977, 7
  %v5979 = vsub.s32 %v5976, %v5978
  %v5980 = vrot.slane %v5048, %v5979
  %v5982 = vunpack.c.l.s4 1966171168
  %v5983 = vunpack.c.0.s8 %v5982
  %v5984 = vlaneseq
  %v5985 = vshrl.u32 %v5984, 7
  %v5986 = vsub.s32 %v5983, %v5985
  %v5987 = vrot.slane %v5980, %v5986
  %v5989 = vunpack.c.l.s4 1966171168
  %v5990 = vunpack.c.0.s8 %v5989
  %v5991 = vlaneseq
  %v5992 = vshrl.u32 %v5991, 7
  %v5993 = vsub.s32 %v5990, %v5992
  %v5994 = vrot.slane %v5072, %v5993
  %v5996 = vunpack.c.l.s4 1966171168
  %v5997 = vunpack.c.0.s8 %v5996
  %v5998 = vlaneseq
  %v5999 = vshrl.u32 %v5998, 7
  %v6000 = vsub.s32 %v5997, %v5999
  %v6001 = vrot.slane %v5994, %v6000
  %v6003 = vunpack.c.l.s4 1966171168
  %v6004 = vunpack.c.0.s8 %v6003
  %v6005 = vlaneseq
  %v6006 = vshrl.u32 %v6005, 7
  %v6007 = vsub.s32 %v6004, %v6006
  %v6008 = vrot.slane %v5096, %v6007
  %v6010 = vunpack.c.l.s4 1966171168
  %v6011 = vunpack.c.0.s8 %v6010
  %v6012 = vlaneseq
  %v6013 = vshrl.u32 %v6012, 7
  %v6014 = vsub.s32 %v6011, %v6013
  %v6015 = vrot.slane %v6008, %v6014
  %v6017 = vunpack.c.l.s4 1966171168
  %v6018 = vunpack.c.0.s8 %v6017
  %v6019 = vlaneseq
  %v6020 = vshrl.u32 %v6019, 7
  %v6021 = vsub.s32 %v6018, %v6020
  %v6022 = vrot.slane %v5120, %v6021
  %v6024 = vunpack.c.l.s4 1966171168
  %v6025 = vunpack.c.0.s8 %v6024
  %v6026 = vlaneseq
  %v6027 = vshrl.u32 %v6026, 7
  %v6028 = vsub.s32 %v6025, %v6027
  %v6029 = vrot.slane %v6022, %v6028
  %v6031 = vunpack.c.l.s4 1966171168
  %v6032 = vunpack.c.0.s8 %v6031
  %v6033 = vlaneseq
  %v6034 = vshrl.u32 %v6033, 7
  %v6035 = vsub.s32 %v6032, %v6034
  %v6036 = vrot.slane %v5144, %v6035
  %v6038 = vunpack.c.l.s4 1966171168
  %v6039 = vunpack.c.0.s8 %v6038
  %v6040 = vlaneseq
  %v6041 = vshrl.u32 %v6040, 7
  %v6042 = vsub.s32 %v6039, %v6041
  %v6043 = vrot.slane %v6036, %v6042
  %v6044 = vunpack.c.l.b16 %v5945
  %v6045 = vunpack.c.l.b16 %v5959
  %v6046 = vunpack.c.l.b16 %v5973
  %v6047 = vunpack.c.l.b16 %v5987
  %v6048 = vunpack.c.l.b16 %v6001
  %v6049 = vunpack.c.l.b16 %v6015
  %v6050 = vunpack.c.l.b16 %v6029
  %v6051 = vunpack.c.l.b16 %v6043
  %v6052 = vrot.slane %v6044, 7
  %v6053 = vsel %vm1678, %v6052, %v5716
  %v6054 = vsel %vm1681, %v5829, %v6053
  %v6055 = vrot.slane %v6045, 5
  %v6056 = vsel %vm1684, %v6055, %v6054
  %v6057 = vsel %vm1687, %v5833, %v6056
  %v6058 = vrot.slane %v6046, 3
  %v6059 = vsel %vm1690, %v6058, %v6057
  %v6060 = vsel %vm1693, %v5837, %v6059
  %v6061 = vrot.slane %v6047, 1
  %v6062 = vsel %vm1696, %v6061, %v6060
  %v6063 = vrot.slane %v6048, 7
  %v6064 = vsel %vm1678, %v6063, %v5720
  %v6065 = vsel %vm1681, %v5843, %v6064
  %v6066 = vrot.slane %v6049, 5
  %v6067 = vsel %vm1684, %v6066, %v6065
  %v6068 = vsel %vm1687, %v5847, %v6067
  %v6069 = vrot.slane %v6050, 3
  %v6070 = vsel %vm1690, %v6069, %v6068
  %v6071 = vsel %vm1693, %v5851, %v6070
  %v6072 = vrot.slane %v6051, 1
  %v6073 = vsel %vm1696, %v6072, %v6071
  %v6074 = vpack.c.b16 %v6073, %v6062
  %v6083 = vunpack.c.l.b16 %v5924
  %v6084 = vunpack.c.l.b16 %v5925
  %v6085 = vunpack.c.l.b16 %v5926
  %v6086 = vunpack.c.l.b16 %v5927
  %v6087 = vunpack.c.l.b16 %v5928
  %v6088 = vunpack.c.l.b16 %v5929
  %v6089 = vunpack.c.l.b16 %v5930
  %v6090 = vunpack.c.l.b16 %v5931
  %v6091 = vpack.c.b16 %v6084, %v6083
  %v6092 = vpack.c.b16 %v6086, %v6085
  %v6093 = vpack.c.b16 %v6088, %v6087
  %v6094 = vpack.c.b16 %v6090, %v6089
  %v6100 = vsel %vm5454, %v6074, 0
  %6102 = vmatprep.subr.bf16.mxu0 0
  %6103 = vmatpush1.bf16.msra.mxu0 %v6091
  %6104 = vmatprep.subr.bf16.mxu0 0
  %6105 = vmatpush1.bf16.msra.mxu0 %v6092
  %6106 = vmatprep.subr.bf16.mxu0 0
  %6107 = vmatpush1.bf16.msra.mxu0 %v6093
  %6108 = vmatprep.subr.bf16.mxu0 0
  %6109 = vmatpush1.bf16.msra.mxu0 %v6094
  %6110 = vmatprep.subr.bf16.mxu0 0
  %6111 = vmatpush1.bf16.msra.mxu0 0
  %6112 = vmatprep.subr.bf16.mxu0 0
  %6113 = vmatpush1.bf16.msra.mxu0 0
  %6114 = vmatprep.subr.bf16.mxu0 0
  %6115 = vmatpush1.bf16.msra.mxu0 0
  %6116 = vmatprep.subr.bf16.mxu0 0
  %6117 = vmatpush1.bf16.msra.mxu0 0
  %6118 = vmatprep.subr.bf16.mxu0 0
  %6119 = vmatpush1.bf16.msra.mxu0 0
  %6120 = vmatprep.subr.bf16.mxu0 0
  %6121 = vmatpush1.bf16.msra.mxu0 0
  %6122 = vmatprep.subr.bf16.mxu0 0
  %6123 = vmatpush1.bf16.msra.mxu0 0
  %6124 = vmatprep.subr.bf16.mxu0 0
  %6125 = vmatpush1.bf16.msra.mxu0 0
  %6126 = vmatprep.subr.bf16.mxu0 0
  %6127 = vmatpush1.bf16.msra.mxu0 0
  %6128 = vmatprep.subr.bf16.mxu0 0
  %6129 = vmatpush1.bf16.msra.mxu0 0
  %6130 = vmatprep.subr.bf16.mxu0 0
  %6131 = vmatpush1.bf16.msra.mxu0 0
  %6132 = vmatprep.subr.bf16.mxu0 0
  %6133 = vmatpush1.bf16.msra.mxu0 0
  %6134 = vmatprep.mubr.bf16.mxu0 0
  %6135 = vmatmul.mubr.bf16.gmra.mrb[0].mxu0 %v6100
  %v6136 = vpop.f32.mrb[0].mxu0
  %v6137 = vadd.f32 0.0, %v6136
  %v6138 = vpop.f32.mrb[0].mxu0
  %v6139 = vpop.f32.mrb[0].mxu0
  %v6140 = vadd.f32 0.0, %v6139
  %v6141 = vpop.f32.mrb[0].mxu0
  %6142 = vdwg.mxu0
  %v6143 = vadd.f32 %v5922, %v6137
  %v6144 = vadd.f32 %v5923, %v6140
  %v6145 = vld [vmem:[%s6] sm:$0x1]
  %v6147 = vlaneseq
  %v6148 = vshrl.u32 %v6147, 7
  %v6149 = vsub.s32 0, %v6148
  %v6150 = vrot.slane %v6145, %v6149
  %v6152 = vadd.f32 %v6143, %v6150
  %v6153 = vadd.f32 %v6144, %v6150
  %v6156 = vcombine.high %v6152, %v6152
  %v6158 = vunpack.c.l.s4 1983009808
  %v6159 = vunpack.c.0.s8 %v6158
  %v6160 = vlaneseq
  %v6161 = vshrl.u32 %v6160, 7
  %v6162 = vsub.s32 %v6159, %v6161
  %v6163 = vrot.slane %v6152, %v6162
  %v6165 = vunpack.c.l.s4 1983009808
  %v6166 = vunpack.c.0.s8 %v6165
  %v6167 = vlaneseq
  %v6168 = vshrl.u32 %v6167, 7
  %v6169 = vsub.s32 %v6166, %v6168
  %v6170 = vrot.slane %v6156, %v6169
  %v6171 = vcombine.high %v6163, %v6163
  %v6172 = vcombine.high %v6170, %v6170
  %v6173 = vcombine.high %v6153, %v6153
  %v6175 = vunpack.c.l.s4 1983009808
  %v6176 = vunpack.c.0.s8 %v6175
  %v6177 = vlaneseq
  %v6178 = vshrl.u32 %v6177, 7
  %v6179 = vsub.s32 %v6176, %v6178
  %v6180 = vrot.slane %v6153, %v6179
  %v6182 = vunpack.c.l.s4 1983009808
  %v6183 = vunpack.c.0.s8 %v6182
  %v6184 = vlaneseq
  %v6185 = vshrl.u32 %v6184, 7
  %v6186 = vsub.s32 %v6183, %v6185
  %v6187 = vrot.slane %v6173, %v6186
  %v6188 = vcombine.high %v6180, %v6180
  %v6189 = vcombine.high %v6187, %v6187
  %v6198 = vsel %vm1817, %v6163, 0.0
  %v6199 = vrot.slane %v6198, 4
  %v6200 = vadd.f32 %v6198, %v6199
  %v6201 = vrot.slane %v6200, 2
  %v6202 = vadd.f32 %v6200, %v6201
  %v6203 = vrot.slane %v6202, 1
  %v6204 = vadd.f32 %v6202, %v6203
  %v6205 = vsel %vm1817, %v6171, 0.0
  %v6206 = vrot.slane %v6205, 4
  %v6207 = vadd.f32 %v6205, %v6206
  %v6208 = vrot.slane %v6207, 2
  %v6209 = vadd.f32 %v6207, %v6208
  %v6210 = vrot.slane %v6209, 1
  %v6211 = vadd.f32 %v6209, %v6210
  %v6212 = vsel %vm1817, %v6170, 0.0
  %v6213 = vrot.slane %v6212, 4
  %v6214 = vadd.f32 %v6212, %v6213
  %v6215 = vrot.slane %v6214, 2
  %v6216 = vadd.f32 %v6214, %v6215
  %v6217 = vrot.slane %v6216, 1
  %v6218 = vadd.f32 %v6216, %v6217
  %v6219 = vsel %vm1817, %v6172, 0.0
  %v6220 = vrot.slane %v6219, 4
  %v6221 = vadd.f32 %v6219, %v6220
  %v6222 = vrot.slane %v6221, 2
  %v6223 = vadd.f32 %v6221, %v6222
  %v6224 = vrot.slane %v6223, 1
  %v6225 = vadd.f32 %v6223, %v6224
  %v6226 = vsel %vm1817, %v6180, 0.0
  %v6227 = vrot.slane %v6226, 4
  %v6228 = vadd.f32 %v6226, %v6227
  %v6229 = vrot.slane %v6228, 2
  %v6230 = vadd.f32 %v6228, %v6229
  %v6231 = vrot.slane %v6230, 1
  %v6232 = vadd.f32 %v6230, %v6231
  %v6233 = vsel %vm1817, %v6188, 0.0
  %v6234 = vrot.slane %v6233, 4
  %v6235 = vadd.f32 %v6233, %v6234
  %v6236 = vrot.slane %v6235, 2
  %v6237 = vadd.f32 %v6235, %v6236
  %v6238 = vrot.slane %v6237, 1
  %v6239 = vadd.f32 %v6237, %v6238
  %v6240 = vsel %vm1817, %v6187, 0.0
  %v6241 = vrot.slane %v6240, 4
  %v6242 = vadd.f32 %v6240, %v6241
  %v6243 = vrot.slane %v6242, 2
  %v6244 = vadd.f32 %v6242, %v6243
  %v6245 = vrot.slane %v6244, 1
  %v6246 = vadd.f32 %v6244, %v6245
  %v6247 = vsel %vm1817, %v6189, 0.0
  %v6248 = vrot.slane %v6247, 4
  %v6249 = vadd.f32 %v6247, %v6248
  %v6250 = vrot.slane %v6249, 2
  %v6251 = vadd.f32 %v6249, %v6250
  %v6252 = vrot.slane %v6251, 1
  %v6253 = vadd.f32 %v6251, %v6252
  %v6254 = vrcp.pop 2.0
  %v6255 = vmul.f32 %v6204, %v6254
  %v6256 = vmul.f32 %v6211, %v6254
  %v6257 = vmul.f32 %v6218, %v6254
  %v6258 = vmul.f32 %v6225, %v6254
  %v6259 = vmul.f32 %v6232, %v6254
  %v6260 = vmul.f32 %v6239, %v6254
  %v6261 = vmul.f32 %v6246, %v6254
  %v6262 = vmul.f32 %v6253, %v6254
  %v6263 = vmul.f32 %v6163, %v6163
  %v6264 = vmul.f32 %v6171, %v6171
  %v6265 = vmul.f32 %v6170, %v6170
  %v6266 = vmul.f32 %v6172, %v6172
  %v6267 = vmul.f32 %v6180, %v6180
  %v6268 = vmul.f32 %v6188, %v6188
  %v6269 = vmul.f32 %v6187, %v6187
  %v6270 = vmul.f32 %v6189, %v6189
  %v6271 = vsel %vm1817, %v6263, 0.0
  %v6272 = vrot.slane %v6271, 4
  %v6273 = vadd.f32 %v6271, %v6272
  %v6274 = vrot.slane %v6273, 2
  %v6275 = vadd.f32 %v6273, %v6274
  %v6276 = vrot.slane %v6275, 1
  %v6277 = vadd.f32 %v6275, %v6276
  %v6278 = vsel %vm1817, %v6264, 0.0
  %v6279 = vrot.slane %v6278, 4
  %v6280 = vadd.f32 %v6278, %v6279
  %v6281 = vrot.slane %v6280, 2
  %v6282 = vadd.f32 %v6280, %v6281
  %v6283 = vrot.slane %v6282, 1
  %v6284 = vadd.f32 %v6282, %v6283
  %v6285 = vsel %vm1817, %v6265, 0.0
  %v6286 = vrot.slane %v6285, 4
  %v6287 = vadd.f32 %v6285, %v6286
  %v6288 = vrot.slane %v6287, 2
  %v6289 = vadd.f32 %v6287, %v6288
  %v6290 = vrot.slane %v6289, 1
  %v6291 = vadd.f32 %v6289, %v6290
  %v6292 = vsel %vm1817, %v6266, 0.0
  %v6293 = vrot.slane %v6292, 4
  %v6294 = vadd.f32 %v6292, %v6293
  %v6295 = vrot.slane %v6294, 2
  %v6296 = vadd.f32 %v6294, %v6295
  %v6297 = vrot.slane %v6296, 1
  %v6298 = vadd.f32 %v6296, %v6297
  %v6299 = vsel %vm1817, %v6267, 0.0
  %v6300 = vrot.slane %v6299, 4
  %v6301 = vadd.f32 %v6299, %v6300
  %v6302 = vrot.slane %v6301, 2
  %v6303 = vadd.f32 %v6301, %v6302
  %v6304 = vrot.slane %v6303, 1
  %v6305 = vadd.f32 %v6303, %v6304
  %v6306 = vsel %vm1817, %v6268, 0.0
  %v6307 = vrot.slane %v6306, 4
  %v6308 = vadd.f32 %v6306, %v6307
  %v6309 = vrot.slane %v6308, 2
  %v6310 = vadd.f32 %v6308, %v6309
  %v6311 = vrot.slane %v6310, 1
  %v6312 = vadd.f32 %v6310, %v6311
  %v6313 = vsel %vm1817, %v6269, 0.0
  %v6314 = vrot.slane %v6313, 4
  %v6315 = vadd.f32 %v6313, %v6314
  %v6316 = vrot.slane %v6315, 2
  %v6317 = vadd.f32 %v6315, %v6316
  %v6318 = vrot.slane %v6317, 1
  %v6319 = vadd.f32 %v6317, %v6318
  %v6320 = vsel %vm1817, %v6270, 0.0
  %v6321 = vrot.slane %v6320, 4
  %v6322 = vadd.f32 %v6320, %v6321
  %v6323 = vrot.slane %v6322, 2
  %v6324 = vadd.f32 %v6322, %v6323
  %v6325 = vrot.slane %v6324, 1
  %v6326 = vadd.f32 %v6324, %v6325
  %v6327 = vmul.f32 %v6277, %v6254
  %v6328 = vmul.f32 %v6284, %v6254
  %v6329 = vmul.f32 %v6291, %v6254
  %v6330 = vmul.f32 %v6298, %v6254
  %v6331 = vmul.f32 %v6305, %v6254
  %v6332 = vmul.f32 %v6312, %v6254
  %v6333 = vmul.f32 %v6319, %v6254
  %v6334 = vmul.f32 %v6326, %v6254
  %v6335 = vmul.f32 %v6255, %v6255
  %v6336 = vmul.f32 %v6256, %v6256
  %v6337 = vmul.f32 %v6257, %v6257
  %v6338 = vmul.f32 %v6258, %v6258
  %v6339 = vmul.f32 %v6259, %v6259
  %v6340 = vmul.f32 %v6260, %v6260
  %v6341 = vmul.f32 %v6261, %v6261
  %v6342 = vmul.f32 %v6262, %v6262
  %v6343 = vsub.f32 %v6327, %v6335
  %v6344 = vsub.f32 %v6328, %v6336
  %v6345 = vsub.f32 %v6329, %v6337
  %v6346 = vsub.f32 %v6330, %v6338
  %v6347 = vsub.f32 %v6331, %v6339
  %v6348 = vsub.f32 %v6332, %v6340
  %v6349 = vsub.f32 %v6333, %v6341
  %v6350 = vsub.f32 %v6334, %v6342
  %v6351 = vmax.f32 %v6343, 0.0
  %v6352 = vmax.f32 %v6344, 0.0
  %v6353 = vmax.f32 %v6345, 0.0
  %v6354 = vmax.f32 %v6346, 0.0
  %v6355 = vmax.f32 %v6347, 0.0
  %v6356 = vmax.f32 %v6348, 0.0
  %v6357 = vmax.f32 %v6349, 0.0
  %v6358 = vmax.f32 %v6350, 0.0
  %v6359 = vsub.f32 %v6163, %v6255
  %v6360 = vsub.f32 %v6171, %v6256
  %v6361 = vsub.f32 %v6170, %v6257
  %v6362 = vsub.f32 %v6172, %v6258
  %v6363 = vsub.f32 %v6180, %v6259
  %v6364 = vsub.f32 %v6188, %v6260
  %v6365 = vsub.f32 %v6187, %v6261
  %v6366 = vsub.f32 %v6189, %v6262
  %v6367 = vadd.f32 %v6351, 1e-05
  %v6368 = vadd.f32 %v6352, 1e-05
  %v6369 = vadd.f32 %v6353, 1e-05
  %v6370 = vadd.f32 %v6354, 1e-05
  %v6371 = vadd.f32 %v6355, 1e-05
  %v6372 = vadd.f32 %v6356, 1e-05
  %v6373 = vadd.f32 %v6357, 1e-05
  %v6374 = vadd.f32 %v6358, 1e-05
  %v6375 = vrsqrt.pop %v6367
  %v6376 = vrsqrt.pop %v6368
  %v6377 = vrsqrt.pop %v6369
  %v6378 = vrsqrt.pop %v6370
  %v6379 = vrsqrt.pop %v6371
  %v6380 = vrsqrt.pop %v6372
  %v6381 = vrsqrt.pop %v6373
  %v6382 = vrsqrt.pop %v6374
  %v6383 = vmul.f32 %v6359, %v6375
  %v6384 = vmul.f32 %v6360, %v6376
  %v6385 = vmul.f32 %v6361, %v6377
  %v6386 = vmul.f32 %v6362, %v6378
  %v6387 = vmul.f32 %v6363, %v6379
  %v6388 = vmul.f32 %v6364, %v6380
  %v6389 = vmul.f32 %v6365, %v6381
  %v6390 = vmul.f32 %v6366, %v6382
  %vm6391 = vcmp.gt.f32.partialorder %v6383, 0.0
  %vm6392 = vcmp.gt.f32.partialorder %v6384, 0.0
  %vm6393 = vcmp.gt.f32.partialorder %v6385, 0.0
  %vm6394 = vcmp.gt.f32.partialorder %v6386, 0.0
  %vm6395 = vcmp.gt.f32.partialorder %v6387, 0.0
  %vm6396 = vcmp.gt.f32.partialorder %v6388, 0.0
  %vm6397 = vcmp.gt.f32.partialorder %v6389, 0.0
  %vm6398 = vcmp.gt.f32.partialorder %v6390, 0.0
  %v6399 = vmul.f32 %v6383, 0.2
  %v6400 = vmul.f32 %v6384, 0.2
  %v6401 = vmul.f32 %v6385, 0.2
  %v6402 = vmul.f32 %v6386, 0.2
  %v6403 = vmul.f32 %v6387, 0.2
  %v6404 = vmul.f32 %v6388, 0.2
  %v6405 = vmul.f32 %v6389, 0.2
  %v6406 = vmul.f32 %v6390, 0.2
  %v6407 = vsel %vm6391, %v6383, %v6399
  %v6408 = vsel %vm6392, %v6384, %v6400
  %v6409 = vsel %vm6393, %v6385, %v6401
  %v6410 = vsel %vm6394, %v6386, %v6402
  %v6411 = vsel %vm6395, %v6387, %v6403
  %v6412 = vsel %vm6396, %v6388, %v6404
  %v6413 = vsel %vm6397, %v6389, %v6405
  %v6414 = vsel %vm6398, %v6390, %v6406
  %v6415 = vsel %vm1817, %v6407, 0.0
  %v6416 = vrot.slane %v6415, 4
  %v6417 = vadd.f32 %v6415, %v6416
  %v6418 = vrot.slane %v6417, 2
  %v6419 = vadd.f32 %v6417, %v6418
  %v6420 = vrot.slane %v6419, 1
  %v6421 = vadd.f32 %v6419, %v6420
  %v6422 = vsel %vm1817, %v6408, 0.0
  %v6423 = vrot.slane %v6422, 4
  %v6424 = vadd.f32 %v6422, %v6423
  %v6425 = vrot.slane %v6424, 2
  %v6426 = vadd.f32 %v6424, %v6425
  %v6427 = vrot.slane %v6426, 1
  %v6428 = vadd.f32 %v6426, %v6427
  %v6429 = vsel %vm1817, %v6409, 0.0
  %v6430 = vrot.slane %v6429, 4
  %v6431 = vadd.f32 %v6429, %v6430
  %v6432 = vrot.slane %v6431, 2
  %v6433 = vadd.f32 %v6431, %v6432
  %v6434 = vrot.slane %v6433, 1
  %v6435 = vadd.f32 %v6433, %v6434
  %v6436 = vsel %vm1817, %v6410, 0.0
  %v6437 = vrot.slane %v6436, 4
  %v6438 = vadd.f32 %v6436, %v6437
  %v6439 = vrot.slane %v6438, 2
  %v6440 = vadd.f32 %v6438, %v6439
  %v6441 = vrot.slane %v6440, 1
  %v6442 = vadd.f32 %v6440, %v6441
  %v6443 = vsel %vm1817, %v6411, 0.0
  %v6444 = vrot.slane %v6443, 4
  %v6445 = vadd.f32 %v6443, %v6444
  %v6446 = vrot.slane %v6445, 2
  %v6447 = vadd.f32 %v6445, %v6446
  %v6448 = vrot.slane %v6447, 1
  %v6449 = vadd.f32 %v6447, %v6448
  %v6450 = vsel %vm1817, %v6412, 0.0
  %v6451 = vrot.slane %v6450, 4
  %v6452 = vadd.f32 %v6450, %v6451
  %v6453 = vrot.slane %v6452, 2
  %v6454 = vadd.f32 %v6452, %v6453
  %v6455 = vrot.slane %v6454, 1
  %v6456 = vadd.f32 %v6454, %v6455
  %v6457 = vsel %vm1817, %v6413, 0.0
  %v6458 = vrot.slane %v6457, 4
  %v6459 = vadd.f32 %v6457, %v6458
  %v6460 = vrot.slane %v6459, 2
  %v6461 = vadd.f32 %v6459, %v6460
  %v6462 = vrot.slane %v6461, 1
  %v6463 = vadd.f32 %v6461, %v6462
  %v6464 = vsel %vm1817, %v6414, 0.0
  %v6465 = vrot.slane %v6464, 4
  %v6466 = vadd.f32 %v6464, %v6465
  %v6467 = vrot.slane %v6466, 2
  %v6468 = vadd.f32 %v6466, %v6467
  %v6469 = vrot.slane %v6468, 1
  %v6470 = vadd.f32 %v6468, %v6469
  %v6471 = vmul.f32 %v6421, %v6254
  %v6472 = vmul.f32 %v6428, %v6254
  %v6473 = vmul.f32 %v6435, %v6254
  %v6474 = vmul.f32 %v6442, %v6254
  %v6475 = vmul.f32 %v6449, %v6254
  %v6476 = vmul.f32 %v6456, %v6254
  %v6477 = vmul.f32 %v6463, %v6254
  %v6478 = vmul.f32 %v6470, %v6254
  %v6479 = vpack.c.bf16 %v6471, %v6471
  %v6480 = vpack.c.bf16 %v6472, %v6472
  %v6481 = vpack.c.bf16 %v6473, %v6473
  %v6482 = vpack.c.bf16 %v6474, %v6474
  %v6483 = vpack.c.bf16 %v6475, %v6475
  %v6484 = vpack.c.bf16 %v6476, %v6476
  %v6485 = vpack.c.bf16 %v6477, %v6477
  %v6486 = vpack.c.bf16 %v6478, %v6478
  %v6487 = vld [vmem:[%s7] sm:$0xf]
  %v6488 = vld [vmem:[%s7 + $0x4] sm:$0xf]
  %v6489 = vld [vmem:[%s7 + $0x8] sm:$0xf]
  %v6490 = vld [vmem:[%s7 + $0xc] sm:$0xf]
  %v6491 = vld [vmem:[%s7 + $0x10] sm:$0xf]
  %v6492 = vld [vmem:[%s7 + $0x14] sm:$0xf]
  %v6493 = vld [vmem:[%s7 + $0x18] sm:$0xf]
  %v6494 = vld [vmem:[%s7 + $0x1c] sm:$0xf]
  %v6495 = vld [vmem:[%s7 + $0x20] sm:$0xf]
  %v6496 = vld [vmem:[%s7 + $0x24] sm:$0xf]
  %v6497 = vld [vmem:[%s7 + $0x28] sm:$0xf]
  %v6498 = vld [vmem:[%s7 + $0x2c] sm:$0xf]
  %v6499 = vld [vmem:[%s7 + $0x30] sm:$0xf]
  %v6500 = vld [vmem:[%s7 + $0x34] sm:$0xf]
  %v6501 = vld [vmem:[%s7 + $0x38] sm:$0xf]
  %v6502 = vld [vmem:[%s7 + $0x3c] sm:$0xf]
  %v6503 = vld [vmem:[%s8] sm:$0x1]
  %v6505 = vlaneseq
  %v6506 = vshrl.u32 %v6505, 7
  %v6507 = vsub.s32 0, %v6506
  %v6508 = vrot.slane %v6503, %v6507
  %v6518 = vunpack.c.l.b16 %v6479
  %v6519 = vunpack.c.l.b16 %v6480
  %v6520 = vunpack.c.l.b16 %v6481
  %v6521 = vunpack.c.l.b16 %v6482
  %v6522 = vunpack.c.l.b16 %v6483
  %v6523 = vunpack.c.l.b16 %v6484
  %v6524 = vunpack.c.l.b16 %v6485
  %v6525 = vunpack.c.l.b16 %v6486
  %v6526 = vsel %vm1678, %v6519, %v6518
  %v6527 = vsel %vm1681, %v6520, %v6526
  %v6528 = vsel %vm1684, %v6521, %v6527
  %v6529 = vsel %vm1687, %v6522, %v6528
  %v6530 = vsel %vm1690, %v6523, %v6529
  %v6531 = vsel %vm1693, %v6524, %v6530
  %v6532 = vsel %vm1696, %v6525, %v6531
  %v6533 = vpack.c.b16 %v6532, %v6532
  %v6551 = vunpack.c.l.b16 %v6487
  %v6552 = vunpack.c.l.b16 %v6488
  %v6553 = vunpack.c.l.b16 %v6489
  %v6554 = vunpack.c.l.b16 %v6490
  %v6555 = vunpack.c.l.b16 %v6491
  %v6556 = vunpack.c.l.b16 %v6492
  %v6557 = vunpack.c.l.b16 %v6493
  %v6558 = vunpack.c.l.b16 %v6494
  %v6559 = vunpack.c.l.b16 %v6495
  %v6560 = vunpack.c.l.b16 %v6496
  %v6561 = vunpack.c.l.b16 %v6497
  %v6562 = vunpack.c.l.b16 %v6498
  %v6563 = vunpack.c.l.b16 %v6499
  %v6564 = vunpack.c.l.b16 %v6500
  %v6565 = vunpack.c.l.b16 %v6501
  %v6566 = vunpack.c.l.b16 %v6502
  %v6567 = vpack.c.b16 %v6552, %v6551
  %v6568 = vpack.c.b16 %v6554, %v6553
  %v6569 = vpack.c.b16 %v6556, %v6555
  %v6570 = vpack.c.b16 %v6558, %v6557
  %v6571 = vpack.c.b16 %v6560, %v6559
  %v6572 = vpack.c.b16 %v6562, %v6561
  %v6573 = vpack.c.b16 %v6564, %v6563
  %v6574 = vpack.c.b16 %v6566, %v6565
  %6583 = vmatprep.subr.bf16.mxu0 0
  %6584 = vmatpush1.bf16.msra.mxu0 %v6567
  %6585 = vmatprep.subr.bf16.mxu0 0
  %6586 = vmatpush1.bf16.msra.mxu0 %v6568
  %6587 = vmatprep.subr.bf16.mxu0 0
  %6588 = vmatpush1.bf16.msra.mxu0 %v6569
  %6589 = vmatprep.subr.bf16.mxu0 0
  %6590 = vmatpush1.bf16.msra.mxu0 %v6570
  %6591 = vmatprep.subr.bf16.mxu0 0
  %6592 = vmatpush1.bf16.msra.mxu0 %v6571
  %6593 = vmatprep.subr.bf16.mxu0 0
  %6594 = vmatpush1.bf16.msra.mxu0 %v6572
  %6595 = vmatprep.subr.bf16.mxu0 0
  %6596 = vmatpush1.bf16.msra.mxu0 %v6573
  %6597 = vmatprep.subr.bf16.mxu0 0
  %6598 = vmatpush1.bf16.msra.mxu0 %v6574
  %6599 = vmatprep.subr.bf16.mxu0 0
  %6600 = vmatpush1.bf16.msra.mxu0 0
  %6601 = vmatprep.subr.bf16.mxu0 0
  %6602 = vmatpush1.bf16.msra.mxu0 0
  %6603 = vmatprep.subr.bf16.mxu0 0
  %6604 = vmatpush1.bf16.msra.mxu0 0
  %6605 = vmatprep.subr.bf16.mxu0 0
  %6606 = vmatpush1.bf16.msra.mxu0 0
  %6607 = vmatprep.subr.bf16.mxu0 0
  %6608 = vmatpush1.bf16.msra.mxu0 0
  %6609 = vmatprep.subr.bf16.mxu0 0
  %6610 = vmatpush1.bf16.msra.mxu0 0
  %6611 = vmatprep.subr.bf16.mxu0 0
  %6612 = vmatpush1.bf16.msra.mxu0 0
  %6613 = vmatprep.subr.bf16.mxu0 0
  %6614 = vmatpush1.bf16.msra.mxu0 0
  %6615 = vmatprep.mubr.bf16.mxu0 0
  %6616 = vmatmul.mubr.bf16.gmra.mrb[0].mxu0 %v6533
  %v6617 = vpop.f32.mrb[0].mxu0
  %v6618 = vadd.f32 %v6508, %v6617
  %v6619 = vpop.f32.mrb[0].mxu0
  %v6620 = vpop.f32.mrb[0].mxu0
  %v6621 = vpop.f32.mrb[0].mxu0
  %6622 = vdwg.mxu0
  %v6623 = vmax.f32 %v6618, 0.0
  %v6624 = vpack.c.bf16 %v6623, %v6623
  %v6625 = vld [vmem:[%s9] sm:$0xf]
  %v6626 = vld [vmem:[%s9 + $0x4] sm:$0xf]
  %v6627 = vld [vmem:[%s9 + $0x8] sm:$0xf]
  %v6628 = vld [vmem:[%s9 + $0xc] sm:$0xf]
  %v6629 = vld [vmem:[#allocation2] sm:$0x1]
  %v6631 = vlaneseq
  %v6632 = vshrl.u32 %v6631, 7
  %v6633 = vsub.s32 0, %v6632
  %v6634 = vrot.slane %v6629, %v6633
  %v6640 = vunpack.c.l.b16 %v6625
  %v6641 = vunpack.c.l.b16 %v6626
  %v6642 = vunpack.c.l.b16 %v6627
  %v6643 = vunpack.c.l.b16 %v6628
  %v6644 = vpack.c.b16 %v6641, %v6640
  %v6645 = vpack.c.b16 %v6643, %v6642
  %v6649 = vsel %vm3875, %v6624, 0
  %6651 = vmatprep.subr.bf16.mxu0 0
  %6652 = vmatpush1.bf16.msra.mxu0 %v6644
  %6653 = vmatprep.subr.bf16.mxu0 0
  %6654 = vmatpush1.bf16.msra.mxu0 %v6645
  %6655 = vmatprep.subr.bf16.mxu0 0
  %6656 = vmatpush1.bf16.msra.mxu0 0
  %6657 = vmatprep.subr.bf16.mxu0 0
  %6658 = vmatpush1.bf16.msra.mxu0 0
  %6659 = vmatprep.subr.bf16.mxu0 0
  %6660 = vmatpush1.bf16.msra.mxu0 0
  %6661 = vmatprep.subr.bf16.mxu0 0
  %6662 = vmatpush1.bf16.msra.mxu0 0
  %6663 = vmatprep.subr.bf16.mxu0 0
  %6664 = vmatpush1.bf16.msra.mxu0 0
  %6665 = vmatprep.subr.bf16.mxu0 0
  %6666 = vmatpush1.bf16.msra.mxu0 0
  %6667 = vmatprep.subr.bf16.mxu0 0
  %6668 = vmatpush1.bf16.msra.mxu0 0
  %6669 = vmatprep.subr.bf16.mxu0 0
  %6670 = vmatpush1.bf16.msra.mxu0 0
  %6671 = vmatprep.subr.bf16.mxu0 0
  %6672 = vmatpush1.bf16.msra.mxu0 0
  %6673 = vmatprep.subr.bf16.mxu0 0
  %6674 = vmatpush1.bf16.msra.mxu0 0
  %6675 = vmatprep.subr.bf16.mxu0 0
  %6676 = vmatpush1.bf16.msra.mxu0 0
  %6677 = vmatprep.subr.bf16.mxu0 0
  %6678 = vmatpush1.bf16.msra.mxu0 0
  %6679 = vmatprep.subr.bf16.mxu0 0
  %6680 = vmatpush1.bf16.msra.mxu0 0
  %6681 = vmatprep.subr.bf16.mxu0 0
  %6682 = vmatpush1.bf16.msra.mxu0 0
  %6683 = vmatprep.mubr.bf16.mxu0 0
  %6684 = vmatmul.mubr.bf16.gmra.mrb[0].mxu0 %v6649
  %v6685 = vpop.f32.mrb[0].mxu0
  %v6686 = vadd.f32 %v6634, %v6685
  %v6687 = vpop.f32.mrb[0].mxu0
  %v6688 = vpop.f32.mrb[0].mxu0
  %v6689 = vpop.f32.mrb[0].mxu0
  %6690 = vdwg.mxu0
  %v6691 = vsub.f32 0.0, %v6686
  %v6692 = vmul.f32 %v6691, 1.442695
  %v6693 = vpow.pop %v6692
  %v6694 = vadd.f32 %v6693, 1.0
  %v6695 = vrcp.pop %v6694
  %vm6696 = vcmask 7168
  %6697 = vst.msk [vmem:[%s11] sm:$0xff] %vm6696, %v6695
  // Predicated region
  $region46: #{tpu_custom_call.1} parent=0 // pred_check
    _
  $region47: #{tpu_custom_call.1} parent=0 // pred_check_branch
    %6699 = sbr.rel (0) target = $region49
  $region48: #{tpu_custom_call.1} parent=0 // pred_region
    _
  $region49: #{tpu_custom_call.1} parent=0 // pred_fallthru
    _
  // Predicated region
  $region50: #{tpu_custom_call.1} parent=0 // pred_check
    _
  $region51: #{tpu_custom_call.1} parent=0 // pred_check_branch
    %6701 = sbr.rel (0) target = $region53
  $region52: #{tpu_custom_call.1} parent=0 // pred_region
    _
  $region53: #{tpu_custom_call.1} parent=0 // pred_fallthru
    _

// kernel: tpu_custom_call.1
$region0: #{tpu_custom_call.1}
  #allocation0 [shape = 'u32[]', space=smem, size = 0x4, offset = 0x4, fixed_abs, tag = 'smem constant byte address 0x4 - core index']
  #allocation1 [shape = 'u32[144,128]{1,0:T(1,128)}', space=vmem, size = 0x12000, scoped, tag = 'internal scratch']
  #allocation2 [shape = 'f32[1,1]{1,0:T(1,128)S(1)}', space=vmem, size = 0x200, scoped, tag = 'scoped memory for tpu_custom_call.1']
  %s0 = inlined_call_operand.vmem [shape: bf16[8,16,4], index: 0, kind: input, shape index: {}]
  %s1 = inlined_call_operand.vmem [shape: bf16[20,32], index: 1, kind: input, shape index: {}]
  %s2 = inlined_call_operand.vmem [shape: f32[1,32], index: 2, kind: input, shape index: {}]
  %s3 = inlined_call_operand.vmem [shape: bf16[160,64], index: 3, kind: input, shape index: {}]
  %s4 = inlined_call_operand.vmem [shape: f32[1,64], index: 4, kind: input, shape index: {}]
  %s5 = inlined_call_operand.vmem [shape: bf16[320,128], index: 5, kind: input, shape index: {}]
  %s6 = inlined_call_operand.vmem [shape: f32[1,128], index: 6, kind: input, shape index: {}]
  %s7 = inlined_call_operand.vmem [shape: bf16[128,32], index: 7, kind: input, shape index: {}]
  %s8 = inlined_call_operand.vmem [shape: f32[1,32], index: 8, kind: input, shape index: {}]
  %s9 = inlined_call_operand.vmem [shape: bf16[32,1], index: 9, kind: input, shape index: {}]
  %s10 = inlined_call_operand.<no memory space> [shape: f32[1,1], index: 10, kind: input, shape index: {}]
  %s11 = inlined_call_operand.vmem [shape: f32[8,1], index: 11, kind: output, shape index: {}]
  %s12 = sld [smem:[#allocation0]]
  $region54: #{tpu_custom_call.1} parent=0
    _
  %s14 = ssub.s32 1, %s12
  %s15 = scalar_select 0, %s14, %s12
  %v16 = vstv %s10
  %17 = vst [vmem:[#allocation2] sm:$0x1] %v16
  // Predicated region
  $region2: #{tpu_custom_call.1} parent=0 // pred_check
    _
  $region3: #{tpu_custom_call.1} parent=0 // pred_check_branch
    %19 = sbr.rel (0) target = $region5
  $region4: #{tpu_custom_call.1} parent=0 // pred_region
    _
  $region5: #{tpu_custom_call.1} parent=0 // pred_fallthru
    _
  // Predicated region
  $region6: #{tpu_custom_call.1} parent=0 // pred_check
    _
  $region7: #{tpu_custom_call.1} parent=0 // pred_check_branch
    %21 = sbr.rel (0) target = $region9
  $region8: #{tpu_custom_call.1} parent=0 // pred_region
    _
  $region9: #{tpu_custom_call.1} parent=0 // pred_fallthru
    _
  // Predicated region
  $region10: #{tpu_custom_call.1} parent=0 // pred_check
    _
  $region11: #{tpu_custom_call.1} parent=0 // pred_check_branch
    %23 = sbr.rel (0) target = $region13
  $region12: #{tpu_custom_call.1} parent=0 // pred_region
    _
  $region13: #{tpu_custom_call.1} parent=0 // pred_fallthru
    _
  // Predicated region
  $region14: #{tpu_custom_call.1} parent=0 // pred_check
    _
  $region15: #{tpu_custom_call.1} parent=0 // pred_check_branch
    %25 = sbr.rel (0) target = $region17
  $region16: #{tpu_custom_call.1} parent=0 // pred_region
    _
  $region17: #{tpu_custom_call.1} parent=0 // pred_fallthru
    _
  // Predicated region
  $region18: #{tpu_custom_call.1} parent=0 // pred_check
    _
  $region19: #{tpu_custom_call.1} parent=0 // pred_check_branch
    %27 = sbr.rel (0) target = $region21
  $region20: #{tpu_custom_call.1} parent=0 // pred_region
    _
  $region21: #{tpu_custom_call.1} parent=0 // pred_fallthru
    _
  // Predicated region
  $region22: #{tpu_custom_call.1} parent=0 // pred_check
    _
  $region23: #{tpu_custom_call.1} parent=0 // pred_check_branch
    %29 = sbr.rel (0) target = $region25
  $region24: #{tpu_custom_call.1} parent=0 // pred_region
    _
  $region25: #{tpu_custom_call.1} parent=0 // pred_fallthru
    _
  // Predicated region
  $region26: #{tpu_custom_call.1} parent=0 // pred_check
    _
  $region27: #{tpu_custom_call.1} parent=0 // pred_check_branch
    %31 = sbr.rel (0) target = $region29
  $region28: #{tpu_custom_call.1} parent=0 // pred_region
    _
  $region29: #{tpu_custom_call.1} parent=0 // pred_fallthru
    _
  // Predicated region
  $region30: #{tpu_custom_call.1} parent=0 // pred_check
    _
  $region31: #{tpu_custom_call.1} parent=0 // pred_check_branch
    %33 = sbr.rel (0) target = $region33
  $region32: #{tpu_custom_call.1} parent=0 // pred_region
    _
  $region33: #{tpu_custom_call.1} parent=0 // pred_fallthru
    _
  // Predicated region
  $region34: #{tpu_custom_call.1} parent=0 // pred_check
    _
  $region35: #{tpu_custom_call.1} parent=0 // pred_check_branch
    %35 = sbr.rel (0) target = $region37
  $region36: #{tpu_custom_call.1} parent=0 // pred_region
    _
  $region37: #{tpu_custom_call.1} parent=0 // pred_fallthru
    _
  // Predicated region
  $region38: #{tpu_custom_call.1} parent=0 // pred_check
    _
  $region39: #{tpu_custom_call.1} parent=0 // pred_check_branch
    %37 = sbr.rel (0) target = $region41
  $region40: #{tpu_custom_call.1} parent=0 // pred_region
    _
  $region41: #{tpu_custom_call.1} parent=0 // pred_fallthru
    _
  // Predicated region
  $region42: #{tpu_custom_call.1} parent=0 // pred_check
    _
  $region43: #{tpu_custom_call.1} parent=0 // pred_check_branch
    %39 = sbr.rel (0) target = $region45
  $region44: #{tpu_custom_call.1} parent=0 // pred_region
    _
  $region45: #{tpu_custom_call.1} parent=0 // pred_fallthru
    _
  %v41 = vld [vmem:[%s0] sm:$0xf]
  %v42 = vld [vmem:[%s0 + $0x4] sm:$0xf]
  %v43 = vld [vmem:[%s0 + $0x8] sm:$0xf]
  %v44 = vld [vmem:[%s0 + $0xc] sm:$0xf]
  %v45 = vld [vmem:[%s0 + $0x10] sm:$0xf]
  %v46 = vld [vmem:[%s0 + $0x14] sm:$0xf]
  %v47 = vld [vmem:[%s0 + $0x18] sm:$0xf]
  %v48 = vld [vmem:[%s0 + $0x1c] sm:$0xf]
  %v49 = vld [vmem:[%s0 + $0x20] sm:$0xf]
  %v50 = vld [vmem:[%s0 + $0x24] sm:$0xf]
  %v51 = vld [vmem:[%s0 + $0x28] sm:$0xf]
  %v52 = vld [vmem:[%s0 + $0x2c] sm:$0xf]
  %v53 = vld [vmem:[%s0 + $0x30] sm:$0xf]
  %v54 = vld [vmem:[%s0 + $0x34] sm:$0xf]
  %v55 = vld [vmem:[%s0 + $0x38] sm:$0xf]
  %v56 = vld [vmem:[%s0 + $0x3c] sm:$0xf]
  %v73 = vunpack.c.l.b16 %v41
  %v74 = vunpack.c.l.b16 %v42
  %v75 = vunpack.c.l.b16 %v43
  %v76 = vunpack.c.l.b16 %v44
  %v77 = vunpack.c.l.b16 %v45
  %v78 = vunpack.c.l.b16 %v46
  %v79 = vunpack.c.l.b16 %v47
  %v80 = vunpack.c.l.b16 %v48
  %v81 = vunpack.c.l.b16 %v49
  %v82 = vunpack.c.l.b16 %v50
  %v83 = vunpack.c.l.b16 %v51
  %v84 = vunpack.c.l.b16 %v52
  %v85 = vunpack.c.l.b16 %v53
  %v86 = vunpack.c.l.b16 %v54
  %v87 = vunpack.c.l.b16 %v55
  %v88 = vunpack.c.l.b16 %v56
  %v89 = vpack.c.b16 %v74, %v73
  %v90 = vpack.c.b16 %v76, %v75
  %v91 = vpack.c.b16 %v78, %v77
  %v92 = vpack.c.b16 %v80, %v79
  %v93 = vpack.c.b16 %v82, %v81
  %v94 = vpack.c.b16 %v84, %v83
  %v95 = vpack.c.b16 %v86, %v85
  %v96 = vpack.c.b16 %v88, %v87
  %v97 = vrot.slane %v89, 7
  %v98 = vrot.slane %v90, 7
  %v99 = vrot.slane %v91, 7
  %v100 = vrot.slane %v92, 7
  %v101 = vrot.slane %v93, 7
  %v102 = vrot.slane %v94, 7
  %v103 = vrot.slane %v95, 7
  %v104 = vrot.slane %v96, 7
  %vm105 = vcmask 1040384
  %v108 = vsel %vm105, 0, %v97
  %v110 = vsel %vm105, 0, %v98
  %v112 = vsel %vm105, 0, %v99
  %v114 = vsel %vm105, 0, %v100
  %v116 = vsel %vm105, 0, %v101
  %v118 = vsel %vm105, 0, %v102
  %v120 = vsel %vm105, 0, %v103
  %v122 = vsel %vm105, 0, %v104
  %v123 = vsel %vm105, %v97, 0
  %v124 = vsel %vm105, %v98, 0
  %v125 = vsel %vm105, %v99, 0
  %v126 = vsel %vm105, %v100, 0
  %v127 = vsel %vm105, %v101, 0
  %v128 = vsel %vm105, %v102, 0
  %v129 = vsel %vm105, %v103, 0
  %v130 = vsel %vm105, %v104, 0
  %v147 = vcombine.high %v108, %v108
  %v149 = vunpack.c.l.s4 1966171168
  %v150 = vunpack.c.0.s8 %v149
  %v151 = vlaneseq
  %v152 = vshrl.u32 %v151, 7
  %v153 = vsub.s32 %v150, %v152
  %v154 = vrot.slane %v108, %v153
  %v156 = vunpack.c.l.s4 1966171168
  %v157 = vunpack.c.0.s8 %v156
  %v158 = vlaneseq
  %v159 = vshrl.u32 %v158, 7
  %v160 = vsub.s32 %v157, %v159
  %v161 = vrot.slane %v147, %v160
  %v162 = vcombine.high %v154, %v154
  %v163 = vcombine.high %v161, %v161
  %v165 = vunpack.c.l.s4 1966171168
  %v166 = vunpack.c.0.s8 %v165
  %v167 = vlaneseq
  %v168 = vshrl.u32 %v167, 7
  %v169 = vsub.s32 %v166, %v168
  %v170 = vrot.slane %v154, %v169
  %v172 = vunpack.c.l.s4 1966171168
  %v173 = vunpack.c.0.s8 %v172
  %v174 = vlaneseq
  %v175 = vshrl.u32 %v174, 7
  %v176 = vsub.s32 %v173, %v175
  %v177 = vrot.slane %v161, %v176
  %v179 = vunpack.c.l.s4 1966171168
  %v180 = vunpack.c.0.s8 %v179
  %v181 = vlaneseq
  %v182 = vshrl.u32 %v181, 7
  %v183 = vsub.s32 %v180, %v182
  %v184 = vrot.slane %v162, %v183
  %v186 = vunpack.c.l.s4 1966171168
  %v187 = vunpack.c.0.s8 %v186
  %v188 = vlaneseq
  %v189 = vshrl.u32 %v188, 7
  %v190 = vsub.s32 %v187, %v189
  %v191 = vrot.slane %v163, %v190
  %v192 = vcombine.high %v170, %v170
  %v193 = vcombine.high %v177, %v177
  %v194 = vcombine.high %v184, %v184
  %v195 = vcombine.high %v191, %v191
  %v197 = vunpack.c.l.s4 1966171168
  %v198 = vunpack.c.0.s8 %v197
  %v199 = vlaneseq
  %v200 = vshrl.u32 %v199, 7
  %v201 = vsub.s32 %v198, %v200
  %v202 = vrot.slane %v123, %v201
  %v203 = vcombine.high %v202, %v202
  %v205 = vunpack.c.l.s4 1966171168
  %v206 = vunpack.c.0.s8 %v205
  %v207 = vlaneseq
  %v208 = vshrl.u32 %v207, 7
  %v209 = vsub.s32 %v206, %v208
  %v210 = vrot.slane %v202, %v209
  %v212 = vunpack.c.l.s4 1966171168
  %v213 = vunpack.c.0.s8 %v212
  %v214 = vlaneseq
  %v215 = vshrl.u32 %v214, 7
  %v216 = vsub.s32 %v213, %v215
  %v217 = vrot.slane %v203, %v216
  %v218 = vcombine.high %v110, %v110
  %v220 = vunpack.c.l.s4 1966171168
  %v221 = vunpack.c.0.s8 %v220
  %v222 = vlaneseq
  %v223 = vshrl.u32 %v222, 7
  %v224 = vsub.s32 %v221, %v223
  %v225 = vrot.slane %v110, %v224
  %v227 = vunpack.c.l.s4 1966171168
  %v228 = vunpack.c.0.s8 %v227
  %v229 = vlaneseq
  %v230 = vshrl.u32 %v229, 7
  %v231 = vsub.s32 %v228, %v230
  %v232 = vrot.slane %v218, %v231
  %v233 = vcombine.high %v225, %v225
  %v234 = vcombine.high %v232, %v232
  %v236 = vunpack.c.l.s4 1966171168
  %v237 = vunpack.c.0.s8 %v236
  %v238 = vlaneseq
  %v239 = vshrl.u32 %v238, 7
  %v240 = vsub.s32 %v237, %v239
  %v241 = vrot.slane %v225, %v240
  %v243 = vunpack.c.l.s4 1966171168
  %v244 = vunpack.c.0.s8 %v243
  %v245 = vlaneseq
  %v246 = vshrl.u32 %v245, 7
  %v247 = vsub.s32 %v244, %v246
  %v248 = vrot.slane %v232, %v247
  %v250 = vunpack.c.l.s4 1966171168
  %v251 = vunpack.c.0.s8 %v250
  %v252 = vlaneseq
  %v253 = vshrl.u32 %v252, 7
  %v254 = vsub.s32 %v251, %v253
  %v255 = vrot.slane %v233, %v254
  %v257 = vunpack.c.l.s4 1966171168
  %v258 = vunpack.c.0.s8 %v257
  %v259 = vlaneseq
  %v260 = vshrl.u32 %v259, 7
  %v261 = vsub.s32 %v258, %v260
  %v262 = vrot.slane %v234, %v261
  %v263 = vcombine.high %v241, %v241
  %v264 = vcombine.high %v248, %v248
  %v265 = vcombine.high %v255, %v255
  %v266 = vcombine.high %v262, %v262
  %v268 = vunpack.c.l.s4 1966171168
  %v269 = vunpack.c.0.s8 %v268
  %v270 = vlaneseq
  %v271 = vshrl.u32 %v270, 7
  %v272 = vsub.s32 %v269, %v271
  %v273 = vrot.slane %v124, %v272
  %v274 = vcombine.high %v273, %v273
  %v276 = vunpack.c.l.s4 1966171168
  %v277 = vunpack.c.0.s8 %v276
  %v278 = vlaneseq
  %v279 = vshrl.u32 %v278, 7
  %v280 = vsub.s32 %v277, %v279
  %v281 = vrot.slane %v273, %v280
  %v283 = vunpack.c.l.s4 1966171168
  %v284 = vunpack.c.0.s8 %v283
  %v285 = vlaneseq
  %v286 = vshrl.u32 %v285, 7
  %v287 = vsub.s32 %v284, %v286
  %v288 = vrot.slane %v274, %v287
  %v289 = vcombine.high %v112, %v112
  %v291 = vunpack.c.l.s4 1966171168
  %v292 = vunpack.c.0.s8 %v291
  %v293 = vlaneseq
  %v294 = vshrl.u32 %v293, 7
  %v295 = vsub.s32 %v292, %v294
  %v296 = vrot.slane %v112, %v295
  %v298 = vunpack.c.l.s4 1966171168
  %v299 = vunpack.c.0.s8 %v298
  %v300 = vlaneseq
  %v301 = vshrl.u32 %v300, 7
  %v302 = vsub.s32 %v299, %v301
  %v303 = vrot.slane %v289, %v302
  %v304 = vcombine.high %v296, %v296
  %v305 = vcombine.high %v303, %v303
  %v307 = vunpack.c.l.s4 1966171168
  %v308 = vunpack.c.0.s8 %v307
  %v309 = vlaneseq
  %v310 = vshrl.u32 %v309, 7
  %v311 = vsub.s32 %v308, %v310
  %v312 = vrot.slane %v296, %v311
  %v314 = vunpack.c.l.s4 1966171168
  %v315 = vunpack.c.0.s8 %v314
  %v316 = vlaneseq
  %v317 = vshrl.u32 %v316, 7
  %v318 = vsub.s32 %v315, %v317
  %v319 = vrot.slane %v303, %v318
  %v321 = vunpack.c.l.s4 1966171168
  %v322 = vunpack.c.0.s8 %v321
  %v323 = vlaneseq
  %v324 = vshrl.u32 %v323, 7
  %v325 = vsub.s32 %v322, %v324
  %v326 = vrot.slane %v304, %v325
  %v328 = vunpack.c.l.s4 1966171168
  %v329 = vunpack.c.0.s8 %v328
  %v330 = vlaneseq
  %v331 = vshrl.u32 %v330, 7
  %v332 = vsub.s32 %v329, %v331
  %v333 = vrot.slane %v305, %v332
  %v334 = vcombine.high %v312, %v312
  %v335 = vcombine.high %v319, %v319
  %v336 = vcombine.high %v326, %v326
  %v337 = vcombine.high %v333, %v333
  %v339 = vunpack.c.l.s4 1966171168
  %v340 = vunpack.c.0.s8 %v339
  %v341 = vlaneseq
  %v342 = vshrl.u32 %v341, 7
  %v343 = vsub.s32 %v340, %v342
  %v344 = vrot.slane %v125, %v343
  %v345 = vcombine.high %v344, %v344
  %v347 = vunpack.c.l.s4 1966171168
  %v348 = vunpack.c.0.s8 %v347
  %v349 = vlaneseq
  %v350 = vshrl.u32 %v349, 7
  %v351 = vsub.s32 %v348, %v350
  %v352 = vrot.slane %v344, %v351
  %v354 = vunpack.c.l.s4 1966171168
  %v355 = vunpack.c.0.s8 %v354
  %v356 = vlaneseq
  %v357 = vshrl.u32 %v356, 7
  %v358 = vsub.s32 %v355, %v357
  %v359 = vrot.slane %v345, %v358
  %v360 = vcombine.high %v114, %v114
  %v362 = vunpack.c.l.s4 1966171168
  %v363 = vunpack.c.0.s8 %v362
  %v364 = vlaneseq
  %v365 = vshrl.u32 %v364, 7
  %v366 = vsub.s32 %v363, %v365
  %v367 = vrot.slane %v114, %v366
  %v369 = vunpack.c.l.s4 1966171168
  %v370 = vunpack.c.0.s8 %v369
  %v371 = vlaneseq
  %v372 = vshrl.u32 %v371, 7
  %v373 = vsub.s32 %v370, %v372
  %v374 = vrot.slane %v360, %v373
  %v375 = vcombine.high %v367, %v367
  %v376 = vcombine.high %v374, %v374
  %v378 = vunpack.c.l.s4 1966171168
  %v379 = vunpack.c.0.s8 %v378
  %v380 = vlaneseq
  %v381 = vshrl.u32 %v380, 7
  %v382 = vsub.s32 %v379, %v381
  %v383 = vrot.slane %v367, %v382
  %v385 = vunpack.c.l.s4 1966171168
  %v386 = vunpack.c.0.s8 %v385
  %v387 = vlaneseq
  %v388 = vshrl.u32 %v387, 7
  %v389 = vsub.s32 %v386, %v388
  %v390 = vrot.slane %v374, %v389
  %v392 = vunpack.c.l.s4 1966171168
  %v393 = vunpack.c.0.s8 %v392
  %v394 = vlaneseq
  %v395 = vshrl.u32 %v394, 7
  %v396 = vsub.s32 %v393, %v395
  %v397 = vrot.slane %v375, %v396
  %v399 = vunpack.c.l.s4 1966171168
  %v400 = vunpack.c.0.s8 %v399
  %v401 = vlaneseq
  %v402 = vshrl.u32 %v401, 7
  %v403 = vsub.s32 %v400, %v402
  %v404 = vrot.slane %v376, %v403
  %v405 = vcombine.high %v383, %v383
  %v406 = vcombine.high %v390, %v390
  %v407 = vcombine.high %v397, %v397
  %v408 = vcombine.high %v404, %v404
  %v410 = vunpack.c.l.s4 1966171168
  %v411 = vunpack.c.0.s8 %v410
  %v412 = vlaneseq
  %v413 = vshrl.u32 %v412, 7
  %v414 = vsub.s32 %v411, %v413
  %v415 = vrot.slane %v126, %v414
  %v416 = vcombine.high %v415, %v415
  %v418 = vunpack.c.l.s4 1966171168
  %v419 = vunpack.c.0.s8 %v418
  %v420 = vlaneseq
  %v421 = vshrl.u32 %v420, 7
  %v422 = vsub.s32 %v419, %v421
  %v423 = vrot.slane %v415, %v422
  %v425 = vunpack.c.l.s4 1966171168
  %v426 = vunpack.c.0.s8 %v425
  %v427 = vlaneseq
  %v428 = vshrl.u32 %v427, 7
  %v429 = vsub.s32 %v426, %v428
  %v430 = vrot.slane %v416, %v429
  %v431 = vcombine.high %v116, %v116
  %v433 = vunpack.c.l.s4 1966171168
  %v434 = vunpack.c.0.s8 %v433
  %v435 = vlaneseq
  %v436 = vshrl.u32 %v435, 7
  %v437 = vsub.s32 %v434, %v436
  %v438 = vrot.slane %v116, %v437
  %v440 = vunpack.c.l.s4 1966171168
  %v441 = vunpack.c.0.s8 %v440
  %v442 = vlaneseq
  %v443 = vshrl.u32 %v442, 7
  %v444 = vsub.s32 %v441, %v443
  %v445 = vrot.slane %v431, %v444
  %v446 = vcombine.high %v438, %v438
  %v447 = vcombine.high %v445, %v445
  %v449 = vunpack.c.l.s4 1966171168
  %v450 = vunpack.c.0.s8 %v449
  %v451 = vlaneseq
  %v452 = vshrl.u32 %v451, 7
  %v453 = vsub.s32 %v450, %v452
  %v454 = vrot.slane %v438, %v453
  %v456 = vunpack.c.l.s4 1966171168
  %v457 = vunpack.c.0.s8 %v456
  %v458 = vlaneseq
  %v459 = vshrl.u32 %v458, 7
  %v460 = vsub.s32 %v457, %v459
  %v461 = vrot.slane %v445, %v460
  %v463 = vunpack.c.l.s4 1966171168
  %v464 = vunpack.c.0.s8 %v463
  %v465 = vlaneseq
  %v466 = vshrl.u32 %v465, 7
  %v467 = vsub.s32 %v464, %v466
  %v468 = vrot.slane %v446, %v467
  %v470 = vunpack.c.l.s4 1966171168
  %v471 = vunpack.c.0.s8 %v470
  %v472 = vlaneseq
  %v473 = vshrl.u32 %v472, 7
  %v474 = vsub.s32 %v471, %v473
  %v475 = vrot.slane %v447, %v474
  %v476 = vcombine.high %v454, %v454
  %v477 = vcombine.high %v461, %v461
  %v478 = vcombine.high %v468, %v468
  %v479 = vcombine.high %v475, %v475
  %v481 = vunpack.c.l.s4 1966171168
  %v482 = vunpack.c.0.s8 %v481
  %v483 = vlaneseq
  %v484 = vshrl.u32 %v483, 7
  %v485 = vsub.s32 %v482, %v484
  %v486 = vrot.slane %v127, %v485
  %v487 = vcombine.high %v486, %v486
  %v489 = vunpack.c.l.s4 1966171168
  %v490 = vunpack.c.0.s8 %v489
  %v491 = vlaneseq
  %v492 = vshrl.u32 %v491, 7
  %v493 = vsub.s32 %v490, %v492
  %v494 = vrot.slane %v486, %v493
  %v496 = vunpack.c.l.s4 1966171168
  %v497 = vunpack.c.0.s8 %v496
  %v498 = vlaneseq
  %v499 = vshrl.u32 %v498, 7
  %v500 = vsub.s32 %v497, %v499
  %v501 = vrot.slane %v487, %v500
  %v502 = vcombine.high %v118, %v118
  %v504 = vunpack.c.l.s4 1966171168
  %v505 = vunpack.c.0.s8 %v504
  %v506 = vlaneseq
  %v507 = vshrl.u32 %v506, 7
  %v508 = vsub.s32 %v505, %v507
  %v509 = vrot.slane %v118, %v508
  %v511 = vunpack.c.l.s4 1966171168
  %v512 = vunpack.c.0.s8 %v511
  %v513 = vlaneseq
  %v514 = vshrl.u32 %v513, 7
  %v515 = vsub.s32 %v512, %v514
  %v516 = vrot.slane %v502, %v515
  %v517 = vcombine.high %v509, %v509
  %v518 = vcombine.high %v516, %v516
  %v520 = vunpack.c.l.s4 1966171168
  %v521 = vunpack.c.0.s8 %v520
  %v522 = vlaneseq
  %v523 = vshrl.u32 %v522, 7
  %v524 = vsub.s32 %v521, %v523
  %v525 = vrot.slane %v509, %v524
  %v527 = vunpack.c.l.s4 1966171168
  %v528 = vunpack.c.0.s8 %v527
  %v529 = vlaneseq
  %v530 = vshrl.u32 %v529, 7
  %v531 = vsub.s32 %v528, %v530
  %v532 = vrot.slane %v516, %v531
  %v534 = vunpack.c.l.s4 1966171168
  %v535 = vunpack.c.0.s8 %v534
  %v536 = vlaneseq
  %v537 = vshrl.u32 %v536, 7
  %v538 = vsub.s32 %v535, %v537
  %v539 = vrot.slane %v517, %v538
  %v541 = vunpack.c.l.s4 1966171168
  %v542 = vunpack.c.0.s8 %v541
  %v543 = vlaneseq
  %v544 = vshrl.u32 %v543, 7
  %v545 = vsub.s32 %v542, %v544
  %v546 = vrot.slane %v518, %v545
  %v547 = vcombine.high %v525, %v525
  %v548 = vcombine.high %v532, %v532
  %v549 = vcombine.high %v539, %v539
  %v550 = vcombine.high %v546, %v546
  %v552 = vunpack.c.l.s4 1966171168
  %v553 = vunpack.c.0.s8 %v552
  %v554 = vlaneseq
  %v555 = vshrl.u32 %v554, 7
  %v556 = vsub.s32 %v553, %v555
  %v557 = vrot.slane %v128, %v556
  %v558 = vcombine.high %v557, %v557
  %v560 = vunpack.c.l.s4 1966171168
  %v561 = vunpack.c.0.s8 %v560
  %v562 = vlaneseq
  %v563 = vshrl.u32 %v562, 7
  %v564 = vsub.s32 %v561, %v563
  %v565 = vrot.slane %v557, %v564
  %v567 = vunpack.c.l.s4 1966171168
  %v568 = vunpack.c.0.s8 %v567
  %v569 = vlaneseq
  %v570 = vshrl.u32 %v569, 7
  %v571 = vsub.s32 %v568, %v570
  %v572 = vrot.slane %v558, %v571
  %v573 = vcombine.high %v120, %v120
  %v575 = vunpack.c.l.s4 1966171168
  %v576 = vunpack.c.0.s8 %v575
  %v577 = vlaneseq
  %v578 = vshrl.u32 %v577, 7
  %v579 = vsub.s32 %v576, %v578
  %v580 = vrot.slane %v120, %v579
  %v582 = vunpack.c.l.s4 1966171168
  %v583 = vunpack.c.0.s8 %v582
  %v584 = vlaneseq
  %v585 = vshrl.u32 %v584, 7
  %v586 = vsub.s32 %v583, %v585
  %v587 = vrot.slane %v573, %v586
  %v588 = vcombine.high %v580, %v580
  %v589 = vcombine.high %v587, %v587
  %v591 = vunpack.c.l.s4 1966171168
  %v592 = vunpack.c.0.s8 %v591
  %v593 = vlaneseq
  %v594 = vshrl.u32 %v593, 7
  %v595 = vsub.s32 %v592, %v594
  %v596 = vrot.slane %v580, %v595
  %v598 = vunpack.c.l.s4 1966171168
  %v599 = vunpack.c.0.s8 %v598
  %v600 = vlaneseq
  %v601 = vshrl.u32 %v600, 7
  %v602 = vsub.s32 %v599, %v601
  %v603 = vrot.slane %v587, %v602
  %v605 = vunpack.c.l.s4 1966171168
  %v606 = vunpack.c.0.s8 %v605
  %v607 = vlaneseq
  %v608 = vshrl.u32 %v607, 7
  %v609 = vsub.s32 %v606, %v608
  %v610 = vrot.slane %v588, %v609
  %v612 = vunpack.c.l.s4 1966171168
  %v613 = vunpack.c.0.s8 %v612
  %v614 = vlaneseq
  %v615 = vshrl.u32 %v614, 7
  %v616 = vsub.s32 %v613, %v615
  %v617 = vrot.slane %v589, %v616
  %v618 = vcombine.high %v596, %v596
  %v619 = vcombine.high %v603, %v603
  %v620 = vcombine.high %v610, %v610
  %v621 = vcombine.high %v617, %v617
  %v623 = vunpack.c.l.s4 1966171168
  %v624 = vunpack.c.0.s8 %v623
  %v625 = vlaneseq
  %v626 = vshrl.u32 %v625, 7
  %v627 = vsub.s32 %v624, %v626
  %v628 = vrot.slane %v129, %v627
  %v629 = vcombine.high %v628, %v628
  %v631 = vunpack.c.l.s4 1966171168
  %v632 = vunpack.c.0.s8 %v631
  %v633 = vlaneseq
  %v634 = vshrl.u32 %v633, 7
  %v635 = vsub.s32 %v632, %v634
  %v636 = vrot.slane %v628, %v635
  %v638 = vunpack.c.l.s4 1966171168
  %v639 = vunpack.c.0.s8 %v638
  %v640 = vlaneseq
  %v641 = vshrl.u32 %v640, 7
  %v642 = vsub.s32 %v639, %v641
  %v643 = vrot.slane %v629, %v642
  %v644 = vcombine.high %v122, %v122
  %v646 = vunpack.c.l.s4 1966171168
  %v647 = vunpack.c.0.s8 %v646
  %v648 = vlaneseq
  %v649 = vshrl.u32 %v648, 7
  %v650 = vsub.s32 %v647, %v649
  %v651 = vrot.slane %v122, %v650
  %v653 = vunpack.c.l.s4 1966171168
  %v654 = vunpack.c.0.s8 %v653
  %v655 = vlaneseq
  %v656 = vshrl.u32 %v655, 7
  %v657 = vsub.s32 %v654, %v656
  %v658 = vrot.slane %v644, %v657
  %v659 = vcombine.high %v651, %v651
  %v660 = vcombine.high %v658, %v658
  %v662 = vunpack.c.l.s4 1966171168
  %v663 = vunpack.c.0.s8 %v662
  %v664 = vlaneseq
  %v665 = vshrl.u32 %v664, 7
  %v666 = vsub.s32 %v663, %v665
  %v667 = vrot.slane %v651, %v666
  %v669 = vunpack.c.l.s4 1966171168
  %v670 = vunpack.c.0.s8 %v669
  %v671 = vlaneseq
  %v672 = vshrl.u32 %v671, 7
  %v673 = vsub.s32 %v670, %v672
  %v674 = vrot.slane %v658, %v673
  %v676 = vunpack.c.l.s4 1966171168
  %v677 = vunpack.c.0.s8 %v676
  %v678 = vlaneseq
  %v679 = vshrl.u32 %v678, 7
  %v680 = vsub.s32 %v677, %v679
  %v681 = vrot.slane %v659, %v680
  %v683 = vunpack.c.l.s4 1966171168
  %v684 = vunpack.c.0.s8 %v683
  %v685 = vlaneseq
  %v686 = vshrl.u32 %v685, 7
  %v687 = vsub.s32 %v684, %v686
  %v688 = vrot.slane %v660, %v687
  %v689 = vcombine.high %v667, %v667
  %v690 = vcombine.high %v674, %v674
  %v691 = vcombine.high %v681, %v681
  %v692 = vcombine.high %v688, %v688
  %v694 = vunpack.c.l.s4 1966171168
  %v695 = vunpack.c.0.s8 %v694
  %v696 = vlaneseq
  %v697 = vshrl.u32 %v696, 7
  %v698 = vsub.s32 %v695, %v697
  %v699 = vrot.slane %v130, %v698
  %v700 = vcombine.high %v699, %v699
  %v702 = vunpack.c.l.s4 1966171168
  %v703 = vunpack.c.0.s8 %v702
  %v704 = vlaneseq
  %v705 = vshrl.u32 %v704, 7
  %v706 = vsub.s32 %v703, %v705
  %v707 = vrot.slane %v699, %v706
  %v709 = vunpack.c.l.s4 1966171168
  %v710 = vunpack.c.0.s8 %v709
  %v711 = vlaneseq
  %v712 = vshrl.u32 %v711, 7
  %v713 = vsub.s32 %v710, %v712
  %v714 = vrot.slane %v700, %v713
  %v715 = vld [vmem:[%s1] sm:$0x3]
  %v716 = vld [vmem:[%s1] sm:$0xc]
  %v718 = vunpack.c.l.s4 1966171168
  %v719 = vunpack.c.0.s8 %v718
  %v720 = vlaneseq
  %v721 = vshrl.u32 %v720, 7
  %v722 = vsub.s32 %v719, %v721
  %v723 = vrot.slane %v170, %v722
  %v725 = vunpack.c.l.s4 1966171168
  %v726 = vunpack.c.0.s8 %v725
  %v727 = vlaneseq
  %v728 = vshrl.u32 %v727, 7
  %v729 = vsub.s32 %v726, %v728
  %v730 = vrot.slane %v723, %v729
  %v732 = vunpack.c.l.s4 1966171168
  %v733 = vunpack.c.0.s8 %v732
  %v734 = vlaneseq
  %v735 = vshrl.u32 %v734, 7
  %v736 = vsub.s32 %v733, %v735
  %v737 = vrot.slane %v184, %v736
  %v739 = vunpack.c.l.s4 1966171168
  %v740 = vunpack.c.0.s8 %v739
  %v741 = vlaneseq
  %v742 = vshrl.u32 %v741, 7
  %v743 = vsub.s32 %v740, %v742
  %v744 = vrot.slane %v737, %v743
  %v746 = vunpack.c.l.s4 1966171168
  %v747 = vunpack.c.0.s8 %v746
  %v748 = vlaneseq
  %v749 = vshrl.u32 %v748, 7
  %v750 = vsub.s32 %v747, %v749
  %v751 = vrot.slane %v192, %v750
  %v753 = vunpack.c.l.s4 1966171168
  %v754 = vunpack.c.0.s8 %v753
  %v755 = vlaneseq
  %v756 = vshrl.u32 %v755, 7
  %v757 = vsub.s32 %v754, %v756
  %v758 = vrot.slane %v751, %v757
  %v760 = vunpack.c.l.s4 1966171168
  %v761 = vunpack.c.0.s8 %v760
  %v762 = vlaneseq
  %v763 = vshrl.u32 %v762, 7
  %v764 = vsub.s32 %v761, %v763
  %v765 = vrot.slane %v194, %v764
  %v767 = vunpack.c.l.s4 1966171168
  %v768 = vunpack.c.0.s8 %v767
  %v769 = vlaneseq
  %v770 = vshrl.u32 %v769, 7
  %v771 = vsub.s32 %v768, %v770
  %v772 = vrot.slane %v765, %v771
  %v774 = vunpack.c.l.s4 1966171168
  %v775 = vunpack.c.0.s8 %v774
  %v776 = vlaneseq
  %v777 = vshrl.u32 %v776, 7
  %v778 = vsub.s32 %v775, %v777
  %v779 = vrot.slane %v177, %v778
  %v781 = vunpack.c.l.s4 1966171168
  %v782 = vunpack.c.0.s8 %v781
  %v783 = vlaneseq
  %v784 = vshrl.u32 %v783, 7
  %v785 = vsub.s32 %v782, %v784
  %v786 = vrot.slane %v779, %v785
  %v788 = vunpack.c.l.s4 1966171168
  %v789 = vunpack.c.0.s8 %v788
  %v790 = vlaneseq
  %v791 = vshrl.u32 %v790, 7
  %v792 = vsub.s32 %v789, %v791
  %v793 = vrot.slane %v191, %v792
  %v795 = vunpack.c.l.s4 1966171168
  %v796 = vunpack.c.0.s8 %v795
  %v797 = vlaneseq
  %v798 = vshrl.u32 %v797, 7
  %v799 = vsub.s32 %v796, %v798
  %v800 = vrot.slane %v793, %v799
  %v802 = vunpack.c.l.s4 1966171168
  %v803 = vunpack.c.0.s8 %v802
  %v804 = vlaneseq
  %v805 = vshrl.u32 %v804, 7
  %v806 = vsub.s32 %v803, %v805
  %v807 = vrot.slane %v193, %v806
  %v809 = vunpack.c.l.s4 1966171168
  %v810 = vunpack.c.0.s8 %v809
  %v811 = vlaneseq
  %v812 = vshrl.u32 %v811, 7
  %v813 = vsub.s32 %v810, %v812
  %v814 = vrot.slane %v807, %v813
  %v816 = vunpack.c.l.s4 1966171168
  %v817 = vunpack.c.0.s8 %v816
  %v818 = vlaneseq
  %v819 = vshrl.u32 %v818, 7
  %v820 = vsub.s32 %v817, %v819
  %v821 = vrot.slane %v195, %v820
  %v823 = vunpack.c.l.s4 1966171168
  %v824 = vunpack.c.0.s8 %v823
  %v825 = vlaneseq
  %v826 = vshrl.u32 %v825, 7
  %v827 = vsub.s32 %v824, %v826
  %v828 = vrot.slane %v821, %v827
  %v830 = vunpack.c.l.s4 1966171168
  %v831 = vunpack.c.0.s8 %v830
  %v832 = vlaneseq
  %v833 = vshrl.u32 %v832, 7
  %v834 = vsub.s32 %v831, %v833
  %v835 = vrot.slane %v241, %v834
  %v837 = vunpack.c.l.s4 1966171168
  %v838 = vunpack.c.0.s8 %v837
  %v839 = vlaneseq
  %v840 = vshrl.u32 %v839, 7
  %v841 = vsub.s32 %v838, %v840
  %v842 = vrot.slane %v835, %v841
  %v844 = vunpack.c.l.s4 1966171168
  %v845 = vunpack.c.0.s8 %v844
  %v846 = vlaneseq
  %v847 = vshrl.u32 %v846, 7
  %v848 = vsub.s32 %v845, %v847
  %v849 = vrot.slane %v255, %v848
  %v851 = vunpack.c.l.s4 1966171168
  %v852 = vunpack.c.0.s8 %v851
  %v853 = vlaneseq
  %v854 = vshrl.u32 %v853, 7
  %v855 = vsub.s32 %v852, %v854
  %v856 = vrot.slane %v849, %v855
  %v858 = vunpack.c.l.s4 1966171168
  %v859 = vunpack.c.0.s8 %v858
  %v860 = vlaneseq
  %v861 = vshrl.u32 %v860, 7
  %v862 = vsub.s32 %v859, %v861
  %v863 = vrot.slane %v263, %v862
  %v865 = vunpack.c.l.s4 1966171168
  %v866 = vunpack.c.0.s8 %v865
  %v867 = vlaneseq
  %v868 = vshrl.u32 %v867, 7
  %v869 = vsub.s32 %v866, %v868
  %v870 = vrot.slane %v863, %v869
  %v872 = vunpack.c.l.s4 1966171168
  %v873 = vunpack.c.0.s8 %v872
  %v874 = vlaneseq
  %v875 = vshrl.u32 %v874, 7
  %v876 = vsub.s32 %v873, %v875
  %v877 = vrot.slane %v265, %v876
  %v879 = vunpack.c.l.s4 1966171168
  %v880 = vunpack.c.0.s8 %v879
  %v881 = vlaneseq
  %v882 = vshrl.u32 %v881, 7
  %v883 = vsub.s32 %v880, %v882
  %v884 = vrot.slane %v877, %v883
  %v886 = vunpack.c.l.s4 1966171168
  %v887 = vunpack.c.0.s8 %v886
  %v888 = vlaneseq
  %v889 = vshrl.u32 %v888, 7
  %v890 = vsub.s32 %v887, %v889
  %v891 = vrot.slane %v248, %v890
  %v893 = vunpack.c.l.s4 1966171168
  %v894 = vunpack.c.0.s8 %v893
  %v895 = vlaneseq
  %v896 = vshrl.u32 %v895, 7
  %v897 = vsub.s32 %v894, %v896
  %v898 = vrot.slane %v891, %v897
  %v900 = vunpack.c.l.s4 1966171168
  %v901 = vunpack.c.0.s8 %v900
  %v902 = vlaneseq
  %v903 = vshrl.u32 %v902, 7
  %v904 = vsub.s32 %v901, %v903
  %v905 = vrot.slane %v262, %v904
  %v907 = vunpack.c.l.s4 1966171168
  %v908 = vunpack.c.0.s8 %v907
  %v909 = vlaneseq
  %v910 = vshrl.u32 %v909, 7
  %v911 = vsub.s32 %v908, %v910
  %v912 = vrot.slane %v905, %v911
  %v914 = vunpack.c.l.s4 1966171168
  %v915 = vunpack.c.0.s8 %v914
  %v916 = vlaneseq
  %v917 = vshrl.u32 %v916, 7
  %v918 = vsub.s32 %v915, %v917
  %v919 = vrot.slane %v264, %v918
  %v921 = vunpack.c.l.s4 1966171168
  %v922 = vunpack.c.0.s8 %v921
  %v923 = vlaneseq
  %v924 = vshrl.u32 %v923, 7
  %v925 = vsub.s32 %v922, %v924
  %v926 = vrot.slane %v919, %v925
  %v928 = vunpack.c.l.s4 1966171168
  %v929 = vunpack.c.0.s8 %v928
  %v930 = vlaneseq
  %v931 = vshrl.u32 %v930, 7
  %v932 = vsub.s32 %v929, %v931
  %v933 = vrot.slane %v266, %v932
  %v935 = vunpack.c.l.s4 1966171168
  %v936 = vunpack.c.0.s8 %v935
  %v937 = vlaneseq
  %v938 = vshrl.u32 %v937, 7
  %v939 = vsub.s32 %v936, %v938
  %v940 = vrot.slane %v933, %v939
  %v942 = vunpack.c.l.s4 1966171168
  %v943 = vunpack.c.0.s8 %v942
  %v944 = vlaneseq
  %v945 = vshrl.u32 %v944, 7
  %v946 = vsub.s32 %v943, %v945
  %v947 = vrot.slane %v312, %v946
  %v949 = vunpack.c.l.s4 1966171168
  %v950 = vunpack.c.0.s8 %v949
  %v951 = vlaneseq
  %v952 = vshrl.u32 %v951, 7
  %v953 = vsub.s32 %v950, %v952
  %v954 = vrot.slane %v947, %v953
  %v956 = vunpack.c.l.s4 1966171168
  %v957 = vunpack.c.0.s8 %v956
  %v958 = vlaneseq
  %v959 = vshrl.u32 %v958, 7
  %v960 = vsub.s32 %v957, %v959
  %v961 = vrot.slane %v326, %v960
  %v963 = vunpack.c.l.s4 1966171168
  %v964 = vunpack.c.0.s8 %v963
  %v965 = vlaneseq
  %v966 = vshrl.u32 %v965, 7
  %v967 = vsub.s32 %v964, %v966
  %v968 = vrot.slane %v961, %v967
  %v970 = vunpack.c.l.s4 1966171168
  %v971 = vunpack.c.0.s8 %v970
  %v972 = vlaneseq
  %v973 = vshrl.u32 %v972, 7
  %v974 = vsub.s32 %v971, %v973
  %v975 = vrot.slane %v334, %v974
  %v977 = vunpack.c.l.s4 1966171168
  %v978 = vunpack.c.0.s8 %v977
  %v979 = vlaneseq
  %v980 = vshrl.u32 %v979, 7
  %v981 = vsub.s32 %v978, %v980
  %v982 = vrot.slane %v975, %v981
  %v984 = vunpack.c.l.s4 1966171168
  %v985 = vunpack.c.0.s8 %v984
  %v986 = vlaneseq
  %v987 = vshrl.u32 %v986, 7
  %v988 = vsub.s32 %v985, %v987
  %v989 = vrot.slane %v336, %v988
  %v991 = vunpack.c.l.s4 1966171168
  %v992 = vunpack.c.0.s8 %v991
  %v993 = vlaneseq
  %v994 = vshrl.u32 %v993, 7
  %v995 = vsub.s32 %v992, %v994
  %v996 = vrot.slane %v989, %v995
  %v998 = vunpack.c.l.s4 1966171168
  %v999 = vunpack.c.0.s8 %v998
  %v1000 = vlaneseq
  %v1001 = vshrl.u32 %v1000, 7
  %v1002 = vsub.s32 %v999, %v1001
  %v1003 = vrot.slane %v319, %v1002
  %v1005 = vunpack.c.l.s4 1966171168
  %v1006 = vunpack.c.0.s8 %v1005
  %v1007 = vlaneseq
  %v1008 = vshrl.u32 %v1007, 7
  %v1009 = vsub.s32 %v1006, %v1008
  %v1010 = vrot.slane %v1003, %v1009
  %v1012 = vunpack.c.l.s4 1966171168
  %v1013 = vunpack.c.0.s8 %v1012
  %v1014 = vlaneseq
  %v1015 = vshrl.u32 %v1014, 7
  %v1016 = vsub.s32 %v1013, %v1015
  %v1017 = vrot.slane %v333, %v1016
  %v1019 = vunpack.c.l.s4 1966171168
  %v1020 = vunpack.c.0.s8 %v1019
  %v1021 = vlaneseq
  %v1022 = vshrl.u32 %v1021, 7
  %v1023 = vsub.s32 %v1020, %v1022
  %v1024 = vrot.slane %v1017, %v1023
  %v1026 = vunpack.c.l.s4 1966171168
  %v1027 = vunpack.c.0.s8 %v1026
  %v1028 = vlaneseq
  %v1029 = vshrl.u32 %v1028, 7
  %v1030 = vsub.s32 %v1027, %v1029
  %v1031 = vrot.slane %v335, %v1030
  %v1033 = vunpack.c.l.s4 1966171168
  %v1034 = vunpack.c.0.s8 %v1033
  %v1035 = vlaneseq
  %v1036 = vshrl.u32 %v1035, 7
  %v1037 = vsub.s32 %v1034, %v1036
  %v1038 = vrot.slane %v1031, %v1037
  %v1040 = vunpack.c.l.s4 1966171168
  %v1041 = vunpack.c.0.s8 %v1040
  %v1042 = vlaneseq
  %v1043 = vshrl.u32 %v1042, 7
  %v1044 = vsub.s32 %v1041, %v1043
  %v1045 = vrot.slane %v337, %v1044
  %v1047 = vunpack.c.l.s4 1966171168
  %v1048 = vunpack.c.0.s8 %v1047
  %v1049 = vlaneseq
  %v1050 = vshrl.u32 %v1049, 7
  %v1051 = vsub.s32 %v1048, %v1050
  %v1052 = vrot.slane %v1045, %v1051
  %v1054 = vunpack.c.l.s4 1966171168
  %v1055 = vunpack.c.0.s8 %v1054
  %v1056 = vlaneseq
  %v1057 = vshrl.u32 %v1056, 7
  %v1058 = vsub.s32 %v1055, %v1057
  %v1059 = vrot.slane %v383, %v1058
  %v1061 = vunpack.c.l.s4 1966171168
  %v1062 = vunpack.c.0.s8 %v1061
  %v1063 = vlaneseq
  %v1064 = vshrl.u32 %v1063, 7
  %v1065 = vsub.s32 %v1062, %v1064
  %v1066 = vrot.slane %v1059, %v1065
  %v1068 = vunpack.c.l.s4 1966171168
  %v1069 = vunpack.c.0.s8 %v1068
  %v1070 = vlaneseq
  %v1071 = vshrl.u32 %v1070, 7
  %v1072 = vsub.s32 %v1069, %v1071
  %v1073 = vrot.slane %v397, %v1072
  %v1075 = vunpack.c.l.s4 1966171168
  %v1076 = vunpack.c.0.s8 %v1075
  %v1077 = vlaneseq
  %v1078 = vshrl.u32 %v1077, 7
  %v1079 = vsub.s32 %v1076, %v1078
  %v1080 = vrot.slane %v1073, %v1079
  %v1082 = vunpack.c.l.s4 1966171168
  %v1083 = vunpack.c.0.s8 %v1082
  %v1084 = vlaneseq
  %v1085 = vshrl.u32 %v1084, 7
  %v1086 = vsub.s32 %v1083, %v1085
  %v1087 = vrot.slane %v405, %v1086
  %v1089 = vunpack.c.l.s4 1966171168
  %v1090 = vunpack.c.0.s8 %v1089
  %v1091 = vlaneseq
  %v1092 = vshrl.u32 %v1091, 7
  %v1093 = vsub.s32 %v1090, %v1092
  %v1094 = vrot.slane %v1087, %v1093
  %v1096 = vunpack.c.l.s4 1966171168
  %v1097 = vunpack.c.0.s8 %v1096
  %v1098 = vlaneseq
  %v1099 = vshrl.u32 %v1098, 7
  %v1100 = vsub.s32 %v1097, %v1099
  %v1101 = vrot.slane %v407, %v1100
  %v1103 = vunpack.c.l.s4 1966171168
  %v1104 = vunpack.c.0.s8 %v1103
  %v1105 = vlaneseq
  %v1106 = vshrl.u32 %v1105, 7
  %v1107 = vsub.s32 %v1104, %v1106
  %v1108 = vrot.slane %v1101, %v1107
  %v1110 = vunpack.c.l.s4 1966171168
  %v1111 = vunpack.c.0.s8 %v1110
  %v1112 = vlaneseq
  %v1113 = vshrl.u32 %v1112, 7
  %v1114 = vsub.s32 %v1111, %v1113
  %v1115 = vrot.slane %v390, %v1114
  %v1117 = vunpack.c.l.s4 1966171168
  %v1118 = vunpack.c.0.s8 %v1117
  %v1119 = vlaneseq
  %v1120 = vshrl.u32 %v1119, 7
  %v1121 = vsub.s32 %v1118, %v1120
  %v1122 = vrot.slane %v1115, %v1121
  %v1124 = vunpack.c.l.s4 1966171168
  %v1125 = vunpack.c.0.s8 %v1124
  %v1126 = vlaneseq
  %v1127 = vshrl.u32 %v1126, 7
  %v1128 = vsub.s32 %v1125, %v1127
  %v1129 = vrot.slane %v404, %v1128
  %v1131 = vunpack.c.l.s4 1966171168
  %v1132 = vunpack.c.0.s8 %v1131
  %v1133 = vlaneseq
  %v1134 = vshrl.u32 %v1133, 7
  %v1135 = vsub.s32 %v1132, %v1134
  %v1136 = vrot.slane %v1129, %v1135
  %v1138 = vunpack.c.l.s4 1966171168
  %v1139 = vunpack.c.0.s8 %v1138
  %v1140 = vlaneseq
  %v1141 = vshrl.u32 %v1140, 7
  %v1142 = vsub.s32 %v1139, %v1141
  %v1143 = vrot.slane %v406, %v1142
  %v1145 = vunpack.c.l.s4 1966171168
  %v1146 = vunpack.c.0.s8 %v1145
  %v1147 = vlaneseq
  %v1148 = vshrl.u32 %v1147, 7
  %v1149 = vsub.s32 %v1146, %v1148
  %v1150 = vrot.slane %v1143, %v1149
  %v1152 = vunpack.c.l.s4 1966171168
  %v1153 = vunpack.c.0.s8 %v1152
  %v1154 = vlaneseq
  %v1155 = vshrl.u32 %v1154, 7
  %v1156 = vsub.s32 %v1153, %v1155
  %v1157 = vrot.slane %v408, %v1156
  %v1159 = vunpack.c.l.s4 1966171168
  %v1160 = vunpack.c.0.s8 %v1159
  %v1161 = vlaneseq
  %v1162 = vshrl.u32 %v1161, 7
  %v1163 = vsub.s32 %v1160, %v1162
  %v1164 = vrot.slane %v1157, %v1163
  %v1166 = vunpack.c.l.s4 1966171168
  %v1167 = vunpack.c.0.s8 %v1166
  %v1168 = vlaneseq
  %v1169 = vshrl.u32 %v1168, 7
  %v1170 = vsub.s32 %v1167, %v1169
  %v1171 = vrot.slane %v454, %v1170
  %v1173 = vunpack.c.l.s4 1966171168
  %v1174 = vunpack.c.0.s8 %v1173
  %v1175 = vlaneseq
  %v1176 = vshrl.u32 %v1175, 7
  %v1177 = vsub.s32 %v1174, %v1176
  %v1178 = vrot.slane %v1171, %v1177
  %v1180 = vunpack.c.l.s4 1966171168
  %v1181 = vunpack.c.0.s8 %v1180
  %v1182 = vlaneseq
  %v1183 = vshrl.u32 %v1182, 7
  %v1184 = vsub.s32 %v1181, %v1183
  %v1185 = vrot.slane %v468, %v1184
  %v1187 = vunpack.c.l.s4 1966171168
  %v1188 = vunpack.c.0.s8 %v1187
  %v1189 = vlaneseq
  %v1190 = vshrl.u32 %v1189, 7
  %v1191 = vsub.s32 %v1188, %v1190
  %v1192 = vrot.slane %v1185, %v1191
  %v1194 = vunpack.c.l.s4 1966171168
  %v1195 = vunpack.c.0.s8 %v1194
  %v1196 = vlaneseq
  %v1197 = vshrl.u32 %v1196, 7
  %v1198 = vsub.s32 %v1195, %v1197
  %v1199 = vrot.slane %v476, %v1198
  %v1201 = vunpack.c.l.s4 1966171168
  %v1202 = vunpack.c.0.s8 %v1201
  %v1203 = vlaneseq
  %v1204 = vshrl.u32 %v1203, 7
  %v1205 = vsub.s32 %v1202, %v1204
  %v1206 = vrot.slane %v1199, %v1205
  %v1208 = vunpack.c.l.s4 1966171168
  %v1209 = vunpack.c.0.s8 %v1208
  %v1210 = vlaneseq
  %v1211 = vshrl.u32 %v1210, 7
  %v1212 = vsub.s32 %v1209, %v1211
  %v1213 = vrot.slane %v478, %v1212
  %v1215 = vunpack.c.l.s4 1966171168
  %v1216 = vunpack.c.0.s8 %v1215
  %v1217 = vlaneseq
  %v1218 = vshrl.u32 %v1217, 7
  %v1219 = vsub.s32 %v1216, %v1218
  %v1220 = vrot.slane %v1213, %v1219
  %v1222 = vunpack.c.l.s4 1966171168
  %v1223 = vunpack.c.0.s8 %v1222
  %v1224 = vlaneseq
  %v1225 = vshrl.u32 %v1224, 7
  %v1226 = vsub.s32 %v1223, %v1225
  %v1227 = vrot.slane %v461, %v1226
  %v1229 = vunpack.c.l.s4 1966171168
  %v1230 = vunpack.c.0.s8 %v1229
  %v1231 = vlaneseq
  %v1232 = vshrl.u32 %v1231, 7
  %v1233 = vsub.s32 %v1230, %v1232
  %v1234 = vrot.slane %v1227, %v1233
  %v1236 = vunpack.c.l.s4 1966171168
  %v1237 = vunpack.c.0.s8 %v1236
  %v1238 = vlaneseq
  %v1239 = vshrl.u32 %v1238, 7
  %v1240 = vsub.s32 %v1237, %v1239
  %v1241 = vrot.slane %v475, %v1240
  %v1243 = vunpack.c.l.s4 1966171168
  %v1244 = vunpack.c.0.s8 %v1243
  %v1245 = vlaneseq
  %v1246 = vshrl.u32 %v1245, 7
  %v1247 = vsub.s32 %v1244, %v1246
  %v1248 = vrot.slane %v1241, %v1247
  %v1250 = vunpack.c.l.s4 1966171168
  %v1251 = vunpack.c.0.s8 %v1250
  %v1252 = vlaneseq
  %v1253 = vshrl.u32 %v1252, 7
  %v1254 = vsub.s32 %v1251, %v1253
  %v1255 = vrot.slane %v477, %v1254
  %v1257 = vunpack.c.l.s4 1966171168
  %v1258 = vunpack.c.0.s8 %v1257
  %v1259 = vlaneseq
  %v1260 = vshrl.u32 %v1259, 7
  %v1261 = vsub.s32 %v1258, %v1260
  %v1262 = vrot.slane %v1255, %v1261
  %v1264 = vunpack.c.l.s4 1966171168
  %v1265 = vunpack.c.0.s8 %v1264
  %v1266 = vlaneseq
  %v1267 = vshrl.u32 %v1266, 7
  %v1268 = vsub.s32 %v1265, %v1267
  %v1269 = vrot.slane %v479, %v1268
  %v1271 = vunpack.c.l.s4 1966171168
  %v1272 = vunpack.c.0.s8 %v1271
  %v1273 = vlaneseq
  %v1274 = vshrl.u32 %v1273, 7
  %v1275 = vsub.s32 %v1272, %v1274
  %v1276 = vrot.slane %v1269, %v1275
  %v1278 = vunpack.c.l.s4 1966171168
  %v1279 = vunpack.c.0.s8 %v1278
  %v1280 = vlaneseq
  %v1281 = vshrl.u32 %v1280, 7
  %v1282 = vsub.s32 %v1279, %v1281
  %v1283 = vrot.slane %v525, %v1282
  %v1285 = vunpack.c.l.s4 1966171168
  %v1286 = vunpack.c.0.s8 %v1285
  %v1287 = vlaneseq
  %v1288 = vshrl.u32 %v1287, 7
  %v1289 = vsub.s32 %v1286, %v1288
  %v1290 = vrot.slane %v1283, %v1289
  %v1292 = vunpack.c.l.s4 1966171168
  %v1293 = vunpack.c.0.s8 %v1292
  %v1294 = vlaneseq
  %v1295 = vshrl.u32 %v1294, 7
  %v1296 = vsub.s32 %v1293, %v1295
  %v1297 = vrot.slane %v539, %v1296
  %v1299 = vunpack.c.l.s4 1966171168
  %v1300 = vunpack.c.0.s8 %v1299
  %v1301 = vlaneseq
  %v1302 = vshrl.u32 %v1301, 7
  %v1303 = vsub.s32 %v1300, %v1302
  %v1304 = vrot.slane %v1297, %v1303
  %v1306 = vunpack.c.l.s4 1966171168
  %v1307 = vunpack.c.0.s8 %v1306
  %v1308 = vlaneseq
  %v1309 = vshrl.u32 %v1308, 7
  %v1310 = vsub.s32 %v1307, %v1309
  %v1311 = vrot.slane %v547, %v1310
  %v1313 = vunpack.c.l.s4 1966171168
  %v1314 = vunpack.c.0.s8 %v1313
  %v1315 = vlaneseq
  %v1316 = vshrl.u32 %v1315, 7
  %v1317 = vsub.s32 %v1314, %v1316
  %v1318 = vrot.slane %v1311, %v1317
  %v1320 = vunpack.c.l.s4 1966171168
  %v1321 = vunpack.c.0.s8 %v1320
  %v1322 = vlaneseq
  %v1323 = vshrl.u32 %v1322, 7
  %v1324 = vsub.s32 %v1321, %v1323
  %v1325 = vrot.slane %v549, %v1324
  %v1327 = vunpack.c.l.s4 1966171168
  %v1328 = vunpack.c.0.s8 %v1327
  %v1329 = vlaneseq
  %v1330 = vshrl.u32 %v1329, 7
  %v1331 = vsub.s32 %v1328, %v1330
  %v1332 = vrot.slane %v1325, %v1331
  %v1334 = vunpack.c.l.s4 1966171168
  %v1335 = vunpack.c.0.s8 %v1334
  %v1336 = vlaneseq
  %v1337 = vshrl.u32 %v1336, 7
  %v1338 = vsub.s32 %v1335, %v1337
  %v1339 = vrot.slane %v532, %v1338
  %v1341 = vunpack.c.l.s4 1966171168
  %v1342 = vunpack.c.0.s8 %v1341
  %v1343 = vlaneseq
  %v1344 = vshrl.u32 %v1343, 7
  %v1345 = vsub.s32 %v1342, %v1344
  %v1346 = vrot.slane %v1339, %v1345
  %v1348 = vunpack.c.l.s4 1966171168
  %v1349 = vunpack.c.0.s8 %v1348
  %v1350 = vlaneseq
  %v1351 = vshrl.u32 %v1350, 7
  %v1352 = vsub.s32 %v1349, %v1351
  %v1353 = vrot.slane %v546, %v1352
  %v1355 = vunpack.c.l.s4 1966171168
  %v1356 = vunpack.c.0.s8 %v1355
  %v1357 = vlaneseq
  %v1358 = vshrl.u32 %v1357, 7
  %v1359 = vsub.s32 %v1356, %v1358
  %v1360 = vrot.slane %v1353, %v1359
  %v1362 = vunpack.c.l.s4 1966171168
  %v1363 = vunpack.c.0.s8 %v1362
  %v1364 = vlaneseq
  %v1365 = vshrl.u32 %v1364, 7
  %v1366 = vsub.s32 %v1363, %v1365
  %v1367 = vrot.slane %v548, %v1366
  %v1369 = vunpack.c.l.s4 1966171168
  %v1370 = vunpack.c.0.s8 %v1369
  %v1371 = vlaneseq
  %v1372 = vshrl.u32 %v1371, 7
  %v1373 = vsub.s32 %v1370, %v1372
  %v1374 = vrot.slane %v1367, %v1373
  %v1376 = vunpack.c.l.s4 1966171168
  %v1377 = vunpack.c.0.s8 %v1376
  %v1378 = vlaneseq
  %v1379 = vshrl.u32 %v1378, 7
  %v1380 = vsub.s32 %v1377, %v1379
  %v1381 = vrot.slane %v550, %v1380
  %v1383 = vunpack.c.l.s4 1966171168
  %v1384 = vunpack.c.0.s8 %v1383
  %v1385 = vlaneseq
  %v1386 = vshrl.u32 %v1385, 7
  %v1387 = vsub.s32 %v1384, %v1386
  %v1388 = vrot.slane %v1381, %v1387
  %v1390 = vunpack.c.l.s4 1966171168
  %v1391 = vunpack.c.0.s8 %v1390
  %v1392 = vlaneseq
  %v1393 = vshrl.u32 %v1392, 7
  %v1394 = vsub.s32 %v1391, %v1393
  %v1395 = vrot.slane %v596, %v1394
  %v1397 = vunpack.c.l.s4 1966171168
  %v1398 = vunpack.c.0.s8 %v1397
  %v1399 = vlaneseq
  %v1400 = vshrl.u32 %v1399, 7
  %v1401 = vsub.s32 %v1398, %v1400
  %v1402 = vrot.slane %v1395, %v1401
  %v1404 = vunpack.c.l.s4 1966171168
  %v1405 = vunpack.c.0.s8 %v1404
  %v1406 = vlaneseq
  %v1407 = vshrl.u32 %v1406, 7
  %v1408 = vsub.s32 %v1405, %v1407
  %v1409 = vrot.slane %v610, %v1408
  %v1411 = vunpack.c.l.s4 1966171168
  %v1412 = vunpack.c.0.s8 %v1411
  %v1413 = vlaneseq
  %v1414 = vshrl.u32 %v1413, 7
  %v1415 = vsub.s32 %v1412, %v1414
  %v1416 = vrot.slane %v1409, %v1415
  %v1418 = vunpack.c.l.s4 1966171168
  %v1419 = vunpack.c.0.s8 %v1418
  %v1420 = vlaneseq
  %v1421 = vshrl.u32 %v1420, 7
  %v1422 = vsub.s32 %v1419, %v1421
  %v1423 = vrot.slane %v618, %v1422
  %v1425 = vunpack.c.l.s4 1966171168
  %v1426 = vunpack.c.0.s8 %v1425
  %v1427 = vlaneseq
  %v1428 = vshrl.u32 %v1427, 7
  %v1429 = vsub.s32 %v1426, %v1428
  %v1430 = vrot.slane %v1423, %v1429
  %v1432 = vunpack.c.l.s4 1966171168
  %v1433 = vunpack.c.0.s8 %v1432
  %v1434 = vlaneseq
  %v1435 = vshrl.u32 %v1434, 7
  %v1436 = vsub.s32 %v1433, %v1435
  %v1437 = vrot.slane %v620, %v1436
  %v1439 = vunpack.c.l.s4 1966171168
  %v1440 = vunpack.c.0.s8 %v1439
  %v1441 = vlaneseq
  %v1442 = vshrl.u32 %v1441, 7
  %v1443 = vsub.s32 %v1440, %v1442
  %v1444 = vrot.slane %v1437, %v1443
  %v1446 = vunpack.c.l.s4 1966171168
  %v1447 = vunpack.c.0.s8 %v1446
  %v1448 = vlaneseq
  %v1449 = vshrl.u32 %v1448, 7
  %v1450 = vsub.s32 %v1447, %v1449
  %v1451 = vrot.slane %v603, %v1450
  %v1453 = vunpack.c.l.s4 1966171168
  %v1454 = vunpack.c.0.s8 %v1453
  %v1455 = vlaneseq
  %v1456 = vshrl.u32 %v1455, 7
  %v1457 = vsub.s32 %v1454, %v1456
  %v1458 = vrot.slane %v1451, %v1457
  %v1460 = vunpack.c.l.s4 1966171168
  %v1461 = vunpack.c.0.s8 %v1460
  %v1462 = vlaneseq
  %v1463 = vshrl.u32 %v1462, 7
  %v1464 = vsub.s32 %v1461, %v1463
  %v1465 = vrot.slane %v617, %v1464
  %v1467 = vunpack.c.l.s4 1966171168
  %v1468 = vunpack.c.0.s8 %v1467
  %v1469 = vlaneseq
  %v1470 = vshrl.u32 %v1469, 7
  %v1471 = vsub.s32 %v1468, %v1470
  %v1472 = vrot.slane %v1465, %v1471
  %v1474 = vunpack.c.l.s4 1966171168
  %v1475 = vunpack.c.0.s8 %v1474
  %v1476 = vlaneseq
  %v1477 = vshrl.u32 %v1476, 7
  %v1478 = vsub.s32 %v1475, %v1477
  %v1479 = vrot.slane %v619, %v1478
  %v1481 = vunpack.c.l.s4 1966171168
  %v1482 = vunpack.c.0.s8 %v1481
  %v1483 = vlaneseq
  %v1484 = vshrl.u32 %v1483, 7
  %v1485 = vsub.s32 %v1482, %v1484
  %v1486 = vrot.slane %v1479, %v1485
  %v1488 = vunpack.c.l.s4 1966171168
  %v1489 = vunpack.c.0.s8 %v1488
  %v1490 = vlaneseq
  %v1491 = vshrl.u32 %v1490, 7
  %v1492 = vsub.s32 %v1489, %v1491
  %v1493 = vrot.slane %v621, %v1492
  %v1495 = vunpack.c.l.s4 1966171168
  %v1496 = vunpack.c.0.s8 %v1495
  %v1497 = vlaneseq
  %v1498 = vshrl.u32 %v1497, 7
  %v1499 = vsub.s32 %v1496, %v1498
  %v1500 = vrot.slane %v1493, %v1499
  %v1502 = vunpack.c.l.s4 1966171168
  %v1503 = vunpack.c.0.s8 %v1502
  %v1504 = vlaneseq
  %v1505 = vshrl.u32 %v1504, 7
  %v1506 = vsub.s32 %v1503, %v1505
  %v1507 = vrot.slane %v667, %v1506
  %v1509 = vunpack.c.l.s4 1966171168
  %v1510 = vunpack.c.0.s8 %v1509
  %v1511 = vlaneseq
  %v1512 = vshrl.u32 %v1511, 7
  %v1513 = vsub.s32 %v1510, %v1512
  %v1514 = vrot.slane %v1507, %v1513
  %v1516 = vunpack.c.l.s4 1966171168
  %v1517 = vunpack.c.0.s8 %v1516
  %v1518 = vlaneseq
  %v1519 = vshrl.u32 %v1518, 7
  %v1520 = vsub.s32 %v1517, %v1519
  %v1521 = vrot.slane %v681, %v1520
  %v1523 = vunpack.c.l.s4 1966171168
  %v1524 = vunpack.c.0.s8 %v1523
  %v1525 = vlaneseq
  %v1526 = vshrl.u32 %v1525, 7
  %v1527 = vsub.s32 %v1524, %v1526
  %v1528 = vrot.slane %v1521, %v1527
  %v1530 = vunpack.c.l.s4 1966171168
  %v1531 = vunpack.c.0.s8 %v1530
  %v1532 = vlaneseq
  %v1533 = vshrl.u32 %v1532, 7
  %v1534 = vsub.s32 %v1531, %v1533
  %v1535 = vrot.slane %v689, %v1534
  %v1537 = vunpack.c.l.s4 1966171168
  %v1538 = vunpack.c.0.s8 %v1537
  %v1539 = vlaneseq
  %v1540 = vshrl.u32 %v1539, 7
  %v1541 = vsub.s32 %v1538, %v1540
  %v1542 = vrot.slane %v1535, %v1541
  %v1544 = vunpack.c.l.s4 1966171168
  %v1545 = vunpack.c.0.s8 %v1544
  %v1546 = vlaneseq
  %v1547 = vshrl.u32 %v1546, 7
  %v1548 = vsub.s32 %v1545, %v1547
  %v1549 = vrot.slane %v691, %v1548
  %v1551 = vunpack.c.l.s4 1966171168
  %v1552 = vunpack.c.0.s8 %v1551
  %v1553 = vlaneseq
  %v1554 = vshrl.u32 %v1553, 7
  %v1555 = vsub.s32 %v1552, %v1554
  %v1556 = vrot.slane %v1549, %v1555
  %v1558 = vunpack.c.l.s4 1966171168
  %v1559 = vunpack.c.0.s8 %v1558
  %v1560 = vlaneseq
  %v1561 = vshrl.u32 %v1560, 7
  %v1562 = vsub.s32 %v1559, %v1561
  %v1563 = vrot.slane %v674, %v1562
  %v1565 = vunpack.c.l.s4 1966171168
  %v1566 = vunpack.c.0.s8 %v1565
  %v1567 = vlaneseq
  %v1568 = vshrl.u32 %v1567, 7
  %v1569 = vsub.s32 %v1566, %v1568
  %v1570 = vrot.slane %v1563, %v1569
  %v1572 = vunpack.c.l.s4 1966171168
  %v1573 = vunpack.c.0.s8 %v1572
  %v1574 = vlaneseq
  %v1575 = vshrl.u32 %v1574, 7
  %v1576 = vsub.s32 %v1573, %v1575
  %v1577 = vrot.slane %v688, %v1576
  %v1579 = vunpack.c.l.s4 1966171168
  %v1580 = vunpack.c.0.s8 %v1579
  %v1581 = vlaneseq
  %v1582 = vshrl.u32 %v1581, 7
  %v1583 = vsub.s32 %v1580, %v1582
  %v1584 = vrot.slane %v1577, %v1583
  %v1586 = vunpack.c.l.s4 1966171168
  %v1587 = vunpack.c.0.s8 %v1586
  %v1588 = vlaneseq
  %v1589 = vshrl.u32 %v1588, 7
  %v1590 = vsub.s32 %v1587, %v1589
  %v1591 = vrot.slane %v690, %v1590
  %v1593 = vunpack.c.l.s4 1966171168
  %v1594 = vunpack.c.0.s8 %v1593
  %v1595 = vlaneseq
  %v1596 = vshrl.u32 %v1595, 7
  %v1597 = vsub.s32 %v1594, %v1596
  %v1598 = vrot.slane %v1591, %v1597
  %v1600 = vunpack.c.l.s4 1966171168
  %v1601 = vunpack.c.0.s8 %v1600
  %v1602 = vlaneseq
  %v1603 = vshrl.u32 %v1602, 7
  %v1604 = vsub.s32 %v1601, %v1603
  %v1605 = vrot.slane %v692, %v1604
  %v1607 = vunpack.c.l.s4 1966171168
  %v1608 = vunpack.c.0.s8 %v1607
  %v1609 = vlaneseq
  %v1610 = vshrl.u32 %v1609, 7
  %v1611 = vsub.s32 %v1608, %v1610
  %v1612 = vrot.slane %v1605, %v1611
  %v1613 = vunpack.c.l.b16 %v730
  %v1614 = vunpack.c.l.b16 %v744
  %v1615 = vunpack.c.l.b16 %v758
  %v1616 = vunpack.c.l.b16 %v772
  %v1617 = vunpack.c.l.b16 %v786
  %v1618 = vunpack.c.l.b16 %v800
  %v1619 = vunpack.c.l.b16 %v814
  %v1620 = vunpack.c.l.b16 %v828
  %v1621 = vunpack.c.l.b16 %v842
  %v1622 = vunpack.c.l.b16 %v856
  %v1623 = vunpack.c.l.b16 %v870
  %v1624 = vunpack.c.l.b16 %v884
  %v1625 = vunpack.c.l.b16 %v898
  %v1626 = vunpack.c.l.b16 %v912
  %v1627 = vunpack.c.l.b16 %v926
  %v1628 = vunpack.c.l.b16 %v940
  %v1629 = vunpack.c.l.b16 %v954
  %v1630 = vunpack.c.l.b16 %v968
  %v1631 = vunpack.c.l.b16 %v982
  %v1632 = vunpack.c.l.b16 %v996
  %v1633 = vunpack.c.l.b16 %v1010
  %v1634 = vunpack.c.l.b16 %v1024
  %v1635 = vunpack.c.l.b16 %v1038
  %v1636 = vunpack.c.l.b16 %v1052
  %v1637 = vunpack.c.l.b16 %v1066
  %v1638 = vunpack.c.l.b16 %v1080
  %v1639 = vunpack.c.l.b16 %v1094
  %v1640 = vunpack.c.l.b16 %v1108
  %v1641 = vunpack.c.l.b16 %v1122
  %v1642 = vunpack.c.l.b16 %v1136
  %v1643 = vunpack.c.l.b16 %v1150
  %v1644 = vunpack.c.l.b16 %v1164
  %v1645 = vunpack.c.l.b16 %v1178
  %v1646 = vunpack.c.l.b16 %v1192
  %v1647 = vunpack.c.l.b16 %v1206
  %v1648 = vunpack.c.l.b16 %v1220
  %v1649 = vunpack.c.l.b16 %v1234
  %v1650 = vunpack.c.l.b16 %v1248
  %v1651 = vunpack.c.l.b16 %v1262
  %v1652 = vunpack.c.l.b16 %v1276
  %v1653 = vunpack.c.l.b16 %v1290
  %v1654 = vunpack.c.l.b16 %v1304
  %v1655 = vunpack.c.l.b16 %v1318
  %v1656 = vunpack.c.l.b16 %v1332
  %v1657 = vunpack.c.l.b16 %v1346
  %v1658 = vunpack.c.l.b16 %v1360
  %v1659 = vunpack.c.l.b16 %v1374
  %v1660 = vunpack.c.l.b16 %v1388
  %v1661 = vunpack.c.l.b16 %v1402
  %v1662 = vunpack.c.l.b16 %v1416
  %v1663 = vunpack.c.l.b16 %v1430
  %v1664 = vunpack.c.l.b16 %v1444
  %v1665 = vunpack.c.l.b16 %v1458
  %v1666 = vunpack.c.l.b16 %v1472
  %v1667 = vunpack.c.l.b16 %v1486
  %v1668 = vunpack.c.l.b16 %v1500
  %v1669 = vunpack.c.l.b16 %v1514
  %v1670 = vunpack.c.l.b16 %v1528
  %v1671 = vunpack.c.l.b16 %v1542
  %v1672 = vunpack.c.l.b16 %v1556
  %v1673 = vunpack.c.l.b16 %v1570
  %v1674 = vunpack.c.l.b16 %v1584
  %v1675 = vunpack.c.l.b16 %v1598
  %v1676 = vunpack.c.l.b16 %v1612
  %v1677 = vrot.slane %v1613, 1
  %vm1678 = vcmask 1041409
  %v1679 = vsel %vm1678, %v1614, %v1677
  %v1680 = vrot.slane %v1615, 7
  %vm1681 = vcmask 1042434
  %v1682 = vsel %vm1681, %v1680, %v1679
  %v1683 = vrot.slane %v1616, 6
  %vm1684 = vcmask 1043459
  %v1685 = vsel %vm1684, %v1683, %v1682
  %v1686 = vrot.slane %v1617, 5
  %vm1687 = vcmask 1044484
  %v1688 = vsel %vm1687, %v1686, %v1685
  %v1689 = vrot.slane %v1618, 4
  %vm1690 = vcmask 1045509
  %v1691 = vsel %vm1690, %v1689, %v1688
  %v1692 = vrot.slane %v1619, 3
  %vm1693 = vcmask 1046534
  %v1694 = vsel %vm1693, %v1692, %v1691
  %v1695 = vrot.slane %v1620, 2
  %vm1696 = vcmask 1047559
  %v1697 = vsel %vm1696, %v1695, %v1694
  %v1698 = vrot.slane %v1621, 1
  %v1699 = vsel %vm1678, %v1622, %v1698
  %v1700 = vrot.slane %v1623, 7
  %v1701 = vsel %vm1681, %v1700, %v1699
  %v1702 = vrot.slane %v1624, 6
  %v1703 = vsel %vm1684, %v1702, %v1701
  %v1704 = vrot.slane %v1625, 5
  %v1705 = vsel %vm1687, %v1704, %v1703
  %v1706 = vrot.slane %v1626, 4
  %v1707 = vsel %vm1690, %v1706, %v1705
  %v1708 = vrot.slane %v1627, 3
  %v1709 = vsel %vm1693, %v1708, %v1707
  %v1710 = vrot.slane %v1628, 2
  %v1711 = vsel %vm1696, %v1710, %v1709
  %v1712 = vrot.slane %v1629, 1
  %v1713 = vsel %vm1678, %v1630, %v1712
  %v1714 = vrot.slane %v1631, 7
  %v1715 = vsel %vm1681, %v1714, %v1713
  %v1716 = vrot.slane %v1632, 6
  %v1717 = vsel %vm1684, %v1716, %v1715
  %v1718 = vrot.slane %v1633, 5
  %v1719 = vsel %vm1687, %v1718, %v1717
  %v1720 = vrot.slane %v1634, 4
  %v1721 = vsel %vm1690, %v1720, %v1719
  %v1722 = vrot.slane %v1635, 3
  %v1723 = vsel %vm1693, %v1722, %v1721
  %v1724 = vrot.slane %v1636, 2
  %v1725 = vsel %vm1696, %v1724, %v1723
  %v1726 = vrot.slane %v1637, 1
  %v1727 = vsel %vm1678, %v1638, %v1726
  %v1728 = vrot.slane %v1639, 7
  %v1729 = vsel %vm1681, %v1728, %v1727
  %v1730 = vrot.slane %v1640, 6
  %v1731 = vsel %vm1684, %v1730, %v1729
  %v1732 = vrot.slane %v1641, 5
  %v1733 = vsel %vm1687, %v1732, %v1731
  %v1734 = vrot.slane %v1642, 4
  %v1735 = vsel %vm1690, %v1734, %v1733
  %v1736 = vrot.slane %v1643, 3
  %v1737 = vsel %vm1693, %v1736, %v1735
  %v1738 = vrot.slane %v1644, 2
  %v1739 = vsel %vm1696, %v1738, %v1737
  %v1740 = vrot.slane %v1645, 1
  %v1741 = vsel %vm1678, %v1646, %v1740
  %v1742 = vrot.slane %v1647, 7
  %v1743 = vsel %vm1681, %v1742, %v1741
  %v1744 = vrot.slane %v1648, 6
  %v1745 = vsel %vm1684, %v1744, %v1743
  %v1746 = vrot.slane %v1649, 5
  %v1747 = vsel %vm1687, %v1746, %v1745
  %v1748 = vrot.slane %v1650, 4
  %v1749 = vsel %vm1690, %v1748, %v1747
  %v1750 = vrot.slane %v1651, 3
  %v1751 = vsel %vm1693, %v1750, %v1749
  %v1752 = vrot.slane %v1652, 2
  %v1753 = vsel %vm1696, %v1752, %v1751
  %v1754 = vrot.slane %v1653, 1
  %v1755 = vsel %vm1678, %v1654, %v1754
  %v1756 = vrot.slane %v1655, 7
  %v1757 = vsel %vm1681, %v1756, %v1755
  %v1758 = vrot.slane %v1656, 6
  %v1759 = vsel %vm1684, %v1758, %v1757
  %v1760 = vrot.slane %v1657, 5
  %v1761 = vsel %vm1687, %v1760, %v1759
  %v1762 = vrot.slane %v1658, 4
  %v1763 = vsel %vm1690, %v1762, %v1761
  %v1764 = vrot.slane %v1659, 3
  %v1765 = vsel %vm1693, %v1764, %v1763
  %v1766 = vrot.slane %v1660, 2
  %v1767 = vsel %vm1696, %v1766, %v1765
  %v1768 = vrot.slane %v1661, 1
  %v1769 = vsel %vm1678, %v1662, %v1768
  %v1770 = vrot.slane %v1663, 7
  %v1771 = vsel %vm1681, %v1770, %v1769
  %v1772 = vrot.slane %v1664, 6
  %v1773 = vsel %vm1684, %v1772, %v1771
  %v1774 = vrot.slane %v1665, 5
  %v1775 = vsel %vm1687, %v1774, %v1773
  %v1776 = vrot.slane %v1666, 4
  %v1777 = vsel %vm1690, %v1776, %v1775
  %v1778 = vrot.slane %v1667, 3
  %v1779 = vsel %vm1693, %v1778, %v1777
  %v1780 = vrot.slane %v1668, 2
  %v1781 = vsel %vm1696, %v1780, %v1779
  %v1782 = vrot.slane %v1669, 1
  %v1783 = vsel %vm1678, %v1670, %v1782
  %v1784 = vrot.slane %v1671, 7
  %v1785 = vsel %vm1681, %v1784, %v1783
  %v1786 = vrot.slane %v1672, 6
  %v1787 = vsel %vm1684, %v1786, %v1785
  %v1788 = vrot.slane %v1673, 5
  %v1789 = vsel %vm1687, %v1788, %v1787
  %v1790 = vrot.slane %v1674, 4
  %v1791 = vsel %vm1690, %v1790, %v1789
  %v1792 = vrot.slane %v1675, 3
  %v1793 = vsel %vm1693, %v1792, %v1791
  %v1794 = vrot.slane %v1676, 2
  %v1795 = vsel %vm1696, %v1794, %v1793
  %v1796 = vpack.c.b16 %v1711, %v1697
  %v1797 = vpack.c.b16 %v1739, %v1725
  %v1798 = vpack.c.b16 %v1767, %v1753
  %v1799 = vpack.c.b16 %v1795, %v1781
  %v1801 = vunpack.c.l.b16 %v716
  %v1802 = vpack.c.b16 %v1801, %v1801
  %v1803 = vrot.slane %v1802, 2
  %vm1804 = vcmask 31744
  %v1806 = vsel %vm1804, %v1796, 0
  %v1809 = vsel %vm1804, %v1797, 0
  %v1812 = vsel %vm1804, %v1798, 0
  %v1815 = vsel %vm1804, %v1799, 0
  %vm1817 = vcmask 1041408
  %v1819 = vsel %vm1817, %v1803, 0
  %1821 = vmatprep.subr.bf16.mxu0 0
  %1822 = vmatpush1.bf16.msra.mxu0 %v1819
  %1823 = vmatprep.subr.bf16.mxu0 0
  %1824 = vmatpush1.bf16.msra.mxu0 0
  %1825 = vmatprep.subr.bf16.mxu0 0
  %1826 = vmatpush1.bf16.msra.mxu0 0
  %1827 = vmatprep.subr.bf16.mxu0 0
  %1828 = vmatpush1.bf16.msra.mxu0 0
  %1829 = vmatprep.subr.bf16.mxu0 0
  %1830 = vmatpush1.bf16.msra.mxu0 0
  %1831 = vmatprep.subr.bf16.mxu0 0
  %1832 = vmatpush1.bf16.msra.mxu0 0
  %1833 = vmatprep.subr.bf16.mxu0 0
  %1834 = vmatpush1.bf16.msra.mxu0 0
  %1835 = vmatprep.subr.bf16.mxu0 0
  %1836 = vmatpush1.bf16.msra.mxu0 0
  %1837 = vmatprep.subr.bf16.mxu0 0
  %1838 = vmatpush1.bf16.msra.mxu0 0
  %1839 = vmatprep.subr.bf16.mxu0 0
  %1840 = vmatpush1.bf16.msra.mxu0 0
  %1841 = vmatprep.subr.bf16.mxu0 0
  %1842 = vmatpush1.bf16.msra.mxu0 0
  %1843 = vmatprep.subr.bf16.mxu0 0
  %1844 = vmatpush1.bf16.msra.mxu0 0
  %1845 = vmatprep.subr.bf16.mxu0 0
  %1846 = vmatpush1.bf16.msra.mxu0 0
  %1847 = vmatprep.subr.bf16.mxu0 0
  %1848 = vmatpush1.bf16.msra.mxu0 0
  %1849 = vmatprep.subr.bf16.mxu0 0
  %1850 = vmatpush1.bf16.msra.mxu0 0
  %1851 = vmatprep.subr.bf16.mxu0 0
  %1852 = vmatpush1.bf16.msra.mxu0 0
  %1853 = vmatprep.mubr.bf16.mxu0 0
  %1854 = vmatmul.mubr.bf16.gmra.mrb[0].mxu0 %v1806
  %v1855 = vpop.f32.mrb[0].mxu0
  %v1856 = vadd.f32 0.0, %v1855
  %v1857 = vpop.f32.mrb[0].mxu0
  %v1858 = vpop.f32.mrb[0].mxu0
  %v1859 = vadd.f32 0.0, %v1858
  %v1860 = vpop.f32.mrb[0].mxu0
  %1861 = vmatprep.mubr.bf16.mxu0 0
  %1862 = vmatmul.mubr.bf16.gmra.mrb[0].mxu0 %v1809
  %v1863 = vpop.f32.mrb[0].mxu0
  %v1864 = vadd.f32 0.0, %v1863
  %v1865 = vpop.f32.mrb[0].mxu0
  %v1866 = vpop.f32.mrb[0].mxu0
  %v1867 = vadd.f32 0.0, %v1866
  %v1868 = vpop.f32.mrb[0].mxu0
  %1869 = vmatprep.mubr.bf16.mxu0 0
  %1870 = vmatmul.mubr.bf16.gmra.mrb[0].mxu0 %v1812
  %v1871 = vpop.f32.mrb[0].mxu0
  %v1872 = vadd.f32 0.0, %v1871
  %v1873 = vpop.f32.mrb[0].mxu0
  %v1874 = vpop.f32.mrb[0].mxu0
  %v1875 = vadd.f32 0.0, %v1874
  %v1876 = vpop.f32.mrb[0].mxu0
  %1877 = vmatprep.mubr.bf16.mxu0 0
  %1878 = vmatmul.mubr.bf16.gmra.mrb[0].mxu0 %v1815
  %v1879 = vpop.f32.mrb[0].mxu0
  %v1880 = vadd.f32 0.0, %v1879
  %v1881 = vpop.f32.mrb[0].mxu0
  %v1882 = vpop.f32.mrb[0].mxu0
  %v1883 = vadd.f32 0.0, %v1882
  %v1884 = vpop.f32.mrb[0].mxu0
  %1885 = vdwg.mxu0
  %v1886 = vrot.slane %v1614, 7
  %v1887 = vsel %vm1678, %v1886, %v1613
  %v1888 = vrot.slane %v1615, 6
  %v1889 = vsel %vm1681, %v1888, %v1887
  %v1890 = vrot.slane %v1616, 5
  %v1891 = vsel %vm1684, %v1890, %v1889
  %v1892 = vrot.slane %v1617, 4
  %v1893 = vsel %vm1687, %v1892, %v1891
  %v1894 = vrot.slane %v1618, 3
  %v1895 = vsel %vm1690, %v1894, %v1893
  %v1896 = vrot.slane %v1619, 2
  %v1897 = vsel %vm1693, %v1896, %v1895
  %v1898 = vrot.slane %v1620, 1
  %v1899 = vsel %vm1696, %v1898, %v1897
  %v1900 = vrot.slane %v1622, 7
  %v1901 = vsel %vm1678, %v1900, %v1621
  %v1902 = vrot.slane %v1623, 6
  %v1903 = vsel %vm1681, %v1902, %v1901
  %v1904 = vrot.slane %v1624, 5
  %v1905 = vsel %vm1684, %v1904, %v1903
  %v1906 = vrot.slane %v1625, 4
  %v1907 = vsel %vm1687, %v1906, %v1905
  %v1908 = vrot.slane %v1626, 3
  %v1909 = vsel %vm1690, %v1908, %v1907
  %v1910 = vrot.slane %v1627, 2
  %v1911 = vsel %vm1693, %v1910, %v1909
  %v1912 = vrot.slane %v1628, 1
  %v1913 = vsel %vm1696, %v1912, %v1911
  %v1914 = vrot.slane %v1630, 7
  %v1915 = vsel %vm1678, %v1914, %v1629
  %v1916 = vrot.slane %v1631, 6
  %v1917 = vsel %vm1681, %v1916, %v1915
  %v1918 = vrot.slane %v1632, 5
  %v1919 = vsel %vm1684, %v1918, %v1917
  %v1920 = vrot.slane %v1633, 4
  %v1921 = vsel %vm1687, %v1920, %v1919
  %v1922 = vrot.slane %v1634, 3
  %v1923 = vsel %vm1690, %v1922, %v1921
  %v1924 = vrot.slane %v1635, 2
  %v1925 = vsel %vm1693, %v1924, %v1923
  %v1926 = vrot.slane %v1636, 1
  %v1927 = vsel %vm1696, %v1926, %v1925
  %v1928 = vrot.slane %v1638, 7
  %v1929 = vsel %vm1678, %v1928, %v1637
  %v1930 = vrot.slane %v1639, 6
  %v1931 = vsel %vm1681, %v1930, %v1929
  %v1932 = vrot.slane %v1640, 5
  %v1933 = vsel %vm1684, %v1932, %v1931
  %v1934 = vrot.slane %v1641, 4
  %v1935 = vsel %vm1687, %v1934, %v1933
  %v1936 = vrot.slane %v1642, 3
  %v1937 = vsel %vm1690, %v1936, %v1935
  %v1938 = vrot.slane %v1643, 2
  %v1939 = vsel %vm1693, %v1938, %v1937
  %v1940 = vrot.slane %v1644, 1
  %v1941 = vsel %vm1696, %v1940, %v1939
  %v1942 = vrot.slane %v1646, 7
  %v1943 = vsel %vm1678, %v1942, %v1645
  %v1944 = vrot.slane %v1647, 6
  %v1945 = vsel %vm1681, %v1944, %v1943
  %v1946 = vrot.slane %v1648, 5
  %v1947 = vsel %vm1684, %v1946, %v1945
  %v1948 = vrot.slane %v1649, 4
  %v1949 = vsel %vm1687, %v1948, %v1947
  %v1950 = vrot.slane %v1650, 3
  %v1951 = vsel %vm1690, %v1950, %v1949
  %v1952 = vrot.slane %v1651, 2
  %v1953 = vsel %vm1693, %v1952, %v1951
  %v1954 = vrot.slane %v1652, 1
  %v1955 = vsel %vm1696, %v1954, %v1953
  %v1956 = vrot.slane %v1654, 7
  %v1957 = vsel %vm1678, %v1956, %v1653
  %v1958 = vrot.slane %v1655, 6
  %v1959 = vsel %vm1681, %v1958, %v1957
  %v1960 = vrot.slane %v1656, 5
  %v1961 = vsel %vm1684, %v1960, %v1959
  %v1962 = vrot.slane %v1657, 4
  %v1963 = vsel %vm1687, %v1962, %v1961
  %v1964 = vrot.slane %v1658, 3
  %v1965 = vsel %vm1690, %v1964, %v1963
  %v1966 = vrot.slane %v1659, 2
  %v1967 = vsel %vm1693, %v1966, %v1965
  %v1968 = vrot.slane %v1660, 1
  %v1969 = vsel %vm1696, %v1968, %v1967
  %v1970 = vrot.slane %v1662, 7
  %v1971 = vsel %vm1678, %v1970, %v1661
  %v1972 = vrot.slane %v1663, 6
  %v1973 = vsel %vm1681, %v1972, %v1971
  %v1974 = vrot.slane %v1664, 5
  %v1975 = vsel %vm1684, %v1974, %v1973
  %v1976 = vrot.slane %v1665, 4
  %v1977 = vsel %vm1687, %v1976, %v1975
  %v1978 = vrot.slane %v1666, 3
  %v1979 = vsel %vm1690, %v1978, %v1977
  %v1980 = vrot.slane %v1667, 2
  %v1981 = vsel %vm1693, %v1980, %v1979
  %v1982 = vrot.slane %v1668, 1
  %v1983 = vsel %vm1696, %v1982, %v1981
  %v1984 = vrot.slane %v1670, 7
  %v1985 = vsel %vm1678, %v1984, %v1669
  %v1986 = vrot.slane %v1671, 6
  %v1987 = vsel %vm1681, %v1986, %v1985
  %v1988 = vrot.slane %v1672, 5
  %v1989 = vsel %vm1684, %v1988, %v1987
  %v1990 = vrot.slane %v1673, 4
  %v1991 = vsel %vm1687, %v1990, %v1989
  %v1992 = vrot.slane %v1674, 3
  %v1993 = vsel %vm1690, %v1992, %v1991
  %v1994 = vrot.slane %v1675, 2
  %v1995 = vsel %vm1693, %v1994, %v1993
  %v1996 = vrot.slane %v1676, 1
  %v1997 = vsel %vm1696, %v1996, %v1995
  %v1998 = vpack.c.b16 %v1913, %v1899
  %v1999 = vpack.c.b16 %v1941, %v1927
  %v2000 = vpack.c.b16 %v1969, %v1955
  %v2001 = vpack.c.b16 %v1997, %v1983
  %v2003 = vsel %vm1804, %v1998, 0
  %v2006 = vsel %vm1804, %v1999, 0
  %v2009 = vsel %vm1804, %v2000, 0
  %v2012 = vsel %vm1804, %v2001, 0
  %v2015 = vsel %vm1817, %v715, 0
  %2017 = vmatprep.subr.bf16.mxu0 0
  %2018 = vmatpush1.bf16.msra.mxu0 %v2015
  %2019 = vmatprep.subr.bf16.mxu0 0
  %2020 = vmatpush1.bf16.msra.mxu0 0
  %2021 = vmatprep.subr.bf16.mxu0 0
  %2022 = vmatpush1.bf16.msra.mxu0 0
  %2023 = vmatprep.subr.bf16.mxu0 0
  %2024 = vmatpush1.bf16.msra.mxu0 0
  %2025 = vmatprep.subr.bf16.mxu0 0
  %2026 = vmatpush1.bf16.msra.mxu0 0
  %2027 = vmatprep.subr.bf16.mxu0 0
  %2028 = vmatpush1.bf16.msra.mxu0 0
  %2029 = vmatprep.subr.bf16.mxu0 0
  %2030 = vmatpush1.bf16.msra.mxu0 0
  %2031 = vmatprep.subr.bf16.mxu0 0
  %2032 = vmatpush1.bf16.msra.mxu0 0
  %2033 = vmatprep.subr.bf16.mxu0 0
  %2034 = vmatpush1.bf16.msra.mxu0 0
  %2035 = vmatprep.subr.bf16.mxu0 0
  %2036 = vmatpush1.bf16.msra.mxu0 0
  %2037 = vmatprep.subr.bf16.mxu0 0
  %2038 = vmatpush1.bf16.msra.mxu0 0
  %2039 = vmatprep.subr.bf16.mxu0 0
  %2040 = vmatpush1.bf16.msra.mxu0 0
  %2041 = vmatprep.subr.bf16.mxu0 0
  %2042 = vmatpush1.bf16.msra.mxu0 0
  %2043 = vmatprep.subr.bf16.mxu0 0
  %2044 = vmatpush1.bf16.msra.mxu0 0
  %2045 = vmatprep.subr.bf16.mxu0 0
  %2046 = vmatpush1.bf16.msra.mxu0 0
  %2047 = vmatprep.subr.bf16.mxu0 0
  %2048 = vmatpush1.bf16.msra.mxu0 0
  %2049 = vmatprep.mubr.bf16.mxu0 0
  %2050 = vmatmul.mubr.bf16.gmra.mrb[0].mxu0 %v2003
  %v2051 = vpop.f32.mrb[0].mxu0
  %v2052 = vadd.f32 %v1856, %v2051
  %v2053 = vpop.f32.mrb[0].mxu0
  %v2054 = vpop.f32.mrb[0].mxu0
  %v2055 = vadd.f32 %v1859, %v2054
  %v2056 = vpop.f32.mrb[0].mxu0
  %2057 = vmatprep.mubr.bf16.mxu0 0
  %2058 = vmatmul.mubr.bf16.gmra.mrb[0].mxu0 %v2006
  %v2059 = vpop.f32.mrb[0].mxu0
  %v2060 = vadd.f32 %v1864, %v2059
  %v2061 = vpop.f32.mrb[0].mxu0
  %v2062 = vpop.f32.mrb[0].mxu0
  %v2063 = vadd.f32 %v1867, %v2062
  %v2064 = vpop.f32.mrb[0].mxu0
  %2065 = vmatprep.mubr.bf16.mxu0 0
  %2066 = vmatmul.mubr.bf16.gmra.mrb[0].mxu0 %v2009
  %v2067 = vpop.f32.mrb[0].mxu0
  %v2068 = vadd.f32 %v1872, %v2067
  %v2069 = vpop.f32.mrb[0].mxu0
  %v2070 = vpop.f32.mrb[0].mxu0
  %v2071 = vadd.f32 %v1875, %v2070
  %v2072 = vpop.f32.mrb[0].mxu0
  %2073 = vmatprep.mubr.bf16.mxu0 0
  %2074 = vmatmul.mubr.bf16.gmra.mrb[0].mxu0 %v2012
  %v2075 = vpop.f32.mrb[0].mxu0
  %v2076 = vadd.f32 %v1880, %v2075
  %v2077 = vpop.f32.mrb[0].mxu0
  %v2078 = vpop.f32.mrb[0].mxu0
  %v2079 = vadd.f32 %v1883, %v2078
  %v2080 = vpop.f32.mrb[0].mxu0
  %2081 = vdwg.mxu0
  %v2082 = vld [vmem:[%s1 + $0x4] sm:$0x3]
  %v2084 = vunpack.c.l.s4 1966171168
  %v2085 = vunpack.c.0.s8 %v2084
  %v2086 = vlaneseq
  %v2087 = vshrl.u32 %v2086, 7
  %v2088 = vsub.s32 %v2085, %v2087
  %v2089 = vrot.slane %v210, %v2088
  %v2091 = vunpack.c.l.s4 1966171168
  %v2092 = vunpack.c.0.s8 %v2091
  %v2093 = vlaneseq
  %v2094 = vshrl.u32 %v2093, 7
  %v2095 = vsub.s32 %v2092, %v2094
  %v2096 = vrot.slane %v2089, %v2095
  %v2098 = vunpack.c.l.s4 1966171168
  %v2099 = vunpack.c.0.s8 %v2098
  %v2100 = vlaneseq
  %v2101 = vshrl.u32 %v2100, 7
  %v2102 = vsub.s32 %v2099, %v2101
  %v2103 = vrot.slane %v281, %v2102
  %v2105 = vunpack.c.l.s4 1966171168
  %v2106 = vunpack.c.0.s8 %v2105
  %v2107 = vlaneseq
  %v2108 = vshrl.u32 %v2107, 7
  %v2109 = vsub.s32 %v2106, %v2108
  %v2110 = vrot.slane %v2103, %v2109
  %v2112 = vunpack.c.l.s4 1966171168
  %v2113 = vunpack.c.0.s8 %v2112
  %v2114 = vlaneseq
  %v2115 = vshrl.u32 %v2114, 7
  %v2116 = vsub.s32 %v2113, %v2115
  %v2117 = vrot.slane %v352, %v2116
  %v2119 = vunpack.c.l.s4 1966171168
  %v2120 = vunpack.c.0.s8 %v2119
  %v2121 = vlaneseq
  %v2122 = vshrl.u32 %v2121, 7
  %v2123 = vsub.s32 %v2120, %v2122
  %v2124 = vrot.slane %v2117, %v2123
  %v2126 = vunpack.c.l.s4 1966171168
  %v2127 = vunpack.c.0.s8 %v2126
  %v2128 = vlaneseq
  %v2129 = vshrl.u32 %v2128, 7
  %v2130 = vsub.s32 %v2127, %v2129
  %v2131 = vrot.slane %v423, %v2130
  %v2133 = vunpack.c.l.s4 1966171168
  %v2134 = vunpack.c.0.s8 %v2133
  %v2135 = vlaneseq
  %v2136 = vshrl.u32 %v2135, 7
  %v2137 = vsub.s32 %v2134, %v2136
  %v2138 = vrot.slane %v2131, %v2137
  %v2140 = vunpack.c.l.s4 1966171168
  %v2141 = vunpack.c.0.s8 %v2140
  %v2142 = vlaneseq
  %v2143 = vshrl.u32 %v2142, 7
  %v2144 = vsub.s32 %v2141, %v2143
  %v2145 = vrot.slane %v494, %v2144
  %v2147 = vunpack.c.l.s4 1966171168
  %v2148 = vunpack.c.0.s8 %v2147
  %v2149 = vlaneseq
  %v2150 = vshrl.u32 %v2149, 7
  %v2151 = vsub.s32 %v2148, %v2150
  %v2152 = vrot.slane %v2145, %v2151
  %v2154 = vunpack.c.l.s4 1966171168
  %v2155 = vunpack.c.0.s8 %v2154
  %v2156 = vlaneseq
  %v2157 = vshrl.u32 %v2156, 7
  %v2158 = vsub.s32 %v2155, %v2157
  %v2159 = vrot.slane %v565, %v2158
  %v2161 = vunpack.c.l.s4 1966171168
  %v2162 = vunpack.c.0.s8 %v2161
  %v2163 = vlaneseq
  %v2164 = vshrl.u32 %v2163, 7
  %v2165 = vsub.s32 %v2162, %v2164
  %v2166 = vrot.slane %v2159, %v2165
  %v2168 = vunpack.c.l.s4 1966171168
  %v2169 = vunpack.c.0.s8 %v2168
  %v2170 = vlaneseq
  %v2171 = vshrl.u32 %v2170, 7
  %v2172 = vsub.s32 %v2169, %v2171
  %v2173 = vrot.slane %v636, %v2172
  %v2175 = vunpack.c.l.s4 1966171168
  %v2176 = vunpack.c.0.s8 %v2175
  %v2177 = vlaneseq
  %v2178 = vshrl.u32 %v2177, 7
  %v2179 = vsub.s32 %v2176, %v2178
  %v2180 = vrot.slane %v2173, %v2179
  %v2182 = vunpack.c.l.s4 1966171168
  %v2183 = vunpack.c.0.s8 %v2182
  %v2184 = vlaneseq
  %v2185 = vshrl.u32 %v2184, 7
  %v2186 = vsub.s32 %v2183, %v2185
  %v2187 = vrot.slane %v707, %v2186
  %v2189 = vunpack.c.l.s4 1966171168
  %v2190 = vunpack.c.0.s8 %v2189
  %v2191 = vlaneseq
  %v2192 = vshrl.u32 %v2191, 7
  %v2193 = vsub.s32 %v2190, %v2192
  %v2194 = vrot.slane %v2187, %v2193
  %v2195 = vunpack.c.l.b16 %v2096
  %v2196 = vunpack.c.l.b16 %v2110
  %v2197 = vunpack.c.l.b16 %v2124
  %v2198 = vunpack.c.l.b16 %v2138
  %v2199 = vunpack.c.l.b16 %v2152
  %v2200 = vunpack.c.l.b16 %v2166
  %v2201 = vunpack.c.l.b16 %v2180
  %v2202 = vunpack.c.l.b16 %v2194
  %v2203 = vsel %vm1678, %v1680, %v1614
  %v2204 = vsel %vm1681, %v1683, %v2203
  %v2205 = vsel %vm1684, %v1686, %v2204
  %v2206 = vsel %vm1687, %v1689, %v2205
  %v2207 = vsel %vm1690, %v1692, %v2206
  %v2208 = vsel %vm1693, %v1695, %v2207
  %v2209 = vrot.slane %v2195, 1
  %v2210 = vsel %vm1696, %v2209, %v2208
  %v2211 = vsel %vm1678, %v1700, %v1622
  %v2212 = vsel %vm1681, %v1702, %v2211
  %v2213 = vsel %vm1684, %v1704, %v2212
  %v2214 = vsel %vm1687, %v1706, %v2213
  %v2215 = vsel %vm1690, %v1708, %v2214
  %v2216 = vsel %vm1693, %v1710, %v2215
  %v2217 = vrot.slane %v2196, 1
  %v2218 = vsel %vm1696, %v2217, %v2216
  %v2219 = vsel %vm1678, %v1714, %v1630
  %v2220 = vsel %vm1681, %v1716, %v2219
  %v2221 = vsel %vm1684, %v1718, %v2220
  %v2222 = vsel %vm1687, %v1720, %v2221
  %v2223 = vsel %vm1690, %v1722, %v2222
  %v2224 = vsel %vm1693, %v1724, %v2223
  %v2225 = vrot.slane %v2197, 1
  %v2226 = vsel %vm1696, %v2225, %v2224
  %v2227 = vsel %vm1678, %v1728, %v1638
  %v2228 = vsel %vm1681, %v1730, %v2227
  %v2229 = vsel %vm1684, %v1732, %v2228
  %v2230 = vsel %vm1687, %v1734, %v2229
  %v2231 = vsel %vm1690, %v1736, %v2230
  %v2232 = vsel %vm1693, %v1738, %v2231
  %v2233 = vrot.slane %v2198, 1
  %v2234 = vsel %vm1696, %v2233, %v2232
  %v2235 = vsel %vm1678, %v1742, %v1646
  %v2236 = vsel %vm1681, %v1744, %v2235
  %v2237 = vsel %vm1684, %v1746, %v2236
  %v2238 = vsel %vm1687, %v1748, %v2237
  %v2239 = vsel %vm1690, %v1750, %v2238
  %v2240 = vsel %vm1693, %v1752, %v2239
  %v2241 = vrot.slane %v2199, 1
  %v2242 = vsel %vm1696, %v2241, %v2240
  %v2243 = vsel %vm1678, %v1756, %v1654
  %v2244 = vsel %vm1681, %v1758, %v2243
  %v2245 = vsel %vm1684, %v1760, %v2244
  %v2246 = vsel %vm1687, %v1762, %v2245
  %v2247 = vsel %vm1690, %v1764, %v2246
  %v2248 = vsel %vm1693, %v1766, %v2247
  %v2249 = vrot.slane %v2200, 1
  %v2250 = vsel %vm1696, %v2249, %v2248
  %v2251 = vsel %vm1678, %v1770, %v1662
  %v2252 = vsel %vm1681, %v1772, %v2251
  %v2253 = vsel %vm1684, %v1774, %v2252
  %v2254 = vsel %vm1687, %v1776, %v2253
  %v2255 = vsel %vm1690, %v1778, %v2254
  %v2256 = vsel %vm1693, %v1780, %v2255
  %v2257 = vrot.slane %v2201, 1
  %v2258 = vsel %vm1696, %v2257, %v2256
  %v2259 = vsel %vm1678, %v1784, %v1670
  %v2260 = vsel %vm1681, %v1786, %v2259
  %v2261 = vsel %vm1684, %v1788, %v2260
  %v2262 = vsel %vm1687, %v1790, %v2261
  %v2263 = vsel %vm1690, %v1792, %v2262
  %v2264 = vsel %vm1693, %v1794, %v2263
  %v2265 = vrot.slane %v2202, 1
  %v2266 = vsel %vm1696, %v2265, %v2264
  %v2267 = vpack.c.b16 %v2218, %v2210
  %v2268 = vpack.c.b16 %v2234, %v2226
  %v2269 = vpack.c.b16 %v2250, %v2242
  %v2270 = vpack.c.b16 %v2266, %v2258
  %v2272 = vsel %vm1804, %v2267, 0
  %v2275 = vsel %vm1804, %v2268, 0
  %v2278 = vsel %vm1804, %v2269, 0
  %v2281 = vsel %vm1804, %v2270, 0
  %v2284 = vsel %vm1817, %v2082, 0
  %2286 = vmatprep.subr.bf16.mxu0 0
  %2287 = vmatpush1.bf16.msra.mxu0 %v2284
  %2288 = vmatprep.subr.bf16.mxu0 0
  %2289 = vmatpush1.bf16.msra.mxu0 0
  %2290 = vmatprep.subr.bf16.mxu0 0
  %2291 = vmatpush1.bf16.msra.mxu0 0
  %2292 = vmatprep.subr.bf16.mxu0 0
  %2293 = vmatpush1.bf16.msra.mxu0 0
  %2294 = vmatprep.subr.bf16.mxu0 0
  %2295 = vmatpush1.bf16.msra.mxu0 0
  %2296 = vmatprep.subr.bf16.mxu0 0
  %2297 = vmatpush1.bf16.msra.mxu0 0
  %2298 = vmatprep.subr.bf16.mxu0 0
  %2299 = vmatpush1.bf16.msra.mxu0 0
  %2300 = vmatprep.subr.bf16.mxu0 0
  %2301 = vmatpush1.bf16.msra.mxu0 0
  %2302 = vmatprep.subr.bf16.mxu0 0
  %2303 = vmatpush1.bf16.msra.mxu0 0
  %2304 = vmatprep.subr.bf16.mxu0 0
  %2305 = vmatpush1.bf16.msra.mxu0 0
  %2306 = vmatprep.subr.bf16.mxu0 0
  %2307 = vmatpush1.bf16.msra.mxu0 0
  %2308 = vmatprep.subr.bf16.mxu0 0
  %2309 = vmatpush1.bf16.msra.mxu0 0
  %2310 = vmatprep.subr.bf16.mxu0 0
  %2311 = vmatpush1.bf16.msra.mxu0 0
  %2312 = vmatprep.subr.bf16.mxu0 0
  %2313 = vmatpush1.bf16.msra.mxu0 0
  %2314 = vmatprep.subr.bf16.mxu0 0
  %2315 = vmatpush1.bf16.msra.mxu0 0
  %2316 = vmatprep.subr.bf16.mxu0 0
  %2317 = vmatpush1.bf16.msra.mxu0 0
  %2318 = vmatprep.mubr.bf16.mxu0 0
  %2319 = vmatmul.mubr.bf16.gmra.mrb[0].mxu0 %v2272
  %v2320 = vpop.f32.mrb[0].mxu0
  %v2321 = vadd.f32 0.0, %v2320
  %v2322 = vpop.f32.mrb[0].mxu0
  %v2323 = vpop.f32.mrb[0].mxu0
  %v2324 = vadd.f32 0.0, %v2323
  %v2325 = vpop.f32.mrb[0].mxu0
  %2326 = vmatprep.mubr.bf16.mxu0 0
  %2327 = vmatmul.mubr.bf16.gmra.mrb[0].mxu0 %v2275
  %v2328 = vpop.f32.mrb[0].mxu0
  %v2329 = vadd.f32 0.0, %v2328
  %v2330 = vpop.f32.mrb[0].mxu0
  %v2331 = vpop.f32.mrb[0].mxu0
  %v2332 = vadd.f32 0.0, %v2331
  %v2333 = vpop.f32.mrb[0].mxu0
  %2334 = vmatprep.mubr.bf16.mxu0 0
  %2335 = vmatmul.mubr.bf16.gmra.mrb[0].mxu0 %v2278
  %v2336 = vpop.f32.mrb[0].mxu0
  %v2337 = vadd.f32 0.0, %v2336
  %v2338 = vpop.f32.mrb[0].mxu0
  %v2339 = vpop.f32.mrb[0].mxu0
  %v2340 = vadd.f32 0.0, %v2339
  %v2341 = vpop.f32.mrb[0].mxu0
  %2342 = vmatprep.mubr.bf16.mxu0 0
  %2343 = vmatmul.mubr.bf16.gmra.mrb[0].mxu0 %v2281
  %v2344 = vpop.f32.mrb[0].mxu0
  %v2345 = vadd.f32 0.0, %v2344
  %v2346 = vpop.f32.mrb[0].mxu0
  %v2347 = vpop.f32.mrb[0].mxu0
  %v2348 = vadd.f32 0.0, %v2347
  %v2349 = vpop.f32.mrb[0].mxu0
  %2350 = vdwg.mxu0
  %v2351 = vadd.f32 %v2052, %v2321
  %v2352 = vadd.f32 %v2055, %v2324
  %v2353 = vadd.f32 %v2060, %v2329
  %v2354 = vadd.f32 %v2063, %v2332
  %v2355 = vadd.f32 %v2068, %v2337
  %v2356 = vadd.f32 %v2071, %v2340
  %v2357 = vadd.f32 %v2076, %v2345
  %v2358 = vadd.f32 %v2079, %v2348
  %v2359 = vld [vmem:[%s1 + $0x4] sm:$0xc]
  %v2360 = vrot.slane %v1614, 1
  %v2361 = vsel %vm1678, %v1615, %v2360
  %v2362 = vrot.slane %v1616, 7
  %v2363 = vsel %vm1681, %v2362, %v2361
  %v2364 = vrot.slane %v1617, 6
  %v2365 = vsel %vm1684, %v2364, %v2363
  %v2366 = vrot.slane %v1618, 5
  %v2367 = vsel %vm1687, %v2366, %v2365
  %v2368 = vrot.slane %v1619, 4
  %v2369 = vsel %vm1690, %v2368, %v2367
  %v2370 = vrot.slane %v1620, 3
  %v2371 = vsel %vm1693, %v2370, %v2369
  %v2372 = vrot.slane %v2195, 2
  %v2373 = vsel %vm1696, %v2372, %v2371
  %v2374 = vrot.slane %v1622, 1
  %v2375 = vsel %vm1678, %v1623, %v2374
  %v2376 = vrot.slane %v1624, 7
  %v2377 = vsel %vm1681, %v2376, %v2375
  %v2378 = vrot.slane %v1625, 6
  %v2379 = vsel %vm1684, %v2378, %v2377
  %v2380 = vrot.slane %v1626, 5
  %v2381 = vsel %vm1687, %v2380, %v2379
  %v2382 = vrot.slane %v1627, 4
  %v2383 = vsel %vm1690, %v2382, %v2381
  %v2384 = vrot.slane %v1628, 3
  %v2385 = vsel %vm1693, %v2384, %v2383
  %v2386 = vrot.slane %v2196, 2
  %v2387 = vsel %vm1696, %v2386, %v2385
  %v2388 = vrot.slane %v1630, 1
  %v2389 = vsel %vm1678, %v1631, %v2388
  %v2390 = vrot.slane %v1632, 7
  %v2391 = vsel %vm1681, %v2390, %v2389
  %v2392 = vrot.slane %v1633, 6
  %v2393 = vsel %vm1684, %v2392, %v2391
  %v2394 = vrot.slane %v1634, 5
  %v2395 = vsel %vm1687, %v2394, %v2393
  %v2396 = vrot.slane %v1635, 4
  %v2397 = vsel %vm1690, %v2396, %v2395
  %v2398 = vrot.slane %v1636, 3
  %v2399 = vsel %vm1693, %v2398, %v2397
  %v2400 = vrot.slane %v2197, 2
  %v2401 = vsel %vm1696, %v2400, %v2399
  %v2402 = vrot.slane %v1638, 1
  %v2403 = vsel %vm1678, %v1639, %v2402
  %v2404 = vrot.slane %v1640, 7
  %v2405 = vsel %vm1681, %v2404, %v2403
  %v2406 = vrot.slane %v1641, 6
  %v2407 = vsel %vm1684, %v2406, %v2405
  %v2408 = vrot.slane %v1642, 5
  %v2409 = vsel %vm1687, %v2408, %v2407
  %v2410 = vrot.slane %v1643, 4
  %v2411 = vsel %vm1690, %v2410, %v2409
  %v2412 = vrot.slane %v1644, 3
  %v2413 = vsel %vm1693, %v2412, %v2411
  %v2414 = vrot.slane %v2198, 2
  %v2415 = vsel %vm1696, %v2414, %v2413
  %v2416 = vrot.slane %v1646, 1
  %v2417 = vsel %vm1678, %v1647, %v2416
  %v2418 = vrot.slane %v1648, 7
  %v2419 = vsel %vm1681, %v2418, %v2417
  %v2420 = vrot.slane %v1649, 6
  %v2421 = vsel %vm1684, %v2420, %v2419
  %v2422 = vrot.slane %v1650, 5
  %v2423 = vsel %vm1687, %v2422, %v2421
  %v2424 = vrot.slane %v1651, 4
  %v2425 = vsel %vm1690, %v2424, %v2423
  %v2426 = vrot.slane %v1652, 3
  %v2427 = vsel %vm1693, %v2426, %v2425
  %v2428 = vrot.slane %v2199, 2
  %v2429 = vsel %vm1696, %v2428, %v2427
  %v2430 = vrot.slane %v1654, 1
  %v2431 = vsel %vm1678, %v1655, %v2430
  %v2432 = vrot.slane %v1656, 7
  %v2433 = vsel %vm1681, %v2432, %v2431
  %v2434 = vrot.slane %v1657, 6
  %v2435 = vsel %vm1684, %v2434, %v2433
  %v2436 = vrot.slane %v1658, 5
  %v2437 = vsel %vm1687, %v2436, %v2435
  %v2438 = vrot.slane %v1659, 4
  %v2439 = vsel %vm1690, %v2438, %v2437
  %v2440 = vrot.slane %v1660, 3
  %v2441 = vsel %vm1693, %v2440, %v2439
  %v2442 = vrot.slane %v2200, 2
  %v2443 = vsel %vm1696, %v2442, %v2441
  %v2444 = vrot.slane %v1662, 1
  %v2445 = vsel %vm1678, %v1663, %v2444
  %v2446 = vrot.slane %v1664, 7
  %v2447 = vsel %vm1681, %v2446, %v2445
  %v2448 = vrot.slane %v1665, 6
  %v2449 = vsel %vm1684, %v2448, %v2447
  %v2450 = vrot.slane %v1666, 5
  %v2451 = vsel %vm1687, %v2450, %v2449
  %v2452 = vrot.slane %v1667, 4
  %v2453 = vsel %vm1690, %v2452, %v2451
  %v2454 = vrot.slane %v1668, 3
  %v2455 = vsel %vm1693, %v2454, %v2453
  %v2456 = vrot.slane %v2201, 2
  %v2457 = vsel %vm1696, %v2456, %v2455
  %v2458 = vrot.slane %v1670, 1
  %v2459 = vsel %vm1678, %v1671, %v2458
  %v2460 = vrot.slane %v1672, 7
  %v2461 = vsel %vm1681, %v2460, %v2459
  %v2462 = vrot.slane %v1673, 6
  %v2463 = vsel %vm1684, %v2462, %v2461
  %v2464 = vrot.slane %v1674, 5
  %v2465 = vsel %vm1687, %v2464, %v2463
  %v2466 = vrot.slane %v1675, 4
  %v2467 = vsel %vm1690, %v2466, %v2465
  %v2468 = vrot.slane %v1676, 3
  %v2469 = vsel %vm1693, %v2468, %v2467
  %v2470 = vrot.slane %v2202, 2
  %v2471 = vsel %vm1696, %v2470, %v2469
  %v2472 = vpack.c.b16 %v2387, %v2373
  %v2473 = vpack.c.b16 %v2415, %v2401
  %v2474 = vpack.c.b16 %v2443, %v2429
  %v2475 = vpack.c.b16 %v2471, %v2457
  %v2477 = vunpack.c.l.b16 %v2359
  %v2478 = vpack.c.b16 %v2477, %v2477
  %v2479 = vrot.slane %v2478, 2
  %v2481 = vsel %vm1804, %v2472, 0
  %v2484 = vsel %vm1804, %v2473, 0
  %v2487 = vsel %vm1804, %v2474, 0
  %v2490 = vsel %vm1804, %v2475, 0
  %v2493 = vsel %vm1817, %v2479, 0
  %2495 = vmatprep.subr.bf16.mxu0 0
  %2496 = vmatpush1.bf16.msra.mxu0 %v2493
  %2497 = vmatprep.subr.bf16.mxu0 0
  %2498 = vmatpush1.bf16.msra.mxu0 0
  %2499 = vmatprep.subr.bf16.mxu0 0
  %2500 = vmatpush1.bf16.msra.mxu0 0
  %2501 = vmatprep.subr.bf16.mxu0 0
  %2502 = vmatpush1.bf16.msra.mxu0 0
  %2503 = vmatprep.subr.bf16.mxu0 0
  %2504 = vmatpush1.bf16.msra.mxu0 0
  %2505 = vmatprep.subr.bf16.mxu0 0
  %2506 = vmatpush1.bf16.msra.mxu0 0
  %2507 = vmatprep.subr.bf16.mxu0 0
  %2508 = vmatpush1.bf16.msra.mxu0 0
  %2509 = vmatprep.subr.bf16.mxu0 0
  %2510 = vmatpush1.bf16.msra.mxu0 0
  %2511 = vmatprep.subr.bf16.mxu0 0
  %2512 = vmatpush1.bf16.msra.mxu0 0
  %2513 = vmatprep.subr.bf16.mxu0 0
  %2514 = vmatpush1.bf16.msra.mxu0 0
  %2515 = vmatprep.subr.bf16.mxu0 0
  %2516 = vmatpush1.bf16.msra.mxu0 0
  %2517 = vmatprep.subr.bf16.mxu0 0
  %2518 = vmatpush1.bf16.msra.mxu0 0
  %2519 = vmatprep.subr.bf16.mxu0 0
  %2520 = vmatpush1.bf16.msra.mxu0 0
  %2521 = vmatprep.subr.bf16.mxu0 0
  %2522 = vmatpush1.bf16.msra.mxu0 0
  %2523 = vmatprep.subr.bf16.mxu0 0
  %2524 = vmatpush1.bf16.msra.mxu0 0
  %2525 = vmatprep.subr.bf16.mxu0 0
  %2526 = vmatpush1.bf16.msra.mxu0 0
  %2527 = vmatprep.mubr.bf16.mxu0 0
  %2528 = vmatmul.mubr.bf16.gmra.mrb[0].mxu0 %v2481
  %v2529 = vpop.f32.mrb[0].mxu0
  %v2530 = vadd.f32 0.0, %v2529
  %v2531 = vpop.f32.mrb[0].mxu0
  %v2532 = vpop.f32.mrb[0].mxu0
  %v2533 = vadd.f32 0.0, %v2532
  %v2534 = vpop.f32.mrb[0].mxu0
  %2535 = vmatprep.mubr.bf16.mxu0 0
  %2536 = vmatmul.mubr.bf16.gmra.mrb[0].mxu0 %v2484
  %v2537 = vpop.f32.mrb[0].mxu0
  %v2538 = vadd.f32 0.0, %v2537
  %v2539 = vpop.f32.mrb[0].mxu0
  %v2540 = vpop.f32.mrb[0].mxu0
  %v2541 = vadd.f32 0.0, %v2540
  %v2542 = vpop.f32.mrb[0].mxu0
  %2543 = vmatprep.mubr.bf16.mxu0 0
  %2544 = vmatmul.mubr.bf16.gmra.mrb[0].mxu0 %v2487
  %v2545 = vpop.f32.mrb[0].mxu0
  %v2546 = vadd.f32 0.0, %v2545
  %v2547 = vpop.f32.mrb[0].mxu0
  %v2548 = vpop.f32.mrb[0].mxu0
  %v2549 = vadd.f32 0.0, %v2548
  %v2550 = vpop.f32.mrb[0].mxu0
  %2551 = vmatprep.mubr.bf16.mxu0 0
  %2552 = vmatmul.mubr.bf16.gmra.mrb[0].mxu0 %v2490
  %v2553 = vpop.f32.mrb[0].mxu0
  %v2554 = vadd.f32 0.0, %v2553
  %v2555 = vpop.f32.mrb[0].mxu0
  %v2556 = vpop.f32.mrb[0].mxu0
  %v2557 = vadd.f32 0.0, %v2556
  %v2558 = vpop.f32.mrb[0].mxu0
  %2559 = vdwg.mxu0
  %v2560 = vadd.f32 %v2351, %v2530
  %v2561 = vadd.f32 %v2352, %v2533
  %v2562 = vadd.f32 %v2353, %v2538
  %v2563 = vadd.f32 %v2354, %v2541
  %v2564 = vadd.f32 %v2355, %v2546
  %v2565 = vadd.f32 %v2356, %v2549
  %v2566 = vadd.f32 %v2357, %v2554
  %v2567 = vadd.f32 %v2358, %v2557
  %v2568 = vld [vmem:[%s1 + $0x8] sm:$0x3]
  %v2570 = vunpack.c.l.s4 1966171168
  %v2571 = vunpack.c.0.s8 %v2570
  %v2572 = vlaneseq
  %v2573 = vshrl.u32 %v2572, 7
  %v2574 = vsub.s32 %v2571, %v2573
  %v2575 = vrot.slane %v217, %v2574
  %v2577 = vunpack.c.l.s4 1966171168
  %v2578 = vunpack.c.0.s8 %v2577
  %v2579 = vlaneseq
  %v2580 = vshrl.u32 %v2579, 7
  %v2581 = vsub.s32 %v2578, %v2580
  %v2582 = vrot.slane %v2575, %v2581
  %v2584 = vunpack.c.l.s4 1966171168
  %v2585 = vunpack.c.0.s8 %v2584
  %v2586 = vlaneseq
  %v2587 = vshrl.u32 %v2586, 7
  %v2588 = vsub.s32 %v2585, %v2587
  %v2589 = vrot.slane %v288, %v2588
  %v2591 = vunpack.c.l.s4 1966171168
  %v2592 = vunpack.c.0.s8 %v2591
  %v2593 = vlaneseq
  %v2594 = vshrl.u32 %v2593, 7
  %v2595 = vsub.s32 %v2592, %v2594
  %v2596 = vrot.slane %v2589, %v2595
  %v2598 = vunpack.c.l.s4 1966171168
  %v2599 = vunpack.c.0.s8 %v2598
  %v2600 = vlaneseq
  %v2601 = vshrl.u32 %v2600, 7
  %v2602 = vsub.s32 %v2599, %v2601
  %v2603 = vrot.slane %v359, %v2602
  %v2605 = vunpack.c.l.s4 1966171168
  %v2606 = vunpack.c.0.s8 %v2605
  %v2607 = vlaneseq
  %v2608 = vshrl.u32 %v2607, 7
  %v2609 = vsub.s32 %v2606, %v2608
  %v2610 = vrot.slane %v2603, %v2609
  %v2612 = vunpack.c.l.s4 1966171168
  %v2613 = vunpack.c.0.s8 %v2612
  %v2614 = vlaneseq
  %v2615 = vshrl.u32 %v2614, 7
  %v2616 = vsub.s32 %v2613, %v2615
  %v2617 = vrot.slane %v430, %v2616
  %v2619 = vunpack.c.l.s4 1966171168
  %v2620 = vunpack.c.0.s8 %v2619
  %v2621 = vlaneseq
  %v2622 = vshrl.u32 %v2621, 7
  %v2623 = vsub.s32 %v2620, %v2622
  %v2624 = vrot.slane %v2617, %v2623
  %v2626 = vunpack.c.l.s4 1966171168
  %v2627 = vunpack.c.0.s8 %v2626
  %v2628 = vlaneseq
  %v2629 = vshrl.u32 %v2628, 7
  %v2630 = vsub.s32 %v2627, %v2629
  %v2631 = vrot.slane %v501, %v2630
  %v2633 = vunpack.c.l.s4 1966171168
  %v2634 = vunpack.c.0.s8 %v2633
  %v2635 = vlaneseq
  %v2636 = vshrl.u32 %v2635, 7
  %v2637 = vsub.s32 %v2634, %v2636
  %v2638 = vrot.slane %v2631, %v2637
  %v2640 = vunpack.c.l.s4 1966171168
  %v2641 = vunpack.c.0.s8 %v2640
  %v2642 = vlaneseq
  %v2643 = vshrl.u32 %v2642, 7
  %v2644 = vsub.s32 %v2641, %v2643
  %v2645 = vrot.slane %v572, %v2644
  %v2647 = vunpack.c.l.s4 1966171168
  %v2648 = vunpack.c.0.s8 %v2647
  %v2649 = vlaneseq
  %v2650 = vshrl.u32 %v2649, 7
  %v2651 = vsub.s32 %v2648, %v2650
  %v2652 = vrot.slane %v2645, %v2651
  %v2654 = vunpack.c.l.s4 1966171168
  %v2655 = vunpack.c.0.s8 %v2654
  %v2656 = vlaneseq
  %v2657 = vshrl.u32 %v2656, 7
  %v2658 = vsub.s32 %v2655, %v2657
  %v2659 = vrot.slane %v643, %v2658
  %v2661 = vunpack.c.l.s4 1966171168
  %v2662 = vunpack.c.0.s8 %v2661
  %v2663 = vlaneseq
  %v2664 = vshrl.u32 %v2663, 7
  %v2665 = vsub.s32 %v2662, %v2664
  %v2666 = vrot.slane %v2659, %v2665
  %v2668 = vunpack.c.l.s4 1966171168
  %v2669 = vunpack.c.0.s8 %v2668
  %v2670 = vlaneseq
  %v2671 = vshrl.u32 %v2670, 7
  %v2672 = vsub.s32 %v2669, %v2671
  %v2673 = vrot.slane %v714, %v2672
  %v2675 = vunpack.c.l.s4 1966171168
  %v2676 = vunpack.c.0.s8 %v2675
  %v2677 = vlaneseq
  %v2678 = vshrl.u32 %v2677, 7
  %v2679 = vsub.s32 %v2676, %v2678
  %v2680 = vrot.slane %v2673, %v2679
  %v2681 = vunpack.c.l.b16 %v2582
  %v2682 = vunpack.c.l.b16 %v2596
  %v2683 = vunpack.c.l.b16 %v2610
  %v2684 = vunpack.c.l.b16 %v2624
  %v2685 = vunpack.c.l.b16 %v2638
  %v2686 = vunpack.c.l.b16 %v2652
  %v2687 = vunpack.c.l.b16 %v2666
  %v2688 = vunpack.c.l.b16 %v2680
  %v2689 = vsel %vm1678, %v2362, %v1615
  %v2690 = vsel %vm1681, %v2364, %v2689
  %v2691 = vsel %vm1684, %v2366, %v2690
  %v2692 = vsel %vm1687, %v2368, %v2691
  %v2693 = vsel %vm1690, %v2370, %v2692
  %v2694 = vsel %vm1693, %v2372, %v2693
  %v2695 = vrot.slane %v2681, 1
  %v2696 = vsel %vm1696, %v2695, %v2694
  %v2697 = vsel %vm1678, %v2376, %v1623
  %v2698 = vsel %vm1681, %v2378, %v2697
  %v2699 = vsel %vm1684, %v2380, %v2698
  %v2700 = vsel %vm1687, %v2382, %v2699
  %v2701 = vsel %vm1690, %v2384, %v2700
  %v2702 = vsel %vm1693, %v2386, %v2701
  %v2703 = vrot.slane %v2682, 1
  %v2704 = vsel %vm1696, %v2703, %v2702
  %v2705 = vsel %vm1678, %v2390, %v1631
  %v2706 = vsel %vm1681, %v2392, %v2705
  %v2707 = vsel %vm1684, %v2394, %v2706
  %v2708 = vsel %vm1687, %v2396, %v2707
  %v2709 = vsel %vm1690, %v2398, %v2708
  %v2710 = vsel %vm1693, %v2400, %v2709
  %v2711 = vrot.slane %v2683, 1
  %v2712 = vsel %vm1696, %v2711, %v2710
  %v2713 = vsel %vm1678, %v2404, %v1639
  %v2714 = vsel %vm1681, %v2406, %v2713
  %v2715 = vsel %vm1684, %v2408, %v2714
  %v2716 = vsel %vm1687, %v2410, %v2715
  %v2717 = vsel %vm1690, %v2412, %v2716
  %v2718 = vsel %vm1693, %v2414, %v2717
  %v2719 = vrot.slane %v2684, 1
  %v2720 = vsel %vm1696, %v2719, %v2718
  %v2721 = vsel %vm1678, %v2418, %v1647
  %v2722 = vsel %vm1681, %v2420, %v2721
  %v2723 = vsel %vm1684, %v2422, %v2722
  %v2724 = vsel %vm1687, %v2424, %v2723
  %v2725 = vsel %vm1690, %v2426, %v2724
  %v2726 = vsel %vm1693, %v2428, %v2725
  %v2727 = vrot.slane %v2685, 1
  %v2728 = vsel %vm1696, %v2727, %v2726
  %v2729 = vsel %vm1678, %v2432, %v1655
  %v2730 = vsel %vm1681, %v2434, %v2729
  %v2731 = vsel %vm1684, %v2436, %v2730
  %v2732 = vsel %vm1687, %v2438, %v2731
  %v2733 = vsel %vm1690, %v2440, %v2732
  %v2734 = vsel %vm1693, %v2442, %v2733
  %v2735 = vrot.slane %v2686, 1
  %v2736 = vsel %vm1696, %v2735, %v2734
  %v2737 = vsel %vm1678, %v2446, %v1663
  %v2738 = vsel %vm1681, %v2448, %v2737
  %v2739 = vsel %vm1684, %v2450, %v2738
  %v2740 = vsel %vm1687, %v2452, %v2739
  %v2741 = vsel %vm1690, %v2454, %v2740
  %v2742 = vsel %vm1693, %v2456, %v2741
  %v2743 = vrot.slane %v2687, 1
  %v2744 = vsel %vm1696, %v2743, %v2742
  %v2745 = vsel %vm1678, %v2460, %v1671
  %v2746 = vsel %vm1681, %v2462, %v2745
  %v2747 = vsel %vm1684, %v2464, %v2746
  %v2748 = vsel %vm1687, %v2466, %v2747
  %v2749 = vsel %vm1690, %v2468, %v2748
  %v2750 = vsel %vm1693, %v2470, %v2749
  %v2751 = vrot.slane %v2688, 1
  %v2752 = vsel %vm1696, %v2751, %v2750
  %v2753 = vpack.c.b16 %v2704, %v2696
  %v2754 = vpack.c.b16 %v2720, %v2712
  %v2755 = vpack.c.b16 %v2736, %v2728
  %v2756 = vpack.c.b16 %v2752, %v2744
  %v2758 = vsel %vm1804, %v2753, 0
  %v2761 = vsel %vm1804, %v2754, 0
  %v2764 = vsel %vm1804, %v2755, 0
  %v2767 = vsel %vm1804, %v2756, 0
  %v2770 = vsel %vm1817, %v2568, 0
  %2772 = vmatprep.subr.bf16.mxu0 0
  %2773 = vmatpush1.bf16.msra.mxu0 %v2770
  %2774 = vmatprep.subr.bf16.mxu0 0
  %2775 = vmatpush1.bf16.msra.mxu0 0
  %2776 = vmatprep.subr.bf16.mxu0 0
  %2777 = vmatpush1.bf16.msra.mxu0 0
  %2778 = vmatprep.subr.bf16.mxu0 0
  %2779 = vmatpush1.bf16.msra.mxu0 0
  %2780 = vmatprep.subr.bf16.mxu0 0
  %2781 = vmatpush1.bf16.msra.mxu0 0
  %2782 = vmatprep.subr.bf16.mxu0 0
  %2783 = vmatpush1.bf16.msra.mxu0 0
  %2784 = vmatprep.subr.bf16.mxu0 0
  %2785 = vmatpush1.bf16.msra.mxu0 0
  %2786 = vmatprep.subr.bf16.mxu0 0
  %2787 = vmatpush1.bf16.msra.mxu0 0
  %2788 = vmatprep.subr.bf16.mxu0 0
  %2789 = vmatpush1.bf16.msra.mxu0 0
  %2790 = vmatprep.subr.bf16.mxu0 0
  %2791 = vmatpush1.bf16.msra.mxu0 0
  %2792 = vmatprep.subr.bf16.mxu0 0
  %2793 = vmatpush1.bf16.msra.mxu0 0
  %2794 = vmatprep.subr.bf16.mxu0 0
  %2795 = vmatpush1.bf16.msra.mxu0 0
  %2796 = vmatprep.subr.bf16.mxu0 0
  %2797 = vmatpush1.bf16.msra.mxu0 0
  %2798 = vmatprep.subr.bf16.mxu0 0
  %2799 = vmatpush1.bf16.msra.mxu0 0
  %2800 = vmatprep.subr.bf16.mxu0 0
  %2801 = vmatpush1.bf16.msra.mxu0 0
  %2802 = vmatprep.subr.bf16.mxu0 0
  %2803 = vmatpush1.bf16.msra.mxu0 0
  %2804 = vmatprep.mubr.bf16.mxu0 0
  %2805 = vmatmul.mubr.bf16.gmra.mrb[0].mxu0 %v2758
  %v2806 = vpop.f32.mrb[0].mxu0
  %v2807 = vadd.f32 0.0, %v2806
  %v2808 = vpop.f32.mrb[0].mxu0
  %v2809 = vpop.f32.mrb[0].mxu0
  %v2810 = vadd.f32 0.0, %v2809
  %v2811 = vpop.f32.mrb[0].mxu0
  %2812 = vmatprep.mubr.bf16.mxu0 0
  %2813 = vmatmul.mubr.bf16.gmra.mrb[0].mxu0 %v2761
  %v2814 = vpop.f32.mrb[0].mxu0
  %v2815 = vadd.f32 0.0, %v2814
  %v2816 = vpop.f32.mrb[0].mxu0
  %v2817 = vpop.f32.mrb[0].mxu0
  %v2818 = vadd.f32 0.0, %v2817
  %v2819 = vpop.f32.mrb[0].mxu0
  %2820 = vmatprep.mubr.bf16.mxu0 0
  %2821 = vmatmul.mubr.bf16.gmra.mrb[0].mxu0 %v2764
  %v2822 = vpop.f32.mrb[0].mxu0
  %v2823 = vadd.f32 0.0, %v2822
  %v2824 = vpop.f32.mrb[0].mxu0
  %v2825 = vpop.f32.mrb[0].mxu0
  %v2826 = vadd.f32 0.0, %v2825
  %v2827 = vpop.f32.mrb[0].mxu0
  %2828 = vmatprep.mubr.bf16.mxu0 0
  %2829 = vmatmul.mubr.bf16.gmra.mrb[0].mxu0 %v2767
  %v2830 = vpop.f32.mrb[0].mxu0
  %v2831 = vadd.f32 0.0, %v2830
  %v2832 = vpop.f32.mrb[0].mxu0
  %v2833 = vpop.f32.mrb[0].mxu0
  %v2834 = vadd.f32 0.0, %v2833
  %v2835 = vpop.f32.mrb[0].mxu0
  %2836 = vdwg.mxu0
  %v2837 = vadd.f32 %v2560, %v2807
  %v2838 = vadd.f32 %v2561, %v2810
  %v2839 = vadd.f32 %v2562, %v2815
  %v2840 = vadd.f32 %v2563, %v2818
  %v2841 = vadd.f32 %v2564, %v2823
  %v2842 = vadd.f32 %v2565, %v2826
  %v2843 = vadd.f32 %v2566, %v2831
  %v2844 = vadd.f32 %v2567, %v2834
  %v2845 = vld [vmem:[%s2] sm:$0x1]
  %v2847 = vlaneseq
  %v2848 = vshrl.u32 %v2847, 7
  %v2849 = vsub.s32 0, %v2848
  %v2850 = vrot.slane %v2845, %v2849
  %v2852 = vadd.f32 %v2837, %v2850
  %v2853 = vadd.f32 %v2838, %v2850
  %v2854 = vadd.f32 %v2839, %v2850
  %v2855 = vadd.f32 %v2840, %v2850
  %v2856 = vadd.f32 %v2841, %v2850
  %v2857 = vadd.f32 %v2842, %v2850
  %v2858 = vadd.f32 %v2843, %v2850
  %v2859 = vadd.f32 %v2844, %v2850
  %vm2860 = vcmp.gt.f32.partialorder %v2852, 0.0
  %vm2861 = vcmp.gt.f32.partialorder %v2853, 0.0
  %vm2862 = vcmp.gt.f32.partialorder %v2854, 0.0
  %vm2863 = vcmp.gt.f32.partialorder %v2855, 0.0
  %vm2864 = vcmp.gt.f32.partialorder %v2856, 0.0
  %vm2865 = vcmp.gt.f32.partialorder %v2857, 0.0
  %vm2866 = vcmp.gt.f32.partialorder %v2858, 0.0
  %vm2867 = vcmp.gt.f32.partialorder %v2859, 0.0
  %v2868 = vmul.f32 %v2852, 0.2
  %v2869 = vmul.f32 %v2853, 0.2
  %v2870 = vmul.f32 %v2854, 0.2
  %v2871 = vmul.f32 %v2855, 0.2
  %v2872 = vmul.f32 %v2856, 0.2
  %v2873 = vmul.f32 %v2857, 0.2
  %v2874 = vmul.f32 %v2858, 0.2
  %v2875 = vmul.f32 %v2859, 0.2
  %v2876 = vsel %vm2860, %v2852, %v2868
  %v2877 = vsel %vm2861, %v2853, %v2869
  %v2878 = vsel %vm2862, %v2854, %v2870
  %v2879 = vsel %vm2863, %v2855, %v2871
  %v2880 = vsel %vm2864, %v2856, %v2872
  %v2881 = vsel %vm2865, %v2857, %v2873
  %v2882 = vsel %vm2866, %v2858, %v2874
  %v2883 = vsel %vm2867, %v2859, %v2875
  %v2884 = vpack.c.bf16 %v2876, %v2876
  %v2885 = vpack.c.bf16 %v2877, %v2877
  %v2886 = vpack.c.bf16 %v2878, %v2878
  %v2887 = vpack.c.bf16 %v2879, %v2879
  %v2888 = vpack.c.bf16 %v2880, %v2880
  %v2889 = vpack.c.bf16 %v2881, %v2881
  %v2890 = vpack.c.bf16 %v2882, %v2882
  %v2891 = vpack.c.bf16 %v2883, %v2883
  %v2900 = vrot.slane %v2884, 7
  %v2901 = vrot.slane %v2885, 7
  %v2902 = vrot.slane %v2886, 7
  %v2903 = vrot.slane %v2887, 7
  %v2904 = vrot.slane %v2888, 7
  %v2905 = vrot.slane %v2889, 7
  %v2906 = vrot.slane %v2890, 7
  %v2907 = vrot.slane %v2891, 7
  %v2909 = vsel %vm105, 0, %v2900
  %v2911 = vsel %vm105, 0, %v2901
  %v2913 = vsel %vm105, 0, %v2902
  %v2915 = vsel %vm105, 0, %v2903
  %v2917 = vsel %vm105, 0, %v2904
  %v2919 = vsel %vm105, 0, %v2905
  %v2921 = vsel %vm105, 0, %v2906
  %v2923 = vsel %vm105, 0, %v2907
  %vm2924 = vcmask 1044480
  %v2925 = vsel %vm2924, %v2909, 0
  %v2926 = vsel %vm2924, %v2911, 0
  %v2927 = vsel %vm2924, %v2913, 0
  %v2928 = vsel %vm2924, %v2915, 0
  %v2929 = vsel %vm2924, %v2917, 0
  %v2930 = vsel %vm2924, %v2919, 0
  %v2931 = vsel %vm2924, %v2921, 0
  %v2932 = vsel %vm2924, %v2923, 0
  %v2941 = vcombine.high %v2925, %v2925
  %v2943 = vunpack.c.l.s4 1966171168
  %v2944 = vunpack.c.0.s8 %v2943
  %v2945 = vlaneseq
  %v2946 = vshrl.u32 %v2945, 7
  %v2947 = vsub.s32 %v2944, %v2946
  %v2948 = vrot.slane %v2925, %v2947
  %v2950 = vunpack.c.l.s4 1966171168
  %v2951 = vunpack.c.0.s8 %v2950
  %v2952 = vlaneseq
  %v2953 = vshrl.u32 %v2952, 7
  %v2954 = vsub.s32 %v2951, %v2953
  %v2955 = vrot.slane %v2941, %v2954
  %v2956 = vcombine.high %v2948, %v2948
  %v2957 = vcombine.high %v2955, %v2955
  %v2959 = vunpack.c.l.s4 1966171168
  %v2960 = vunpack.c.0.s8 %v2959
  %v2961 = vlaneseq
  %v2962 = vshrl.u32 %v2961, 7
  %v2963 = vsub.s32 %v2960, %v2962
  %v2964 = vrot.slane %v2948, %v2963
  %v2966 = vunpack.c.l.s4 1966171168
  %v2967 = vunpack.c.0.s8 %v2966
  %v2968 = vlaneseq
  %v2969 = vshrl.u32 %v2968, 7
  %v2970 = vsub.s32 %v2967, %v2969
  %v2971 = vrot.slane %v2955, %v2970
  %v2973 = vunpack.c.l.s4 1966171168
  %v2974 = vunpack.c.0.s8 %v2973
  %v2975 = vlaneseq
  %v2976 = vshrl.u32 %v2975, 7
  %v2977 = vsub.s32 %v2974, %v2976
  %v2978 = vrot.slane %v2956, %v2977
  %v2980 = vunpack.c.l.s4 1966171168
  %v2981 = vunpack.c.0.s8 %v2980
  %v2982 = vlaneseq
  %v2983 = vshrl.u32 %v2982, 7
  %v2984 = vsub.s32 %v2981, %v2983
  %v2985 = vrot.slane %v2957, %v2984
  %v2986 = vcombine.high %v2964, %v2964
  %v2987 = vcombine.high %v2978, %v2978
  %v2988 = vcombine.high %v2926, %v2926
  %v2990 = vunpack.c.l.s4 1966171168
  %v2991 = vunpack.c.0.s8 %v2990
  %v2992 = vlaneseq
  %v2993 = vshrl.u32 %v2992, 7
  %v2994 = vsub.s32 %v2991, %v2993
  %v2995 = vrot.slane %v2926, %v2994
  %v2997 = vunpack.c.l.s4 1966171168
  %v2998 = vunpack.c.0.s8 %v2997
  %v2999 = vlaneseq
  %v3000 = vshrl.u32 %v2999, 7
  %v3001 = vsub.s32 %v2998, %v3000
  %v3002 = vrot.slane %v2988, %v3001
  %v3003 = vcombine.high %v2995, %v2995
  %v3004 = vcombine.high %v3002, %v3002
  %v3006 = vunpack.c.l.s4 1966171168
  %v3007 = vunpack.c.0.s8 %v3006
  %v3008 = vlaneseq
  %v3009 = vshrl.u32 %v3008, 7
  %v3010 = vsub.s32 %v3007, %v3009
  %v3011 = vrot.slane %v2995, %v3010
  %v3013 = vunpack.c.l.s4 1966171168
  %v3014 = vunpack.c.0.s8 %v3013
  %v3015 = vlaneseq
  %v3016 = vshrl.u32 %v3015, 7
  %v3017 = vsub.s32 %v3014, %v3016
  %v3018 = vrot.slane %v3002, %v3017
  %v3020 = vunpack.c.l.s4 1966171168
  %v3021 = vunpack.c.0.s8 %v3020
  %v3022 = vlaneseq
  %v3023 = vshrl.u32 %v3022, 7
  %v3024 = vsub.s32 %v3021, %v3023
  %v3025 = vrot.slane %v3003, %v3024
  %v3027 = vunpack.c.l.s4 1966171168
  %v3028 = vunpack.c.0.s8 %v3027
  %v3029 = vlaneseq
  %v3030 = vshrl.u32 %v3029, 7
  %v3031 = vsub.s32 %v3028, %v3030
  %v3032 = vrot.slane %v3004, %v3031
  %v3033 = vcombine.high %v3011, %v3011
  %v3034 = vcombine.high %v3025, %v3025
  %v3035 = vcombine.high %v2927, %v2927
  %v3037 = vunpack.c.l.s4 1966171168
  %v3038 = vunpack.c.0.s8 %v3037
  %v3039 = vlaneseq
  %v3040 = vshrl.u32 %v3039, 7
  %v3041 = vsub.s32 %v3038, %v3040
  %v3042 = vrot.slane %v2927, %v3041
  %v3044 = vunpack.c.l.s4 1966171168
  %v3045 = vunpack.c.0.s8 %v3044
  %v3046 = vlaneseq
  %v3047 = vshrl.u32 %v3046, 7
  %v3048 = vsub.s32 %v3045, %v3047
  %v3049 = vrot.slane %v3035, %v3048
  %v3050 = vcombine.high %v3042, %v3042
  %v3051 = vcombine.high %v3049, %v3049
  %v3053 = vunpack.c.l.s4 1966171168
  %v3054 = vunpack.c.0.s8 %v3053
  %v3055 = vlaneseq
  %v3056 = vshrl.u32 %v3055, 7
  %v3057 = vsub.s32 %v3054, %v3056
  %v3058 = vrot.slane %v3042, %v3057
  %v3060 = vunpack.c.l.s4 1966171168
  %v3061 = vunpack.c.0.s8 %v3060
  %v3062 = vlaneseq
  %v3063 = vshrl.u32 %v3062, 7
  %v3064 = vsub.s32 %v3061, %v3063
  %v3065 = vrot.slane %v3049, %v3064
  %v3067 = vunpack.c.l.s4 1966171168
  %v3068 = vunpack.c.0.s8 %v3067
  %v3069 = vlaneseq
  %v3070 = vshrl.u32 %v3069, 7
  %v3071 = vsub.s32 %v3068, %v3070
  %v3072 = vrot.slane %v3050, %v3071
  %v3074 = vunpack.c.l.s4 1966171168
  %v3075 = vunpack.c.0.s8 %v3074
  %v3076 = vlaneseq
  %v3077 = vshrl.u32 %v3076, 7
  %v3078 = vsub.s32 %v3075, %v3077
  %v3079 = vrot.slane %v3051, %v3078
  %v3080 = vcombine.high %v3058, %v3058
  %v3081 = vcombine.high %v3072, %v3072
  %v3082 = vcombine.high %v2928, %v2928
  %v3084 = vunpack.c.l.s4 1966171168
  %v3085 = vunpack.c.0.s8 %v3084
  %v3086 = vlaneseq
  %v3087 = vshrl.u32 %v3086, 7
  %v3088 = vsub.s32 %v3085, %v3087
  %v3089 = vrot.slane %v2928, %v3088
  %v3091 = vunpack.c.l.s4 1966171168
  %v3092 = vunpack.c.0.s8 %v3091
  %v3093 = vlaneseq
  %v3094 = vshrl.u32 %v3093, 7
  %v3095 = vsub.s32 %v3092, %v3094
  %v3096 = vrot.slane %v3082, %v3095
  %v3097 = vcombine.high %v3089, %v3089
  %v3098 = vcombine.high %v3096, %v3096
  %v3100 = vunpack.c.l.s4 1966171168
  %v3101 = vunpack.c.0.s8 %v3100
  %v3102 = vlaneseq
  %v3103 = vshrl.u32 %v3102, 7
  %v3104 = vsub.s32 %v3101, %v3103
  %v3105 = vrot.slane %v3089, %v3104
  %v3107 = vunpack.c.l.s4 1966171168
  %v3108 = vunpack.c.0.s8 %v3107
  %v3109 = vlaneseq
  %v3110 = vshrl.u32 %v3109, 7
  %v3111 = vsub.s32 %v3108, %v3110
  %v3112 = vrot.slane %v3096, %v3111
  %v3114 = vunpack.c.l.s4 1966171168
  %v3115 = vunpack.c.0.s8 %v3114
  %v3116 = vlaneseq
  %v3117 = vshrl.u32 %v3116, 7
  %v3118 = vsub.s32 %v3115, %v3117
  %v3119 = vrot.slane %v3097, %v3118
  %v3121 = vunpack.c.l.s4 1966171168
  %v3122 = vunpack.c.0.s8 %v3121
  %v3123 = vlaneseq
  %v3124 = vshrl.u32 %v3123, 7
  %v3125 = vsub.s32 %v3122, %v3124
  %v3126 = vrot.slane %v3098, %v3125
  %v3127 = vcombine.high %v3105, %v3105
  %v3128 = vcombine.high %v3119, %v3119
  %v3129 = vcombine.high %v2929, %v2929
  %v3131 = vunpack.c.l.s4 1966171168
  %v3132 = vunpack.c.0.s8 %v3131
  %v3133 = vlaneseq
  %v3134 = vshrl.u32 %v3133, 7
  %v3135 = vsub.s32 %v3132, %v3134
  %v3136 = vrot.slane %v2929, %v3135
  %v3138 = vunpack.c.l.s4 1966171168
  %v3139 = vunpack.c.0.s8 %v3138
  %v3140 = vlaneseq
  %v3141 = vshrl.u32 %v3140, 7
  %v3142 = vsub.s32 %v3139, %v3141
  %v3143 = vrot.slane %v3129, %v3142
  %v3144 = vcombine.high %v3136, %v3136
  %v3145 = vcombine.high %v3143, %v3143
  %v3147 = vunpack.c.l.s4 1966171168
  %v3148 = vunpack.c.0.s8 %v3147
  %v3149 = vlaneseq
  %v3150 = vshrl.u32 %v3149, 7
  %v3151 = vsub.s32 %v3148, %v3150
  %v3152 = vrot.slane %v3136, %v3151
  %v3154 = vunpack.c.l.s4 1966171168
  %v3155 = vunpack.c.0.s8 %v3154
  %v3156 = vlaneseq
  %v3157 = vshrl.u32 %v3156, 7
  %v3158 = vsub.s32 %v3155, %v3157
  %v3159 = vrot.slane %v3143, %v3158
  %v3161 = vunpack.c.l.s4 1966171168
  %v3162 = vunpack.c.0.s8 %v3161
  %v3163 = vlaneseq
  %v3164 = vshrl.u32 %v3163, 7
  %v3165 = vsub.s32 %v3162, %v3164
  %v3166 = vrot.slane %v3144, %v3165
  %v3168 = vunpack.c.l.s4 1966171168
  %v3169 = vunpack.c.0.s8 %v3168
  %v3170 = vlaneseq
  %v3171 = vshrl.u32 %v3170, 7
  %v3172 = vsub.s32 %v3169, %v3171
  %v3173 = vrot.slane %v3145, %v3172
  %v3174 = vcombine.high %v3152, %v3152
  %v3175 = vcombine.high %v3166, %v3166
  %v3176 = vcombine.high %v2930, %v2930
  %v3178 = vunpack.c.l.s4 1966171168
  %v3179 = vunpack.c.0.s8 %v3178
  %v3180 = vlaneseq
  %v3181 = vshrl.u32 %v3180, 7
  %v3182 = vsub.s32 %v3179, %v3181
  %v3183 = vrot.slane %v2930, %v3182
  %v3185 = vunpack.c.l.s4 1966171168
  %v3186 = vunpack.c.0.s8 %v3185
  %v3187 = vlaneseq
  %v3188 = vshrl.u32 %v3187, 7
  %v3189 = vsub.s32 %v3186, %v3188
  %v3190 = vrot.slane %v3176, %v3189
  %v3191 = vcombine.high %v3183, %v3183
  %v3192 = vcombine.high %v3190, %v3190
  %v3194 = vunpack.c.l.s4 1966171168
  %v3195 = vunpack.c.0.s8 %v3194
  %v3196 = vlaneseq
  %v3197 = vshrl.u32 %v3196, 7
  %v3198 = vsub.s32 %v3195, %v3197
  %v3199 = vrot.slane %v3183, %v3198
  %v3201 = vunpack.c.l.s4 1966171168
  %v3202 = vunpack.c.0.s8 %v3201
  %v3203 = vlaneseq
  %v3204 = vshrl.u32 %v3203, 7
  %v3205 = vsub.s32 %v3202, %v3204
  %v3206 = vrot.slane %v3190, %v3205
  %v3208 = vunpack.c.l.s4 1966171168
  %v3209 = vunpack.c.0.s8 %v3208
  %v3210 = vlaneseq
  %v3211 = vshrl.u32 %v3210, 7
  %v3212 = vsub.s32 %v3209, %v3211
  %v3213 = vrot.slane %v3191, %v3212
  %v3215 = vunpack.c.l.s4 1966171168
  %v3216 = vunpack.c.0.s8 %v3215
  %v3217 = vlaneseq
  %v3218 = vshrl.u32 %v3217, 7
  %v3219 = vsub.s32 %v3216, %v3218
  %v3220 = vrot.slane %v3192, %v3219
  %v3221 = vcombine.high %v3199, %v3199
  %v3222 = vcombine.high %v3213, %v3213
  %v3223 = vcombine.high %v2931, %v2931
  %v3225 = vunpack.c.l.s4 1966171168
  %v3226 = vunpack.c.0.s8 %v3225
  %v3227 = vlaneseq
  %v3228 = vshrl.u32 %v3227, 7
  %v3229 = vsub.s32 %v3226, %v3228
  %v3230 = vrot.slane %v2931, %v3229
  %v3232 = vunpack.c.l.s4 1966171168
  %v3233 = vunpack.c.0.s8 %v3232
  %v3234 = vlaneseq
  %v3235 = vshrl.u32 %v3234, 7
  %v3236 = vsub.s32 %v3233, %v3235
  %v3237 = vrot.slane %v3223, %v3236
  %v3238 = vcombine.high %v3230, %v3230
  %v3239 = vcombine.high %v3237, %v3237
  %v3241 = vunpack.c.l.s4 1966171168
  %v3242 = vunpack.c.0.s8 %v3241
  %v3243 = vlaneseq
  %v3244 = vshrl.u32 %v3243, 7
  %v3245 = vsub.s32 %v3242, %v3244
  %v3246 = vrot.slane %v3230, %v3245
  %v3248 = vunpack.c.l.s4 1966171168
  %v3249 = vunpack.c.0.s8 %v3248
  %v3250 = vlaneseq
  %v3251 = vshrl.u32 %v3250, 7
  %v3252 = vsub.s32 %v3249, %v3251
  %v3253 = vrot.slane %v3237, %v3252
  %v3255 = vunpack.c.l.s4 1966171168
  %v3256 = vunpack.c.0.s8 %v3255
  %v3257 = vlaneseq
  %v3258 = vshrl.u32 %v3257, 7
  %v3259 = vsub.s32 %v3256, %v3258
  %v3260 = vrot.slane %v3238, %v3259
  %v3262 = vunpack.c.l.s4 1966171168
  %v3263 = vunpack.c.0.s8 %v3262
  %v3264 = vlaneseq
  %v3265 = vshrl.u32 %v3264, 7
  %v3266 = vsub.s32 %v3263, %v3265
  %v3267 = vrot.slane %v3239, %v3266
  %v3268 = vcombine.high %v3246, %v3246
  %v3269 = vcombine.high %v3260, %v3260
  %v3270 = vcombine.high %v2932, %v2932
  %v3272 = vunpack.c.l.s4 1966171168
  %v3273 = vunpack.c.0.s8 %v3272
  %v3274 = vlaneseq
  %v3275 = vshrl.u32 %v3274, 7
  %v3276 = vsub.s32 %v3273, %v3275
  %v3277 = vrot.slane %v2932, %v3276
  %v3279 = vunpack.c.l.s4 1966171168
  %v3280 = vunpack.c.0.s8 %v3279
  %v3281 = vlaneseq
  %v3282 = vshrl.u32 %v3281, 7
  %v3283 = vsub.s32 %v3280, %v3282
  %v3284 = vrot.slane %v3270, %v3283
  %v3285 = vcombine.high %v3277, %v3277
  %v3286 = vcombine.high %v3284, %v3284
  %v3288 = vunpack.c.l.s4 1966171168
  %v3289 = vunpack.c.0.s8 %v3288
  %v3290 = vlaneseq
  %v3291 = vshrl.u32 %v3290, 7
  %v3292 = vsub.s32 %v3289, %v3291
  %v3293 = vrot.slane %v3277, %v3292
  %v3295 = vunpack.c.l.s4 1966171168
  %v3296 = vunpack.c.0.s8 %v3295
  %v3297 = vlaneseq
  %v3298 = vshrl.u32 %v3297, 7
  %v3299 = vsub.s32 %v3296, %v3298
  %v3300 = vrot.slane %v3284, %v3299
  %v3302 = vunpack.c.l.s4 1966171168
  %v3303 = vunpack.c.0.s8 %v3302
  %v3304 = vlaneseq
  %v3305 = vshrl.u32 %v3304, 7
  %v3306 = vsub.s32 %v3303, %v3305
  %v3307 = vrot.slane %v3285, %v3306
  %v3309 = vunpack.c.l.s4 1966171168
  %v3310 = vunpack.c.0.s8 %v3309
  %v3311 = vlaneseq
  %v3312 = vshrl.u32 %v3311, 7
  %v3313 = vsub.s32 %v3310, %v3312
  %v3314 = vrot.slane %v3286, %v3313
  %v3315 = vcombine.high %v3293, %v3293
  %v3316 = vcombine.high %v3307, %v3307
  %v3317 = vld [vmem:[%s3] sm:$0xf]
  %v3318 = vld [vmem:[%s3 + $0x4] sm:$0xf]
  %v3319 = vld [vmem:[%s3 + $0x8] sm:$0xf]
  %v3320 = vld [vmem:[%s3 + $0xc] sm:$0xf]
  %v3321 = vld [vmem:[%s3 + $0x10] sm:$0xf]
  %v3322 = vld [vmem:[%s3 + $0x14] sm:$0xf]
  %v3323 = vld [vmem:[%s3 + $0x18] sm:$0xf]
  %v3324 = vld [vmem:[%s3 + $0x1c] sm:$0xf]
  %v3326 = vunpack.c.l.s4 1966171168
  %v3327 = vunpack.c.0.s8 %v3326
  %v3328 = vlaneseq
  %v3329 = vshrl.u32 %v3328, 7
  %v3330 = vsub.s32 %v3327, %v3329
  %v3331 = vrot.slane %v2964, %v3330
  %v3333 = vunpack.c.l.s4 1966171168
  %v3334 = vunpack.c.0.s8 %v3333
  %v3335 = vlaneseq
  %v3336 = vshrl.u32 %v3335, 7
  %v3337 = vsub.s32 %v3334, %v3336
  %v3338 = vrot.slane %v3331, %v3337
  %v3340 = vunpack.c.l.s4 1966171168
  %v3341 = vunpack.c.0.s8 %v3340
  %v3342 = vlaneseq
  %v3343 = vshrl.u32 %v3342, 7
  %v3344 = vsub.s32 %v3341, %v3343
  %v3345 = vrot.slane %v2978, %v3344
  %v3347 = vunpack.c.l.s4 1966171168
  %v3348 = vunpack.c.0.s8 %v3347
  %v3349 = vlaneseq
  %v3350 = vshrl.u32 %v3349, 7
  %v3351 = vsub.s32 %v3348, %v3350
  %v3352 = vrot.slane %v3345, %v3351
  %v3354 = vunpack.c.l.s4 1966171168
  %v3355 = vunpack.c.0.s8 %v3354
  %v3356 = vlaneseq
  %v3357 = vshrl.u32 %v3356, 7
  %v3358 = vsub.s32 %v3355, %v3357
  %v3359 = vrot.slane %v2986, %v3358
  %v3361 = vunpack.c.l.s4 1966171168
  %v3362 = vunpack.c.0.s8 %v3361
  %v3363 = vlaneseq
  %v3364 = vshrl.u32 %v3363, 7
  %v3365 = vsub.s32 %v3362, %v3364
  %v3366 = vrot.slane %v3359, %v3365
  %v3368 = vunpack.c.l.s4 1966171168
  %v3369 = vunpack.c.0.s8 %v3368
  %v3370 = vlaneseq
  %v3371 = vshrl.u32 %v3370, 7
  %v3372 = vsub.s32 %v3369, %v3371
  %v3373 = vrot.slane %v2987, %v3372
  %v3375 = vunpack.c.l.s4 1966171168
  %v3376 = vunpack.c.0.s8 %v3375
  %v3377 = vlaneseq
  %v3378 = vshrl.u32 %v3377, 7
  %v3379 = vsub.s32 %v3376, %v3378
  %v3380 = vrot.slane %v3373, %v3379
  %v3382 = vunpack.c.l.s4 1966171168
  %v3383 = vunpack.c.0.s8 %v3382
  %v3384 = vlaneseq
  %v3385 = vshrl.u32 %v3384, 7
  %v3386 = vsub.s32 %v3383, %v3385
  %v3387 = vrot.slane %v3011, %v3386
  %v3389 = vunpack.c.l.s4 1966171168
  %v3390 = vunpack.c.0.s8 %v3389
  %v3391 = vlaneseq
  %v3392 = vshrl.u32 %v3391, 7
  %v3393 = vsub.s32 %v3390, %v3392
  %v3394 = vrot.slane %v3387, %v3393
  %v3396 = vunpack.c.l.s4 1966171168
  %v3397 = vunpack.c.0.s8 %v3396
  %v3398 = vlaneseq
  %v3399 = vshrl.u32 %v3398, 7
  %v3400 = vsub.s32 %v3397, %v3399
  %v3401 = vrot.slane %v3025, %v3400
  %v3403 = vunpack.c.l.s4 1966171168
  %v3404 = vunpack.c.0.s8 %v3403
  %v3405 = vlaneseq
  %v3406 = vshrl.u32 %v3405, 7
  %v3407 = vsub.s32 %v3404, %v3406
  %v3408 = vrot.slane %v3401, %v3407
  %v3410 = vunpack.c.l.s4 1966171168
  %v3411 = vunpack.c.0.s8 %v3410
  %v3412 = vlaneseq
  %v3413 = vshrl.u32 %v3412, 7
  %v3414 = vsub.s32 %v3411, %v3413
  %v3415 = vrot.slane %v3033, %v3414
  %v3417 = vunpack.c.l.s4 1966171168
  %v3418 = vunpack.c.0.s8 %v3417
  %v3419 = vlaneseq
  %v3420 = vshrl.u32 %v3419, 7
  %v3421 = vsub.s32 %v3418, %v3420
  %v3422 = vrot.slane %v3415, %v3421
  %v3424 = vunpack.c.l.s4 1966171168
  %v3425 = vunpack.c.0.s8 %v3424
  %v3426 = vlaneseq
  %v3427 = vshrl.u32 %v3426, 7
  %v3428 = vsub.s32 %v3425, %v3427
  %v3429 = vrot.slane %v3034, %v3428
  %v3431 = vunpack.c.l.s4 1966171168
  %v3432 = vunpack.c.0.s8 %v3431
  %v3433 = vlaneseq
  %v3434 = vshrl.u32 %v3433, 7
  %v3435 = vsub.s32 %v3432, %v3434
  %v3436 = vrot.slane %v3429, %v3435
  %v3438 = vunpack.c.l.s4 1966171168
  %v3439 = vunpack.c.0.s8 %v3438
  %v3440 = vlaneseq
  %v3441 = vshrl.u32 %v3440, 7
  %v3442 = vsub.s32 %v3439, %v3441
  %v3443 = vrot.slane %v3058, %v3442
  %v3445 = vunpack.c.l.s4 1966171168
  %v3446 = vunpack.c.0.s8 %v3445
  %v3447 = vlaneseq
  %v3448 = vshrl.u32 %v3447, 7
  %v3449 = vsub.s32 %v3446, %v3448
  %v3450 = vrot.slane %v3443, %v3449
  %v3452 = vunpack.c.l.s4 1966171168
  %v3453 = vunpack.c.0.s8 %v3452
  %v3454 = vlaneseq
  %v3455 = vshrl.u32 %v3454, 7
  %v3456 = vsub.s32 %v3453, %v3455
  %v3457 = vrot.slane %v3072, %v3456
  %v3459 = vunpack.c.l.s4 1966171168
  %v3460 = vunpack.c.0.s8 %v3459
  %v3461 = vlaneseq
  %v3462 = vshrl.u32 %v3461, 7
  %v3463 = vsub.s32 %v3460, %v3462
  %v3464 = vrot.slane %v3457, %v3463
  %v3466 = vunpack.c.l.s4 1966171168
  %v3467 = vunpack.c.0.s8 %v3466
  %v3468 = vlaneseq
  %v3469 = vshrl.u32 %v3468, 7
  %v3470 = vsub.s32 %v3467, %v3469
  %v3471 = vrot.slane %v3080, %v3470
  %v3473 = vunpack.c.l.s4 1966171168
  %v3474 = vunpack.c.0.s8 %v3473
  %v3475 = vlaneseq
  %v3476 = vshrl.u32 %v3475, 7
  %v3477 = vsub.s32 %v3474, %v3476
  %v3478 = vrot.slane %v3471, %v3477
  %v3480 = vunpack.c.l.s4 1966171168
  %v3481 = vunpack.c.0.s8 %v3480
  %v3482 = vlaneseq
  %v3483 = vshrl.u32 %v3482, 7
  %v3484 = vsub.s32 %v3481, %v3483
  %v3485 = vrot.slane %v3081, %v3484
  %v3487 = vunpack.c.l.s4 1966171168
  %v3488 = vunpack.c.0.s8 %v3487
  %v3489 = vlaneseq
  %v3490 = vshrl.u32 %v3489, 7
  %v3491 = vsub.s32 %v3488, %v3490
  %v3492 = vrot.slane %v3485, %v3491
  %v3494 = vunpack.c.l.s4 1966171168
  %v3495 = vunpack.c.0.s8 %v3494
  %v3496 = vlaneseq
  %v3497 = vshrl.u32 %v3496, 7
  %v3498 = vsub.s32 %v3495, %v3497
  %v3499 = vrot.slane %v3105, %v3498
  %v3501 = vunpack.c.l.s4 1966171168
  %v3502 = vunpack.c.0.s8 %v3501
  %v3503 = vlaneseq
  %v3504 = vshrl.u32 %v3503, 7
  %v3505 = vsub.s32 %v3502, %v3504
  %v3506 = vrot.slane %v3499, %v3505
  %v3508 = vunpack.c.l.s4 1966171168
  %v3509 = vunpack.c.0.s8 %v3508
  %v3510 = vlaneseq
  %v3511 = vshrl.u32 %v3510, 7
  %v3512 = vsub.s32 %v3509, %v3511
  %v3513 = vrot.slane %v3119, %v3512
  %v3515 = vunpack.c.l.s4 1966171168
  %v3516 = vunpack.c.0.s8 %v3515
  %v3517 = vlaneseq
  %v3518 = vshrl.u32 %v3517, 7
  %v3519 = vsub.s32 %v3516, %v3518
  %v3520 = vrot.slane %v3513, %v3519
  %v3522 = vunpack.c.l.s4 1966171168
  %v3523 = vunpack.c.0.s8 %v3522
  %v3524 = vlaneseq
  %v3525 = vshrl.u32 %v3524, 7
  %v3526 = vsub.s32 %v3523, %v3525
  %v3527 = vrot.slane %v3127, %v3526
  %v3529 = vunpack.c.l.s4 1966171168
  %v3530 = vunpack.c.0.s8 %v3529
  %v3531 = vlaneseq
  %v3532 = vshrl.u32 %v3531, 7
  %v3533 = vsub.s32 %v3530, %v3532
  %v3534 = vrot.slane %v3527, %v3533
  %v3536 = vunpack.c.l.s4 1966171168
  %v3537 = vunpack.c.0.s8 %v3536
  %v3538 = vlaneseq
  %v3539 = vshrl.u32 %v3538, 7
  %v3540 = vsub.s32 %v3537, %v3539
  %v3541 = vrot.slane %v3128, %v3540
  %v3543 = vunpack.c.l.s4 1966171168
  %v3544 = vunpack.c.0.s8 %v3543
  %v3545 = vlaneseq
  %v3546 = vshrl.u32 %v3545, 7
  %v3547 = vsub.s32 %v3544, %v3546
  %v3548 = vrot.slane %v3541, %v3547
  %v3550 = vunpack.c.l.s4 1966171168
  %v3551 = vunpack.c.0.s8 %v3550
  %v3552 = vlaneseq
  %v3553 = vshrl.u32 %v3552, 7
  %v3554 = vsub.s32 %v3551, %v3553
  %v3555 = vrot.slane %v3152, %v3554
  %v3557 = vunpack.c.l.s4 1966171168
  %v3558 = vunpack.c.0.s8 %v3557
  %v3559 = vlaneseq
  %v3560 = vshrl.u32 %v3559, 7
  %v3561 = vsub.s32 %v3558, %v3560
  %v3562 = vrot.slane %v3555, %v3561
  %v3564 = vunpack.c.l.s4 1966171168
  %v3565 = vunpack.c.0.s8 %v3564
  %v3566 = vlaneseq
  %v3567 = vshrl.u32 %v3566, 7
  %v3568 = vsub.s32 %v3565, %v3567
  %v3569 = vrot.slane %v3166, %v3568
  %v3571 = vunpack.c.l.s4 1966171168
  %v3572 = vunpack.c.0.s8 %v3571
  %v3573 = vlaneseq
  %v3574 = vshrl.u32 %v3573, 7
  %v3575 = vsub.s32 %v3572, %v3574
  %v3576 = vrot.slane %v3569, %v3575
  %v3578 = vunpack.c.l.s4 1966171168
  %v3579 = vunpack.c.0.s8 %v3578
  %v3580 = vlaneseq
  %v3581 = vshrl.u32 %v3580, 7
  %v3582 = vsub.s32 %v3579, %v3581
  %v3583 = vrot.slane %v3174, %v3582
  %v3585 = vunpack.c.l.s4 1966171168
  %v3586 = vunpack.c.0.s8 %v3585
  %v3587 = vlaneseq
  %v3588 = vshrl.u32 %v3587, 7
  %v3589 = vsub.s32 %v3586, %v3588
  %v3590 = vrot.slane %v3583, %v3589
  %v3592 = vunpack.c.l.s4 1966171168
  %v3593 = vunpack.c.0.s8 %v3592
  %v3594 = vlaneseq
  %v3595 = vshrl.u32 %v3594, 7
  %v3596 = vsub.s32 %v3593, %v3595
  %v3597 = vrot.slane %v3175, %v3596
  %v3599 = vunpack.c.l.s4 1966171168
  %v3600 = vunpack.c.0.s8 %v3599
  %v3601 = vlaneseq
  %v3602 = vshrl.u32 %v3601, 7
  %v3603 = vsub.s32 %v3600, %v3602
  %v3604 = vrot.slane %v3597, %v3603
  %v3606 = vunpack.c.l.s4 1966171168
  %v3607 = vunpack.c.0.s8 %v3606
  %v3608 = vlaneseq
  %v3609 = vshrl.u32 %v3608, 7
  %v3610 = vsub.s32 %v3607, %v3609
  %v3611 = vrot.slane %v3199, %v3610
  %v3613 = vunpack.c.l.s4 1966171168
  %v3614 = vunpack.c.0.s8 %v3613
  %v3615 = vlaneseq
  %v3616 = vshrl.u32 %v3615, 7
  %v3617 = vsub.s32 %v3614, %v3616
  %v3618 = vrot.slane %v3611, %v3617
  %v3620 = vunpack.c.l.s4 1966171168
  %v3621 = vunpack.c.0.s8 %v3620
  %v3622 = vlaneseq
  %v3623 = vshrl.u32 %v3622, 7
  %v3624 = vsub.s32 %v3621, %v3623
  %v3625 = vrot.slane %v3213, %v3624
  %v3627 = vunpack.c.l.s4 1966171168
  %v3628 = vunpack.c.0.s8 %v3627
  %v3629 = vlaneseq
  %v3630 = vshrl.u32 %v3629, 7
  %v3631 = vsub.s32 %v3628, %v3630
  %v3632 = vrot.slane %v3625, %v3631
  %v3634 = vunpack.c.l.s4 1966171168
  %v3635 = vunpack.c.0.s8 %v3634
  %v3636 = vlaneseq
  %v3637 = vshrl.u32 %v3636, 7
  %v3638 = vsub.s32 %v3635, %v3637
  %v3639 = vrot.slane %v3221, %v3638
  %v3641 = vunpack.c.l.s4 1966171168
  %v3642 = vunpack.c.0.s8 %v3641
  %v3643 = vlaneseq
  %v3644 = vshrl.u32 %v3643, 7
  %v3645 = vsub.s32 %v3642, %v3644
  %v3646 = vrot.slane %v3639, %v3645
  %v3648 = vunpack.c.l.s4 1966171168
  %v3649 = vunpack.c.0.s8 %v3648
  %v3650 = vlaneseq
  %v3651 = vshrl.u32 %v3650, 7
  %v3652 = vsub.s32 %v3649, %v3651
  %v3653 = vrot.slane %v3222, %v3652
  %v3655 = vunpack.c.l.s4 1966171168
  %v3656 = vunpack.c.0.s8 %v3655
  %v3657 = vlaneseq
  %v3658 = vshrl.u32 %v3657, 7
  %v3659 = vsub.s32 %v3656, %v3658
  %v3660 = vrot.slane %v3653, %v3659
  %v3662 = vunpack.c.l.s4 1966171168
  %v3663 = vunpack.c.0.s8 %v3662
  %v3664 = vlaneseq
  %v3665 = vshrl.u32 %v3664, 7
  %v3666 = vsub.s32 %v3663, %v3665
  %v3667 = vrot.slane %v3246, %v3666
  %v3669 = vunpack.c.l.s4 1966171168
  %v3670 = vunpack.c.0.s8 %v3669
  %v3671 = vlaneseq
  %v3672 = vshrl.u32 %v3671, 7
  %v3673 = vsub.s32 %v3670, %v3672
  %v3674 = vrot.slane %v3667, %v3673
  %v3676 = vunpack.c.l.s4 1966171168
  %v3677 = vunpack.c.0.s8 %v3676
  %v3678 = vlaneseq
  %v3679 = vshrl.u32 %v3678, 7
  %v3680 = vsub.s32 %v3677, %v3679
  %v3681 = vrot.slane %v3260, %v3680
  %v3683 = vunpack.c.l.s4 1966171168
  %v3684 = vunpack.c.0.s8 %v3683
  %v3685 = vlaneseq
  %v3686 = vshrl.u32 %v3685, 7
  %v3687 = vsub.s32 %v3684, %v3686
  %v3688 = vrot.slane %v3681, %v3687
  %v3690 = vunpack.c.l.s4 1966171168
  %v3691 = vunpack.c.0.s8 %v3690
  %v3692 = vlaneseq
  %v3693 = vshrl.u32 %v3692, 7
  %v3694 = vsub.s32 %v3691, %v3693
  %v3695 = vrot.slane %v3268, %v3694
  %v3697 = vunpack.c.l.s4 1966171168
  %v3698 = vunpack.c.0.s8 %v3697
  %v3699 = vlaneseq
  %v3700 = vshrl.u32 %v3699, 7
  %v3701 = vsub.s32 %v3698, %v3700
  %v3702 = vrot.slane %v3695, %v3701
  %v3704 = vunpack.c.l.s4 1966171168
  %v3705 = vunpack.c.0.s8 %v3704
  %v3706 = vlaneseq
  %v3707 = vshrl.u32 %v3706, 7
  %v3708 = vsub.s32 %v3705, %v3707
  %v3709 = vrot.slane %v3269, %v3708
  %v3711 = vunpack.c.l.s4 1966171168
  %v3712 = vunpack.c.0.s8 %v3711
  %v3713 = vlaneseq
  %v3714 = vshrl.u32 %v3713, 7
  %v3715 = vsub.s32 %v3712, %v3714
  %v3716 = vrot.slane %v3709, %v3715
  %v3718 = vunpack.c.l.s4 1966171168
  %v3719 = vunpack.c.0.s8 %v3718
  %v3720 = vlaneseq
  %v3721 = vshrl.u32 %v3720, 7
  %v3722 = vsub.s32 %v3719, %v3721
  %v3723 = vrot.slane %v3293, %v3722
  %v3725 = vunpack.c.l.s4 1966171168
  %v3726 = vunpack.c.0.s8 %v3725
  %v3727 = vlaneseq
  %v3728 = vshrl.u32 %v3727, 7
  %v3729 = vsub.s32 %v3726, %v3728
  %v3730 = vrot.slane %v3723, %v3729
  %v3732 = vunpack.c.l.s4 1966171168
  %v3733 = vunpack.c.0.s8 %v3732
  %v3734 = vlaneseq
  %v3735 = vshrl.u32 %v3734, 7
  %v3736 = vsub.s32 %v3733, %v3735
  %v3737 = vrot.slane %v3307, %v3736
  %v3739 = vunpack.c.l.s4 1966171168
  %v3740 = vunpack.c.0.s8 %v3739
  %v3741 = vlaneseq
  %v3742 = vshrl.u32 %v3741, 7
  %v3743 = vsub.s32 %v3740, %v3742
  %v3744 = vrot.slane %v3737, %v3743
  %v3746 = vunpack.c.l.s4 1966171168
  %v3747 = vunpack.c.0.s8 %v3746
  %v3748 = vlaneseq
  %v3749 = vshrl.u32 %v3748, 7
  %v3750 = vsub.s32 %v3747, %v3749
  %v3751 = vrot.slane %v3315, %v3750
  %v3753 = vunpack.c.l.s4 1966171168
  %v3754 = vunpack.c.0.s8 %v3753
  %v3755 = vlaneseq
  %v3756 = vshrl.u32 %v3755, 7
  %v3757 = vsub.s32 %v3754, %v3756
  %v3758 = vrot.slane %v3751, %v3757
  %v3760 = vunpack.c.l.s4 1966171168
  %v3761 = vunpack.c.0.s8 %v3760
  %v3762 = vlaneseq
  %v3763 = vshrl.u32 %v3762, 7
  %v3764 = vsub.s32 %v3761, %v3763
  %v3765 = vrot.slane %v3316, %v3764
  %v3767 = vunpack.c.l.s4 1966171168
  %v3768 = vunpack.c.0.s8 %v3767
  %v3769 = vlaneseq
  %v3770 = vshrl.u32 %v3769, 7
  %v3771 = vsub.s32 %v3768, %v3770
  %v3772 = vrot.slane %v3765, %v3771
  %v3773 = vunpack.c.l.b16 %v3338
  %v3774 = vunpack.c.l.b16 %v3352
  %v3775 = vunpack.c.l.b16 %v3366
  %v3776 = vunpack.c.l.b16 %v3380
  %v3777 = vunpack.c.l.b16 %v3394
  %v3778 = vunpack.c.l.b16 %v3408
  %v3779 = vunpack.c.l.b16 %v3422
  %v3780 = vunpack.c.l.b16 %v3436
  %v3781 = vunpack.c.l.b16 %v3450
  %v3782 = vunpack.c.l.b16 %v3464
  %v3783 = vunpack.c.l.b16 %v3478
  %v3784 = vunpack.c.l.b16 %v3492
  %v3785 = vunpack.c.l.b16 %v3506
  %v3786 = vunpack.c.l.b16 %v3520
  %v3787 = vunpack.c.l.b16 %v3534
  %v3788 = vunpack.c.l.b16 %v3548
  %v3789 = vunpack.c.l.b16 %v3562
  %v3790 = vunpack.c.l.b16 %v3576
  %v3791 = vunpack.c.l.b16 %v3590
  %v3792 = vunpack.c.l.b16 %v3604
  %v3793 = vunpack.c.l.b16 %v3618
  %v3794 = vunpack.c.l.b16 %v3632
  %v3795 = vunpack.c.l.b16 %v3646
  %v3796 = vunpack.c.l.b16 %v3660
  %v3797 = vunpack.c.l.b16 %v3674
  %v3798 = vunpack.c.l.b16 %v3688
  %v3799 = vunpack.c.l.b16 %v3702
  %v3800 = vunpack.c.l.b16 %v3716
  %v3801 = vunpack.c.l.b16 %v3730
  %v3802 = vunpack.c.l.b16 %v3744
  %v3803 = vunpack.c.l.b16 %v3758
  %v3804 = vunpack.c.l.b16 %v3772
  %v3805 = vrot.slane %v3773, 1
  %v3806 = vsel %vm1678, %v3774, %v3805
  %v3807 = vrot.slane %v3775, 7
  %v3808 = vsel %vm1681, %v3807, %v3806
  %v3809 = vrot.slane %v3776, 6
  %v3810 = vsel %vm1684, %v3809, %v3808
  %v3811 = vrot.slane %v3777, 5
  %v3812 = vsel %vm1687, %v3811, %v3810
  %v3813 = vrot.slane %v3778, 4
  %v3814 = vsel %vm1690, %v3813, %v3812
  %v3815 = vrot.slane %v3779, 3
  %v3816 = vsel %vm1693, %v3815, %v3814
  %v3817 = vrot.slane %v3780, 2
  %v3818 = vsel %vm1696, %v3817, %v3816
  %v3819 = vrot.slane %v3781, 1
  %v3820 = vsel %vm1678, %v3782, %v3819
  %v3821 = vrot.slane %v3783, 7
  %v3822 = vsel %vm1681, %v3821, %v3820
  %v3823 = vrot.slane %v3784, 6
  %v3824 = vsel %vm1684, %v3823, %v3822
  %v3825 = vrot.slane %v3785, 5
  %v3826 = vsel %vm1687, %v3825, %v3824
  %v3827 = vrot.slane %v3786, 4
  %v3828 = vsel %vm1690, %v3827, %v3826
  %v3829 = vrot.slane %v3787, 3
  %v3830 = vsel %vm1693, %v3829, %v3828
  %v3831 = vrot.slane %v3788, 2
  %v3832 = vsel %vm1696, %v3831, %v3830
  %v3833 = vrot.slane %v3789, 1
  %v3834 = vsel %vm1678, %v3790, %v3833
  %v3835 = vrot.slane %v3791, 7
  %v3836 = vsel %vm1681, %v3835, %v3834
  %v3837 = vrot.slane %v3792, 6
  %v3838 = vsel %vm1684, %v3837, %v3836
  %v3839 = vrot.slane %v3793, 5
  %v3840 = vsel %vm1687, %v3839, %v3838
  %v3841 = vrot.slane %v3794, 4
  %v3842 = vsel %vm1690, %v3841, %v3840
  %v3843 = vrot.slane %v3795, 3
  %v3844 = vsel %vm1693, %v3843, %v3842
  %v3845 = vrot.slane %v3796, 2
  %v3846 = vsel %vm1696, %v3845, %v3844
  %v3847 = vrot.slane %v3797, 1
  %v3848 = vsel %vm1678, %v3798, %v3847
  %v3849 = vrot.slane %v3799, 7
  %v3850 = vsel %vm1681, %v3849, %v3848
  %v3851 = vrot.slane %v3800, 6
  %v3852 = vsel %vm1684, %v3851, %v3850
  %v3853 = vrot.slane %v3801, 5
  %v3854 = vsel %vm1687, %v3853, %v3852
  %v3855 = vrot.slane %v3802, 4
  %v3856 = vsel %vm1690, %v3855, %v3854
  %v3857 = vrot.slane %v3803, 3
  %v3858 = vsel %vm1693, %v3857, %v3856
  %v3859 = vrot.slane %v3804, 2
  %v3860 = vsel %vm1696, %v3859, %v3858
  %v3861 = vpack.c.b16 %v3832, %v3818
  %v3862 = vpack.c.b16 %v3860, %v3846
  %v3867 = vunpack.c.l.b16 %v3321
  %v3868 = vunpack.c.l.b16 %v3322
  %v3869 = vunpack.c.l.b16 %v3323
  %v3870 = vunpack.c.l.b16 %v3324
  %v3871 = vpack.c.b16 %v3868, %v3867
  %v3872 = vpack.c.b16 %v3870, %v3869
  %vm3875 = vcmask 261120
  %v3877 = vsel %vm3875, %v3861, 0
  %v3880 = vsel %vm3875, %v3862, 0
  %3882 = vmatprep.subr.bf16.mxu0 0
  %3883 = vmatpush1.bf16.msra.mxu0 %v3871
  %3884 = vmatprep.subr.bf16.mxu0 0
  %3885 = vmatpush1.bf16.msra.mxu0 %v3872
  %3886 = vmatprep.subr.bf16.mxu0 0
  %3887 = vmatpush1.bf16.msra.mxu0 0
  %3888 = vmatprep.subr.bf16.mxu0 0
  %3889 = vmatpush1.bf16.msra.mxu0 0
  %3890 = vmatprep.subr.bf16.mxu0 0
  %3891 = vmatpush1.bf16.msra.mxu0 0
  %3892 = vmatprep.subr.bf16.mxu0 0
  %3893 = vmatpush1.bf16.msra.mxu0 0
  %3894 = vmatprep.subr.bf16.mxu0 0
  %3895 = vmatpush1.bf16.msra.mxu0 0
  %3896 = vmatprep.subr.bf16.mxu0 0
  %3897 = vmatpush1.bf16.msra.mxu0 0
  %3898 = vmatprep.subr.bf16.mxu0 0
  %3899 = vmatpush1.bf16.msra.mxu0 0
  %3900 = vmatprep.subr.bf16.mxu0 0
  %3901 = vmatpush1.bf16.msra.mxu0 0
  %3902 = vmatprep.subr.bf16.mxu0 0
  %3903 = vmatpush1.bf16.msra.mxu0 0
  %3904 = vmatprep.subr.bf16.mxu0 0
  %3905 = vmatpush1.bf16.msra.mxu0 0
  %3906 = vmatprep.subr.bf16.mxu0 0
  %3907 = vmatpush1.bf16.msra.mxu0 0
  %3908 = vmatprep.subr.bf16.mxu0 0
  %3909 = vmatpush1.bf16.msra.mxu0 0
  %3910 = vmatprep.subr.bf16.mxu0 0
  %3911 = vmatpush1.bf16.msra.mxu0 0
  %3912 = vmatprep.subr.bf16.mxu0 0
  %3913 = vmatpush1.bf16.msra.mxu0 0
  %3914 = vmatprep.mubr.bf16.mxu0 0
  %3915 = vmatmul.mubr.bf16.gmra.mrb[0].mxu0 %v3877
  %v3916 = vpop.f32.mrb[0].mxu0
  %v3917 = vadd.f32 0.0, %v3916
  %v3918 = vpop.f32.mrb[0].mxu0
  %v3919 = vpop.f32.mrb[0].mxu0
  %v3920 = vadd.f32 0.0, %v3919
  %v3921 = vpop.f32.mrb[0].mxu0
  %3922 = vmatprep.mubr.bf16.mxu0 0
  %3923 = vmatmul.mubr.bf16.gmra.mrb[0].mxu0 %v3880
  %v3924 = vpop.f32.mrb[0].mxu0
  %v3925 = vadd.f32 0.0, %v3924
  %v3926 = vpop.f32.mrb[0].mxu0
  %v3927 = vpop.f32.mrb[0].mxu0
  %v3928 = vadd.f32 0.0, %v3927
  %v3929 = vpop.f32.mrb[0].mxu0
  %3930 = vdwg.mxu0
  %v3931 = vrot.slane %v3774, 7
  %v3932 = vsel %vm1678, %v3931, %v3773
  %v3933 = vrot.slane %v3775, 6
  %v3934 = vsel %vm1681, %v3933, %v3932
  %v3935 = vrot.slane %v3776, 5
  %v3936 = vsel %vm1684, %v3935, %v3934
  %v3937 = vrot.slane %v3777, 4
  %v3938 = vsel %vm1687, %v3937, %v3936
  %v3939 = vrot.slane %v3778, 3
  %v3940 = vsel %vm1690, %v3939, %v3938
  %v3941 = vrot.slane %v3779, 2
  %v3942 = vsel %vm1693, %v3941, %v3940
  %v3943 = vrot.slane %v3780, 1
  %v3944 = vsel %vm1696, %v3943, %v3942
  %v3945 = vrot.slane %v3782, 7
  %v3946 = vsel %vm1678, %v3945, %v3781
  %v3947 = vrot.slane %v3783, 6
  %v3948 = vsel %vm1681, %v3947, %v3946
  %v3949 = vrot.slane %v3784, 5
  %v3950 = vsel %vm1684, %v3949, %v3948
  %v3951 = vrot.slane %v3785, 4
  %v3952 = vsel %vm1687, %v3951, %v3950
  %v3953 = vrot.slane %v3786, 3
  %v3954 = vsel %vm1690, %v3953, %v3952
  %v3955 = vrot.slane %v3787, 2
  %v3956 = vsel %vm1693, %v3955, %v3954
  %v3957 = vrot.slane %v3788, 1
  %v3958 = vsel %vm1696, %v3957, %v3956
  %v3959 = vrot.slane %v3790, 7
  %v3960 = vsel %vm1678, %v3959, %v3789
  %v3961 = vrot.slane %v3791, 6
  %v3962 = vsel %vm1681, %v3961, %v3960
  %v3963 = vrot.slane %v3792, 5
  %v3964 = vsel %vm1684, %v3963, %v3962
  %v3965 = vrot.slane %v3793, 4
  %v3966 = vsel %vm1687, %v3965, %v3964
  %v3967 = vrot.slane %v3794, 3
  %v3968 = vsel %vm1690, %v3967, %v3966
  %v3969 = vrot.slane %v3795, 2
  %v3970 = vsel %vm1693, %v3969, %v3968
  %v3971 = vrot.slane %v3796, 1
  %v3972 = vsel %vm1696, %v3971, %v3970
  %v3973 = vrot.slane %v3798, 7
  %v3974 = vsel %vm1678, %v3973, %v3797
  %v3975 = vrot.slane %v3799, 6
  %v3976 = vsel %vm1681, %v3975, %v3974
  %v3977 = vrot.slane %v3800, 5
  %v3978 = vsel %vm1684, %v3977, %v3976
  %v3979 = vrot.slane %v3801, 4
  %v3980 = vsel %vm1687, %v3979, %v3978
  %v3981 = vrot.slane %v3802, 3
  %v3982 = vsel %vm1690, %v3981, %v3980
  %v3983 = vrot.slane %v3803, 2
  %v3984 = vsel %vm1693, %v3983, %v3982
  %v3985 = vrot.slane %v3804, 1
  %v3986 = vsel %vm1696, %v3985, %v3984
  %v3987 = vpack.c.b16 %v3958, %v3944
  %v3988 = vpack.c.b16 %v3986, %v3972
  %v3993 = vunpack.c.l.b16 %v3317
  %v3994 = vunpack.c.l.b16 %v3318
  %v3995 = vunpack.c.l.b16 %v3319
  %v3996 = vunpack.c.l.b16 %v3320
  %v3997 = vpack.c.b16 %v3994, %v3993
  %v3998 = vpack.c.b16 %v3996, %v3995
  %v4002 = vsel %vm3875, %v3987, 0
  %v4005 = vsel %vm3875, %v3988, 0
  %4007 = vmatprep.subr.bf16.mxu0 0
  %4008 = vmatpush1.bf16.msra.mxu0 %v3997
  %4009 = vmatprep.subr.bf16.mxu0 0
  %4010 = vmatpush1.bf16.msra.mxu0 %v3998
  %4011 = vmatprep.subr.bf16.mxu0 0
  %4012 = vmatpush1.bf16.msra.mxu0 0
  %4013 = vmatprep.subr.bf16.mxu0 0
  %4014 = vmatpush1.bf16.msra.mxu0 0
  %4015 = vmatprep.subr.bf16.mxu0 0
  %4016 = vmatpush1.bf16.msra.mxu0 0
  %4017 = vmatprep.subr.bf16.mxu0 0
  %4018 = vmatpush1.bf16.msra.mxu0 0
  %4019 = vmatprep.subr.bf16.mxu0 0
  %4020 = vmatpush1.bf16.msra.mxu0 0
  %4021 = vmatprep.subr.bf16.mxu0 0
  %4022 = vmatpush1.bf16.msra.mxu0 0
  %4023 = vmatprep.subr.bf16.mxu0 0
  %4024 = vmatpush1.bf16.msra.mxu0 0
  %4025 = vmatprep.subr.bf16.mxu0 0
  %4026 = vmatpush1.bf16.msra.mxu0 0
  %4027 = vmatprep.subr.bf16.mxu0 0
  %4028 = vmatpush1.bf16.msra.mxu0 0
  %4029 = vmatprep.subr.bf16.mxu0 0
  %4030 = vmatpush1.bf16.msra.mxu0 0
  %4031 = vmatprep.subr.bf16.mxu0 0
  %4032 = vmatpush1.bf16.msra.mxu0 0
  %4033 = vmatprep.subr.bf16.mxu0 0
  %4034 = vmatpush1.bf16.msra.mxu0 0
  %4035 = vmatprep.subr.bf16.mxu0 0
  %4036 = vmatpush1.bf16.msra.mxu0 0
  %4037 = vmatprep.subr.bf16.mxu0 0
  %4038 = vmatpush1.bf16.msra.mxu0 0
  %4039 = vmatprep.mubr.bf16.mxu0 0
  %4040 = vmatmul.mubr.bf16.gmra.mrb[0].mxu0 %v4002
  %v4041 = vpop.f32.mrb[0].mxu0
  %v4042 = vadd.f32 %v3917, %v4041
  %v4043 = vpop.f32.mrb[0].mxu0
  %v4044 = vpop.f32.mrb[0].mxu0
  %v4045 = vadd.f32 %v3920, %v4044
  %v4046 = vpop.f32.mrb[0].mxu0
  %4047 = vmatprep.mubr.bf16.mxu0 0
  %4048 = vmatmul.mubr.bf16.gmra.mrb[0].mxu0 %v4005
  %v4049 = vpop.f32.mrb[0].mxu0
  %v4050 = vadd.f32 %v3925, %v4049
  %v4051 = vpop.f32.mrb[0].mxu0
  %v4052 = vpop.f32.mrb[0].mxu0
  %v4053 = vadd.f32 %v3928, %v4052
  %v4054 = vpop.f32.mrb[0].mxu0
  %4055 = vdwg.mxu0
  %v4056 = vld [vmem:[%s3 + $0x20] sm:$0xf]
  %v4057 = vld [vmem:[%s3 + $0x24] sm:$0xf]
  %v4058 = vld [vmem:[%s3 + $0x28] sm:$0xf]
  %v4059 = vld [vmem:[%s3 + $0x2c] sm:$0xf]
  %v4061 = vunpack.c.l.s4 1966171168
  %v4062 = vunpack.c.0.s8 %v4061
  %v4063 = vlaneseq
  %v4064 = vshrl.u32 %v4063, 7
  %v4065 = vsub.s32 %v4062, %v4064
  %v4066 = vrot.slane %v2971, %v4065
  %v4068 = vunpack.c.l.s4 1966171168
  %v4069 = vunpack.c.0.s8 %v4068
  %v4070 = vlaneseq
  %v4071 = vshrl.u32 %v4070, 7
  %v4072 = vsub.s32 %v4069, %v4071
  %v4073 = vrot.slane %v4066, %v4072
  %v4075 = vunpack.c.l.s4 1966171168
  %v4076 = vunpack.c.0.s8 %v4075
  %v4077 = vlaneseq
  %v4078 = vshrl.u32 %v4077, 7
  %v4079 = vsub.s32 %v4076, %v4078
  %v4080 = vrot.slane %v3018, %v4079
  %v4082 = vunpack.c.l.s4 1966171168
  %v4083 = vunpack.c.0.s8 %v4082
  %v4084 = vlaneseq
  %v4085 = vshrl.u32 %v4084, 7
  %v4086 = vsub.s32 %v4083, %v4085
  %v4087 = vrot.slane %v4080, %v4086
  %v4089 = vunpack.c.l.s4 1966171168
  %v4090 = vunpack.c.0.s8 %v4089
  %v4091 = vlaneseq
  %v4092 = vshrl.u32 %v4091, 7
  %v4093 = vsub.s32 %v4090, %v4092
  %v4094 = vrot.slane %v3065, %v4093
  %v4096 = vunpack.c.l.s4 1966171168
  %v4097 = vunpack.c.0.s8 %v4096
  %v4098 = vlaneseq
  %v4099 = vshrl.u32 %v4098, 7
  %v4100 = vsub.s32 %v4097, %v4099
  %v4101 = vrot.slane %v4094, %v4100
  %v4103 = vunpack.c.l.s4 1966171168
  %v4104 = vunpack.c.0.s8 %v4103
  %v4105 = vlaneseq
  %v4106 = vshrl.u32 %v4105, 7
  %v4107 = vsub.s32 %v4104, %v4106
  %v4108 = vrot.slane %v3112, %v4107
  %v4110 = vunpack.c.l.s4 1966171168
  %v4111 = vunpack.c.0.s8 %v4110
  %v4112 = vlaneseq
  %v4113 = vshrl.u32 %v4112, 7
  %v4114 = vsub.s32 %v4111, %v4113
  %v4115 = vrot.slane %v4108, %v4114
  %v4117 = vunpack.c.l.s4 1966171168
  %v4118 = vunpack.c.0.s8 %v4117
  %v4119 = vlaneseq
  %v4120 = vshrl.u32 %v4119, 7
  %v4121 = vsub.s32 %v4118, %v4120
  %v4122 = vrot.slane %v3159, %v4121
  %v4124 = vunpack.c.l.s4 1966171168
  %v4125 = vunpack.c.0.s8 %v4124
  %v4126 = vlaneseq
  %v4127 = vshrl.u32 %v4126, 7
  %v4128 = vsub.s32 %v4125, %v4127
  %v4129 = vrot.slane %v4122, %v4128
  %v4131 = vunpack.c.l.s4 1966171168
  %v4132 = vunpack.c.0.s8 %v4131
  %v4133 = vlaneseq
  %v4134 = vshrl.u32 %v4133, 7
  %v4135 = vsub.s32 %v4132, %v4134
  %v4136 = vrot.slane %v3206, %v4135
  %v4138 = vunpack.c.l.s4 1966171168
  %v4139 = vunpack.c.0.s8 %v4138
  %v4140 = vlaneseq
  %v4141 = vshrl.u32 %v4140, 7
  %v4142 = vsub.s32 %v4139, %v4141
  %v4143 = vrot.slane %v4136, %v4142
  %v4145 = vunpack.c.l.s4 1966171168
  %v4146 = vunpack.c.0.s8 %v4145
  %v4147 = vlaneseq
  %v4148 = vshrl.u32 %v4147, 7
  %v4149 = vsub.s32 %v4146, %v4148
  %v4150 = vrot.slane %v3253, %v4149
  %v4152 = vunpack.c.l.s4 1966171168
  %v4153 = vunpack.c.0.s8 %v4152
  %v4154 = vlaneseq
  %v4155 = vshrl.u32 %v4154, 7
  %v4156 = vsub.s32 %v4153, %v4155
  %v4157 = vrot.slane %v4150, %v4156
  %v4159 = vunpack.c.l.s4 1966171168
  %v4160 = vunpack.c.0.s8 %v4159
  %v4161 = vlaneseq
  %v4162 = vshrl.u32 %v4161, 7
  %v4163 = vsub.s32 %v4160, %v4162
  %v4164 = vrot.slane %v3300, %v4163
  %v4166 = vunpack.c.l.s4 1966171168
  %v4167 = vunpack.c.0.s8 %v4166
  %v4168 = vlaneseq
  %v4169 = vshrl.u32 %v4168, 7
  %v4170 = vsub.s32 %v4167, %v4169
  %v4171 = vrot.slane %v4164, %v4170
  %v4172 = vunpack.c.l.b16 %v4073
  %v4173 = vunpack.c.l.b16 %v4087
  %v4174 = vunpack.c.l.b16 %v4101
  %v4175 = vunpack.c.l.b16 %v4115
  %v4176 = vunpack.c.l.b16 %v4129
  %v4177 = vunpack.c.l.b16 %v4143
  %v4178 = vunpack.c.l.b16 %v4157
  %v4179 = vunpack.c.l.b16 %v4171
  %v4180 = vsel %vm1678, %v3807, %v3774
  %v4181 = vsel %vm1681, %v3809, %v4180
  %v4182 = vrot.slane %v4172, 5
  %v4183 = vsel %vm1684, %v4182, %v4181
  %v4184 = vsel %vm1687, %v3813, %v4183
  %v4185 = vsel %vm1690, %v3815, %v4184
  %v4186 = vsel %vm1693, %v3817, %v4185
  %v4187 = vrot.slane %v4173, 1
  %v4188 = vsel %vm1696, %v4187, %v4186
  %v4189 = vsel %vm1678, %v3821, %v3782
  %v4190 = vsel %vm1681, %v3823, %v4189
  %v4191 = vrot.slane %v4174, 5
  %v4192 = vsel %vm1684, %v4191, %v4190
  %v4193 = vsel %vm1687, %v3827, %v4192
  %v4194 = vsel %vm1690, %v3829, %v4193
  %v4195 = vsel %vm1693, %v3831, %v4194
  %v4196 = vrot.slane %v4175, 1
  %v4197 = vsel %vm1696, %v4196, %v4195
  %v4198 = vsel %vm1678, %v3835, %v3790
  %v4199 = vsel %vm1681, %v3837, %v4198
  %v4200 = vrot.slane %v4176, 5
  %v4201 = vsel %vm1684, %v4200, %v4199
  %v4202 = vsel %vm1687, %v3841, %v4201
  %v4203 = vsel %vm1690, %v3843, %v4202
  %v4204 = vsel %vm1693, %v3845, %v4203
  %v4205 = vrot.slane %v4177, 1
  %v4206 = vsel %vm1696, %v4205, %v4204
  %v4207 = vsel %vm1678, %v3849, %v3798
  %v4208 = vsel %vm1681, %v3851, %v4207
  %v4209 = vrot.slane %v4178, 5
  %v4210 = vsel %vm1684, %v4209, %v4208
  %v4211 = vsel %vm1687, %v3855, %v4210
  %v4212 = vsel %vm1690, %v3857, %v4211
  %v4213 = vsel %vm1693, %v3859, %v4212
  %v4214 = vrot.slane %v4179, 1
  %v4215 = vsel %vm1696, %v4214, %v4213
  %v4216 = vpack.c.b16 %v4197, %v4188
  %v4217 = vpack.c.b16 %v4215, %v4206
  %v4222 = vunpack.c.l.b16 %v4056
  %v4223 = vunpack.c.l.b16 %v4057
  %v4224 = vunpack.c.l.b16 %v4058
  %v4225 = vunpack.c.l.b16 %v4059
  %v4226 = vpack.c.b16 %v4223, %v4222
  %v4227 = vpack.c.b16 %v4225, %v4224
  %v4231 = vsel %vm3875, %v4216, 0
  %v4234 = vsel %vm3875, %v4217, 0
  %4236 = vmatprep.subr.bf16.mxu0 0
  %4237 = vmatpush1.bf16.msra.mxu0 %v4226
  %4238 = vmatprep.subr.bf16.mxu0 0
  %4239 = vmatpush1.bf16.msra.mxu0 %v4227
  %4240 = vmatprep.subr.bf16.mxu0 0
  %4241 = vmatpush1.bf16.msra.mxu0 0
  %4242 = vmatprep.subr.bf16.mxu0 0
  %4243 = vmatpush1.bf16.msra.mxu0 0
  %4244 = vmatprep.subr.bf16.mxu0 0
  %4245 = vmatpush1.bf16.msra.mxu0 0
  %4246 = vmatprep.subr.bf16.mxu0 0
  %4247 = vmatpush1.bf16.msra.mxu0 0
  %4248 = vmatprep.subr.bf16.mxu0 0
  %4249 = vmatpush1.bf16.msra.mxu0 0
  %4250 = vmatprep.subr.bf16.mxu0 0
  %4251 = vmatpush1.bf16.msra.mxu0 0
  %4252 = vmatprep.subr.bf16.mxu0 0
  %4253 = vmatpush1.bf16.msra.mxu0 0
  %4254 = vmatprep.subr.bf16.mxu0 0
  %4255 = vmatpush1.bf16.msra.mxu0 0
  %4256 = vmatprep.subr.bf16.mxu0 0
  %4257 = vmatpush1.bf16.msra.mxu0 0
  %4258 = vmatprep.subr.bf16.mxu0 0
  %4259 = vmatpush1.bf16.msra.mxu0 0
  %4260 = vmatprep.subr.bf16.mxu0 0
  %4261 = vmatpush1.bf16.msra.mxu0 0
  %4262 = vmatprep.subr.bf16.mxu0 0
  %4263 = vmatpush1.bf16.msra.mxu0 0
  %4264 = vmatprep.subr.bf16.mxu0 0
  %4265 = vmatpush1.bf16.msra.mxu0 0
  %4266 = vmatprep.subr.bf16.mxu0 0
  %4267 = vmatpush1.bf16.msra.mxu0 0
  %4268 = vmatprep.mubr.bf16.mxu0 0
  %4269 = vmatmul.mubr.bf16.gmra.mrb[0].mxu0 %v4231
  %v4270 = vpop.f32.mrb[0].mxu0
  %v4271 = vadd.f32 0.0, %v4270
  %v4272 = vpop.f32.mrb[0].mxu0
  %v4273 = vpop.f32.mrb[0].mxu0
  %v4274 = vadd.f32 0.0, %v4273
  %v4275 = vpop.f32.mrb[0].mxu0
  %4276 = vmatprep.mubr.bf16.mxu0 0
  %4277 = vmatmul.mubr.bf16.gmra.mrb[0].mxu0 %v4234
  %v4278 = vpop.f32.mrb[0].mxu0
  %v4279 = vadd.f32 0.0, %v4278
  %v4280 = vpop.f32.mrb[0].mxu0
  %v4281 = vpop.f32.mrb[0].mxu0
  %v4282 = vadd.f32 0.0, %v4281
  %v4283 = vpop.f32.mrb[0].mxu0
  %4284 = vdwg.mxu0
  %v4285 = vadd.f32 %v4042, %v4271
  %v4286 = vadd.f32 %v4045, %v4274
  %v4287 = vadd.f32 %v4050, %v4279
  %v4288 = vadd.f32 %v4053, %v4282
  %v4289 = vld [vmem:[%s3 + $0x30] sm:$0xf]
  %v4290 = vld [vmem:[%s3 + $0x34] sm:$0xf]
  %v4291 = vld [vmem:[%s3 + $0x38] sm:$0xf]
  %v4292 = vld [vmem:[%s3 + $0x3c] sm:$0xf]
  %v4293 = vrot.slane %v3774, 1
  %v4294 = vsel %vm1678, %v3775, %v4293
  %v4295 = vrot.slane %v3776, 7
  %v4296 = vsel %vm1681, %v4295, %v4294
  %v4297 = vrot.slane %v4172, 6
  %v4298 = vsel %vm1684, %v4297, %v4296
  %v4299 = vrot.slane %v3778, 5
  %v4300 = vsel %vm1687, %v4299, %v4298
  %v4301 = vrot.slane %v3779, 4
  %v4302 = vsel %vm1690, %v4301, %v4300
  %v4303 = vrot.slane %v3780, 3
  %v4304 = vsel %vm1693, %v4303, %v4302
  %v4305 = vrot.slane %v4173, 2
  %v4306 = vsel %vm1696, %v4305, %v4304
  %v4307 = vrot.slane %v3782, 1
  %v4308 = vsel %vm1678, %v3783, %v4307
  %v4309 = vrot.slane %v3784, 7
  %v4310 = vsel %vm1681, %v4309, %v4308
  %v4311 = vrot.slane %v4174, 6
  %v4312 = vsel %vm1684, %v4311, %v4310
  %v4313 = vrot.slane %v3786, 5
  %v4314 = vsel %vm1687, %v4313, %v4312
  %v4315 = vrot.slane %v3787, 4
  %v4316 = vsel %vm1690, %v4315, %v4314
  %v4317 = vrot.slane %v3788, 3
  %v4318 = vsel %vm1693, %v4317, %v4316
  %v4319 = vrot.slane %v4175, 2
  %v4320 = vsel %vm1696, %v4319, %v4318
  %v4321 = vrot.slane %v3790, 1
  %v4322 = vsel %vm1678, %v3791, %v4321
  %v4323 = vrot.slane %v3792, 7
  %v4324 = vsel %vm1681, %v4323, %v4322
  %v4325 = vrot.slane %v4176, 6
  %v4326 = vsel %vm1684, %v4325, %v4324
  %v4327 = vrot.slane %v3794, 5
  %v4328 = vsel %vm1687, %v4327, %v4326
  %v4329 = vrot.slane %v3795, 4
  %v4330 = vsel %vm1690, %v4329, %v4328
  %v4331 = vrot.slane %v3796, 3
  %v4332 = vsel %vm1693, %v4331, %v4330
  %v4333 = vrot.slane %v4177, 2
  %v4334 = vsel %vm1696, %v4333, %v4332
  %v4335 = vrot.slane %v3798, 1
  %v4336 = vsel %vm1678, %v3799, %v4335
  %v4337 = vrot.slane %v3800, 7
  %v4338 = vsel %vm1681, %v4337, %v4336
  %v4339 = vrot.slane %v4178, 6
  %v4340 = vsel %vm1684, %v4339, %v4338
  %v4341 = vrot.slane %v3802, 5
  %v4342 = vsel %vm1687, %v4341, %v4340
  %v4343 = vrot.slane %v3803, 4
  %v4344 = vsel %vm1690, %v4343, %v4342
  %v4345 = vrot.slane %v3804, 3
  %v4346 = vsel %vm1693, %v4345, %v4344
  %v4347 = vrot.slane %v4179, 2
  %v4348 = vsel %vm1696, %v4347, %v4346
  %v4349 = vpack.c.b16 %v4320, %v4306
  %v4350 = vpack.c.b16 %v4348, %v4334
  %v4355 = vunpack.c.l.b16 %v4289
  %v4356 = vunpack.c.l.b16 %v4290
  %v4357 = vunpack.c.l.b16 %v4291
  %v4358 = vunpack.c.l.b16 %v4292
  %v4359 = vpack.c.b16 %v4356, %v4355
  %v4360 = vpack.c.b16 %v4358, %v4357
  %v4364 = vsel %vm3875, %v4349, 0
  %v4367 = vsel %vm3875, %v4350, 0
  %4369 = vmatprep.subr.bf16.mxu0 0
  %4370 = vmatpush1.bf16.msra.mxu0 %v4359
  %4371 = vmatprep.subr.bf16.mxu0 0
  %4372 = vmatpush1.bf16.msra.mxu0 %v4360
  %4373 = vmatprep.subr.bf16.mxu0 0
  %4374 = vmatpush1.bf16.msra.mxu0 0
  %4375 = vmatprep.subr.bf16.mxu0 0
  %4376 = vmatpush1.bf16.msra.mxu0 0
  %4377 = vmatprep.subr.bf16.mxu0 0
  %4378 = vmatpush1.bf16.msra.mxu0 0
  %4379 = vmatprep.subr.bf16.mxu0 0
  %4380 = vmatpush1.bf16.msra.mxu0 0
  %4381 = vmatprep.subr.bf16.mxu0 0
  %4382 = vmatpush1.bf16.msra.mxu0 0
  %4383 = vmatprep.subr.bf16.mxu0 0
  %4384 = vmatpush1.bf16.msra.mxu0 0
  %4385 = vmatprep.subr.bf16.mxu0 0
  %4386 = vmatpush1.bf16.msra.mxu0 0
  %4387 = vmatprep.subr.bf16.mxu0 0
  %4388 = vmatpush1.bf16.msra.mxu0 0
  %4389 = vmatprep.subr.bf16.mxu0 0
  %4390 = vmatpush1.bf16.msra.mxu0 0
  %4391 = vmatprep.subr.bf16.mxu0 0
  %4392 = vmatpush1.bf16.msra.mxu0 0
  %4393 = vmatprep.subr.bf16.mxu0 0
  %4394 = vmatpush1.bf16.msra.mxu0 0
  %4395 = vmatprep.subr.bf16.mxu0 0
  %4396 = vmatpush1.bf16.msra.mxu0 0
  %4397 = vmatprep.subr.bf16.mxu0 0
  %4398 = vmatpush1.bf16.msra.mxu0 0
  %4399 = vmatprep.subr.bf16.mxu0 0
  %4400 = vmatpush1.bf16.msra.mxu0 0
  %4401 = vmatprep.mubr.bf16.mxu0 0
  %4402 = vmatmul.mubr.bf16.gmra.mrb[0].mxu0 %v4364
  %v4403 = vpop.f32.mrb[0].mxu0
  %v4404 = vadd.f32 0.0, %v4403
  %v4405 = vpop.f32.mrb[0].mxu0
  %v4406 = vpop.f32.mrb[0].mxu0
  %v4407 = vadd.f32 0.0, %v4406
  %v4408 = vpop.f32.mrb[0].mxu0
  %4409 = vmatprep.mubr.bf16.mxu0 0
  %4410 = vmatmul.mubr.bf16.gmra.mrb[0].mxu0 %v4367
  %v4411 = vpop.f32.mrb[0].mxu0
  %v4412 = vadd.f32 0.0, %v4411
  %v4413 = vpop.f32.mrb[0].mxu0
  %v4414 = vpop.f32.mrb[0].mxu0
  %v4415 = vadd.f32 0.0, %v4414
  %v4416 = vpop.f32.mrb[0].mxu0
  %4417 = vdwg.mxu0
  %v4418 = vadd.f32 %v4285, %v4404
  %v4419 = vadd.f32 %v4286, %v4407
  %v4420 = vadd.f32 %v4287, %v4412
  %v4421 = vadd.f32 %v4288, %v4415
  %v4422 = vld [vmem:[%s3 + $0x40] sm:$0xf]
  %v4423 = vld [vmem:[%s3 + $0x44] sm:$0xf]
  %v4424 = vld [vmem:[%s3 + $0x48] sm:$0xf]
  %v4425 = vld [vmem:[%s3 + $0x4c] sm:$0xf]
  %v4427 = vunpack.c.l.s4 1966171168
  %v4428 = vunpack.c.0.s8 %v4427
  %v4429 = vlaneseq
  %v4430 = vshrl.u32 %v4429, 7
  %v4431 = vsub.s32 %v4428, %v4430
  %v4432 = vrot.slane %v2985, %v4431
  %v4434 = vunpack.c.l.s4 1966171168
  %v4435 = vunpack.c.0.s8 %v4434
  %v4436 = vlaneseq
  %v4437 = vshrl.u32 %v4436, 7
  %v4438 = vsub.s32 %v4435, %v4437
  %v4439 = vrot.slane %v4432, %v4438
  %v4441 = vunpack.c.l.s4 1966171168
  %v4442 = vunpack.c.0.s8 %v4441
  %v4443 = vlaneseq
  %v4444 = vshrl.u32 %v4443, 7
  %v4445 = vsub.s32 %v4442, %v4444
  %v4446 = vrot.slane %v3032, %v4445
  %v4448 = vunpack.c.l.s4 1966171168
  %v4449 = vunpack.c.0.s8 %v4448
  %v4450 = vlaneseq
  %v4451 = vshrl.u32 %v4450, 7
  %v4452 = vsub.s32 %v4449, %v4451
  %v4453 = vrot.slane %v4446, %v4452
  %v4455 = vunpack.c.l.s4 1966171168
  %v4456 = vunpack.c.0.s8 %v4455
  %v4457 = vlaneseq
  %v4458 = vshrl.u32 %v4457, 7
  %v4459 = vsub.s32 %v4456, %v4458
  %v4460 = vrot.slane %v3079, %v4459
  %v4462 = vunpack.c.l.s4 1966171168
  %v4463 = vunpack.c.0.s8 %v4462
  %v4464 = vlaneseq
  %v4465 = vshrl.u32 %v4464, 7
  %v4466 = vsub.s32 %v4463, %v4465
  %v4467 = vrot.slane %v4460, %v4466
  %v4469 = vunpack.c.l.s4 1966171168
  %v4470 = vunpack.c.0.s8 %v4469
  %v4471 = vlaneseq
  %v4472 = vshrl.u32 %v4471, 7
  %v4473 = vsub.s32 %v4470, %v4472
  %v4474 = vrot.slane %v3126, %v4473
  %v4476 = vunpack.c.l.s4 1966171168
  %v4477 = vunpack.c.0.s8 %v4476
  %v4478 = vlaneseq
  %v4479 = vshrl.u32 %v4478, 7
  %v4480 = vsub.s32 %v4477, %v4479
  %v4481 = vrot.slane %v4474, %v4480
  %v4483 = vunpack.c.l.s4 1966171168
  %v4484 = vunpack.c.0.s8 %v4483
  %v4485 = vlaneseq
  %v4486 = vshrl.u32 %v4485, 7
  %v4487 = vsub.s32 %v4484, %v4486
  %v4488 = vrot.slane %v3173, %v4487
  %v4490 = vunpack.c.l.s4 1966171168
  %v4491 = vunpack.c.0.s8 %v4490
  %v4492 = vlaneseq
  %v4493 = vshrl.u32 %v4492, 7
  %v4494 = vsub.s32 %v4491, %v4493
  %v4495 = vrot.slane %v4488, %v4494
  %v4497 = vunpack.c.l.s4 1966171168
  %v4498 = vunpack.c.0.s8 %v4497
  %v4499 = vlaneseq
  %v4500 = vshrl.u32 %v4499, 7
  %v4501 = vsub.s32 %v4498, %v4500
  %v4502 = vrot.slane %v3220, %v4501
  %v4504 = vunpack.c.l.s4 1966171168
  %v4505 = vunpack.c.0.s8 %v4504
  %v4506 = vlaneseq
  %v4507 = vshrl.u32 %v4506, 7
  %v4508 = vsub.s32 %v4505, %v4507
  %v4509 = vrot.slane %v4502, %v4508
  %v4511 = vunpack.c.l.s4 1966171168
  %v4512 = vunpack.c.0.s8 %v4511
  %v4513 = vlaneseq
  %v4514 = vshrl.u32 %v4513, 7
  %v4515 = vsub.s32 %v4512, %v4514
  %v4516 = vrot.slane %v3267, %v4515
  %v4518 = vunpack.c.l.s4 1966171168
  %v4519 = vunpack.c.0.s8 %v4518
  %v4520 = vlaneseq
  %v4521 = vshrl.u32 %v4520, 7
  %v4522 = vsub.s32 %v4519, %v4521
  %v4523 = vrot.slane %v4516, %v4522
  %v4525 = vunpack.c.l.s4 1966171168
  %v4526 = vunpack.c.0.s8 %v4525
  %v4527 = vlaneseq
  %v4528 = vshrl.u32 %v4527, 7
  %v4529 = vsub.s32 %v4526, %v4528
  %v4530 = vrot.slane %v3314, %v4529
  %v4532 = vunpack.c.l.s4 1966171168
  %v4533 = vunpack.c.0.s8 %v4532
  %v4534 = vlaneseq
  %v4535 = vshrl.u32 %v4534, 7
  %v4536 = vsub.s32 %v4533, %v4535
  %v4537 = vrot.slane %v4530, %v4536
  %v4538 = vunpack.c.l.b16 %v4439
  %v4539 = vunpack.c.l.b16 %v4453
  %v4540 = vunpack.c.l.b16 %v4467
  %v4541 = vunpack.c.l.b16 %v4481
  %v4542 = vunpack.c.l.b16 %v4495
  %v4543 = vunpack.c.l.b16 %v4509
  %v4544 = vunpack.c.l.b16 %v4523
  %v4545 = vunpack.c.l.b16 %v4537
  %v4546 = vsel %vm1678, %v4295, %v3775
  %v4547 = vsel %vm1681, %v4297, %v4546
  %v4548 = vrot.slane %v4538, 5
  %v4549 = vsel %vm1684, %v4548, %v4547
  %v4550 = vsel %vm1687, %v4301, %v4549
  %v4551 = vsel %vm1690, %v4303, %v4550
  %v4552 = vsel %vm1693, %v4305, %v4551
  %v4553 = vrot.slane %v4539, 1
  %v4554 = vsel %vm1696, %v4553, %v4552
  %v4555 = vsel %vm1678, %v4309, %v3783
  %v4556 = vsel %vm1681, %v4311, %v4555
  %v4557 = vrot.slane %v4540, 5
  %v4558 = vsel %vm1684, %v4557, %v4556
  %v4559 = vsel %vm1687, %v4315, %v4558
  %v4560 = vsel %vm1690, %v4317, %v4559
  %v4561 = vsel %vm1693, %v4319, %v4560
  %v4562 = vrot.slane %v4541, 1
  %v4563 = vsel %vm1696, %v4562, %v4561
  %v4564 = vsel %vm1678, %v4323, %v3791
  %v4565 = vsel %vm1681, %v4325, %v4564
  %v4566 = vrot.slane %v4542, 5
  %v4567 = vsel %vm1684, %v4566, %v4565
  %v4568 = vsel %vm1687, %v4329, %v4567
  %v4569 = vsel %vm1690, %v4331, %v4568
  %v4570 = vsel %vm1693, %v4333, %v4569
  %v4571 = vrot.slane %v4543, 1
  %v4572 = vsel %vm1696, %v4571, %v4570
  %v4573 = vsel %vm1678, %v4337, %v3799
  %v4574 = vsel %vm1681, %v4339, %v4573
  %v4575 = vrot.slane %v4544, 5
  %v4576 = vsel %vm1684, %v4575, %v4574
  %v4577 = vsel %vm1687, %v4343, %v4576
  %v4578 = vsel %vm1690, %v4345, %v4577
  %v4579 = vsel %vm1693, %v4347, %v4578
  %v4580 = vrot.slane %v4545, 1
  %v4581 = vsel %vm1696, %v4580, %v4579
  %v4582 = vpack.c.b16 %v4563, %v4554
  %v4583 = vpack.c.b16 %v4581, %v4572
  %v4588 = vunpack.c.l.b16 %v4422
  %v4589 = vunpack.c.l.b16 %v4423
  %v4590 = vunpack.c.l.b16 %v4424
  %v4591 = vunpack.c.l.b16 %v4425
  %v4592 = vpack.c.b16 %v4589, %v4588
  %v4593 = vpack.c.b16 %v4591, %v4590
  %v4597 = vsel %vm3875, %v4582, 0
  %v4600 = vsel %vm3875, %v4583, 0
  %4602 = vmatprep.subr.bf16.mxu0 0
  %4603 = vmatpush1.bf16.msra.mxu0 %v4592
  %4604 = vmatprep.subr.bf16.mxu0 0
  %4605 = vmatpush1.bf16.msra.mxu0 %v4593
  %4606 = vmatprep.subr.bf16.mxu0 0
  %4607 = vmatpush1.bf16.msra.mxu0 0
  %4608 = vmatprep.subr.bf16.mxu0 0
  %4609 = vmatpush1.bf16.msra.mxu0 0
  %4610 = vmatprep.subr.bf16.mxu0 0
  %4611 = vmatpush1.bf16.msra.mxu0 0
  %4612 = vmatprep.subr.bf16.mxu0 0
  %4613 = vmatpush1.bf16.msra.mxu0 0
  %4614 = vmatprep.subr.bf16.mxu0 0
  %4615 = vmatpush1.bf16.msra.mxu0 0
  %4616 = vmatprep.subr.bf16.mxu0 0
  %4617 = vmatpush1.bf16.msra.mxu0 0
  %4618 = vmatprep.subr.bf16.mxu0 0
  %4619 = vmatpush1.bf16.msra.mxu0 0
  %4620 = vmatprep.subr.bf16.mxu0 0
  %4621 = vmatpush1.bf16.msra.mxu0 0
  %4622 = vmatprep.subr.bf16.mxu0 0
  %4623 = vmatpush1.bf16.msra.mxu0 0
  %4624 = vmatprep.subr.bf16.mxu0 0
  %4625 = vmatpush1.bf16.msra.mxu0 0
  %4626 = vmatprep.subr.bf16.mxu0 0
  %4627 = vmatpush1.bf16.msra.mxu0 0
  %4628 = vmatprep.subr.bf16.mxu0 0
  %4629 = vmatpush1.bf16.msra.mxu0 0
  %4630 = vmatprep.subr.bf16.mxu0 0
  %4631 = vmatpush1.bf16.msra.mxu0 0
  %4632 = vmatprep.subr.bf16.mxu0 0
  %4633 = vmatpush1.bf16.msra.mxu0 0
  %4634 = vmatprep.mubr.bf16.mxu0 0
  %4635 = vmatmul.mubr.bf16.gmra.mrb[0].mxu0 %v4597
  %v4636 = vpop.f32.mrb[0].mxu0
  %v4637 = vadd.f32 0.0, %v4636
  %v4638 = vpop.f32.mrb[0].mxu0
  %v4639 = vpop.f32.mrb[0].mxu0
  %v4640 = vadd.f32 0.0, %v4639
  %v4641 = vpop.f32.mrb[0].mxu0
  %4642 = vmatprep.mubr.bf16.mxu0 0
  %4643 = vmatmul.mubr.bf16.gmra.mrb[0].mxu0 %v4600
  %v4644 = vpop.f32.mrb[0].mxu0
  %v4645 = vadd.f32 0.0, %v4644
  %v4646 = vpop.f32.mrb[0].mxu0
  %v4647 = vpop.f32.mrb[0].mxu0
  %v4648 = vadd.f32 0.0, %v4647
  %v4649 = vpop.f32.mrb[0].mxu0
  %4650 = vdwg.mxu0
  %v4651 = vadd.f32 %v4418, %v4637
  %v4652 = vadd.f32 %v4419, %v4640
  %v4653 = vadd.f32 %v4420, %v4645
  %v4654 = vadd.f32 %v4421, %v4648
  %v4655 = vld [vmem:[%s4] sm:$0x1]
  %v4657 = vlaneseq
  %v4658 = vshrl.u32 %v4657, 7
  %v4659 = vsub.s32 0, %v4658
  %v4660 = vrot.slane %v4655, %v4659
  %v4662 = vadd.f32 %v4651, %v4660
  %v4663 = vadd.f32 %v4652, %v4660
  %v4664 = vadd.f32 %v4653, %v4660
  %v4665 = vadd.f32 %v4654, %v4660
  %v4670 = vcombine.high %v4662, %v4662
  %v4671 = vcombine.high %v4663, %v4663
  %v4672 = vcombine.high %v4664, %v4664
  %v4673 = vcombine.high %v4665, %v4665
  %vm4678 = vcmask 519168
  %v4679 = vsel %vm4678, %v4662, 0.0
  %v4680 = vrot.slane %v4679, 4
  %v4681 = vadd.f32 %v4679, %v4680
  %v4682 = vrot.slane %v4681, 2
  %v4683 = vadd.f32 %v4681, %v4682
  %v4684 = vrot.slane %v4683, 1
  %v4685 = vadd.f32 %v4683, %v4684
  %v4686 = vsel %vm4678, %v4670, 0.0
  %v4687 = vrot.slane %v4686, 4
  %v4688 = vadd.f32 %v4686, %v4687
  %v4689 = vrot.slane %v4688, 2
  %v4690 = vadd.f32 %v4688, %v4689
  %v4691 = vrot.slane %v4690, 1
  %v4692 = vadd.f32 %v4690, %v4691
  %v4693 = vsel %vm4678, %v4663, 0.0
  %v4694 = vrot.slane %v4693, 4
  %v4695 = vadd.f32 %v4693, %v4694
  %v4696 = vrot.slane %v4695, 2
  %v4697 = vadd.f32 %v4695, %v4696
  %v4698 = vrot.slane %v4697, 1
  %v4699 = vadd.f32 %v4697, %v4698
  %v4700 = vsel %vm4678, %v4671, 0.0
  %v4701 = vrot.slane %v4700, 4
  %v4702 = vadd.f32 %v4700, %v4701
  %v4703 = vrot.slane %v4702, 2
  %v4704 = vadd.f32 %v4702, %v4703
  %v4705 = vrot.slane %v4704, 1
  %v4706 = vadd.f32 %v4704, %v4705
  %v4707 = vsel %vm4678, %v4664, 0.0
  %v4708 = vrot.slane %v4707, 4
  %v4709 = vadd.f32 %v4707, %v4708
  %v4710 = vrot.slane %v4709, 2
  %v4711 = vadd.f32 %v4709, %v4710
  %v4712 = vrot.slane %v4711, 1
  %v4713 = vadd.f32 %v4711, %v4712
  %v4714 = vsel %vm4678, %v4672, 0.0
  %v4715 = vrot.slane %v4714, 4
  %v4716 = vadd.f32 %v4714, %v4715
  %v4717 = vrot.slane %v4716, 2
  %v4718 = vadd.f32 %v4716, %v4717
  %v4719 = vrot.slane %v4718, 1
  %v4720 = vadd.f32 %v4718, %v4719
  %v4721 = vsel %vm4678, %v4665, 0.0
  %v4722 = vrot.slane %v4721, 4
  %v4723 = vadd.f32 %v4721, %v4722
  %v4724 = vrot.slane %v4723, 2
  %v4725 = vadd.f32 %v4723, %v4724
  %v4726 = vrot.slane %v4725, 1
  %v4727 = vadd.f32 %v4725, %v4726
  %v4728 = vsel %vm4678, %v4673, 0.0
  %v4729 = vrot.slane %v4728, 4
  %v4730 = vadd.f32 %v4728, %v4729
  %v4731 = vrot.slane %v4730, 2
  %v4732 = vadd.f32 %v4730, %v4731
  %v4733 = vrot.slane %v4732, 1
  %v4734 = vadd.f32 %v4732, %v4733
  %v4735 = vrcp.pop 4.0
  %v4736 = vmul.f32 %v4685, %v4735
  %v4737 = vmul.f32 %v4692, %v4735
  %v4738 = vmul.f32 %v4699, %v4735
  %v4739 = vmul.f32 %v4706, %v4735
  %v4740 = vmul.f32 %v4713, %v4735
  %v4741 = vmul.f32 %v4720, %v4735
  %v4742 = vmul.f32 %v4727, %v4735
  %v4743 = vmul.f32 %v4734, %v4735
  %v4744 = vmul.f32 %v4662, %v4662
  %v4745 = vmul.f32 %v4670, %v4670
  %v4746 = vmul.f32 %v4663, %v4663
  %v4747 = vmul.f32 %v4671, %v4671
  %v4748 = vmul.f32 %v4664, %v4664
  %v4749 = vmul.f32 %v4672, %v4672
  %v4750 = vmul.f32 %v4665, %v4665
  %v4751 = vmul.f32 %v4673, %v4673
  %v4752 = vsel %vm4678, %v4744, 0.0
  %v4753 = vrot.slane %v4752, 4
  %v4754 = vadd.f32 %v4752, %v4753
  %v4755 = vrot.slane %v4754, 2
  %v4756 = vadd.f32 %v4754, %v4755
  %v4757 = vrot.slane %v4756, 1
  %v4758 = vadd.f32 %v4756, %v4757
  %v4759 = vsel %vm4678, %v4745, 0.0
  %v4760 = vrot.slane %v4759, 4
  %v4761 = vadd.f32 %v4759, %v4760
  %v4762 = vrot.slane %v4761, 2
  %v4763 = vadd.f32 %v4761, %v4762
  %v4764 = vrot.slane %v4763, 1
  %v4765 = vadd.f32 %v4763, %v4764
  %v4766 = vsel %vm4678, %v4746, 0.0
  %v4767 = vrot.slane %v4766, 4
  %v4768 = vadd.f32 %v4766, %v4767
  %v4769 = vrot.slane %v4768, 2
  %v4770 = vadd.f32 %v4768, %v4769
  %v4771 = vrot.slane %v4770, 1
  %v4772 = vadd.f32 %v4770, %v4771
  %v4773 = vsel %vm4678, %v4747, 0.0
  %v4774 = vrot.slane %v4773, 4
  %v4775 = vadd.f32 %v4773, %v4774
  %v4776 = vrot.slane %v4775, 2
  %v4777 = vadd.f32 %v4775, %v4776
  %v4778 = vrot.slane %v4777, 1
  %v4779 = vadd.f32 %v4777, %v4778
  %v4780 = vsel %vm4678, %v4748, 0.0
  %v4781 = vrot.slane %v4780, 4
  %v4782 = vadd.f32 %v4780, %v4781
  %v4783 = vrot.slane %v4782, 2
  %v4784 = vadd.f32 %v4782, %v4783
  %v4785 = vrot.slane %v4784, 1
  %v4786 = vadd.f32 %v4784, %v4785
  %v4787 = vsel %vm4678, %v4749, 0.0
  %v4788 = vrot.slane %v4787, 4
  %v4789 = vadd.f32 %v4787, %v4788
  %v4790 = vrot.slane %v4789, 2
  %v4791 = vadd.f32 %v4789, %v4790
  %v4792 = vrot.slane %v4791, 1
  %v4793 = vadd.f32 %v4791, %v4792
  %v4794 = vsel %vm4678, %v4750, 0.0
  %v4795 = vrot.slane %v4794, 4
  %v4796 = vadd.f32 %v4794, %v4795
  %v4797 = vrot.slane %v4796, 2
  %v4798 = vadd.f32 %v4796, %v4797
  %v4799 = vrot.slane %v4798, 1
  %v4800 = vadd.f32 %v4798, %v4799
  %v4801 = vsel %vm4678, %v4751, 0.0
  %v4802 = vrot.slane %v4801, 4
  %v4803 = vadd.f32 %v4801, %v4802
  %v4804 = vrot.slane %v4803, 2
  %v4805 = vadd.f32 %v4803, %v4804
  %v4806 = vrot.slane %v4805, 1
  %v4807 = vadd.f32 %v4805, %v4806
  %v4808 = vmul.f32 %v4758, %v4735
  %v4809 = vmul.f32 %v4765, %v4735
  %v4810 = vmul.f32 %v4772, %v4735
  %v4811 = vmul.f32 %v4779, %v4735
  %v4812 = vmul.f32 %v4786, %v4735
  %v4813 = vmul.f32 %v4793, %v4735
  %v4814 = vmul.f32 %v4800, %v4735
  %v4815 = vmul.f32 %v4807, %v4735
  %v4816 = vmul.f32 %v4736, %v4736
  %v4817 = vmul.f32 %v4737, %v4737
  %v4818 = vmul.f32 %v4738, %v4738
  %v4819 = vmul.f32 %v4739, %v4739
  %v4820 = vmul.f32 %v4740, %v4740
  %v4821 = vmul.f32 %v4741, %v4741
  %v4822 = vmul.f32 %v4742, %v4742
  %v4823 = vmul.f32 %v4743, %v4743
  %v4824 = vsub.f32 %v4808, %v4816
  %v4825 = vsub.f32 %v4809, %v4817
  %v4826 = vsub.f32 %v4810, %v4818
  %v4827 = vsub.f32 %v4811, %v4819
  %v4828 = vsub.f32 %v4812, %v4820
  %v4829 = vsub.f32 %v4813, %v4821
  %v4830 = vsub.f32 %v4814, %v4822
  %v4831 = vsub.f32 %v4815, %v4823
  %v4832 = vmax.f32 %v4824, 0.0
  %v4833 = vmax.f32 %v4825, 0.0
  %v4834 = vmax.f32 %v4826, 0.0
  %v4835 = vmax.f32 %v4827, 0.0
  %v4836 = vmax.f32 %v4828, 0.0
  %v4837 = vmax.f32 %v4829, 0.0
  %v4838 = vmax.f32 %v4830, 0.0
  %v4839 = vmax.f32 %v4831, 0.0
  %v4840 = vsub.f32 %v4662, %v4736
  %v4841 = vsub.f32 %v4670, %v4737
  %v4842 = vsub.f32 %v4663, %v4738
  %v4843 = vsub.f32 %v4671, %v4739
  %v4844 = vsub.f32 %v4664, %v4740
  %v4845 = vsub.f32 %v4672, %v4741
  %v4846 = vsub.f32 %v4665, %v4742
  %v4847 = vsub.f32 %v4673, %v4743
  %v4848 = vadd.f32 %v4832, 1e-05
  %v4849 = vadd.f32 %v4833, 1e-05
  %v4850 = vadd.f32 %v4834, 1e-05
  %v4851 = vadd.f32 %v4835, 1e-05
  %v4852 = vadd.f32 %v4836, 1e-05
  %v4853 = vadd.f32 %v4837, 1e-05
  %v4854 = vadd.f32 %v4838, 1e-05
  %v4855 = vadd.f32 %v4839, 1e-05
  %v4856 = vrsqrt.pop %v4848
  %v4857 = vrsqrt.pop %v4849
  %v4858 = vrsqrt.pop %v4850
  %v4859 = vrsqrt.pop %v4851
  %v4860 = vrsqrt.pop %v4852
  %v4861 = vrsqrt.pop %v4853
  %v4862 = vrsqrt.pop %v4854
  %v4863 = vrsqrt.pop %v4855
  %v4864 = vmul.f32 %v4840, %v4856
  %v4865 = vmul.f32 %v4841, %v4857
  %v4866 = vmul.f32 %v4842, %v4858
  %v4867 = vmul.f32 %v4843, %v4859
  %v4868 = vmul.f32 %v4844, %v4860
  %v4869 = vmul.f32 %v4845, %v4861
  %v4870 = vmul.f32 %v4846, %v4862
  %v4871 = vmul.f32 %v4847, %v4863
  %vm4872 = vcmp.gt.f32.partialorder %v4864, 0.0
  %vm4873 = vcmp.gt.f32.partialorder %v4865, 0.0
  %vm4874 = vcmp.gt.f32.partialorder %v4866, 0.0
  %vm4875 = vcmp.gt.f32.partialorder %v4867, 0.0
  %vm4876 = vcmp.gt.f32.partialorder %v4868, 0.0
  %vm4877 = vcmp.gt.f32.partialorder %v4869, 0.0
  %vm4878 = vcmp.gt.f32.partialorder %v4870, 0.0
  %vm4879 = vcmp.gt.f32.partialorder %v4871, 0.0
  %v4880 = vmul.f32 %v4864, 0.2
  %v4881 = vmul.f32 %v4865, 0.2
  %v4882 = vmul.f32 %v4866, 0.2
  %v4883 = vmul.f32 %v4867, 0.2
  %v4884 = vmul.f32 %v4868, 0.2
  %v4885 = vmul.f32 %v4869, 0.2
  %v4886 = vmul.f32 %v4870, 0.2
  %v4887 = vmul.f32 %v4871, 0.2
  %v4888 = vsel %vm4872, %v4864, %v4880
  %v4889 = vsel %vm4873, %v4865, %v4881
  %v4890 = vsel %vm4874, %v4866, %v4882
  %v4891 = vsel %vm4875, %v4867, %v4883
  %v4892 = vsel %vm4876, %v4868, %v4884
  %v4893 = vsel %vm4877, %v4869, %v4885
  %v4894 = vsel %vm4878, %v4870, %v4886
  %v4895 = vsel %vm4879, %v4871, %v4887
  %v4896 = vpack.c.bf16 %v4888, %v4888
  %v4897 = vpack.c.bf16 %v4889, %v4889
  %v4898 = vpack.c.bf16 %v4890, %v4890
  %v4899 = vpack.c.bf16 %v4891, %v4891
  %v4900 = vpack.c.bf16 %v4892, %v4892
  %v4901 = vpack.c.bf16 %v4893, %v4893
  %v4902 = vpack.c.bf16 %v4894, %v4894
  %v4903 = vpack.c.bf16 %v4895, %v4895
  %v4912 = vrot.slane %v4896, 7
  %v4913 = vrot.slane %v4897, 7
  %v4914 = vrot.slane %v4898, 7
  %v4915 = vrot.slane %v4899, 7
  %v4916 = vrot.slane %v4900, 7
  %v4917 = vrot.slane %v4901, 7
  %v4918 = vrot.slane %v4902, 7
  %v4919 = vrot.slane %v4903, 7
  %v4921 = vsel %vm105, 0, %v4912
  %v4923 = vsel %vm105, 0, %v4913
  %v4925 = vsel %vm105, 0, %v4914
  %v4927 = vsel %vm105, 0, %v4915
  %v4929 = vsel %vm105, 0, %v4916
  %v4931 = vsel %vm105, 0, %v4917
  %v4933 = vsel %vm105, 0, %v4918
  %v4935 = vsel %vm105, 0, %v4919
  %vm4936 = vcmask 1042432
  %v4937 = vsel %vm4936, %v4921, 0
  %v4938 = vsel %vm4936, %v4923, 0
  %v4939 = vsel %vm4936, %v4925, 0
  %v4940 = vsel %vm4936, %v4927, 0
  %v4941 = vsel %vm4936, %v4929, 0
  %v4942 = vsel %vm4936, %v4931, 0
  %v4943 = vsel %vm4936, %v4933, 0
  %v4944 = vsel %vm4936, %v4935, 0
  %v4954 = vunpack.c.l.s4 1966171168
  %v4955 = vunpack.c.0.s8 %v4954
  %v4956 = vlaneseq
  %v4957 = vshrl.u32 %v4956, 7
  %v4958 = vsub.s32 %v4955, %v4957
  %v4959 = vrot.slane %v4937, %v4958
  %v4960 = vcombine.high %v4959, %v4959
  %v4962 = vunpack.c.l.s4 1966171168
  %v4963 = vunpack.c.0.s8 %v4962
  %v4964 = vlaneseq
  %v4965 = vshrl.u32 %v4964, 7
  %v4966 = vsub.s32 %v4963, %v4965
  %v4967 = vrot.slane %v4959, %v4966
  %v4969 = vunpack.c.l.s4 1966171168
  %v4970 = vunpack.c.0.s8 %v4969
  %v4971 = vlaneseq
  %v4972 = vshrl.u32 %v4971, 7
  %v4973 = vsub.s32 %v4970, %v4972
  %v4974 = vrot.slane %v4960, %v4973
  %v4975 = vcombine.high %v4967, %v4967
  %v4976 = vcombine.high %v4974, %v4974
  %v4978 = vunpack.c.l.s4 1966171168
  %v4979 = vunpack.c.0.s8 %v4978
  %v4980 = vlaneseq
  %v4981 = vshrl.u32 %v4980, 7
  %v4982 = vsub.s32 %v4979, %v4981
  %v4983 = vrot.slane %v4938, %v4982
  %v4984 = vcombine.high %v4983, %v4983
  %v4986 = vunpack.c.l.s4 1966171168
  %v4987 = vunpack.c.0.s8 %v4986
  %v4988 = vlaneseq
  %v4989 = vshrl.u32 %v4988, 7
  %v4990 = vsub.s32 %v4987, %v4989
  %v4991 = vrot.slane %v4983, %v4990
  %v4993 = vunpack.c.l.s4 1966171168
  %v4994 = vunpack.c.0.s8 %v4993
  %v4995 = vlaneseq
  %v4996 = vshrl.u32 %v4995, 7
  %v4997 = vsub.s32 %v4994, %v4996
  %v4998 = vrot.slane %v4984, %v4997
  %v4999 = vcombine.high %v4991, %v4991
  %v5000 = vcombine.high %v4998, %v4998
  %v5002 = vunpack.c.l.s4 1966171168
  %v5003 = vunpack.c.0.s8 %v5002
  %v5004 = vlaneseq
  %v5005 = vshrl.u32 %v5004, 7
  %v5006 = vsub.s32 %v5003, %v5005
  %v5007 = vrot.slane %v4939, %v5006
  %v5008 = vcombine.high %v5007, %v5007
  %v5010 = vunpack.c.l.s4 1966171168
  %v5011 = vunpack.c.0.s8 %v5010
  %v5012 = vlaneseq
  %v5013 = vshrl.u32 %v5012, 7
  %v5014 = vsub.s32 %v5011, %v5013
  %v5015 = vrot.slane %v5007, %v5014
  %v5017 = vunpack.c.l.s4 1966171168
  %v5018 = vunpack.c.0.s8 %v5017
  %v5019 = vlaneseq
  %v5020 = vshrl.u32 %v5019, 7
  %v5021 = vsub.s32 %v5018, %v5020
  %v5022 = vrot.slane %v5008, %v5021
  %v5023 = vcombine.high %v5015, %v5015
  %v5024 = vcombine.high %v5022, %v5022
  %v5026 = vunpack.c.l.s4 1966171168
  %v5027 = vunpack.c.0.s8 %v5026
  %v5028 = vlaneseq
  %v5029 = vshrl.u32 %v5028, 7
  %v5030 = vsub.s32 %v5027, %v5029
  %v5031 = vrot.slane %v4940, %v5030
  %v5032 = vcombine.high %v5031, %v5031
  %v5034 = vunpack.c.l.s4 1966171168
  %v5035 = vunpack.c.0.s8 %v5034
  %v5036 = vlaneseq
  %v5037 = vshrl.u32 %v5036, 7
  %v5038 = vsub.s32 %v5035, %v5037
  %v5039 = vrot.slane %v5031, %v5038
  %v5041 = vunpack.c.l.s4 1966171168
  %v5042 = vunpack.c.0.s8 %v5041
  %v5043 = vlaneseq
  %v5044 = vshrl.u32 %v5043, 7
  %v5045 = vsub.s32 %v5042, %v5044
  %v5046 = vrot.slane %v5032, %v5045
  %v5047 = vcombine.high %v5039, %v5039
  %v5048 = vcombine.high %v5046, %v5046
  %v5050 = vunpack.c.l.s4 1966171168
  %v5051 = vunpack.c.0.s8 %v5050
  %v5052 = vlaneseq
  %v5053 = vshrl.u32 %v5052, 7
  %v5054 = vsub.s32 %v5051, %v5053
  %v5055 = vrot.slane %v4941, %v5054
  %v5056 = vcombine.high %v5055, %v5055
  %v5058 = vunpack.c.l.s4 1966171168
  %v5059 = vunpack.c.0.s8 %v5058
  %v5060 = vlaneseq
  %v5061 = vshrl.u32 %v5060, 7
  %v5062 = vsub.s32 %v5059, %v5061
  %v5063 = vrot.slane %v5055, %v5062
  %v5065 = vunpack.c.l.s4 1966171168
  %v5066 = vunpack.c.0.s8 %v5065
  %v5067 = vlaneseq
  %v5068 = vshrl.u32 %v5067, 7
  %v5069 = vsub.s32 %v5066, %v5068
  %v5070 = vrot.slane %v5056, %v5069
  %v5071 = vcombine.high %v5063, %v5063
  %v5072 = vcombine.high %v5070, %v5070
  %v5074 = vunpack.c.l.s4 1966171168
  %v5075 = vunpack.c.0.s8 %v5074
  %v5076 = vlaneseq
  %v5077 = vshrl.u32 %v5076, 7
  %v5078 = vsub.s32 %v5075, %v5077
  %v5079 = vrot.slane %v4942, %v5078
  %v5080 = vcombine.high %v5079, %v5079
  %v5082 = vunpack.c.l.s4 1966171168
  %v5083 = vunpack.c.0.s8 %v5082
  %v5084 = vlaneseq
  %v5085 = vshrl.u32 %v5084, 7
  %v5086 = vsub.s32 %v5083, %v5085
  %v5087 = vrot.slane %v5079, %v5086
  %v5089 = vunpack.c.l.s4 1966171168
  %v5090 = vunpack.c.0.s8 %v5089
  %v5091 = vlaneseq
  %v5092 = vshrl.u32 %v5091, 7
  %v5093 = vsub.s32 %v5090, %v5092
  %v5094 = vrot.slane %v5080, %v5093
  %v5095 = vcombine.high %v5087, %v5087
  %v5096 = vcombine.high %v5094, %v5094
  %v5098 = vunpack.c.l.s4 1966171168
  %v5099 = vunpack.c.0.s8 %v5098
  %v5100 = vlaneseq
  %v5101 = vshrl.u32 %v5100, 7
  %v5102 = vsub.s32 %v5099, %v5101
  %v5103 = vrot.slane %v4943, %v5102
  %v5104 = vcombine.high %v5103, %v5103
  %v5106 = vunpack.c.l.s4 1966171168
  %v5107 = vunpack.c.0.s8 %v5106
  %v5108 = vlaneseq
  %v5109 = vshrl.u32 %v5108, 7
  %v5110 = vsub.s32 %v5107, %v5109
  %v5111 = vrot.slane %v5103, %v5110
  %v5113 = vunpack.c.l.s4 1966171168
  %v5114 = vunpack.c.0.s8 %v5113
  %v5115 = vlaneseq
  %v5116 = vshrl.u32 %v5115, 7
  %v5117 = vsub.s32 %v5114, %v5116
  %v5118 = vrot.slane %v5104, %v5117
  %v5119 = vcombine.high %v5111, %v5111
  %v5120 = vcombine.high %v5118, %v5118
  %v5122 = vunpack.c.l.s4 1966171168
  %v5123 = vunpack.c.0.s8 %v5122
  %v5124 = vlaneseq
  %v5125 = vshrl.u32 %v5124, 7
  %v5126 = vsub.s32 %v5123, %v5125
  %v5127 = vrot.slane %v4944, %v5126
  %v5128 = vcombine.high %v5127, %v5127
  %v5130 = vunpack.c.l.s4 1966171168
  %v5131 = vunpack.c.0.s8 %v5130
  %v5132 = vlaneseq
  %v5133 = vshrl.u32 %v5132, 7
  %v5134 = vsub.s32 %v5131, %v5133
  %v5135 = vrot.slane %v5127, %v5134
  %v5137 = vunpack.c.l.s4 1966171168
  %v5138 = vunpack.c.0.s8 %v5137
  %v5139 = vlaneseq
  %v5140 = vshrl.u32 %v5139, 7
  %v5141 = vsub.s32 %v5138, %v5140
  %v5142 = vrot.slane %v5128, %v5141
  %v5143 = vcombine.high %v5135, %v5135
  %v5144 = vcombine.high %v5142, %v5142
  %v5145 = vld [vmem:[%s5] sm:$0xf]
  %v5146 = vld [vmem:[%s5 + $0x4] sm:$0xf]
  %v5147 = vld [vmem:[%s5 + $0x8] sm:$0xf]
  %v5148 = vld [vmem:[%s5 + $0xc] sm:$0xf]
  %v5149 = vld [vmem:[%s5 + $0x10] sm:$0xf]
  %v5150 = vld [vmem:[%s5 + $0x14] sm:$0xf]
  %v5151 = vld [vmem:[%s5 + $0x18] sm:$0xf]
  %v5152 = vld [vmem:[%s5 + $0x1c] sm:$0xf]
  %v5153 = vld [vmem:[%s5 + $0x20] sm:$0xf]
  %v5154 = vld [vmem:[%s5 + $0x24] sm:$0xf]
  %v5155 = vld [vmem:[%s5 + $0x28] sm:$0xf]
  %v5156 = vld [vmem:[%s5 + $0x2c] sm:$0xf]
  %v5157 = vld [vmem:[%s5 + $0x30] sm:$0xf]
  %v5158 = vld [vmem:[%s5 + $0x34] sm:$0xf]
  %v5159 = vld [vmem:[%s5 + $0x38] sm:$0xf]
  %v5160 = vld [vmem:[%s5 + $0x3c] sm:$0xf]
  %v5162 = vunpack.c.l.s4 1966171168
  %v5163 = vunpack.c.0.s8 %v5162
  %v5164 = vlaneseq
  %v5165 = vshrl.u32 %v5164, 7
  %v5166 = vsub.s32 %v5163, %v5165
  %v5167 = vrot.slane %v4967, %v5166
  %v5169 = vunpack.c.l.s4 1966171168
  %v5170 = vunpack.c.0.s8 %v5169
  %v5171 = vlaneseq
  %v5172 = vshrl.u32 %v5171, 7
  %v5173 = vsub.s32 %v5170, %v5172
  %v5174 = vrot.slane %v5167, %v5173
  %v5176 = vunpack.c.l.s4 1966171168
  %v5177 = vunpack.c.0.s8 %v5176
  %v5178 = vlaneseq
  %v5179 = vshrl.u32 %v5178, 7
  %v5180 = vsub.s32 %v5177, %v5179
  %v5181 = vrot.slane %v4974, %v5180
  %v5183 = vunpack.c.l.s4 1966171168
  %v5184 = vunpack.c.0.s8 %v5183
  %v5185 = vlaneseq
  %v5186 = vshrl.u32 %v5185, 7
  %v5187 = vsub.s32 %v5184, %v5186
  %v5188 = vrot.slane %v5181, %v5187
  %v5190 = vunpack.c.l.s4 1966171168
  %v5191 = vunpack.c.0.s8 %v5190
  %v5192 = vlaneseq
  %v5193 = vshrl.u32 %v5192, 7
  %v5194 = vsub.s32 %v5191, %v5193
  %v5195 = vrot.slane %v4991, %v5194
  %v5197 = vunpack.c.l.s4 1966171168
  %v5198 = vunpack.c.0.s8 %v5197
  %v5199 = vlaneseq
  %v5200 = vshrl.u32 %v5199, 7
  %v5201 = vsub.s32 %v5198, %v5200
  %v5202 = vrot.slane %v5195, %v5201
  %v5204 = vunpack.c.l.s4 1966171168
  %v5205 = vunpack.c.0.s8 %v5204
  %v5206 = vlaneseq
  %v5207 = vshrl.u32 %v5206, 7
  %v5208 = vsub.s32 %v5205, %v5207
  %v5209 = vrot.slane %v4998, %v5208
  %v5211 = vunpack.c.l.s4 1966171168
  %v5212 = vunpack.c.0.s8 %v5211
  %v5213 = vlaneseq
  %v5214 = vshrl.u32 %v5213, 7
  %v5215 = vsub.s32 %v5212, %v5214
  %v5216 = vrot.slane %v5209, %v5215
  %v5218 = vunpack.c.l.s4 1966171168
  %v5219 = vunpack.c.0.s8 %v5218
  %v5220 = vlaneseq
  %v5221 = vshrl.u32 %v5220, 7
  %v5222 = vsub.s32 %v5219, %v5221
  %v5223 = vrot.slane %v5015, %v5222
  %v5225 = vunpack.c.l.s4 1966171168
  %v5226 = vunpack.c.0.s8 %v5225
  %v5227 = vlaneseq
  %v5228 = vshrl.u32 %v5227, 7
  %v5229 = vsub.s32 %v5226, %v5228
  %v5230 = vrot.slane %v5223, %v5229
  %v5232 = vunpack.c.l.s4 1966171168
  %v5233 = vunpack.c.0.s8 %v5232
  %v5234 = vlaneseq
  %v5235 = vshrl.u32 %v5234, 7
  %v5236 = vsub.s32 %v5233, %v5235
  %v5237 = vrot.slane %v5022, %v5236
  %v5239 = vunpack.c.l.s4 1966171168
  %v5240 = vunpack.c.0.s8 %v5239
  %v5241 = vlaneseq
  %v5242 = vshrl.u32 %v5241, 7
  %v5243 = vsub.s32 %v5240, %v5242
  %v5244 = vrot.slane %v5237, %v5243
  %v5246 = vunpack.c.l.s4 1966171168
  %v5247 = vunpack.c.0.s8 %v5246
  %v5248 = vlaneseq
  %v5249 = vshrl.u32 %v5248, 7
  %v5250 = vsub.s32 %v5247, %v5249
  %v5251 = vrot.slane %v5039, %v5250
  %v5253 = vunpack.c.l.s4 1966171168
  %v5254 = vunpack.c.0.s8 %v5253
  %v5255 = vlaneseq
  %v5256 = vshrl.u32 %v5255, 7
  %v5257 = vsub.s32 %v5254, %v5256
  %v5258 = vrot.slane %v5251, %v5257
  %v5260 = vunpack.c.l.s4 1966171168
  %v5261 = vunpack.c.0.s8 %v5260
  %v5262 = vlaneseq
  %v5263 = vshrl.u32 %v5262, 7
  %v5264 = vsub.s32 %v5261, %v5263
  %v5265 = vrot.slane %v5046, %v5264
  %v5267 = vunpack.c.l.s4 1966171168
  %v5268 = vunpack.c.0.s8 %v5267
  %v5269 = vlaneseq
  %v5270 = vshrl.u32 %v5269, 7
  %v5271 = vsub.s32 %v5268, %v5270
  %v5272 = vrot.slane %v5265, %v5271
  %v5274 = vunpack.c.l.s4 1966171168
  %v5275 = vunpack.c.0.s8 %v5274
  %v5276 = vlaneseq
  %v5277 = vshrl.u32 %v5276, 7
  %v5278 = vsub.s32 %v5275, %v5277
  %v5279 = vrot.slane %v5063, %v5278
  %v5281 = vunpack.c.l.s4 1966171168
  %v5282 = vunpack.c.0.s8 %v5281
  %v5283 = vlaneseq
  %v5284 = vshrl.u32 %v5283, 7
  %v5285 = vsub.s32 %v5282, %v5284
  %v5286 = vrot.slane %v5279, %v5285
  %v5288 = vunpack.c.l.s4 1966171168
  %v5289 = vunpack.c.0.s8 %v5288
  %v5290 = vlaneseq
  %v5291 = vshrl.u32 %v5290, 7
  %v5292 = vsub.s32 %v5289, %v5291
  %v5293 = vrot.slane %v5070, %v5292
  %v5295 = vunpack.c.l.s4 1966171168
  %v5296 = vunpack.c.0.s8 %v5295
  %v5297 = vlaneseq
  %v5298 = vshrl.u32 %v5297, 7
  %v5299 = vsub.s32 %v5296, %v5298
  %v5300 = vrot.slane %v5293, %v5299
  %v5302 = vunpack.c.l.s4 1966171168
  %v5303 = vunpack.c.0.s8 %v5302
  %v5304 = vlaneseq
  %v5305 = vshrl.u32 %v5304, 7
  %v5306 = vsub.s32 %v5303, %v5305
  %v5307 = vrot.slane %v5087, %v5306
  %v5309 = vunpack.c.l.s4 1966171168
  %v5310 = vunpack.c.0.s8 %v5309
  %v5311 = vlaneseq
  %v5312 = vshrl.u32 %v5311, 7
  %v5313 = vsub.s32 %v5310, %v5312
  %v5314 = vrot.slane %v5307, %v5313
  %v5316 = vunpack.c.l.s4 1966171168
  %v5317 = vunpack.c.0.s8 %v5316
  %v5318 = vlaneseq
  %v5319 = vshrl.u32 %v5318, 7
  %v5320 = vsub.s32 %v5317, %v5319
  %v5321 = vrot.slane %v5094, %v5320
  %v5323 = vunpack.c.l.s4 1966171168
  %v5324 = vunpack.c.0.s8 %v5323
  %v5325 = vlaneseq
  %v5326 = vshrl.u32 %v5325, 7
  %v5327 = vsub.s32 %v5324, %v5326
  %v5328 = vrot.slane %v5321, %v5327
  %v5330 = vunpack.c.l.s4 1966171168
  %v5331 = vunpack.c.0.s8 %v5330
  %v5332 = vlaneseq
  %v5333 = vshrl.u32 %v5332, 7
  %v5334 = vsub.s32 %v5331, %v5333
  %v5335 = vrot.slane %v5111, %v5334
  %v5337 = vunpack.c.l.s4 1966171168
  %v5338 = vunpack.c.0.s8 %v5337
  %v5339 = vlaneseq
  %v5340 = vshrl.u32 %v5339, 7
  %v5341 = vsub.s32 %v5338, %v5340
  %v5342 = vrot.slane %v5335, %v5341
  %v5344 = vunpack.c.l.s4 1966171168
  %v5345 = vunpack.c.0.s8 %v5344
  %v5346 = vlaneseq
  %v5347 = vshrl.u32 %v5346, 7
  %v5348 = vsub.s32 %v5345, %v5347
  %v5349 = vrot.slane %v5118, %v5348
  %v5351 = vunpack.c.l.s4 1966171168
  %v5352 = vunpack.c.0.s8 %v5351
  %v5353 = vlaneseq
  %v5354 = vshrl.u32 %v5353, 7
  %v5355 = vsub.s32 %v5352, %v5354
  %v5356 = vrot.slane %v5349, %v5355
  %v5358 = vunpack.c.l.s4 1966171168
  %v5359 = vunpack.c.0.s8 %v5358
  %v5360 = vlaneseq
  %v5361 = vshrl.u32 %v5360, 7
  %v5362 = vsub.s32 %v5359, %v5361
  %v5363 = vrot.slane %v5135, %v5362
  %v5365 = vunpack.c.l.s4 1966171168
  %v5366 = vunpack.c.0.s8 %v5365
  %v5367 = vlaneseq
  %v5368 = vshrl.u32 %v5367, 7
  %v5369 = vsub.s32 %v5366, %v5368
  %v5370 = vrot.slane %v5363, %v5369
  %v5372 = vunpack.c.l.s4 1966171168
  %v5373 = vunpack.c.0.s8 %v5372
  %v5374 = vlaneseq
  %v5375 = vshrl.u32 %v5374, 7
  %v5376 = vsub.s32 %v5373, %v5375
  %v5377 = vrot.slane %v5142, %v5376
  %v5379 = vunpack.c.l.s4 1966171168
  %v5380 = vunpack.c.0.s8 %v5379
  %v5381 = vlaneseq
  %v5382 = vshrl.u32 %v5381, 7
  %v5383 = vsub.s32 %v5380, %v5382
  %v5384 = vrot.slane %v5377, %v5383
  %v5385 = vunpack.c.l.b16 %v5174
  %v5386 = vunpack.c.l.b16 %v5188
  %v5387 = vunpack.c.l.b16 %v5202
  %v5388 = vunpack.c.l.b16 %v5216
  %v5389 = vunpack.c.l.b16 %v5230
  %v5390 = vunpack.c.l.b16 %v5244
  %v5391 = vunpack.c.l.b16 %v5258
  %v5392 = vunpack.c.l.b16 %v5272
  %v5393 = vunpack.c.l.b16 %v5286
  %v5394 = vunpack.c.l.b16 %v5300
  %v5395 = vunpack.c.l.b16 %v5314
  %v5396 = vunpack.c.l.b16 %v5328
  %v5397 = vunpack.c.l.b16 %v5342
  %v5398 = vunpack.c.l.b16 %v5356
  %v5399 = vunpack.c.l.b16 %v5370
  %v5400 = vunpack.c.l.b16 %v5384
  %v5401 = vrot.slane %v5385, 1
  %v5402 = vsel %vm1678, %v5386, %v5401
  %v5403 = vrot.slane %v5387, 7
  %v5404 = vsel %vm1681, %v5403, %v5402
  %v5405 = vrot.slane %v5388, 6
  %v5406 = vsel %vm1684, %v5405, %v5404
  %v5407 = vrot.slane %v5389, 5
  %v5408 = vsel %vm1687, %v5407, %v5406
  %v5409 = vrot.slane %v5390, 4
  %v5410 = vsel %vm1690, %v5409, %v5408
  %v5411 = vrot.slane %v5391, 3
  %v5412 = vsel %vm1693, %v5411, %v5410
  %v5413 = vrot.slane %v5392, 2
  %v5414 = vsel %vm1696, %v5413, %v5412
  %v5415 = vrot.slane %v5393, 1
  %v5416 = vsel %vm1678, %v5394, %v5415
  %v5417 = vrot.slane %v5395, 7
  %v5418 = vsel %vm1681, %v5417, %v5416
  %v5419 = vrot.slane %v5396, 6
  %v5420 = vsel %vm1684, %v5419, %v5418
  %v5421 = vrot.slane %v5397, 5
  %v5422 = vsel %vm1687, %v5421, %v5420
  %v5423 = vrot.slane %v5398, 4
  %v5424 = vsel %vm1690, %v5423, %v5422
  %v5425 = vrot.slane %v5399, 3
  %v5426 = vsel %vm1693, %v5425, %v5424
  %v5427 = vrot.slane %v5400, 2
  %v5428 = vsel %vm1696, %v5427, %v5426
  %v5429 = vpack.c.b16 %v5428, %v5414
  %v5438 = vunpack.c.l.b16 %v5153
  %v5439 = vunpack.c.l.b16 %v5154
  %v5440 = vunpack.c.l.b16 %v5155
  %v5441 = vunpack.c.l.b16 %v5156
  %v5442 = vunpack.c.l.b16 %v5157
  %v5443 = vunpack.c.l.b16 %v5158
  %v5444 = vunpack.c.l.b16 %v5159
  %v5445 = vunpack.c.l.b16 %v5160
  %v5446 = vpack.c.b16 %v5439, %v5438
  %v5447 = vpack.c.b16 %v5441, %v5440
  %v5448 = vpack.c.b16 %v5443, %v5442
  %v5449 = vpack.c.b16 %v5445, %v5444
  %vm5454 = vcmask 523264
  %v5456 = vsel %vm5454, %v5429, 0
  %5458 = vmatprep.subr.bf16.mxu0 0
  %5459 = vmatpush1.bf16.msra.mxu0 %v5446
  %5460 = vmatprep.subr.bf16.mxu0 0
  %5461 = vmatpush1.bf16.msra.mxu0 %v5447
  %5462 = vmatprep.subr.bf16.mxu0 0
  %5463 = vmatpush1.bf16.msra.mxu0 %v5448
  %5464 = vmatprep.subr.bf16.mxu0 0
  %5465 = vmatpush1.bf16.msra.mxu0 %v5449
  %5466 = vmatprep.subr.bf16.mxu0 0
  %5467 = vmatpush1.bf16.msra.mxu0 0
  %5468 = vmatprep.subr.bf16.mxu0 0
  %5469 = vmatpush1.bf16.msra.mxu0 0
  %5470 = vmatprep.subr.bf16.mxu0 0
  %5471 = vmatpush1.bf16.msra.mxu0 0
  %5472 = vmatprep.subr.bf16.mxu0 0
  %5473 = vmatpush1.bf16.msra.mxu0 0
  %5474 = vmatprep.subr.bf16.mxu0 0
  %5475 = vmatpush1.bf16.msra.mxu0 0
  %5476 = vmatprep.subr.bf16.mxu0 0
  %5477 = vmatpush1.bf16.msra.mxu0 0
  %5478 = vmatprep.subr.bf16.mxu0 0
  %5479 = vmatpush1.bf16.msra.mxu0 0
  %5480 = vmatprep.subr.bf16.mxu0 0
  %5481 = vmatpush1.bf16.msra.mxu0 0
  %5482 = vmatprep.subr.bf16.mxu0 0
  %5483 = vmatpush1.bf16.msra.mxu0 0
  %5484 = vmatprep.subr.bf16.mxu0 0
  %5485 = vmatpush1.bf16.msra.mxu0 0
  %5486 = vmatprep.subr.bf16.mxu0 0
  %5487 = vmatpush1.bf16.msra.mxu0 0
  %5488 = vmatprep.subr.bf16.mxu0 0
  %5489 = vmatpush1.bf16.msra.mxu0 0
  %5490 = vmatprep.mubr.bf16.mxu0 0
  %5491 = vmatmul.mubr.bf16.gmra.mrb[0].mxu0 %v5456
  %v5492 = vpop.f32.mrb[0].mxu0
  %v5493 = vadd.f32 0.0, %v5492
  %v5494 = vpop.f32.mrb[0].mxu0
  %v5495 = vpop.f32.mrb[0].mxu0
  %v5496 = vadd.f32 0.0, %v5495
  %v5497 = vpop.f32.mrb[0].mxu0
  %5498 = vdwg.mxu0
  %v5499 = vrot.slane %v5386, 7
  %v5500 = vsel %vm1678, %v5499, %v5385
  %v5501 = vrot.slane %v5387, 6
  %v5502 = vsel %vm1681, %v5501, %v5500
  %v5503 = vrot.slane %v5388, 5
  %v5504 = vsel %vm1684, %v5503, %v5502
  %v5505 = vrot.slane %v5389, 4
  %v5506 = vsel %vm1687, %v5505, %v5504
  %v5507 = vrot.slane %v5390, 3
  %v5508 = vsel %vm1690, %v5507, %v5506
  %v5509 = vrot.slane %v5391, 2
  %v5510 = vsel %vm1693, %v5509, %v5508
  %v5511 = vrot.slane %v5392, 1
  %v5512 = vsel %vm1696, %v5511, %v5510
  %v5513 = vrot.slane %v5394, 7
  %v5514 = vsel %vm1678, %v5513, %v5393
  %v5515 = vrot.slane %v5395, 6
  %v5516 = vsel %vm1681, %v5515, %v5514
  %v5517 = vrot.slane %v5396, 5
  %v5518 = vsel %vm1684, %v5517, %v5516
  %v5519 = vrot.slane %v5397, 4
  %v5520 = vsel %vm1687, %v5519, %v5518
  %v5521 = vrot.slane %v5398, 3
  %v5522 = vsel %vm1690, %v5521, %v5520
  %v5523 = vrot.slane %v5399, 2
  %v5524 = vsel %vm1693, %v5523, %v5522
  %v5525 = vrot.slane %v5400, 1
  %v5526 = vsel %vm1696, %v5525, %v5524
  %v5527 = vpack.c.b16 %v5526, %v5512
  %v5536 = vunpack.c.l.b16 %v5145
  %v5537 = vunpack.c.l.b16 %v5146
  %v5538 = vunpack.c.l.b16 %v5147
  %v5539 = vunpack.c.l.b16 %v5148
  %v5540 = vunpack.c.l.b16 %v5149
  %v5541 = vunpack.c.l.b16 %v5150
  %v5542 = vunpack.c.l.b16 %v5151
  %v5543 = vunpack.c.l.b16 %v5152
  %v5544 = vpack.c.b16 %v5537, %v5536
  %v5545 = vpack.c.b16 %v5539, %v5538
  %v5546 = vpack.c.b16 %v5541, %v5540
  %v5547 = vpack.c.b16 %v5543, %v5542
  %v5553 = vsel %vm5454, %v5527, 0
  %5555 = vmatprep.subr.bf16.mxu0 0
  %5556 = vmatpush1.bf16.msra.mxu0 %v5544
  %5557 = vmatprep.subr.bf16.mxu0 0
  %5558 = vmatpush1.bf16.msra.mxu0 %v5545
  %5559 = vmatprep.subr.bf16.mxu0 0
  %5560 = vmatpush1.bf16.msra.mxu0 %v5546
  %5561 = vmatprep.subr.bf16.mxu0 0
  %5562 = vmatpush1.bf16.msra.mxu0 %v5547
  %5563 = vmatprep.subr.bf16.mxu0 0
  %5564 = vmatpush1.bf16.msra.mxu0 0
  %5565 = vmatprep.subr.bf16.mxu0 0
  %5566 = vmatpush1.bf16.msra.mxu0 0
  %5567 = vmatprep.subr.bf16.mxu0 0
  %5568 = vmatpush1.bf16.msra.mxu0 0
  %5569 = vmatprep.subr.bf16.mxu0 0
  %5570 = vmatpush1.bf16.msra.mxu0 0
  %5571 = vmatprep.subr.bf16.mxu0 0
  %5572 = vmatpush1.bf16.msra.mxu0 0
  %5573 = vmatprep.subr.bf16.mxu0 0
  %5574 = vmatpush1.bf16.msra.mxu0 0
  %5575 = vmatprep.subr.bf16.mxu0 0
  %5576 = vmatpush1.bf16.msra.mxu0 0
  %5577 = vmatprep.subr.bf16.mxu0 0
  %5578 = vmatpush1.bf16.msra.mxu0 0
  %5579 = vmatprep.subr.bf16.mxu0 0
  %5580 = vmatpush1.bf16.msra.mxu0 0
  %5581 = vmatprep.subr.bf16.mxu0 0
  %5582 = vmatpush1.bf16.msra.mxu0 0
  %5583 = vmatprep.subr.bf16.mxu0 0
  %5584 = vmatpush1.bf16.msra.mxu0 0
  %5585 = vmatprep.subr.bf16.mxu0 0
  %5586 = vmatpush1.bf16.msra.mxu0 0
  %5587 = vmatprep.mubr.bf16.mxu0 0
  %5588 = vmatmul.mubr.bf16.gmra.mrb[0].mxu0 %v5553
  %v5589 = vpop.f32.mrb[0].mxu0
  %v5590 = vadd.f32 %v5493, %v5589
  %v5591 = vpop.f32.mrb[0].mxu0
  %v5592 = vpop.f32.mrb[0].mxu0
  %v5593 = vadd.f32 %v5496, %v5592
  %v5594 = vpop.f32.mrb[0].mxu0
  %5595 = vdwg.mxu0
  %v5596 = vld [vmem:[%s5 + $0x40] sm:$0xf]
  %v5597 = vld [vmem:[%s5 + $0x44] sm:$0xf]
  %v5598 = vld [vmem:[%s5 + $0x48] sm:$0xf]
  %v5599 = vld [vmem:[%s5 + $0x4c] sm:$0xf]
  %v5600 = vld [vmem:[%s5 + $0x50] sm:$0xf]
  %v5601 = vld [vmem:[%s5 + $0x54] sm:$0xf]
  %v5602 = vld [vmem:[%s5 + $0x58] sm:$0xf]
  %v5603 = vld [vmem:[%s5 + $0x5c] sm:$0xf]
  %v5605 = vunpack.c.l.s4 1966171168
  %v5606 = vunpack.c.0.s8 %v5605
  %v5607 = vlaneseq
  %v5608 = vshrl.u32 %v5607, 7
  %v5609 = vsub.s32 %v5606, %v5608
  %v5610 = vrot.slane %v4975, %v5609
  %v5612 = vunpack.c.l.s4 1966171168
  %v5613 = vunpack.c.0.s8 %v5612
  %v5614 = vlaneseq
  %v5615 = vshrl.u32 %v5614, 7
  %v5616 = vsub.s32 %v5613, %v5615
  %v5617 = vrot.slane %v5610, %v5616
  %v5619 = vunpack.c.l.s4 1966171168
  %v5620 = vunpack.c.0.s8 %v5619
  %v5621 = vlaneseq
  %v5622 = vshrl.u32 %v5621, 7
  %v5623 = vsub.s32 %v5620, %v5622
  %v5624 = vrot.slane %v4999, %v5623
  %v5626 = vunpack.c.l.s4 1966171168
  %v5627 = vunpack.c.0.s8 %v5626
  %v5628 = vlaneseq
  %v5629 = vshrl.u32 %v5628, 7
  %v5630 = vsub.s32 %v5627, %v5629
  %v5631 = vrot.slane %v5624, %v5630
  %v5633 = vunpack.c.l.s4 1966171168
  %v5634 = vunpack.c.0.s8 %v5633
  %v5635 = vlaneseq
  %v5636 = vshrl.u32 %v5635, 7
  %v5637 = vsub.s32 %v5634, %v5636
  %v5638 = vrot.slane %v5023, %v5637
  %v5640 = vunpack.c.l.s4 1966171168
  %v5641 = vunpack.c.0.s8 %v5640
  %v5642 = vlaneseq
  %v5643 = vshrl.u32 %v5642, 7
  %v5644 = vsub.s32 %v5641, %v5643
  %v5645 = vrot.slane %v5638, %v5644
  %v5647 = vunpack.c.l.s4 1966171168
  %v5648 = vunpack.c.0.s8 %v5647
  %v5649 = vlaneseq
  %v5650 = vshrl.u32 %v5649, 7
  %v5651 = vsub.s32 %v5648, %v5650
  %v5652 = vrot.slane %v5047, %v5651
  %v5654 = vunpack.c.l.s4 1966171168
  %v5655 = vunpack.c.0.s8 %v5654
  %v5656 = vlaneseq
  %v5657 = vshrl.u32 %v5656, 7
  %v5658 = vsub.s32 %v5655, %v5657
  %v5659 = vrot.slane %v5652, %v5658
  %v5661 = vunpack.c.l.s4 1966171168
  %v5662 = vunpack.c.0.s8 %v5661
  %v5663 = vlaneseq
  %v5664 = vshrl.u32 %v5663, 7
  %v5665 = vsub.s32 %v5662, %v5664
  %v5666 = vrot.slane %v5071, %v5665
  %v5668 = vunpack.c.l.s4 1966171168
  %v5669 = vunpack.c.0.s8 %v5668
  %v5670 = vlaneseq
  %v5671 = vshrl.u32 %v5670, 7
  %v5672 = vsub.s32 %v5669, %v5671
  %v5673 = vrot.slane %v5666, %v5672
  %v5675 = vunpack.c.l.s4 1966171168
  %v5676 = vunpack.c.0.s8 %v5675
  %v5677 = vlaneseq
  %v5678 = vshrl.u32 %v5677, 7
  %v5679 = vsub.s32 %v5676, %v5678
  %v5680 = vrot.slane %v5095, %v5679
  %v5682 = vunpack.c.l.s4 1966171168
  %v5683 = vunpack.c.0.s8 %v5682
  %v5684 = vlaneseq
  %v5685 = vshrl.u32 %v5684, 7
  %v5686 = vsub.s32 %v5683, %v5685
  %v5687 = vrot.slane %v5680, %v5686
  %v5689 = vunpack.c.l.s4 1966171168
  %v5690 = vunpack.c.0.s8 %v5689
  %v5691 = vlaneseq
  %v5692 = vshrl.u32 %v5691, 7
  %v5693 = vsub.s32 %v5690, %v5692
  %v5694 = vrot.slane %v5119, %v5693
  %v5696 = vunpack.c.l.s4 1966171168
  %v5697 = vunpack.c.0.s8 %v5696
  %v5698 = vlaneseq
  %v5699 = vshrl.u32 %v5698, 7
  %v5700 = vsub.s32 %v5697, %v5699
  %v5701 = vrot.slane %v5694, %v5700
  %v5703 = vunpack.c.l.s4 1966171168
  %v5704 = vunpack.c.0.s8 %v5703
  %v5705 = vlaneseq
  %v5706 = vshrl.u32 %v5705, 7
  %v5707 = vsub.s32 %v5704, %v5706
  %v5708 = vrot.slane %v5143, %v5707
  %v5710 = vunpack.c.l.s4 1966171168
  %v5711 = vunpack.c.0.s8 %v5710
  %v5712 = vlaneseq
  %v5713 = vshrl.u32 %v5712, 7
  %v5714 = vsub.s32 %v5711, %v5713
  %v5715 = vrot.slane %v5708, %v5714
  %v5716 = vunpack.c.l.b16 %v5617
  %v5717 = vunpack.c.l.b16 %v5631
  %v5718 = vunpack.c.l.b16 %v5645
  %v5719 = vunpack.c.l.b16 %v5659
  %v5720 = vunpack.c.l.b16 %v5673
  %v5721 = vunpack.c.l.b16 %v5687
  %v5722 = vunpack.c.l.b16 %v5701
  %v5723 = vunpack.c.l.b16 %v5715
  %v5724 = vrot.slane %v5716, 7
  %v5725 = vsel %vm1678, %v5724, %v5386
  %v5726 = vsel %vm1681, %v5405, %v5725
  %v5727 = vrot.slane %v5717, 5
  %v5728 = vsel %vm1684, %v5727, %v5726
  %v5729 = vsel %vm1687, %v5409, %v5728
  %v5730 = vrot.slane %v5718, 3
  %v5731 = vsel %vm1690, %v5730, %v5729
  %v5732 = vsel %vm1693, %v5413, %v5731
  %v5733 = vrot.slane %v5719, 1
  %v5734 = vsel %vm1696, %v5733, %v5732
  %v5735 = vrot.slane %v5720, 7
  %v5736 = vsel %vm1678, %v5735, %v5394
  %v5737 = vsel %vm1681, %v5419, %v5736
  %v5738 = vrot.slane %v5721, 5
  %v5739 = vsel %vm1684, %v5738, %v5737
  %v5740 = vsel %vm1687, %v5423, %v5739
  %v5741 = vrot.slane %v5722, 3
  %v5742 = vsel %vm1690, %v5741, %v5740
  %v5743 = vsel %vm1693, %v5427, %v5742
  %v5744 = vrot.slane %v5723, 1
  %v5745 = vsel %vm1696, %v5744, %v5743
  %v5746 = vpack.c.b16 %v5745, %v5734
  %v5755 = vunpack.c.l.b16 %v5596
  %v5756 = vunpack.c.l.b16 %v5597
  %v5757 = vunpack.c.l.b16 %v5598
  %v5758 = vunpack.c.l.b16 %v5599
  %v5759 = vunpack.c.l.b16 %v5600
  %v5760 = vunpack.c.l.b16 %v5601
  %v5761 = vunpack.c.l.b16 %v5602
  %v5762 = vunpack.c.l.b16 %v5603
  %v5763 = vpack.c.b16 %v5756, %v5755
  %v5764 = vpack.c.b16 %v5758, %v5757
  %v5765 = vpack.c.b16 %v5760, %v5759
  %v5766 = vpack.c.b16 %v5762, %v5761
  %v5772 = vsel %vm5454, %v5746, 0
  %5774 = vmatprep.subr.bf16.mxu0 0
  %5775 = vmatpush1.bf16.msra.mxu0 %v5763
  %5776 = vmatprep.subr.bf16.mxu0 0
  %5777 = vmatpush1.bf16.msra.mxu0 %v5764
  %5778 = vmatprep.subr.bf16.mxu0 0
  %5779 = vmatpush1.bf16.msra.mxu0 %v5765
  %5780 = vmatprep.subr.bf16.mxu0 0
  %5781 = vmatpush1.bf16.msra.mxu0 %v5766
  %5782 = vmatprep.subr.bf16.mxu0 0
  %5783 = vmatpush1.bf16.msra.mxu0 0
  %5784 = vmatprep.subr.bf16.mxu0 0
  %5785 = vmatpush1.bf16.msra.mxu0 0
  %5786 = vmatprep.subr.bf16.mxu0 0
  %5787 = vmatpush1.bf16.msra.mxu0 0
  %5788 = vmatprep.subr.bf16.mxu0 0
  %5789 = vmatpush1.bf16.msra.mxu0 0
  %5790 = vmatprep.subr.bf16.mxu0 0
  %5791 = vmatpush1.bf16.msra.mxu0 0
  %5792 = vmatprep.subr.bf16.mxu0 0
  %5793 = vmatpush1.bf16.msra.mxu0 0
  %5794 = vmatprep.subr.bf16.mxu0 0
  %5795 = vmatpush1.bf16.msra.mxu0 0
  %5796 = vmatprep.subr.bf16.mxu0 0
  %5797 = vmatpush1.bf16.msra.mxu0 0
  %5798 = vmatprep.subr.bf16.mxu0 0
  %5799 = vmatpush1.bf16.msra.mxu0 0
  %5800 = vmatprep.subr.bf16.mxu0 0
  %5801 = vmatpush1.bf16.msra.mxu0 0
  %5802 = vmatprep.subr.bf16.mxu0 0
  %5803 = vmatpush1.bf16.msra.mxu0 0
  %5804 = vmatprep.subr.bf16.mxu0 0
  %5805 = vmatpush1.bf16.msra.mxu0 0
  %5806 = vmatprep.mubr.bf16.mxu0 0
  %5807 = vmatmul.mubr.bf16.gmra.mrb[0].mxu0 %v5772
  %v5808 = vpop.f32.mrb[0].mxu0
  %v5809 = vadd.f32 0.0, %v5808
  %v5810 = vpop.f32.mrb[0].mxu0
  %v5811 = vpop.f32.mrb[0].mxu0
  %v5812 = vadd.f32 0.0, %v5811
  %v5813 = vpop.f32.mrb[0].mxu0
  %5814 = vdwg.mxu0
  %v5815 = vadd.f32 %v5590, %v5809
  %v5816 = vadd.f32 %v5593, %v5812
  %v5817 = vld [vmem:[%s5 + $0x60] sm:$0xf]
  %v5818 = vld [vmem:[%s5 + $0x64] sm:$0xf]
  %v5819 = vld [vmem:[%s5 + $0x68] sm:$0xf]
  %v5820 = vld [vmem:[%s5 + $0x6c] sm:$0xf]
  %v5821 = vld [vmem:[%s5 + $0x70] sm:$0xf]
  %v5822 = vld [vmem:[%s5 + $0x74] sm:$0xf]
  %v5823 = vld [vmem:[%s5 + $0x78] sm:$0xf]
  %v5824 = vld [vmem:[%s5 + $0x7c] sm:$0xf]
  %v5825 = vrot.slane %v5386, 1
  %v5826 = vsel %vm1678, %v5716, %v5825
  %v5827 = vrot.slane %v5388, 7
  %v5828 = vsel %vm1681, %v5827, %v5826
  %v5829 = vrot.slane %v5717, 6
  %v5830 = vsel %vm1684, %v5829, %v5828
  %v5831 = vrot.slane %v5390, 5
  %v5832 = vsel %vm1687, %v5831, %v5830
  %v5833 = vrot.slane %v5718, 4
  %v5834 = vsel %vm1690, %v5833, %v5832
  %v5835 = vrot.slane %v5392, 3
  %v5836 = vsel %vm1693, %v5835, %v5834
  %v5837 = vrot.slane %v5719, 2
  %v5838 = vsel %vm1696, %v5837, %v5836
  %v5839 = vrot.slane %v5394, 1
  %v5840 = vsel %vm1678, %v5720, %v5839
  %v5841 = vrot.slane %v5396, 7
  %v5842 = vsel %vm1681, %v5841, %v5840
  %v5843 = vrot.slane %v5721, 6
  %v5844 = vsel %vm1684, %v5843, %v5842
  %v5845 = vrot.slane %v5398, 5
  %v5846 = vsel %vm1687, %v5845, %v5844
  %v5847 = vrot.slane %v5722, 4
  %v5848 = vsel %vm1690, %v5847, %v5846
  %v5849 = vrot.slane %v5400, 3
  %v5850 = vsel %vm1693, %v5849, %v5848
  %v5851 = vrot.slane %v5723, 2
  %v5852 = vsel %vm1696, %v5851, %v5850
  %v5853 = vpack.c.b16 %v5852, %v5838
  %v5862 = vunpack.c.l.b16 %v5817
  %v5863 = vunpack.c.l.b16 %v5818
  %v5864 = vunpack.c.l.b16 %v5819
  %v5865 = vunpack.c.l.b16 %v5820
  %v5866 = vunpack.c.l.b16 %v5821
  %v5867 = vunpack.c.l.b16 %v5822
  %v5868 = vunpack.c.l.b16 %v5823
  %v5869 = vunpack.c.l.b16 %v5824
  %v5870 = vpack.c.b16 %v5863, %v5862
  %v5871 = vpack.c.b16 %v5865, %v5864
  %v5872 = vpack.c.b16 %v5867, %v5866
  %v5873 = vpack.c.b16 %v5869, %v5868
  %v5879 = vsel %vm5454, %v5853, 0
  %5881 = vmatprep.subr.bf16.mxu0 0
  %5882 = vmatpush1.bf16.msra.mxu0 %v5870
  %5883 = vmatprep.subr.bf16.mxu0 0
  %5884 = vmatpush1.bf16.msra.mxu0 %v5871
  %5885 = vmatprep.subr.bf16.mxu0 0
  %5886 = vmatpush1.bf16.msra.mxu0 %v5872
  %5887 = vmatprep.subr.bf16.mxu0 0
  %5888 = vmatpush1.bf16.msra.mxu0 %v5873
  %5889 = vmatprep.subr.bf16.mxu0 0
  %5890 = vmatpush1.bf16.msra.mxu0 0
  %5891 = vmatprep.subr.bf16.mxu0 0
  %5892 = vmatpush1.bf16.msra.mxu0 0
  %5893 = vmatprep.subr.bf16.mxu0 0
  %5894 = vmatpush1.bf16.msra.mxu0 0
  %5895 = vmatprep.subr.bf16.mxu0 0
  %5896 = vmatpush1.bf16.msra.mxu0 0
  %5897 = vmatprep.subr.bf16.mxu0 0
  %5898 = vmatpush1.bf16.msra.mxu0 0
  %5899 = vmatprep.subr.bf16.mxu0 0
  %5900 = vmatpush1.bf16.msra.mxu0 0
  %5901 = vmatprep.subr.bf16.mxu0 0
  %5902 = vmatpush1.bf16.msra.mxu0 0
  %5903 = vmatprep.subr.bf16.mxu0 0
  %5904 = vmatpush1.bf16.msra.mxu0 0
  %5905 = vmatprep.subr.bf16.mxu0 0
  %5906 = vmatpush1.bf16.msra.mxu0 0
  %5907 = vmatprep.subr.bf16.mxu0 0
  %5908 = vmatpush1.bf16.msra.mxu0 0
  %5909 = vmatprep.subr.bf16.mxu0 0
  %5910 = vmatpush1.bf16.msra.mxu0 0
  %5911 = vmatprep.subr.bf16.mxu0 0
  %5912 = vmatpush1.bf16.msra.mxu0 0
  %5913 = vmatprep.mubr.bf16.mxu0 0
  %5914 = vmatmul.mubr.bf16.gmra.mrb[0].mxu0 %v5879
  %v5915 = vpop.f32.mrb[0].mxu0
  %v5916 = vadd.f32 0.0, %v5915
  %v5917 = vpop.f32.mrb[0].mxu0
  %v5918 = vpop.f32.mrb[0].mxu0
  %v5919 = vadd.f32 0.0, %v5918
  %v5920 = vpop.f32.mrb[0].mxu0
  %5921 = vdwg.mxu0
  %v5922 = vadd.f32 %v5815, %v5916
  %v5923 = vadd.f32 %v5816, %v5919
  %v5924 = vld [vmem:[%s5 + $0x80] sm:$0xf]
  %v5925 = vld [vmem:[%s5 + $0x84] sm:$0xf]
  %v5926 = vld [vmem:[%s5 + $0x88] sm:$0xf]
  %v5927 = vld [vmem:[%s5 + $0x8c] sm:$0xf]
  %v5928 = vld [vmem:[%s5 + $0x90] sm:$0xf]
  %v5929 = vld [vmem:[%s5 + $0x94] sm:$0xf]
  %v5930 = vld [vmem:[%s5 + $0x98] sm:$0xf]
  %v5931 = vld [vmem:[%s5 + $0x9c] sm:$0xf]
  %v5933 = vunpack.c.l.s4 1966171168
  %v5934 = vunpack.c.0.s8 %v5933
  %v5935 = vlaneseq
  %v5936 = vshrl.u32 %v5935, 7
  %v5937 = vsub.s32 %v5934, %v5936
  %v5938 = vrot.slane %v4976, %v5937
  %v5940 = vunpack.c.l.s4 1966171168
  %v5941 = vunpack.c.0.s8 %v5940
  %v5942 = vlaneseq
  %v5943 = vshrl.u32 %v5942, 7
  %v5944 = vsub.s32 %v5941, %v5943
  %v5945 = vrot.slane %v5938, %v5944
  %v5947 = vunpack.c.l.s4 1966171168
  %v5948 = vunpack.c.0.s8 %v5947
  %v5949 = vlaneseq
  %v5950 = vshrl.u32 %v5949, 7
  %v5951 = vsub.s32 %v5948, %v5950
  %v5952 = vrot.slane %v5000, %v5951
  %v5954 = vunpack.c.l.s4 1966171168
  %v5955 = vunpack.c.0.s8 %v5954
  %v5956 = vlaneseq
  %v5957 = vshrl.u32 %v5956, 7
  %v5958 = vsub.s32 %v5955, %v5957
  %v5959 = vrot.slane %v5952, %v5958
  %v5961 = vunpack.c.l.s4 1966171168
  %v5962 = vunpack.c.0.s8 %v5961
  %v5963 = vlaneseq
  %v5964 = vshrl.u32 %v5963, 7
  %v5965 = vsub.s32 %v5962, %v5964
  %v5966 = vrot.slane %v5024, %v5965
  %v5968 = vunpack.c.l.s4 1966171168
  %v5969 = vunpack.c.0.s8 %v5968
  %v5970 = vlaneseq
  %v5971 = vshrl.u32 %v5970, 7
  %v5972 = vsub.s32 %v5969, %v5971
  %v5973 = vrot.slane %v5966, %v5972
  %v5975 = vunpack.c.l.s4 1966171168
  %v5976 = vunpack.c.0.s8 %v5975
  %v5977 = vlaneseq
  %v5978 = vshrl.u32 %v5977, 7
  %v5979 = vsub.s32 %v5976, %v5978
  %v5980 = vrot.slane %v5048, %v5979
  %v5982 = vunpack.c.l.s4 1966171168
  %v5983 = vunpack.c.0.s8 %v5982
  %v5984 = vlaneseq
  %v5985 = vshrl.u32 %v5984, 7
  %v5986 = vsub.s32 %v5983, %v5985
  %v5987 = vrot.slane %v5980, %v5986
  %v5989 = vunpack.c.l.s4 1966171168
  %v5990 = vunpack.c.0.s8 %v5989
  %v5991 = vlaneseq
  %v5992 = vshrl.u32 %v5991, 7
  %v5993 = vsub.s32 %v5990, %v5992
  %v5994 = vrot.slane %v5072, %v5993
  %v5996 = vunpack.c.l.s4 1966171168
  %v5997 = vunpack.c.0.s8 %v5996
  %v5998 = vlaneseq
  %v5999 = vshrl.u32 %v5998, 7
  %v6000 = vsub.s32 %v5997, %v5999
  %v6001 = vrot.slane %v5994, %v6000
  %v6003 = vunpack.c.l.s4 1966171168
  %v6004 = vunpack.c.0.s8 %v6003
  %v6005 = vlaneseq
  %v6006 = vshrl.u32 %v6005, 7
  %v6007 = vsub.s32 %v6004, %v6006
  %v6008 = vrot.slane %v5096, %v6007
  %v6010 = vunpack.c.l.s4 1966171168
  %v6011 = vunpack.c.0.s8 %v6010
  %v6012 = vlaneseq
  %v6013 = vshrl.u32 %v6012, 7
  %v6014 = vsub.s32 %v6011, %v6013
  %v6015 = vrot.slane %v6008, %v6014
  %v6017 = vunpack.c.l.s4 1966171168
  %v6018 = vunpack.c.0.s8 %v6017
  %v6019 = vlaneseq
  %v6020 = vshrl.u32 %v6019, 7
  %v6021 = vsub.s32 %v6018, %v6020
  %v6022 = vrot.slane %v5120, %v6021
  %v6024 = vunpack.c.l.s4 1966171168
  %v6025 = vunpack.c.0.s8 %v6024
  %v6026 = vlaneseq
  %v6027 = vshrl.u32 %v6026, 7
  %v6028 = vsub.s32 %v6025, %v6027
  %v6029 = vrot.slane %v6022, %v6028
  %v6031 = vunpack.c.l.s4 1966171168
  %v6032 = vunpack.c.0.s8 %v6031
  %v6033 = vlaneseq
  %v6034 = vshrl.u32 %v6033, 7
  %v6035 = vsub.s32 %v6032, %v6034
  %v6036 = vrot.slane %v5144, %v6035
  %v6038 = vunpack.c.l.s4 1966171168
  %v6039 = vunpack.c.0.s8 %v6038
  %v6040 = vlaneseq
  %v6041 = vshrl.u32 %v6040, 7
  %v6042 = vsub.s32 %v6039, %v6041
  %v6043 = vrot.slane %v6036, %v6042
  %v6044 = vunpack.c.l.b16 %v5945
  %v6045 = vunpack.c.l.b16 %v5959
  %v6046 = vunpack.c.l.b16 %v5973
  %v6047 = vunpack.c.l.b16 %v5987
  %v6048 = vunpack.c.l.b16 %v6001
  %v6049 = vunpack.c.l.b16 %v6015
  %v6050 = vunpack.c.l.b16 %v6029
  %v6051 = vunpack.c.l.b16 %v6043
  %v6052 = vrot.slane %v6044, 7
  %v6053 = vsel %vm1678, %v6052, %v5716
  %v6054 = vsel %vm1681, %v5829, %v6053
  %v6055 = vrot.slane %v6045, 5
  %v6056 = vsel %vm1684, %v6055, %v6054
  %v6057 = vsel %vm1687, %v5833, %v6056
  %v6058 = vrot.slane %v6046, 3
  %v6059 = vsel %vm1690, %v6058, %v6057
  %v6060 = vsel %vm1693, %v5837, %v6059
  %v6061 = vrot.slane %v6047, 1
  %v6062 = vsel %vm1696, %v6061, %v6060
  %v6063 = vrot.slane %v6048, 7
  %v6064 = vsel %vm1678, %v6063, %v5720
  %v6065 = vsel %vm1681, %v5843, %v6064
  %v6066 = vrot.slane %v6049, 5
  %v6067 = vsel %vm1684, %v6066, %v6065
  %v6068 = vsel %vm1687, %v5847, %v6067
  %v6069 = vrot.slane %v6050, 3
  %v6070 = vsel %vm1690, %v6069, %v6068
  %v6071 = vsel %vm1693, %v5851, %v6070
  %v6072 = vrot.slane %v6051, 1
  %v6073 = vsel %vm1696, %v6072, %v6071
  %v6074 = vpack.c.b16 %v6073, %v6062
  %v6083 = vunpack.c.l.b16 %v5924
  %v6084 = vunpack.c.l.b16 %v5925
  %v6085 = vunpack.c.l.b16 %v5926
  %v6086 = vunpack.c.l.b16 %v5927
  %v6087 = vunpack.c.l.b16 %v5928
  %v6088 = vunpack.c.l.b16 %v5929
  %v6089 = vunpack.c.l.b16 %v5930
  %v6090 = vunpack.c.l.b16 %v5931
  %v6091 = vpack.c.b16 %v6084, %v6083
  %v6092 = vpack.c.b16 %v6086, %v6085
  %v6093 = vpack.c.b16 %v6088, %v6087
  %v6094 = vpack.c.b16 %v6090, %v6089
  %v6100 = vsel %vm5454, %v6074, 0
  %6102 = vmatprep.subr.bf16.mxu0 0
  %6103 = vmatpush1.bf16.msra.mxu0 %v6091
  %6104 = vmatprep.subr.bf16.mxu0 0
  %6105 = vmatpush1.bf16.msra.mxu0 %v6092
  %6106 = vmatprep.subr.bf16.mxu0 0
  %6107 = vmatpush1.bf16.msra.mxu0 %v6093
  %6108 = vmatprep.subr.bf16.mxu0 0
  %6109 = vmatpush1.bf16.msra.mxu0 %v6094
  %6110 = vmatprep.subr.bf16.mxu0 0
  %6111 = vmatpush1.bf16.msra.mxu0 0
  %6112 = vmatprep.subr.bf16.mxu0 0
  %6113 = vmatpush1.bf16.msra.mxu0 0
  %6114 = vmatprep.subr.bf16.mxu0 0
  %6115 = vmatpush1.bf16.msra.mxu0 0
  %6116 = vmatprep.subr.bf16.mxu0 0
  %6117 = vmatpush1.bf16.msra.mxu0 0
  %6118 = vmatprep.subr.bf16.mxu0 0
  %6119 = vmatpush1.bf16.msra.mxu0 0
  %6120 = vmatprep.subr.bf16.mxu0 0
  %6121 = vmatpush1.bf16.msra.mxu0 0
  %6122 = vmatprep.subr.bf16.mxu0 0
  %6123 = vmatpush1.bf16.msra.mxu0 0
  %6124 = vmatprep.subr.bf16.mxu0 0
  %6125 = vmatpush1.bf16.msra.mxu0 0
  %6126 = vmatprep.subr.bf16.mxu0 0
  %6127 = vmatpush1.bf16.msra.mxu0 0
  %6128 = vmatprep.subr.bf16.mxu0 0
  %6129 = vmatpush1.bf16.msra.mxu0 0
  %6130 = vmatprep.subr.bf16.mxu0 0
  %6131 = vmatpush1.bf16.msra.mxu0 0
  %6132 = vmatprep.subr.bf16.mxu0 0
  %6133 = vmatpush1.bf16.msra.mxu0 0
  %6134 = vmatprep.mubr.bf16.mxu0 0
  %6135 = vmatmul.mubr.bf16.gmra.mrb[0].mxu0 %v6100
  %v6136 = vpop.f32.mrb[0].mxu0
  %v6137 = vadd.f32 0.0, %v6136
  %v6138 = vpop.f32.mrb[0].mxu0
  %v6139 = vpop.f32.mrb[0].mxu0
  %v6140 = vadd.f32 0.0, %v6139
  %v6141 = vpop.f32.mrb[0].mxu0
  %6142 = vdwg.mxu0
  %v6143 = vadd.f32 %v5922, %v6137
  %v6144 = vadd.f32 %v5923, %v6140
  %v6145 = vld [vmem:[%s6] sm:$0x1]
  %v6147 = vlaneseq
  %v6148 = vshrl.u32 %v6147, 7
  %v6149 = vsub.s32 0, %v6148
  %v6150 = vrot.slane %v6145, %v6149
  %v6152 = vadd.f32 %v6143, %v6150
  %v6153 = vadd.f32 %v6144, %v6150
  %v6156 = vcombine.high %v6152, %v6152
  %v6158 = vunpack.c.l.s4 1983009808
  %v6159 = vunpack.c.0.s8 %v6158
  %v6160 = vlaneseq
  %v6161 = vshrl.u32 %v6160, 7
  %v6162 = vsub.s32 %v6159, %v6161
  %v6163 = vrot.slane %v6152, %v6162
  %v6165 = vunpack.c.l.s4 1983009808
  %v6166 = vunpack.c.0.s8 %v6165
  %v6167 = vlaneseq
  %v6168 = vshrl.u32 %v6167, 7
  %v6169 = vsub.s32 %v6166, %v6168
  %v6170 = vrot.slane %v6156, %v6169
  %v6171 = vcombine.high %v6163, %v6163
  %v6172 = vcombine.high %v6170, %v6170
  %v6173 = vcombine.high %v6153, %v6153
  %v6175 = vunpack.c.l.s4 1983009808
  %v6176 = vunpack.c.0.s8 %v6175
  %v6177 = vlaneseq
  %v6178 = vshrl.u32 %v6177, 7
  %v6179 = vsub.s32 %v6176, %v6178
  %v6180 = vrot.slane %v6153, %v6179
  %v6182 = vunpack.c.l.s4 1983009808
  %v6183 = vunpack.c.0.s8 %v6182
  %v6184 = vlaneseq
  %v6185 = vshrl.u32 %v6184, 7
  %v6186 = vsub.s32 %v6183, %v6185
  %v6187 = vrot.slane %v6173, %v6186
  %v6188 = vcombine.high %v6180, %v6180
  %v6189 = vcombine.high %v6187, %v6187
  %v6198 = vsel %vm1817, %v6163, 0.0
  %v6199 = vrot.slane %v6198, 4
  %v6200 = vadd.f32 %v6198, %v6199
  %v6201 = vrot.slane %v6200, 2
  %v6202 = vadd.f32 %v6200, %v6201
  %v6203 = vrot.slane %v6202, 1
  %v6204 = vadd.f32 %v6202, %v6203
  %v6205 = vsel %vm1817, %v6171, 0.0
  %v6206 = vrot.slane %v6205, 4
  %v6207 = vadd.f32 %v6205, %v6206
  %v6208 = vrot.slane %v6207, 2
  %v6209 = vadd.f32 %v6207, %v6208
  %v6210 = vrot.slane %v6209, 1
  %v6211 = vadd.f32 %v6209, %v6210
  %v6212 = vsel %vm1817, %v6170, 0.0
  %v6213 = vrot.slane %v6212, 4
  %v6214 = vadd.f32 %v6212, %v6213
  %v6215 = vrot.slane %v6214, 2
  %v6216 = vadd.f32 %v6214, %v6215
  %v6217 = vrot.slane %v6216, 1
  %v6218 = vadd.f32 %v6216, %v6217
  %v6219 = vsel %vm1817, %v6172, 0.0
  %v6220 = vrot.slane %v6219, 4
  %v6221 = vadd.f32 %v6219, %v6220
  %v6222 = vrot.slane %v6221, 2
  %v6223 = vadd.f32 %v6221, %v6222
  %v6224 = vrot.slane %v6223, 1
  %v6225 = vadd.f32 %v6223, %v6224
  %v6226 = vsel %vm1817, %v6180, 0.0
  %v6227 = vrot.slane %v6226, 4
  %v6228 = vadd.f32 %v6226, %v6227
  %v6229 = vrot.slane %v6228, 2
  %v6230 = vadd.f32 %v6228, %v6229
  %v6231 = vrot.slane %v6230, 1
  %v6232 = vadd.f32 %v6230, %v6231
  %v6233 = vsel %vm1817, %v6188, 0.0
  %v6234 = vrot.slane %v6233, 4
  %v6235 = vadd.f32 %v6233, %v6234
  %v6236 = vrot.slane %v6235, 2
  %v6237 = vadd.f32 %v6235, %v6236
  %v6238 = vrot.slane %v6237, 1
  %v6239 = vadd.f32 %v6237, %v6238
  %v6240 = vsel %vm1817, %v6187, 0.0
  %v6241 = vrot.slane %v6240, 4
  %v6242 = vadd.f32 %v6240, %v6241
  %v6243 = vrot.slane %v6242, 2
  %v6244 = vadd.f32 %v6242, %v6243
  %v6245 = vrot.slane %v6244, 1
  %v6246 = vadd.f32 %v6244, %v6245
  %v6247 = vsel %vm1817, %v6189, 0.0
  %v6248 = vrot.slane %v6247, 4
  %v6249 = vadd.f32 %v6247, %v6248
  %v6250 = vrot.slane %v6249, 2
  %v6251 = vadd.f32 %v6249, %v6250
  %v6252 = vrot.slane %v6251, 1
  %v6253 = vadd.f32 %v6251, %v6252
  %v6254 = vrcp.pop 2.0
  %v6255 = vmul.f32 %v6204, %v6254
  %v6256 = vmul.f32 %v6211, %v6254
  %v6257 = vmul.f32 %v6218, %v6254
  %v6258 = vmul.f32 %v6225, %v6254
  %v6259 = vmul.f32 %v6232, %v6254
  %v6260 = vmul.f32 %v6239, %v6254
  %v6261 = vmul.f32 %v6246, %v6254
  %v6262 = vmul.f32 %v6253, %v6254
  %v6263 = vmul.f32 %v6163, %v6163
  %v6264 = vmul.f32 %v6171, %v6171
  %v6265 = vmul.f32 %v6170, %v6170
  %v6266 = vmul.f32 %v6172, %v6172
  %v6267 = vmul.f32 %v6180, %v6180
  %v6268 = vmul.f32 %v6188, %v6188
  %v6269 = vmul.f32 %v6187, %v6187
  %v6270 = vmul.f32 %v6189, %v6189
  %v6271 = vsel %vm1817, %v6263, 0.0
  %v6272 = vrot.slane %v6271, 4
  %v6273 = vadd.f32 %v6271, %v6272
  %v6274 = vrot.slane %v6273, 2
  %v6275 = vadd.f32 %v6273, %v6274
  %v6276 = vrot.slane %v6275, 1
  %v6277 = vadd.f32 %v6275, %v6276
  %v6278 = vsel %vm1817, %v6264, 0.0
  %v6279 = vrot.slane %v6278, 4
  %v6280 = vadd.f32 %v6278, %v6279
  %v6281 = vrot.slane %v6280, 2
  %v6282 = vadd.f32 %v6280, %v6281
  %v6283 = vrot.slane %v6282, 1
  %v6284 = vadd.f32 %v6282, %v6283
  %v6285 = vsel %vm1817, %v6265, 0.0
  %v6286 = vrot.slane %v6285, 4
  %v6287 = vadd.f32 %v6285, %v6286
  %v6288 = vrot.slane %v6287, 2
  %v6289 = vadd.f32 %v6287, %v6288
  %v6290 = vrot.slane %v6289, 1
  %v6291 = vadd.f32 %v6289, %v6290
  %v6292 = vsel %vm1817, %v6266, 0.0
  %v6293 = vrot.slane %v6292, 4
  %v6294 = vadd.f32 %v6292, %v6293
  %v6295 = vrot.slane %v6294, 2
  %v6296 = vadd.f32 %v6294, %v6295
  %v6297 = vrot.slane %v6296, 1
  %v6298 = vadd.f32 %v6296, %v6297
  %v6299 = vsel %vm1817, %v6267, 0.0
  %v6300 = vrot.slane %v6299, 4
  %v6301 = vadd.f32 %v6299, %v6300
  %v6302 = vrot.slane %v6301, 2
  %v6303 = vadd.f32 %v6301, %v6302
  %v6304 = vrot.slane %v6303, 1
  %v6305 = vadd.f32 %v6303, %v6304
  %v6306 = vsel %vm1817, %v6268, 0.0
  %v6307 = vrot.slane %v6306, 4
  %v6308 = vadd.f32 %v6306, %v6307
  %v6309 = vrot.slane %v6308, 2
  %v6310 = vadd.f32 %v6308, %v6309
  %v6311 = vrot.slane %v6310, 1
  %v6312 = vadd.f32 %v6310, %v6311
  %v6313 = vsel %vm1817, %v6269, 0.0
  %v6314 = vrot.slane %v6313, 4
  %v6315 = vadd.f32 %v6313, %v6314
  %v6316 = vrot.slane %v6315, 2
  %v6317 = vadd.f32 %v6315, %v6316
  %v6318 = vrot.slane %v6317, 1
  %v6319 = vadd.f32 %v6317, %v6318
  %v6320 = vsel %vm1817, %v6270, 0.0
  %v6321 = vrot.slane %v6320, 4
  %v6322 = vadd.f32 %v6320, %v6321
  %v6323 = vrot.slane %v6322, 2
  %v6324 = vadd.f32 %v6322, %v6323
  %v6325 = vrot.slane %v6324, 1
  %v6326 = vadd.f32 %v6324, %v6325
  %v6327 = vmul.f32 %v6277, %v6254
  %v6328 = vmul.f32 %v6284, %v6254
  %v6329 = vmul.f32 %v6291, %v6254
  %v6330 = vmul.f32 %v6298, %v6254
  %v6331 = vmul.f32 %v6305, %v6254
  %v6332 = vmul.f32 %v6312, %v6254
  %v6333 = vmul.f32 %v6319, %v6254
  %v6334 = vmul.f32 %v6326, %v6254
  %v6335 = vmul.f32 %v6255, %v6255
  %v6336 = vmul.f32 %v6256, %v6256
  %v6337 = vmul.f32 %v6257, %v6257
  %v6338 = vmul.f32 %v6258, %v6258
  %v6339 = vmul.f32 %v6259, %v6259
  %v6340 = vmul.f32 %v6260, %v6260
  %v6341 = vmul.f32 %v6261, %v6261
  %v6342 = vmul.f32 %v6262, %v6262
  %v6343 = vsub.f32 %v6327, %v6335
  %v6344 = vsub.f32 %v6328, %v6336
  %v6345 = vsub.f32 %v6329, %v6337
  %v6346 = vsub.f32 %v6330, %v6338
  %v6347 = vsub.f32 %v6331, %v6339
  %v6348 = vsub.f32 %v6332, %v6340
  %v6349 = vsub.f32 %v6333, %v6341
  %v6350 = vsub.f32 %v6334, %v6342
  %v6351 = vmax.f32 %v6343, 0.0
  %v6352 = vmax.f32 %v6344, 0.0
  %v6353 = vmax.f32 %v6345, 0.0
  %v6354 = vmax.f32 %v6346, 0.0
  %v6355 = vmax.f32 %v6347, 0.0
  %v6356 = vmax.f32 %v6348, 0.0
  %v6357 = vmax.f32 %v6349, 0.0
  %v6358 = vmax.f32 %v6350, 0.0
  %v6359 = vsub.f32 %v6163, %v6255
  %v6360 = vsub.f32 %v6171, %v6256
  %v6361 = vsub.f32 %v6170, %v6257
  %v6362 = vsub.f32 %v6172, %v6258
  %v6363 = vsub.f32 %v6180, %v6259
  %v6364 = vsub.f32 %v6188, %v6260
  %v6365 = vsub.f32 %v6187, %v6261
  %v6366 = vsub.f32 %v6189, %v6262
  %v6367 = vadd.f32 %v6351, 1e-05
  %v6368 = vadd.f32 %v6352, 1e-05
  %v6369 = vadd.f32 %v6353, 1e-05
  %v6370 = vadd.f32 %v6354, 1e-05
  %v6371 = vadd.f32 %v6355, 1e-05
  %v6372 = vadd.f32 %v6356, 1e-05
  %v6373 = vadd.f32 %v6357, 1e-05
  %v6374 = vadd.f32 %v6358, 1e-05
  %v6375 = vrsqrt.pop %v6367
  %v6376 = vrsqrt.pop %v6368
  %v6377 = vrsqrt.pop %v6369
  %v6378 = vrsqrt.pop %v6370
  %v6379 = vrsqrt.pop %v6371
  %v6380 = vrsqrt.pop %v6372
  %v6381 = vrsqrt.pop %v6373
  %v6382 = vrsqrt.pop %v6374
  %v6383 = vmul.f32 %v6359, %v6375
  %v6384 = vmul.f32 %v6360, %v6376
  %v6385 = vmul.f32 %v6361, %v6377
  %v6386 = vmul.f32 %v6362, %v6378
  %v6387 = vmul.f32 %v6363, %v6379
  %v6388 = vmul.f32 %v6364, %v6380
  %v6389 = vmul.f32 %v6365, %v6381
  %v6390 = vmul.f32 %v6366, %v6382
  %vm6391 = vcmp.gt.f32.partialorder %v6383, 0.0
  %vm6392 = vcmp.gt.f32.partialorder %v6384, 0.0
  %vm6393 = vcmp.gt.f32.partialorder %v6385, 0.0
  %vm6394 = vcmp.gt.f32.partialorder %v6386, 0.0
  %vm6395 = vcmp.gt.f32.partialorder %v6387, 0.0
  %vm6396 = vcmp.gt.f32.partialorder %v6388, 0.0
  %vm6397 = vcmp.gt.f32.partialorder %v6389, 0.0
  %vm6398 = vcmp.gt.f32.partialorder %v6390, 0.0
  %v6399 = vmul.f32 %v6383, 0.2
  %v6400 = vmul.f32 %v6384, 0.2
  %v6401 = vmul.f32 %v6385, 0.2
  %v6402 = vmul.f32 %v6386, 0.2
  %v6403 = vmul.f32 %v6387, 0.2
  %v6404 = vmul.f32 %v6388, 0.2
  %v6405 = vmul.f32 %v6389, 0.2
  %v6406 = vmul.f32 %v6390, 0.2
  %v6407 = vsel %vm6391, %v6383, %v6399
  %v6408 = vsel %vm6392, %v6384, %v6400
  %v6409 = vsel %vm6393, %v6385, %v6401
  %v6410 = vsel %vm6394, %v6386, %v6402
  %v6411 = vsel %vm6395, %v6387, %v6403
  %v6412 = vsel %vm6396, %v6388, %v6404
  %v6413 = vsel %vm6397, %v6389, %v6405
  %v6414 = vsel %vm6398, %v6390, %v6406
  %v6415 = vsel %vm1817, %v6407, 0.0
  %v6416 = vrot.slane %v6415, 4
  %v6417 = vadd.f32 %v6415, %v6416
  %v6418 = vrot.slane %v6417, 2
  %v6419 = vadd.f32 %v6417, %v6418
  %v6420 = vrot.slane %v6419, 1
  %v6421 = vadd.f32 %v6419, %v6420
  %v6422 = vsel %vm1817, %v6408, 0.0
  %v6423 = vrot.slane %v6422, 4
  %v6424 = vadd.f32 %v6422, %v6423
  %v6425 = vrot.slane %v6424, 2
  %v6426 = vadd.f32 %v6424, %v6425
  %v6427 = vrot.slane %v6426, 1
  %v6428 = vadd.f32 %v6426, %v6427
  %v6429 = vsel %vm1817, %v6409, 0.0
  %v6430 = vrot.slane %v6429, 4
  %v6431 = vadd.f32 %v6429, %v6430
  %v6432 = vrot.slane %v6431, 2
  %v6433 = vadd.f32 %v6431, %v6432
  %v6434 = vrot.slane %v6433, 1
  %v6435 = vadd.f32 %v6433, %v6434
  %v6436 = vsel %vm1817, %v6410, 0.0
  %v6437 = vrot.slane %v6436, 4
  %v6438 = vadd.f32 %v6436, %v6437
  %v6439 = vrot.slane %v6438, 2
  %v6440 = vadd.f32 %v6438, %v6439
  %v6441 = vrot.slane %v6440, 1
  %v6442 = vadd.f32 %v6440, %v6441
  %v6443 = vsel %vm1817, %v6411, 0.0
  %v6444 = vrot.slane %v6443, 4
  %v6445 = vadd.f32 %v6443, %v6444
  %v6446 = vrot.slane %v6445, 2
  %v6447 = vadd.f32 %v6445, %v6446
  %v6448 = vrot.slane %v6447, 1
  %v6449 = vadd.f32 %v6447, %v6448
  %v6450 = vsel %vm1817, %v6412, 0.0
  %v6451 = vrot.slane %v6450, 4
  %v6452 = vadd.f32 %v6450, %v6451
  %v6453 = vrot.slane %v6452, 2
  %v6454 = vadd.f32 %v6452, %v6453
  %v6455 = vrot.slane %v6454, 1
  %v6456 = vadd.f32 %v6454, %v6455
  %v6457 = vsel %vm1817, %v6413, 0.0
  %v6458 = vrot.slane %v6457, 4
  %v6459 = vadd.f32 %v6457, %v6458
  %v6460 = vrot.slane %v6459, 2
  %v6461 = vadd.f32 %v6459, %v6460
  %v6462 = vrot.slane %v6461, 1
  %v6463 = vadd.f32 %v6461, %v6462
  %v6464 = vsel %vm1817, %v6414, 0.0
  %v6465 = vrot.slane %v6464, 4
  %v6466 = vadd.f32 %v6464, %v6465
  %v6467 = vrot.slane %v6466, 2
  %v6468 = vadd.f32 %v6466, %v6467
  %v6469 = vrot.slane %v6468, 1
  %v6470 = vadd.f32 %v6468, %v6469
  %v6471 = vmul.f32 %v6421, %v6254
  %v6472 = vmul.f32 %v6428, %v6254
  %v6473 = vmul.f32 %v6435, %v6254
  %v6474 = vmul.f32 %v6442, %v6254
  %v6475 = vmul.f32 %v6449, %v6254
  %v6476 = vmul.f32 %v6456, %v6254
  %v6477 = vmul.f32 %v6463, %v6254
  %v6478 = vmul.f32 %v6470, %v6254
  %v6479 = vpack.c.bf16 %v6471, %v6471
  %v6480 = vpack.c.bf16 %v6472, %v6472
  %v6481 = vpack.c.bf16 %v6473, %v6473
  %v6482 = vpack.c.bf16 %v6474, %v6474
  %v6483 = vpack.c.bf16 %v6475, %v6475
  %v6484 = vpack.c.bf16 %v6476, %v6476
  %v6485 = vpack.c.bf16 %v6477, %v6477
  %v6486 = vpack.c.bf16 %v6478, %v6478
  %v6487 = vld [vmem:[%s7] sm:$0xf]
  %v6488 = vld [vmem:[%s7 + $0x4] sm:$0xf]
  %v6489 = vld [vmem:[%s7 + $0x8] sm:$0xf]
  %v6490 = vld [vmem:[%s7 + $0xc] sm:$0xf]
  %v6491 = vld [vmem:[%s7 + $0x10] sm:$0xf]
  %v6492 = vld [vmem:[%s7 + $0x14] sm:$0xf]
  %v6493 = vld [vmem:[%s7 + $0x18] sm:$0xf]
  %v6494 = vld [vmem:[%s7 + $0x1c] sm:$0xf]
  %v6495 = vld [vmem:[%s7 + $0x20] sm:$0xf]
  %v6496 = vld [vmem:[%s7 + $0x24] sm:$0xf]
  %v6497 = vld [vmem:[%s7 + $0x28] sm:$0xf]
  %v6498 = vld [vmem:[%s7 + $0x2c] sm:$0xf]
  %v6499 = vld [vmem:[%s7 + $0x30] sm:$0xf]
  %v6500 = vld [vmem:[%s7 + $0x34] sm:$0xf]
  %v6501 = vld [vmem:[%s7 + $0x38] sm:$0xf]
  %v6502 = vld [vmem:[%s7 + $0x3c] sm:$0xf]
  %v6503 = vld [vmem:[%s8] sm:$0x1]
  %v6505 = vlaneseq
  %v6506 = vshrl.u32 %v6505, 7
  %v6507 = vsub.s32 0, %v6506
  %v6508 = vrot.slane %v6503, %v6507
  %v6518 = vunpack.c.l.b16 %v6479
  %v6519 = vunpack.c.l.b16 %v6480
  %v6520 = vunpack.c.l.b16 %v6481
  %v6521 = vunpack.c.l.b16 %v6482
  %v6522 = vunpack.c.l.b16 %v6483
  %v6523 = vunpack.c.l.b16 %v6484
  %v6524 = vunpack.c.l.b16 %v6485
  %v6525 = vunpack.c.l.b16 %v6486
  %v6526 = vsel %vm1678, %v6519, %v6518
  %v6527 = vsel %vm1681, %v6520, %v6526
  %v6528 = vsel %vm1684, %v6521, %v6527
  %v6529 = vsel %vm1687, %v6522, %v6528
  %v6530 = vsel %vm1690, %v6523, %v6529
  %v6531 = vsel %vm1693, %v6524, %v6530
  %v6532 = vsel %vm1696, %v6525, %v6531
  %v6533 = vpack.c.b16 %v6532, %v6532
  %v6551 = vunpack.c.l.b16 %v6487
  %v6552 = vunpack.c.l.b16 %v6488
  %v6553 = vunpack.c.l.b16 %v6489
  %v6554 = vunpack.c.l.b16 %v6490
  %v6555 = vunpack.c.l.b16 %v6491
  %v6556 = vunpack.c.l.b16 %v6492
  %v6557 = vunpack.c.l.b16 %v6493
  %v6558 = vunpack.c.l.b16 %v6494
  %v6559 = vunpack.c.l.b16 %v6495
  %v6560 = vunpack.c.l.b16 %v6496
  %v6561 = vunpack.c.l.b16 %v6497
  %v6562 = vunpack.c.l.b16 %v6498
  %v6563 = vunpack.c.l.b16 %v6499
  %v6564 = vunpack.c.l.b16 %v6500
  %v6565 = vunpack.c.l.b16 %v6501
  %v6566 = vunpack.c.l.b16 %v6502
  %v6567 = vpack.c.b16 %v6552, %v6551
  %v6568 = vpack.c.b16 %v6554, %v6553
  %v6569 = vpack.c.b16 %v6556, %v6555
  %v6570 = vpack.c.b16 %v6558, %v6557
  %v6571 = vpack.c.b16 %v6560, %v6559
  %v6572 = vpack.c.b16 %v6562, %v6561
  %v6573 = vpack.c.b16 %v6564, %v6563
  %v6574 = vpack.c.b16 %v6566, %v6565
  %6583 = vmatprep.subr.bf16.mxu0 0
  %6584 = vmatpush1.bf16.msra.mxu0 %v6567
  %6585 = vmatprep.subr.bf16.mxu0 0
  %6586 = vmatpush1.bf16.msra.mxu0 %v6568
  %6587 = vmatprep.subr.bf16.mxu0 0
  %6588 = vmatpush1.bf16.msra.mxu0 %v6569
  %6589 = vmatprep.subr.bf16.mxu0 0
  %6590 = vmatpush1.bf16.msra.mxu0 %v6570
  %6591 = vmatprep.subr.bf16.mxu0 0
  %6592 = vmatpush1.bf16.msra.mxu0 %v6571
  %6593 = vmatprep.subr.bf16.mxu0 0
  %6594 = vmatpush1.bf16.msra.mxu0 %v6572
  %6595 = vmatprep.subr.bf16.mxu0 0
  %6596 = vmatpush1.bf16.msra.mxu0 %v6573
  %6597 = vmatprep.subr.bf16.mxu0 0
  %6598 = vmatpush1.bf16.msra.mxu0 %v6574
  %6599 = vmatprep.subr.bf16.mxu0 0
  %6600 = vmatpush1.bf16.msra.mxu0 0
  %6601 = vmatprep.subr.bf16.mxu0 0
  %6602 = vmatpush1.bf16.msra.mxu0 0
  %6603 = vmatprep.subr.bf16.mxu0 0
  %6604 = vmatpush1.bf16.msra.mxu0 0
  %6605 = vmatprep.subr.bf16.mxu0 0
  %6606 = vmatpush1.bf16.msra.mxu0 0
  %6607 = vmatprep.subr.bf16.mxu0 0
  %6608 = vmatpush1.bf16.msra.mxu0 0
  %6609 = vmatprep.subr.bf16.mxu0 0
  %6610 = vmatpush1.bf16.msra.mxu0 0
  %6611 = vmatprep.subr.bf16.mxu0 0
  %6612 = vmatpush1.bf16.msra.mxu0 0
  %6613 = vmatprep.subr.bf16.mxu0 0
  %6614 = vmatpush1.bf16.msra.mxu0 0
  %6615 = vmatprep.mubr.bf16.mxu0 0
  %6616 = vmatmul.mubr.bf16.gmra.mrb[0].mxu0 %v6533
  %v6617 = vpop.f32.mrb[0].mxu0
  %v6618 = vadd.f32 %v6508, %v6617
  %v6619 = vpop.f32.mrb[0].mxu0
  %v6620 = vpop.f32.mrb[0].mxu0
  %v6621 = vpop.f32.mrb[0].mxu0
  %6622 = vdwg.mxu0
  %v6623 = vmax.f32 %v6618, 0.0
  %v6624 = vpack.c.bf16 %v6623, %v6623
  %v6625 = vld [vmem:[%s9] sm:$0xf]
  %v6626 = vld [vmem:[%s9 + $0x4] sm:$0xf]
  %v6627 = vld [vmem:[%s9 + $0x8] sm:$0xf]
  %v6628 = vld [vmem:[%s9 + $0xc] sm:$0xf]
  %v6629 = vld [vmem:[#allocation2] sm:$0x1]
  %v6631 = vlaneseq
  %v6632 = vshrl.u32 %v6631, 7
  %v6633 = vsub.s32 0, %v6632
  %v6634 = vrot.slane %v6629, %v6633
  %v6640 = vunpack.c.l.b16 %v6625
  %v6641 = vunpack.c.l.b16 %v6626
  %v6642 = vunpack.c.l.b16 %v6627
  %v6643 = vunpack.c.l.b16 %v6628
  %v6644 = vpack.c.b16 %v6641, %v6640
  %v6645 = vpack.c.b16 %v6643, %v6642
  %v6649 = vsel %vm3875, %v6624, 0
  %6651 = vmatprep.subr.bf16.mxu0 0
  %6652 = vmatpush1.bf16.msra.mxu0 %v6644
  %6653 = vmatprep.subr.bf16.mxu0 0
  %6654 = vmatpush1.bf16.msra.mxu0 %v6645
  %6655 = vmatprep.subr.bf16.mxu0 0
  %6656 = vmatpush1.bf16.msra.mxu0 0
  %6657 = vmatprep.subr.bf16.mxu0 0
  %6658 = vmatpush1.bf16.msra.mxu0 0
  %6659 = vmatprep.subr.bf16.mxu0 0
  %6660 = vmatpush1.bf16.msra.mxu0 0
  %6661 = vmatprep.subr.bf16.mxu0 0
  %6662 = vmatpush1.bf16.msra.mxu0 0
  %6663 = vmatprep.subr.bf16.mxu0 0
  %6664 = vmatpush1.bf16.msra.mxu0 0
  %6665 = vmatprep.subr.bf16.mxu0 0
  %6666 = vmatpush1.bf16.msra.mxu0 0
  %6667 = vmatprep.subr.bf16.mxu0 0
  %6668 = vmatpush1.bf16.msra.mxu0 0
  %6669 = vmatprep.subr.bf16.mxu0 0
  %6670 = vmatpush1.bf16.msra.mxu0 0
  %6671 = vmatprep.subr.bf16.mxu0 0
  %6672 = vmatpush1.bf16.msra.mxu0 0
  %6673 = vmatprep.subr.bf16.mxu0 0
  %6674 = vmatpush1.bf16.msra.mxu0 0
  %6675 = vmatprep.subr.bf16.mxu0 0
  %6676 = vmatpush1.bf16.msra.mxu0 0
  %6677 = vmatprep.subr.bf16.mxu0 0
  %6678 = vmatpush1.bf16.msra.mxu0 0
  %6679 = vmatprep.subr.bf16.mxu0 0
  %6680 = vmatpush1.bf16.msra.mxu0 0
  %6681 = vmatprep.subr.bf16.mxu0 0
  %6682 = vmatpush1.bf16.msra.mxu0 0
  %6683 = vmatprep.mubr.bf16.mxu0 0
  %6684 = vmatmul.mubr.bf16.gmra.mrb[0].mxu0 %v6649
  %v6685 = vpop.f32.mrb[0].mxu0
  %v6686 = vadd.f32 %v6634, %v6685
  %v6687 = vpop.f32.mrb[0].mxu0
  %v6688 = vpop.f32.mrb[0].mxu0
  %v6689 = vpop.f32.mrb[0].mxu0
  %6690 = vdwg.mxu0
  %v6691 = vsub.f32 0.0, %v6686
  %v6692 = vmul.f32 %v6691, 1.442695
  %v6693 = vpow.pop %v6692
  %v6694 = vadd.f32 %v6693, 1.0
  %v6695 = vrcp.pop %v6694
  %vm6696 = vcmask 7168
  %6697 = vst.msk [vmem:[%s11] sm:$0xff] %vm6696, %v6695
  // Predicated region
  $region46: #{tpu_custom_call.1} parent=0 // pred_check
    _
  $region47: #{tpu_custom_call.1} parent=0 // pred_check_branch
    %6699 = sbr.rel (0) target = $region49
  $region48: #{tpu_custom_call.1} parent=0 // pred_region
    _
  $region49: #{tpu_custom_call.1} parent=0 // pred_fallthru
    _
  // Predicated region
  $region50: #{tpu_custom_call.1} parent=0 // pred_check
    _
  $region51: #{tpu_custom_call.1} parent=0 // pred_check_branch
    %6701 = sbr.rel (0) target = $region53
  $region52: #{tpu_custom_call.1} parent=0 // pred_region
    _
  $region53: #{tpu_custom_call.1} parent=0 // pred_fallthru
    _

</llo_original>
